<compile_context>
chip_gen: v5e
topology: v5e:2x2
jax: 0.10.0
libtpu: 0.0.40
codegen_flags: <defaults>
</compile_context>

<pallas_src>
import functools
import numpy as np
import jax
import jax.numpy as jnp
from jax import lax
from jax.experimental import pallas as pl
from jax.experimental.pallas import tpu as pltpu


OUT_PAD = 128  # lane-dense padded class dimension


def rntn_kernel(num_levels, b_pad, hidden,
                nidx_ref, lidx_ref, ridx_ref,             # SMEM scalar prefetch (1-D)
                init_ref, vflat2_ref, w_ref, b_ref, wout_ref, bout_ref,
                logp_ref, states_ref,                     # outputs (per-tree blocks)
                c_scr, o_scr):                            # VMEM scratch
    """One grid step == one tree.

    init_ref   : (1, N_pad, H) f32  leaf-prefilled node states (zeros elsewhere)
    vflat2_ref : (4H^2, H)     bf16 flattened tensor V (outer-product layout)
    w_ref      : (2H, H) f32, b_ref (1, H) f32
    wout_ref   : (H, 128) f32 (W_out.weight^T zero-padded), bout_ref (1, 128)
    logp_ref   : (1, N_pad, 128) f32   log_softmax over the padded classes
    states_ref : (1, N_pad, H)   f32   all node embeddings (post-order rows)
    c_scr      : (B_pad, 2H) f32       gathered children of one level
    o_scr      : (B_pad, H)  f32       composed outputs of one level
    """
    two_h = 2 * hidden
    t = pl.program_id(0)

    # ---- Phase 1: leaves (gathered in plain JAX) seed the state buffer ----
    states_ref[...] = init_ref[...]

    # Loop-invariant parameter loads, hoisted out of the unrolled level loop.
    vflat2 = vflat2_ref[...]          # (4H^2, H) bf16
    w = w_ref[...]                    # (2H, H)   f32
    bias = b_ref[...]                 # (1, H)    f32

    sched_base = t * (num_levels * b_pad)

    # ---- Phase 2: level-wise wavefronts of internal nodes -----------------
    for lvl in range(num_levels):                  # static unroll (tree depth)
        base = sched_base + lvl * b_pad

        def gather(j, carry, base=base):
            li = lidx_ref[base + j]
            ri = ridx_ref[base + j]
            c_scr[pl.ds(j, 1), 0:hidden] = states_ref[0, pl.ds(li, 1), :]
            c_scr[pl.ds(j, 1), hidden:two_h] = states_ref[0, pl.ds(ri, 1), :]
            return carry
        lax.fori_loop(0, b_pad, gather, 0, unroll=True)

        c = c_scr[...]                                            # (B, 2H) f32
        # Outer-product form of the bilinear term:
        #   cc[n, a*2H + b] = c[n, a] * c[n, b]
        cc = (c[:, :, None] * c[:, None, :]).reshape(b_pad, two_h * two_h)
        xvx = jnp.dot(cc.astype(jnp.bfloat16), vflat2,
                      preferred_element_type=jnp.float32)         # (B, H)
        wx = jnp.dot(c, w, preferred_element_type=jnp.float32)    # (B, H)
        o_scr[...] = jnp.tanh(xvx + wx + bias)                    # (B, H) f32

        def scatter(j, carry, base=base):
            ni = nidx_ref[base + j]                 # padded slots -> dummy row
            states_ref[0, pl.ds(ni, 1), :] = o_scr[pl.ds(j, 1), :]
            return carry
        lax.fori_loop(0, b_pad, scatter, 0, unroll=True)

    # ---- Phase 3: output head, lane-dense padded to 128 classes -----------
    s = states_ref[0]                                             # (N_pad, H)
    logits = jnp.dot(s, wout_ref[...],
                     preferred_element_type=jnp.float32) + bout_ref[...]
    m = jnp.max(logits, axis=1, keepdims=True)
    z = logits - m
    lse = jnp.log(jnp.sum(jnp.exp(z), axis=1, keepdims=True))
    logp_ref[0] = z - lse


def _tree_levels(meta):
    """Group internal nodes into wavefronts: level = 1 + max(child levels)."""
    n = meta.shape[0]
    level = np.zeros(n, dtype=np.int64)
    buckets = {}
    for i in range(n):
        if meta[i, 0] == 1:
            level[i] = 0
        else:
            li, ri = int(meta[i, 2]), int(meta[i, 3])
            level[i] = 1 + max(level[li], level[ri])
            buckets.setdefault(int(level[i]), []).append(i)
    depth = int(level.max()) if n else 0
    return depth, buckets


def rntn_forward(meta_list, embed, V, W, b, Wout_w, Wout_b):
    """Level-batched RNTN forward over a list of trees (post-order metadata)."""
    num_trees = len(meta_list)
    vocab, hidden = embed.shape
    two_h = 2 * hidden
    out_size = Wout_w.shape[0]

    # ---- static padding sizes ---------------------------------------------
    n_max = max(m.shape[0] for m in meta_list)
    n_pad = int(np.ceil((n_max + 1) / 8.0)) * 8         # +1 dummy scratch row
    dummy = n_pad - 1                                   # never a real node

    infos = [_tree_levels(m) for m in meta_list]
    num_levels = max(max((d for d, _ in infos), default=1), 1)
    b_max = max((len(v) for _, bk in infos for v in bk.values()), default=1)
    b_pad = max(int(np.ceil(b_max / 8.0)) * 8, 8)

    # ---- per-tree schedule, flattened 1-D int32 for SMEM -------------------
    nidx = np.full((num_trees, num_levels, b_pad), dummy, dtype=np.int32)
    lidx = np.zeros((num_trees, num_levels, b_pad), dtype=np.int32)
    ridx = np.zeros((num_trees, num_levels, b_pad), dtype=np.int32)
    for t, meta in enumerate(meta_list):
        _, buckets = infos[t]
        for lvl, nodes in buckets.items():
            for j, ni in enumerate(nodes):
                nidx[t, lvl - 1, j] = ni
                lidx[t, lvl - 1, j] = meta[ni, 2]
                ridx[t, lvl - 1, j] = meta[ni, 3]
    nidx_f = jnp.asarray(nidx.reshape(-1))
    lidx_f = jnp.asarray(lidx.reshape(-1))
    ridx_f = jnp.asarray(ridx.reshape(-1))

    # ---- batched leaf gather in plain JAX (embed table stays out of VMEM) --
    init_list = []
    for meta in meta_list:
        n = meta.shape[0]
        gathered = jnp.take(embed, jnp.asarray(meta[:, 1]), axis=0)   # (n, H)
        leaf = jnp.where(jnp.asarray(meta[:, 0] == 1)[:, None], gathered, 0.0)
        init_list.append(
            jnp.zeros((n_pad, hidden), jnp.float32).at[:n].set(leaf))
    init_states = jnp.stack(init_list, axis=0)                  # (T, N_pad, H)

    # ---- flattened / padded parameters --------------------------------------
    # Vflat2[a*2H + b, k] = V[k, a, b]; bf16 operand, f32 accumulation on MXU.
    vflat2 = jnp.transpose(V, (1, 2, 0)).reshape(
        two_h * two_h, hidden).astype(jnp.bfloat16)
    wout_pad = jnp.zeros((hidden, OUT_PAD), jnp.float32).at[:, :out_size].set(Wout_w.T)
    bout_pad = jnp.full((1, OUT_PAD), -1e9, jnp.float32).at[:, :out_size].set(
        Wout_b.reshape(1, out_size))

    kernel = functools.partial(rntn_kernel, num_levels, b_pad, hidden)

    grid_spec = pltpu.PrefetchScalarGridSpec(
        num_scalar_prefetch=3,
        grid=(num_trees,),
        in_specs=[
            pl.BlockSpec((1, n_pad, hidden), lambda t, *_: (t, 0, 0)),     # init states
            pl.BlockSpec((two_h * two_h, hidden), lambda t, *_: (0, 0)),   # Vflat2
            pl.BlockSpec((two_h, hidden), lambda t, *_: (0, 0)),           # W
            pl.BlockSpec((1, hidden), lambda t, *_: (0, 0)),               # b
            pl.BlockSpec((hidden, OUT_PAD), lambda t, *_: (0, 0)),         # W_out^T (padded)
            pl.BlockSpec((1, OUT_PAD), lambda t, *_: (0, 0)),              # b_out (padded)
        ],
        out_specs=(
            pl.BlockSpec((1, n_pad, OUT_PAD), lambda t, *_: (t, 0, 0)),    # log-probs
            pl.BlockSpec((1, n_pad, hidden), lambda t, *_: (t, 0, 0)),     # node states
        ),
        scratch_shapes=[
            pltpu.VMEM((b_pad, two_h), jnp.float32),     # gathered children C
            pltpu.VMEM((b_pad, hidden), jnp.float32),    # composed level output
        ],
    )

    logp, states = pl.pallas_call(
        kernel,
        out_shape=(jax.ShapeDtypeStruct((num_trees, n_pad, OUT_PAD), jnp.float32),
                   jax.ShapeDtypeStruct((num_trees, n_pad, hidden), jnp.float32)),
        grid_spec=grid_spec,
        compiler_params=pltpu.CompilerParams(
            dimension_semantics=("parallel",)),
    )(nidx_f, lidx_f, ridx_f, init_states, vflat2, W, b, wout_pad, bout_pad)
    return logp, states


def build_tree_meta(structure, word2index):
    """Flatten a nested-tuple binary tree of words to post-order metadata.

    Rows: [is_leaf, word_idx, left_child_idx, right_child_idx].
    """
    # TODO(synk): Tree/Node string parsing (host-side recursion) has no Pallas
    #             equivalent; trees are flattened to post-order metadata here.
    meta = []

    def visit(node):
        if isinstance(node, str):
            meta.append([1, word2index.get(node, word2index['<UNK>']), 0, 0])
        else:
            l = visit(node[0])
            r = visit(node[1])
            meta.append([0, 0, l, r])
        return len(meta) - 1

    visit(structure)
    return np.asarray(meta, dtype=np.int32)


def rntn_reference(meta, embed, V, W, b, Wout_w, Wout_b):
    """Pure-numpy reference mirroring RNTN.tree_propagation + forward."""
    n = meta.shape[0]
    hidden = embed.shape[1]
    states = np.zeros((n, hidden), dtype=np.float64)
    for i in range(n):
        is_leaf, w, li, ri = (int(x) for x in meta[i])
        if is_leaf:
            states[i] = embed[w]
        else:
            c = np.concatenate([states[li], states[ri]])[None, :]      # (1,2H)
            xvx = np.array([(c @ V[k] @ c.T)[0, 0] for k in range(hidden)])[None, :]
            states[i] = np.tanh(xvx + c @ W + b)[0]
    logits = states @ Wout_w.T + Wout_b[None, :]
    m = logits.max(axis=1, keepdims=True)
    z = logits - m
    logprobs = z - np.log(np.exp(z).sum(axis=1, keepdims=True))
    return logprobs, states


if __name__ == "__main__":
    HIDDEN = 32
    OUT = 5

    word2index = {'<UNK>': 0, 'the': 1, 'cat': 2, 'sat': 3,
                  'on': 4, 'mat': 5, 'a': 6, 'dog': 7}
    tree_a = (('the', 'cat'), ('sat', ('on', 'mat')))   # 9 nodes
    tree_b = (('a', 'dog'), 'sat')                      # 5 nodes
    meta_list = [build_tree_meta(tree_a, word2index),
                 build_tree_meta(tree_b, word2index)]
    vocab = len(word2index)

    key = jax.random.PRNGKey(0)
    k1, k2, k3, k4, k5 = jax.random.split(key, 5)
    embed = jax.random.normal(k1, (vocab, HIDDEN), jnp.float32) * 0.5
    V = jax.random.normal(k2, (HIDDEN, 2 * HIDDEN, 2 * HIDDEN), jnp.float32) * 0.02
    W = jax.random.normal(k3, (2 * HIDDEN, HIDDEN), jnp.float32) * 0.1
    b = jnp.zeros((1, HIDDEN), jnp.float32)
    Wout_w = jax.random.normal(k4, (OUT, HIDDEN), jnp.float32) * 0.1
    Wout_b = jax.random.normal(k5, (OUT,), jnp.float32) * 0.1

    logp_pad, states_pad = rntn_forward(meta_list, embed, V, W, b, Wout_w, Wout_b)
    logp_pad = jax.block_until_ready(logp_pad)
    states_pad = jax.block_until_ready(states_pad)
    logp_np = np.asarray(logp_pad)
    states_np = np.asarray(states_pad)

    # Mirror forward(): torch.cat(propagated) over all nodes of all trees, and
    # rec_tensors = per-tree root embeddings (last node in post-order).
    all_logp, rec_tensors = [], []
    for t, meta in enumerate(meta_list):
        n = meta.shape[0]
        all_logp.append(logp_np[t, :n, :OUT])
        rec_tensors.append(states_np[t, n - 1, :])

        ref_lp, ref_states = rntn_reference(
            meta,
            np.asarray(embed, np.float64), np.asarray(V, np.float64),
            np.asarray(W, np.float64), np.asarray(b, np.float64),
            np.asarray(Wout_w, np.float64), np.asarray(Wout_b, np.float64))
        np.testing.assert_allclose(states_np[t, :n, :], ref_states,
                                   rtol=2e-2, atol=2e-2)
        np.testing.assert_allclose(logp_np[t, :n, :OUT], ref_lp,
                                   rtol=2e-2, atol=2e-2)

    logprobs = np.concatenate(all_logp, axis=0)
    assert np.all(np.isfinite(logprobs))
    assert all(r.shape == (HIDDEN,) for r in rec_tensors)

    print("KERNEL_OK")
</pallas_src>

<mosaic_0001>
module attributes {stable_mosaic.version = 11 : i64} {
  func.func @rntn_kernel(%arg0: i32, %arg1: memref<48xi32, #tpu.memory_space<smem>>, %arg2: memref<48xi32, #tpu.memory_space<smem>>, %arg3: memref<48xi32, #tpu.memory_space<smem>>, %arg4: memref<1x16x32xf32, #tpu.memory_space<vmem>>, %arg5: memref<4096x32xbf16, #tpu.memory_space<vmem>>, %arg6: memref<64x32xf32, #tpu.memory_space<vmem>>, %arg7: memref<1x32xf32, #tpu.memory_space<vmem>>, %arg8: memref<32x128xf32, #tpu.memory_space<vmem>>, %arg9: memref<1x128xf32, #tpu.memory_space<vmem>>, %arg10: memref<1x16x128xf32, #tpu.memory_space<vmem>>, %arg11: memref<1x16x32xf32, #tpu.memory_space<vmem>>, %arg12: memref<8x64xf32, #tpu.memory_space<vmem>>, %arg13: memref<8x32xf32, #tpu.memory_space<vmem>>) attributes {dimension_semantics = [#tpu.dimension_semantics<parallel>], iteration_bounds = array<i64: 2>, scalar_prefetch = 3 : i64, scratch_operands = 2 : i64, tpu.core_type = #tpu.core_type<tc>, window_params = [{transform_indices = @transform_0, window_bounds = array<i64: 1, 16, 32>}, {pipeline_mode = #tpu.pipeline_mode<synchronous>, transform_indices = @transform_1, window_bounds = array<i64: 4096, 32>}, {pipeline_mode = #tpu.pipeline_mode<synchronous>, transform_indices = @transform_2, window_bounds = array<i64: 64, 32>}, {pipeline_mode = #tpu.pipeline_mode<synchronous>, transform_indices = @transform_3, window_bounds = array<i64: 1, 32>}, {pipeline_mode = #tpu.pipeline_mode<synchronous>, transform_indices = @transform_4, window_bounds = array<i64: 32, 128>}, {pipeline_mode = #tpu.pipeline_mode<synchronous>, transform_indices = @transform_5, window_bounds = array<i64: 1, 128>}, {transform_indices = @transform_6, window_bounds = array<i64: 1, 16, 128>}, {transform_indices = @transform_7, window_bounds = array<i64: 1, 16, 32>}]} {
    %c0 = arith.constant 0 : index
    %c0_0 = arith.constant 0 : index
    %c0_1 = arith.constant 0 : index
    %0 = vector.load %arg4[%c0, %c0_0, %c0_1] : memref<1x16x32xf32, #tpu.memory_space<vmem>>, vector<1x16x32xf32>
    %c0_2 = arith.constant 0 : index
    %c0_3 = arith.constant 0 : index
    %c0_4 = arith.constant 0 : index
    %1 = vector.load %arg11[%c0_2, %c0_3, %c0_4] : memref<1x16x32xf32, #tpu.memory_space<vmem>>, vector<1x16x32xf32>
    tpu.vector_store %arg11[%c0_2, %c0_3, %c0_4], %0 {strides = array<i32>} : memref<1x16x32xf32, #tpu.memory_space<vmem>>, vector<1x16x32xf32>,
    %c0_5 = arith.constant 0 : index
    %c0_6 = arith.constant 0 : index
    %2 = vector.load %arg5[%c0_5, %c0_6] : memref<4096x32xbf16, #tpu.memory_space<vmem>>, vector<4096x32xbf16>
    %c0_7 = arith.constant 0 : index
    %c0_8 = arith.constant 0 : index
    %3 = vector.load %arg6[%c0_7, %c0_8] : memref<64x32xf32, #tpu.memory_space<vmem>>, vector<64x32xf32>
    %c0_9 = arith.constant 0 : index
    %c0_10 = arith.constant 0 : index
    %4 = vector.load %arg7[%c0_9, %c0_10] : memref<1x32xf32, #tpu.memory_space<vmem>>, vector<1x32xf32>
    %c24_i32 = arith.constant 24 : i32
    %5 = arith.muli %arg0, %c24_i32 : i32
    %c0_i32 = arith.constant 0 : i32
    %6 = arith.addi %5, %c0_i32 : i32
    %c0_i32_11 = arith.constant 0 : i32
    %7 = arith.addi %6, %c0_i32_11 : i32
    %8 = arith.index_cast %7 : i32 to index
    %9 = memref.load %arg2[%8] : memref<48xi32, #tpu.memory_space<smem>>
    %10 = arith.addi %6, %c0_i32_11 : i32
    %11 = arith.index_cast %10 : i32 to index
    %12 = memref.load %arg3[%11] : memref<48xi32, #tpu.memory_space<smem>>
    %c0_12 = arith.constant 0 : index
    %13 = arith.index_cast %9 : i32 to index
    %c0_13 = arith.constant 0 : index
    %14 = vector.load %arg11[%c0_12, %13, %c0_13] : memref<1x16x32xf32, #tpu.memory_space<vmem>>, vector<1x1x32xf32>
    %15 = vector.shape_cast %14 : vector<1x1x32xf32> to vector<1x32xf32>
    %16 = arith.index_cast %c0_i32_11 : i32 to index
    %c0_14 = arith.constant 0 : index
    %17 = vector.load %arg12[%16, %c0_14] : memref<8x64xf32, #tpu.memory_space<vmem>>, vector<1x32xf32>
    tpu.vector_store %arg12[%16, %c0_14], %15 {strides = array<i32>} : memref<8x64xf32, #tpu.memory_space<vmem>>, vector<1x32xf32>,
    %c0_15 = arith.constant 0 : index
    %18 = arith.index_cast %12 : i32 to index
    %c0_16 = arith.constant 0 : index
    %19 = vector.load %arg11[%c0_15, %18, %c0_16] : memref<1x16x32xf32, #tpu.memory_space<vmem>>, vector<1x1x32xf32>
    %20 = vector.shape_cast %19 : vector<1x1x32xf32> to vector<1x32xf32>
    %21 = arith.index_cast %c0_i32_11 : i32 to index
    %c32 = arith.constant 32 : index
    %22 = vector.load %arg12[%21, %c32] : memref<8x64xf32, #tpu.memory_space<vmem>>, vector<1x32xf32>
    tpu.vector_store %arg12[%21, %c32], %20 {strides = array<i32>} : memref<8x64xf32, #tpu.memory_space<vmem>>, vector<1x32xf32>,
    %c1_i32 = arith.constant 1 : i32
    %23 = arith.addi %6, %c1_i32 : i32
    %24 = arith.index_cast %23 : i32 to index
    %25 = memref.load %arg2[%24] : memref<48xi32, #tpu.memory_space<smem>>
    %26 = arith.addi %6, %c1_i32 : i32
    %27 = arith.index_cast %26 : i32 to index
    %28 = memref.load %arg3[%27] : memref<48xi32, #tpu.memory_space<smem>>
    %c0_17 = arith.constant 0 : index
    %29 = arith.index_cast %25 : i32 to index
    %c0_18 = arith.constant 0 : index
    %30 = vector.load %arg11[%c0_17, %29, %c0_18] : memref<1x16x32xf32, #tpu.memory_space<vmem>>, vector<1x1x32xf32>
    %31 = vector.shape_cast %30 : vector<1x1x32xf32> to vector<1x32xf32>
    %32 = arith.index_cast %c1_i32 : i32 to index
    %c0_19 = arith.constant 0 : index
    %33 = vector.load %arg12[%32, %c0_19] : memref<8x64xf32, #tpu.memory_space<vmem>>, vector<1x32xf32>
    tpu.vector_store %arg12[%32, %c0_19], %31 {strides = array<i32>} : memref<8x64xf32, #tpu.memory_space<vmem>>, vector<1x32xf32>,
    %c0_20 = arith.constant 0 : index
    %34 = arith.index_cast %28 : i32 to index
    %c0_21 = arith.constant 0 : index
    %35 = vector.load %arg11[%c0_20, %34, %c0_21] : memref<1x16x32xf32, #tpu.memory_space<vmem>>, vector<1x1x32xf32>
    %36 = vector.shape_cast %35 : vector<1x1x32xf32> to vector<1x32xf32>
    %37 = arith.index_cast %c1_i32 : i32 to index
    %c32_22 = arith.constant 32 : index
    %38 = vector.load %arg12[%37, %c32_22] : memref<8x64xf32, #tpu.memory_space<vmem>>, vector<1x32xf32>
    tpu.vector_store %arg12[%37, %c32_22], %36 {strides = array<i32>} : memref<8x64xf32, #tpu.memory_space<vmem>>, vector<1x32xf32>,
    %c2_i32 = arith.constant 2 : i32
    %39 = arith.addi %6, %c2_i32 : i32
    %40 = arith.index_cast %39 : i32 to index
    %41 = memref.load %arg2[%40] : memref<48xi32, #tpu.memory_space<smem>>
    %42 = arith.addi %6, %c2_i32 : i32
    %43 = arith.index_cast %42 : i32 to index
    %44 = memref.load %arg3[%43] : memref<48xi32, #tpu.memory_space<smem>>
    %c0_23 = arith.constant 0 : index
    %45 = arith.index_cast %41 : i32 to index
    %c0_24 = arith.constant 0 : index
    %46 = vector.load %arg11[%c0_23, %45, %c0_24] : memref<1x16x32xf32, #tpu.memory_space<vmem>>, vector<1x1x32xf32>
    %47 = vector.shape_cast %46 : vector<1x1x32xf32> to vector<1x32xf32>
    %48 = arith.index_cast %c2_i32 : i32 to index
    %c0_25 = arith.constant 0 : index
    %49 = vector.load %arg12[%48, %c0_25] : memref<8x64xf32, #tpu.memory_space<vmem>>, vector<1x32xf32>
    tpu.vector_store %arg12[%48, %c0_25], %47 {strides = array<i32>} : memref<8x64xf32, #tpu.memory_space<vmem>>, vector<1x32xf32>,
    %c0_26 = arith.constant 0 : index
    %50 = arith.index_cast %44 : i32 to index
    %c0_27 = arith.constant 0 : index
    %51 = vector.load %arg11[%c0_26, %50, %c0_27] : memref<1x16x32xf32, #tpu.memory_space<vmem>>, vector<1x1x32xf32>
    %52 = vector.shape_cast %51 : vector<1x1x32xf32> to vector<1x32xf32>
    %53 = arith.index_cast %c2_i32 : i32 to index
    %c32_28 = arith.constant 32 : index
    %54 = vector.load %arg12[%53, %c32_28] : memref<8x64xf32, #tpu.memory_space<vmem>>, vector<1x32xf32>
    tpu.vector_store %arg12[%53, %c32_28], %52 {strides = array<i32>} : memref<8x64xf32, #tpu.memory_space<vmem>>, vector<1x32xf32>,
    %c3_i32 = arith.constant 3 : i32
    %55 = arith.addi %6, %c3_i32 : i32
    %56 = arith.index_cast %55 : i32 to index
    %57 = memref.load %arg2[%56] : memref<48xi32, #tpu.memory_space<smem>>
    %58 = arith.addi %6, %c3_i32 : i32
    %59 = arith.index_cast %58 : i32 to index
    %60 = memref.load %arg3[%59] : memref<48xi32, #tpu.memory_space<smem>>
    %c0_29 = arith.constant 0 : index
    %61 = arith.index_cast %57 : i32 to index
    %c0_30 = arith.constant 0 : index
    %62 = vector.load %arg11[%c0_29, %61, %c0_30] : memref<1x16x32xf32, #tpu.memory_space<vmem>>, vector<1x1x32xf32>
    %63 = vector.shape_cast %62 : vector<1x1x32xf32> to vector<1x32xf32>
    %64 = arith.index_cast %c3_i32 : i32 to index
    %c0_31 = arith.constant 0 : index
    %65 = vector.load %arg12[%64, %c0_31] : memref<8x64xf32, #tpu.memory_space<vmem>>, vector<1x32xf32>
    tpu.vector_store %arg12[%64, %c0_31], %63 {strides = array<i32>} : memref<8x64xf32, #tpu.memory_space<vmem>>, vector<1x32xf32>,
    %c0_32 = arith.constant 0 : index
    %66 = arith.index_cast %60 : i32 to index
    %c0_33 = arith.constant 0 : index
    %67 = vector.load %arg11[%c0_32, %66, %c0_33] : memref<1x16x32xf32, #tpu.memory_space<vmem>>, vector<1x1x32xf32>
    %68 = vector.shape_cast %67 : vector<1x1x32xf32> to vector<1x32xf32>
    %69 = arith.index_cast %c3_i32 : i32 to index
    %c32_34 = arith.constant 32 : index
    %70 = vector.load %arg12[%69, %c32_34] : memref<8x64xf32, #tpu.memory_space<vmem>>, vector<1x32xf32>
    tpu.vector_store %arg12[%69, %c32_34], %68 {strides = array<i32>} : memref<8x64xf32, #tpu.memory_space<vmem>>, vector<1x32xf32>,
    %c4_i32 = arith.constant 4 : i32
    %71 = arith.addi %6, %c4_i32 : i32
    %72 = arith.index_cast %71 : i32 to index
    %73 = memref.load %arg2[%72] : memref<48xi32, #tpu.memory_space<smem>>
    %74 = arith.addi %6, %c4_i32 : i32
    %75 = arith.index_cast %74 : i32 to index
    %76 = memref.load %arg3[%75] : memref<48xi32, #tpu.memory_space<smem>>
    %c0_35 = arith.constant 0 : index
    %77 = arith.index_cast %73 : i32 to index
    %c0_36 = arith.constant 0 : index
    %78 = vector.load %arg11[%c0_35, %77, %c0_36] : memref<1x16x32xf32, #tpu.memory_space<vmem>>, vector<1x1x32xf32>
    %79 = vector.shape_cast %78 : vector<1x1x32xf32> to vector<1x32xf32>
    %80 = arith.index_cast %c4_i32 : i32 to index
    %c0_37 = arith.constant 0 : index
    %81 = vector.load %arg12[%80, %c0_37] : memref<8x64xf32, #tpu.memory_space<vmem>>, vector<1x32xf32>
    tpu.vector_store %arg12[%80, %c0_37], %79 {strides = array<i32>} : memref<8x64xf32, #tpu.memory_space<vmem>>, vector<1x32xf32>,
    %c0_38 = arith.constant 0 : index
    %82 = arith.index_cast %76 : i32 to index
    %c0_39 = arith.constant 0 : index
    %83 = vector.load %arg11[%c0_38, %82, %c0_39] : memref<1x16x32xf32, #tpu.memory_space<vmem>>, vector<1x1x32xf32>
    %84 = vector.shape_cast %83 : vector<1x1x32xf32> to vector<1x32xf32>
    %85 = arith.index_cast %c4_i32 : i32 to index
    %c32_40 = arith.constant 32 : index
    %86 = vector.load %arg12[%85, %c32_40] : memref<8x64xf32, #tpu.memory_space<vmem>>, vector<1x32xf32>
    tpu.vector_store %arg12[%85, %c32_40], %84 {strides = array<i32>} : memref<8x64xf32, #tpu.memory_space<vmem>>, vector<1x32xf32>,
    %c5_i32 = arith.constant 5 : i32
    %87 = arith.addi %6, %c5_i32 : i32
    %88 = arith.index_cast %87 : i32 to index
    %89 = memref.load %arg2[%88] : memref<48xi32, #tpu.memory_space<smem>>
    %90 = arith.addi %6, %c5_i32 : i32
    %91 = arith.index_cast %90 : i32 to index
    %92 = memref.load %arg3[%91] : memref<48xi32, #tpu.memory_space<smem>>
    %c0_41 = arith.constant 0 : index
    %93 = arith.index_cast %89 : i32 to index
    %c0_42 = arith.constant 0 : index
    %94 = vector.load %arg11[%c0_41, %93, %c0_42] : memref<1x16x32xf32, #tpu.memory_space<vmem>>, vector<1x1x32xf32>
    %95 = vector.shape_cast %94 : vector<1x1x32xf32> to vector<1x32xf32>
    %96 = arith.index_cast %c5_i32 : i32 to index
    %c0_43 = arith.constant 0 : index
    %97 = vector.load %arg12[%96, %c0_43] : memref<8x64xf32, #tpu.memory_space<vmem>>, vector<1x32xf32>
    tpu.vector_store %arg12[%96, %c0_43], %95 {strides = array<i32>} : memref<8x64xf32, #tpu.memory_space<vmem>>, vector<1x32xf32>,
    %c0_44 = arith.constant 0 : index
    %98 = arith.index_cast %92 : i32 to index
    %c0_45 = arith.constant 0 : index
    %99 = vector.load %arg11[%c0_44, %98, %c0_45] : memref<1x16x32xf32, #tpu.memory_space<vmem>>, vector<1x1x32xf32>
    %100 = vector.shape_cast %99 : vector<1x1x32xf32> to vector<1x32xf32>
    %101 = arith.index_cast %c5_i32 : i32 to index
    %c32_46 = arith.constant 32 : index
    %102 = vector.load %arg12[%101, %c32_46] : memref<8x64xf32, #tpu.memory_space<vmem>>, vector<1x32xf32>
    tpu.vector_store %arg12[%101, %c32_46], %100 {strides = array<i32>} : memref<8x64xf32, #tpu.memory_space<vmem>>, vector<1x32xf32>,
    %c6_i32 = arith.constant 6 : i32
    %103 = arith.addi %6, %c6_i32 : i32
    %104 = arith.index_cast %103 : i32 to index
    %105 = memref.load %arg2[%104] : memref<48xi32, #tpu.memory_space<smem>>
    %106 = arith.addi %6, %c6_i32 : i32
    %107 = arith.index_cast %106 : i32 to index
    %108 = memref.load %arg3[%107] : memref<48xi32, #tpu.memory_space<smem>>
    %c0_47 = arith.constant 0 : index
    %109 = arith.index_cast %105 : i32 to index
    %c0_48 = arith.constant 0 : index
    %110 = vector.load %arg11[%c0_47, %109, %c0_48] : memref<1x16x32xf32, #tpu.memory_space<vmem>>, vector<1x1x32xf32>
    %111 = vector.shape_cast %110 : vector<1x1x32xf32> to vector<1x32xf32>
    %112 = arith.index_cast %c6_i32 : i32 to index
    %c0_49 = arith.constant 0 : index
    %113 = vector.load %arg12[%112, %c0_49] : memref<8x64xf32, #tpu.memory_space<vmem>>, vector<1x32xf32>
    tpu.vector_store %arg12[%112, %c0_49], %111 {strides = array<i32>} : memref<8x64xf32, #tpu.memory_space<vmem>>, vector<1x32xf32>,
    %c0_50 = arith.constant 0 : index
    %114 = arith.index_cast %108 : i32 to index
    %c0_51 = arith.constant 0 : index
    %115 = vector.load %arg11[%c0_50, %114, %c0_51] : memref<1x16x32xf32, #tpu.memory_space<vmem>>, vector<1x1x32xf32>
    %116 = vector.shape_cast %115 : vector<1x1x32xf32> to vector<1x32xf32>
    %117 = arith.index_cast %c6_i32 : i32 to index
    %c32_52 = arith.constant 32 : index
    %118 = vector.load %arg12[%117, %c32_52] : memref<8x64xf32, #tpu.memory_space<vmem>>, vector<1x32xf32>
    tpu.vector_store %arg12[%117, %c32_52], %116 {strides = array<i32>} : memref<8x64xf32, #tpu.memory_space<vmem>>, vector<1x32xf32>,
    %c7_i32 = arith.constant 7 : i32
    %119 = arith.addi %6, %c7_i32 : i32
    %120 = arith.index_cast %119 : i32 to index
    %121 = memref.load %arg2[%120] : memref<48xi32, #tpu.memory_space<smem>>
    %122 = arith.addi %6, %c7_i32 : i32
    %123 = arith.index_cast %122 : i32 to index
    %124 = memref.load %arg3[%123] : memref<48xi32, #tpu.memory_space<smem>>
    %c0_53 = arith.constant 0 : index
    %125 = arith.index_cast %121 : i32 to index
    %c0_54 = arith.constant 0 : index
    %126 = vector.load %arg11[%c0_53, %125, %c0_54] : memref<1x16x32xf32, #tpu.memory_space<vmem>>, vector<1x1x32xf32>
    %127 = vector.shape_cast %126 : vector<1x1x32xf32> to vector<1x32xf32>
    %128 = arith.index_cast %c7_i32 : i32 to index
    %c0_55 = arith.constant 0 : index
    %129 = vector.load %arg12[%128, %c0_55] : memref<8x64xf32, #tpu.memory_space<vmem>>, vector<1x32xf32>
    tpu.vector_store %arg12[%128, %c0_55], %127 {strides = array<i32>} : memref<8x64xf32, #tpu.memory_space<vmem>>, vector<1x32xf32>,
    %c0_56 = arith.constant 0 : index
    %130 = arith.index_cast %124 : i32 to index
    %c0_57 = arith.constant 0 : index
    %131 = vector.load %arg11[%c0_56, %130, %c0_57] : memref<1x16x32xf32, #tpu.memory_space<vmem>>, vector<1x1x32xf32>
    %132 = vector.shape_cast %131 : vector<1x1x32xf32> to vector<1x32xf32>
    %133 = arith.index_cast %c7_i32 : i32 to index
    %c32_58 = arith.constant 32 : index
    %134 = vector.load %arg12[%133, %c32_58] : memref<8x64xf32, #tpu.memory_space<vmem>>, vector<1x32xf32>
    tpu.vector_store %arg12[%133, %c32_58], %132 {strides = array<i32>} : memref<8x64xf32, #tpu.memory_space<vmem>>, vector<1x32xf32>,
    %c8_i32 = arith.constant 8 : i32
    %c0_59 = arith.constant 0 : index
    %c0_60 = arith.constant 0 : index
    %135 = vector.load %arg12[%c0_59, %c0_60] : memref<8x64xf32, #tpu.memory_space<vmem>>, vector<8x64xf32>
    %136 = vector.shape_cast %135 : vector<8x64xf32> to vector<8x64x1xf32>
    %137 = vector.shape_cast %135 : vector<8x64xf32> to vector<8x1x64xf32>
    %138 = vector.broadcast %136 : vector<8x64x1xf32> to vector<8x64x64xf32>
    %139 = vector.broadcast %137 : vector<8x1x64xf32> to vector<8x64x64xf32>
    %140 = arith.mulf %138, %139 : vector<8x64x64xf32>
    %141 = vector.shape_cast %140 : vector<8x64x64xf32> to vector<8x4096xf32>
    %142 = arith.truncf %141 : vector<8x4096xf32> to vector<8x4096xbf16>
    %cst = arith.constant dense<0.000000e+00> : vector<8x32xf32>
    %143 = tpu.matmul %142, %2, %cst {dimension_numbers = #tpu.dot_dimension_numbers<[1], [0], [0], [1], [0, 0, 1, 1], [], []>} : vector<8x4096xbf16>, vector<4096x32xbf16>, vector<8x32xf32> -> vector<8x32xf32>
    %cst_61 = arith.constant dense<0.000000e+00> : vector<8x32xf32>
    %144 = tpu.matmul %135, %3, %cst_61 {dimension_numbers = #tpu.dot_dimension_numbers<[1], [0], [0], [1], [0, 0, 1, 1], [], []>} : vector<8x64xf32>, vector<64x32xf32>, vector<8x32xf32> -> vector<8x32xf32>
    %145 = arith.addf %143, %144 : vector<8x32xf32>
    %146 = vector.broadcast %4 : vector<1x32xf32> to vector<8x32xf32>
    %147 = arith.addf %145, %146 : vector<8x32xf32>
    %148 = math.tanh %147 : vector<8x32xf32>
    %c0_62 = arith.constant 0 : index
    %c0_63 = arith.constant 0 : index
    %149 = vector.load %arg13[%c0_62, %c0_63] : memref<8x32xf32, #tpu.memory_space<vmem>>, vector<8x32xf32>
    tpu.vector_store %arg13[%c0_62, %c0_63], %148 {strides = array<i32>} : memref<8x32xf32, #tpu.memory_space<vmem>>, vector<8x32xf32>,
    %c0_i32_64 = arith.constant 0 : i32
    %150 = arith.addi %6, %c0_i32_64 : i32
    %151 = arith.index_cast %150 : i32 to index
    %152 = memref.load %arg1[%151] : memref<48xi32, #tpu.memory_space<smem>>
    %153 = arith.index_cast %c0_i32_64 : i32 to index
    %c0_65 = arith.constant 0 : index
    %154 = vector.load %arg13[%153, %c0_65] : memref<8x32xf32, #tpu.memory_space<vmem>>, vector<1x32xf32>
    %c0_66 = arith.constant 0 : index
    %155 = arith.index_cast %152 : i32 to index
    %c0_67 = arith.constant 0 : index
    %156 = vector.load %arg11[%c0_66, %155, %c0_67] : memref<1x16x32xf32, #tpu.memory_space<vmem>>, vector<1x1x32xf32>
    %157 = vector.shape_cast %156 : vector<1x1x32xf32> to vector<1x32xf32>
    %158 = vector.shape_cast %154 : vector<1x32xf32> to vector<1x1x32xf32>
    tpu.vector_store %arg11[%c0_66, %155, %c0_67], %158 {strides = array<i32>} : memref<1x16x32xf32, #tpu.memory_space<vmem>>, vector<1x1x32xf32>,
    %c1_i32_68 = arith.constant 1 : i32
    %159 = arith.addi %6, %c1_i32_68 : i32
    %160 = arith.index_cast %159 : i32 to index
    %161 = memref.load %arg1[%160] : memref<48xi32, #tpu.memory_space<smem>>
    %162 = arith.index_cast %c1_i32_68 : i32 to index
    %c0_69 = arith.constant 0 : index
    %163 = vector.load %arg13[%162, %c0_69] : memref<8x32xf32, #tpu.memory_space<vmem>>, vector<1x32xf32>
    %c0_70 = arith.constant 0 : index
    %164 = arith.index_cast %161 : i32 to index
    %c0_71 = arith.constant 0 : index
    %165 = vector.load %arg11[%c0_70, %164, %c0_71] : memref<1x16x32xf32, #tpu.memory_space<vmem>>, vector<1x1x32xf32>
    %166 = vector.shape_cast %165 : vector<1x1x32xf32> to vector<1x32xf32>
    %167 = vector.shape_cast %163 : vector<1x32xf32> to vector<1x1x32xf32>
    tpu.vector_store %arg11[%c0_70, %164, %c0_71], %167 {strides = array<i32>} : memref<1x16x32xf32, #tpu.memory_space<vmem>>, vector<1x1x32xf32>,
    %c2_i32_72 = arith.constant 2 : i32
    %168 = arith.addi %6, %c2_i32_72 : i32
    %169 = arith.index_cast %168 : i32 to index
    %170 = memref.load %arg1[%169] : memref<48xi32, #tpu.memory_space<smem>>
    %171 = arith.index_cast %c2_i32_72 : i32 to index
    %c0_73 = arith.constant 0 : index
    %172 = vector.load %arg13[%171, %c0_73] : memref<8x32xf32, #tpu.memory_space<vmem>>, vector<1x32xf32>
    %c0_74 = arith.constant 0 : index
    %173 = arith.index_cast %170 : i32 to index
    %c0_75 = arith.constant 0 : index
    %174 = vector.load %arg11[%c0_74, %173, %c0_75] : memref<1x16x32xf32, #tpu.memory_space<vmem>>, vector<1x1x32xf32>
    %175 = vector.shape_cast %174 : vector<1x1x32xf32> to vector<1x32xf32>
    %176 = vector.shape_cast %172 : vector<1x32xf32> to vector<1x1x32xf32>
    tpu.vector_store %arg11[%c0_74, %173, %c0_75], %176 {strides = array<i32>} : memref<1x16x32xf32, #tpu.memory_space<vmem>>, vector<1x1x32xf32>,
    %c3_i32_76 = arith.constant 3 : i32
    %177 = arith.addi %6, %c3_i32_76 : i32
    %178 = arith.index_cast %177 : i32 to index
    %179 = memref.load %arg1[%178] : memref<48xi32, #tpu.memory_space<smem>>
    %180 = arith.index_cast %c3_i32_76 : i32 to index
    %c0_77 = arith.constant 0 : index
    %181 = vector.load %arg13[%180, %c0_77] : memref<8x32xf32, #tpu.memory_space<vmem>>, vector<1x32xf32>
    %c0_78 = arith.constant 0 : index
    %182 = arith.index_cast %179 : i32 to index
    %c0_79 = arith.constant 0 : index
    %183 = vector.load %arg11[%c0_78, %182, %c0_79] : memref<1x16x32xf32, #tpu.memory_space<vmem>>, vector<1x1x32xf32>
    %184 = vector.shape_cast %183 : vector<1x1x32xf32> to vector<1x32xf32>
    %185 = vector.shape_cast %181 : vector<1x32xf32> to vector<1x1x32xf32>
    tpu.vector_store %arg11[%c0_78, %182, %c0_79], %185 {strides = array<i32>} : memref<1x16x32xf32, #tpu.memory_space<vmem>>, vector<1x1x32xf32>,
    %c4_i32_80 = arith.constant 4 : i32
    %186 = arith.addi %6, %c4_i32_80 : i32
    %187 = arith.index_cast %186 : i32 to index
    %188 = memref.load %arg1[%187] : memref<48xi32, #tpu.memory_space<smem>>
    %189 = arith.index_cast %c4_i32_80 : i32 to index
    %c0_81 = arith.constant 0 : index
    %190 = vector.load %arg13[%189, %c0_81] : memref<8x32xf32, #tpu.memory_space<vmem>>, vector<1x32xf32>
    %c0_82 = arith.constant 0 : index
    %191 = arith.index_cast %188 : i32 to index
    %c0_83 = arith.constant 0 : index
    %192 = vector.load %arg11[%c0_82, %191, %c0_83] : memref<1x16x32xf32, #tpu.memory_space<vmem>>, vector<1x1x32xf32>
    %193 = vector.shape_cast %192 : vector<1x1x32xf32> to vector<1x32xf32>
    %194 = vector.shape_cast %190 : vector<1x32xf32> to vector<1x1x32xf32>
    tpu.vector_store %arg11[%c0_82, %191, %c0_83], %194 {strides = array<i32>} : memref<1x16x32xf32, #tpu.memory_space<vmem>>, vector<1x1x32xf32>,
    %c5_i32_84 = arith.constant 5 : i32
    %195 = arith.addi %6, %c5_i32_84 : i32
    %196 = arith.index_cast %195 : i32 to index
    %197 = memref.load %arg1[%196] : memref<48xi32, #tpu.memory_space<smem>>
    %198 = arith.index_cast %c5_i32_84 : i32 to index
    %c0_85 = arith.constant 0 : index
    %199 = vector.load %arg13[%198, %c0_85] : memref<8x32xf32, #tpu.memory_space<vmem>>, vector<1x32xf32>
    %c0_86 = arith.constant 0 : index
    %200 = arith.index_cast %197 : i32 to index
    %c0_87 = arith.constant 0 : index
    %201 = vector.load %arg11[%c0_86, %200, %c0_87] : memref<1x16x32xf32, #tpu.memory_space<vmem>>, vector<1x1x32xf32>
    %202 = vector.shape_cast %201 : vector<1x1x32xf32> to vector<1x32xf32>
    %203 = vector.shape_cast %199 : vector<1x32xf32> to vector<1x1x32xf32>
    tpu.vector_store %arg11[%c0_86, %200, %c0_87], %203 {strides = array<i32>} : memref<1x16x32xf32, #tpu.memory_space<vmem>>, vector<1x1x32xf32>,
    %c6_i32_88 = arith.constant 6 : i32
    %204 = arith.addi %6, %c6_i32_88 : i32
    %205 = arith.index_cast %204 : i32 to index
    %206 = memref.load %arg1[%205] : memref<48xi32, #tpu.memory_space<smem>>
    %207 = arith.index_cast %c6_i32_88 : i32 to index
    %c0_89 = arith.constant 0 : index
    %208 = vector.load %arg13[%207, %c0_89] : memref<8x32xf32, #tpu.memory_space<vmem>>, vector<1x32xf32>
    %c0_90 = arith.constant 0 : index
    %209 = arith.index_cast %206 : i32 to index
    %c0_91 = arith.constant 0 : index
    %210 = vector.load %arg11[%c0_90, %209, %c0_91] : memref<1x16x32xf32, #tpu.memory_space<vmem>>, vector<1x1x32xf32>
    %211 = vector.shape_cast %210 : vector<1x1x32xf32> to vector<1x32xf32>
    %212 = vector.shape_cast %208 : vector<1x32xf32> to vector<1x1x32xf32>
    tpu.vector_store %arg11[%c0_90, %209, %c0_91], %212 {strides = array<i32>} : memref<1x16x32xf32, #tpu.memory_space<vmem>>, vector<1x1x32xf32>,
    %c7_i32_92 = arith.constant 7 : i32
    %213 = arith.addi %6, %c7_i32_92 : i32
    %214 = arith.index_cast %213 : i32 to index
    %215 = memref.load %arg1[%214] : memref<48xi32, #tpu.memory_space<smem>>
    %216 = arith.index_cast %c7_i32_92 : i32 to index
    %c0_93 = arith.constant 0 : index
    %217 = vector.load %arg13[%216, %c0_93] : memref<8x32xf32, #tpu.memory_space<vmem>>, vector<1x32xf32>
    %c0_94 = arith.constant 0 : index
    %218 = arith.index_cast %215 : i32 to index
    %c0_95 = arith.constant 0 : index
    %219 = vector.load %arg11[%c0_94, %218, %c0_95] : memref<1x16x32xf32, #tpu.memory_space<vmem>>, vector<1x1x32xf32>
    %220 = vector.shape_cast %219 : vector<1x1x32xf32> to vector<1x32xf32>
    %221 = vector.shape_cast %217 : vector<1x32xf32> to vector<1x1x32xf32>
    tpu.vector_store %arg11[%c0_94, %218, %c0_95], %221 {strides = array<i32>} : memref<1x16x32xf32, #tpu.memory_space<vmem>>, vector<1x1x32xf32>,
    %c8_i32_96 = arith.constant 8 : i32
    %c8_i32_97 = arith.constant 8 : i32
    %222 = arith.addi %5, %c8_i32_97 : i32
    %c0_i32_98 = arith.constant 0 : i32
    %223 = arith.addi %222, %c0_i32_98 : i32
    %224 = arith.index_cast %223 : i32 to index
    %225 = memref.load %arg2[%224] : memref<48xi32, #tpu.memory_space<smem>>
    %226 = arith.addi %222, %c0_i32_98 : i32
    %227 = arith.index_cast %226 : i32 to index
    %228 = memref.load %arg3[%227] : memref<48xi32, #tpu.memory_space<smem>>
    %c0_99 = arith.constant 0 : index
    %229 = arith.index_cast %225 : i32 to index
    %c0_100 = arith.constant 0 : index
    %230 = vector.load %arg11[%c0_99, %229, %c0_100] : memref<1x16x32xf32, #tpu.memory_space<vmem>>, vector<1x1x32xf32>
    %231 = vector.shape_cast %230 : vector<1x1x32xf32> to vector<1x32xf32>
    %232 = arith.index_cast %c0_i32_98 : i32 to index
    %c0_101 = arith.constant 0 : index
    %233 = vector.load %arg12[%232, %c0_101] : memref<8x64xf32, #tpu.memory_space<vmem>>, vector<1x32xf32>
    tpu.vector_store %arg12[%232, %c0_101], %231 {strides = array<i32>} : memref<8x64xf32, #tpu.memory_space<vmem>>, vector<1x32xf32>,
    %c0_102 = arith.constant 0 : index
    %234 = arith.index_cast %228 : i32 to index
    %c0_103 = arith.constant 0 : index
    %235 = vector.load %arg11[%c0_102, %234, %c0_103] : memref<1x16x32xf32, #tpu.memory_space<vmem>>, vector<1x1x32xf32>
    %236 = vector.shape_cast %235 : vector<1x1x32xf32> to vector<1x32xf32>
    %237 = arith.index_cast %c0_i32_98 : i32 to index
    %c32_104 = arith.constant 32 : index
    %238 = vector.load %arg12[%237, %c32_104] : memref<8x64xf32, #tpu.memory_space<vmem>>, vector<1x32xf32>
    tpu.vector_store %arg12[%237, %c32_104], %236 {strides = array<i32>} : memref<8x64xf32, #tpu.memory_space<vmem>>, vector<1x32xf32>,
    %c1_i32_105 = arith.constant 1 : i32
    %239 = arith.addi %222, %c1_i32_105 : i32
    %240 = arith.index_cast %239 : i32 to index
    %241 = memref.load %arg2[%240] : memref<48xi32, #tpu.memory_space<smem>>
    %242 = arith.addi %222, %c1_i32_105 : i32
    %243 = arith.index_cast %242 : i32 to index
    %244 = memref.load %arg3[%243] : memref<48xi32, #tpu.memory_space<smem>>
    %c0_106 = arith.constant 0 : index
    %245 = arith.index_cast %241 : i32 to index
    %c0_107 = arith.constant 0 : index
    %246 = vector.load %arg11[%c0_106, %245, %c0_107] : memref<1x16x32xf32, #tpu.memory_space<vmem>>, vector<1x1x32xf32>
    %247 = vector.shape_cast %246 : vector<1x1x32xf32> to vector<1x32xf32>
    %248 = arith.index_cast %c1_i32_105 : i32 to index
    %c0_108 = arith.constant 0 : index
    %249 = vector.load %arg12[%248, %c0_108] : memref<8x64xf32, #tpu.memory_space<vmem>>, vector<1x32xf32>
    tpu.vector_store %arg12[%248, %c0_108], %247 {strides = array<i32>} : memref<8x64xf32, #tpu.memory_space<vmem>>, vector<1x32xf32>,
    %c0_109 = arith.constant 0 : index
    %250 = arith.index_cast %244 : i32 to index
    %c0_110 = arith.constant 0 : index
    %251 = vector.load %arg11[%c0_109, %250, %c0_110] : memref<1x16x32xf32, #tpu.memory_space<vmem>>, vector<1x1x32xf32>
    %252 = vector.shape_cast %251 : vector<1x1x32xf32> to vector<1x32xf32>
    %253 = arith.index_cast %c1_i32_105 : i32 to index
    %c32_111 = arith.constant 32 : index
    %254 = vector.load %arg12[%253, %c32_111] : memref<8x64xf32, #tpu.memory_space<vmem>>, vector<1x32xf32>
    tpu.vector_store %arg12[%253, %c32_111], %252 {strides = array<i32>} : memref<8x64xf32, #tpu.memory_space<vmem>>, vector<1x32xf32>,
    %c2_i32_112 = arith.constant 2 : i32
    %255 = arith.addi %222, %c2_i32_112 : i32
    %256 = arith.index_cast %255 : i32 to index
    %257 = memref.load %arg2[%256] : memref<48xi32, #tpu.memory_space<smem>>
    %258 = arith.addi %222, %c2_i32_112 : i32
    %259 = arith.index_cast %258 : i32 to index
    %260 = memref.load %arg3[%259] : memref<48xi32, #tpu.memory_space<smem>>
    %c0_113 = arith.constant 0 : index
    %261 = arith.index_cast %257 : i32 to index
    %c0_114 = arith.constant 0 : index
    %262 = vector.load %arg11[%c0_113, %261, %c0_114] : memref<1x16x32xf32, #tpu.memory_space<vmem>>, vector<1x1x32xf32>
    %263 = vector.shape_cast %262 : vector<1x1x32xf32> to vector<1x32xf32>
    %264 = arith.index_cast %c2_i32_112 : i32 to index
    %c0_115 = arith.constant 0 : index
    %265 = vector.load %arg12[%264, %c0_115] : memref<8x64xf32, #tpu.memory_space<vmem>>, vector<1x32xf32>
    tpu.vector_store %arg12[%264, %c0_115], %263 {strides = array<i32>} : memref<8x64xf32, #tpu.memory_space<vmem>>, vector<1x32xf32>,
    %c0_116 = arith.constant 0 : index
    %266 = arith.index_cast %260 : i32 to index
    %c0_117 = arith.constant 0 : index
    %267 = vector.load %arg11[%c0_116, %266, %c0_117] : memref<1x16x32xf32, #tpu.memory_space<vmem>>, vector<1x1x32xf32>
    %268 = vector.shape_cast %267 : vector<1x1x32xf32> to vector<1x32xf32>
    %269 = arith.index_cast %c2_i32_112 : i32 to index
    %c32_118 = arith.constant 32 : index
    %270 = vector.load %arg12[%269, %c32_118] : memref<8x64xf32, #tpu.memory_space<vmem>>, vector<1x32xf32>
    tpu.vector_store %arg12[%269, %c32_118], %268 {strides = array<i32>} : memref<8x64xf32, #tpu.memory_space<vmem>>, vector<1x32xf32>,
    %c3_i32_119 = arith.constant 3 : i32
    %271 = arith.addi %222, %c3_i32_119 : i32
    %272 = arith.index_cast %271 : i32 to index
    %273 = memref.load %arg2[%272] : memref<48xi32, #tpu.memory_space<smem>>
    %274 = arith.addi %222, %c3_i32_119 : i32
    %275 = arith.index_cast %274 : i32 to index
    %276 = memref.load %arg3[%275] : memref<48xi32, #tpu.memory_space<smem>>
    %c0_120 = arith.constant 0 : index
    %277 = arith.index_cast %273 : i32 to index
    %c0_121 = arith.constant 0 : index
    %278 = vector.load %arg11[%c0_120, %277, %c0_121] : memref<1x16x32xf32, #tpu.memory_space<vmem>>, vector<1x1x32xf32>
    %279 = vector.shape_cast %278 : vector<1x1x32xf32> to vector<1x32xf32>
    %280 = arith.index_cast %c3_i32_119 : i32 to index
    %c0_122 = arith.constant 0 : index
    %281 = vector.load %arg12[%280, %c0_122] : memref<8x64xf32, #tpu.memory_space<vmem>>, vector<1x32xf32>
    tpu.vector_store %arg12[%280, %c0_122], %279 {strides = array<i32>} : memref<8x64xf32, #tpu.memory_space<vmem>>, vector<1x32xf32>,
    %c0_123 = arith.constant 0 : index
    %282 = arith.index_cast %276 : i32 to index
    %c0_124 = arith.constant 0 : index
    %283 = vector.load %arg11[%c0_123, %282, %c0_124] : memref<1x16x32xf32, #tpu.memory_space<vmem>>, vector<1x1x32xf32>
    %284 = vector.shape_cast %283 : vector<1x1x32xf32> to vector<1x32xf32>
    %285 = arith.index_cast %c3_i32_119 : i32 to index
    %c32_125 = arith.constant 32 : index
    %286 = vector.load %arg12[%285, %c32_125] : memref<8x64xf32, #tpu.memory_space<vmem>>, vector<1x32xf32>
    tpu.vector_store %arg12[%285, %c32_125], %284 {strides = array<i32>} : memref<8x64xf32, #tpu.memory_space<vmem>>, vector<1x32xf32>,
    %c4_i32_126 = arith.constant 4 : i32
    %287 = arith.addi %222, %c4_i32_126 : i32
    %288 = arith.index_cast %287 : i32 to index
    %289 = memref.load %arg2[%288] : memref<48xi32, #tpu.memory_space<smem>>
    %290 = arith.addi %222, %c4_i32_126 : i32
    %291 = arith.index_cast %290 : i32 to index
    %292 = memref.load %arg3[%291] : memref<48xi32, #tpu.memory_space<smem>>
    %c0_127 = arith.constant 0 : index
    %293 = arith.index_cast %289 : i32 to index
    %c0_128 = arith.constant 0 : index
    %294 = vector.load %arg11[%c0_127, %293, %c0_128] : memref<1x16x32xf32, #tpu.memory_space<vmem>>, vector<1x1x32xf32>
    %295 = vector.shape_cast %294 : vector<1x1x32xf32> to vector<1x32xf32>
    %296 = arith.index_cast %c4_i32_126 : i32 to index
    %c0_129 = arith.constant 0 : index
    %297 = vector.load %arg12[%296, %c0_129] : memref<8x64xf32, #tpu.memory_space<vmem>>, vector<1x32xf32>
    tpu.vector_store %arg12[%296, %c0_129], %295 {strides = array<i32>} : memref<8x64xf32, #tpu.memory_space<vmem>>, vector<1x32xf32>,
    %c0_130 = arith.constant 0 : index
    %298 = arith.index_cast %292 : i32 to index
    %c0_131 = arith.constant 0 : index
    %299 = vector.load %arg11[%c0_130, %298, %c0_131] : memref<1x16x32xf32, #tpu.memory_space<vmem>>, vector<1x1x32xf32>
    %300 = vector.shape_cast %299 : vector<1x1x32xf32> to vector<1x32xf32>
    %301 = arith.index_cast %c4_i32_126 : i32 to index
    %c32_132 = arith.constant 32 : index
    %302 = vector.load %arg12[%301, %c32_132] : memref<8x64xf32, #tpu.memory_space<vmem>>, vector<1x32xf32>
    tpu.vector_store %arg12[%301, %c32_132], %300 {strides = array<i32>} : memref<8x64xf32, #tpu.memory_space<vmem>>, vector<1x32xf32>,
    %c5_i32_133 = arith.constant 5 : i32
    %303 = arith.addi %222, %c5_i32_133 : i32
    %304 = arith.index_cast %303 : i32 to index
    %305 = memref.load %arg2[%304] : memref<48xi32, #tpu.memory_space<smem>>
    %306 = arith.addi %222, %c5_i32_133 : i32
    %307 = arith.index_cast %306 : i32 to index
    %308 = memref.load %arg3[%307] : memref<48xi32, #tpu.memory_space<smem>>
    %c0_134 = arith.constant 0 : index
    %309 = arith.index_cast %305 : i32 to index
    %c0_135 = arith.constant 0 : index
    %310 = vector.load %arg11[%c0_134, %309, %c0_135] : memref<1x16x32xf32, #tpu.memory_space<vmem>>, vector<1x1x32xf32>
    %311 = vector.shape_cast %310 : vector<1x1x32xf32> to vector<1x32xf32>
    %312 = arith.index_cast %c5_i32_133 : i32 to index
    %c0_136 = arith.constant 0 : index
    %313 = vector.load %arg12[%312, %c0_136] : memref<8x64xf32, #tpu.memory_space<vmem>>, vector<1x32xf32>
    tpu.vector_store %arg12[%312, %c0_136], %311 {strides = array<i32>} : memref<8x64xf32, #tpu.memory_space<vmem>>, vector<1x32xf32>,
    %c0_137 = arith.constant 0 : index
    %314 = arith.index_cast %308 : i32 to index
    %c0_138 = arith.constant 0 : index
    %315 = vector.load %arg11[%c0_137, %314, %c0_138] : memref<1x16x32xf32, #tpu.memory_space<vmem>>, vector<1x1x32xf32>
    %316 = vector.shape_cast %315 : vector<1x1x32xf32> to vector<1x32xf32>
    %317 = arith.index_cast %c5_i32_133 : i32 to index
    %c32_139 = arith.constant 32 : index
    %318 = vector.load %arg12[%317, %c32_139] : memref<8x64xf32, #tpu.memory_space<vmem>>, vector<1x32xf32>
    tpu.vector_store %arg12[%317, %c32_139], %316 {strides = array<i32>} : memref<8x64xf32, #tpu.memory_space<vmem>>, vector<1x32xf32>,
    %c6_i32_140 = arith.constant 6 : i32
    %319 = arith.addi %222, %c6_i32_140 : i32
    %320 = arith.index_cast %319 : i32 to index
    %321 = memref.load %arg2[%320] : memref<48xi32, #tpu.memory_space<smem>>
    %322 = arith.addi %222, %c6_i32_140 : i32
    %323 = arith.index_cast %322 : i32 to index
    %324 = memref.load %arg3[%323] : memref<48xi32, #tpu.memory_space<smem>>
    %c0_141 = arith.constant 0 : index
    %325 = arith.index_cast %321 : i32 to index
    %c0_142 = arith.constant 0 : index
    %326 = vector.load %arg11[%c0_141, %325, %c0_142] : memref<1x16x32xf32, #tpu.memory_space<vmem>>, vector<1x1x32xf32>
    %327 = vector.shape_cast %326 : vector<1x1x32xf32> to vector<1x32xf32>
    %328 = arith.index_cast %c6_i32_140 : i32 to index
    %c0_143 = arith.constant 0 : index
    %329 = vector.load %arg12[%328, %c0_143] : memref<8x64xf32, #tpu.memory_space<vmem>>, vector<1x32xf32>
    tpu.vector_store %arg12[%328, %c0_143], %327 {strides = array<i32>} : memref<8x64xf32, #tpu.memory_space<vmem>>, vector<1x32xf32>,
    %c0_144 = arith.constant 0 : index
    %330 = arith.index_cast %324 : i32 to index
    %c0_145 = arith.constant 0 : index
    %331 = vector.load %arg11[%c0_144, %330, %c0_145] : memref<1x16x32xf32, #tpu.memory_space<vmem>>, vector<1x1x32xf32>
    %332 = vector.shape_cast %331 : vector<1x1x32xf32> to vector<1x32xf32>
    %333 = arith.index_cast %c6_i32_140 : i32 to index
    %c32_146 = arith.constant 32 : index
    %334 = vector.load %arg12[%333, %c32_146] : memref<8x64xf32, #tpu.memory_space<vmem>>, vector<1x32xf32>
    tpu.vector_store %arg12[%333, %c32_146], %332 {strides = array<i32>} : memref<8x64xf32, #tpu.memory_space<vmem>>, vector<1x32xf32>,
    %c7_i32_147 = arith.constant 7 : i32
    %335 = arith.addi %222, %c7_i32_147 : i32
    %336 = arith.index_cast %335 : i32 to index
    %337 = memref.load %arg2[%336] : memref<48xi32, #tpu.memory_space<smem>>
    %338 = arith.addi %222, %c7_i32_147 : i32
    %339 = arith.index_cast %338 : i32 to index
    %340 = memref.load %arg3[%339] : memref<48xi32, #tpu.memory_space<smem>>
    %c0_148 = arith.constant 0 : index
    %341 = arith.index_cast %337 : i32 to index
    %c0_149 = arith.constant 0 : index
    %342 = vector.load %arg11[%c0_148, %341, %c0_149] : memref<1x16x32xf32, #tpu.memory_space<vmem>>, vector<1x1x32xf32>
    %343 = vector.shape_cast %342 : vector<1x1x32xf32> to vector<1x32xf32>
    %344 = arith.index_cast %c7_i32_147 : i32 to index
    %c0_150 = arith.constant 0 : index
    %345 = vector.load %arg12[%344, %c0_150] : memref<8x64xf32, #tpu.memory_space<vmem>>, vector<1x32xf32>
    tpu.vector_store %arg12[%344, %c0_150], %343 {strides = array<i32>} : memref<8x64xf32, #tpu.memory_space<vmem>>, vector<1x32xf32>,
    %c0_151 = arith.constant 0 : index
    %346 = arith.index_cast %340 : i32 to index
    %c0_152 = arith.constant 0 : index
    %347 = vector.load %arg11[%c0_151, %346, %c0_152] : memref<1x16x32xf32, #tpu.memory_space<vmem>>, vector<1x1x32xf32>
    %348 = vector.shape_cast %347 : vector<1x1x32xf32> to vector<1x32xf32>
    %349 = arith.index_cast %c7_i32_147 : i32 to index
    %c32_153 = arith.constant 32 : index
    %350 = vector.load %arg12[%349, %c32_153] : memref<8x64xf32, #tpu.memory_space<vmem>>, vector<1x32xf32>
    tpu.vector_store %arg12[%349, %c32_153], %348 {strides = array<i32>} : memref<8x64xf32, #tpu.memory_space<vmem>>, vector<1x32xf32>,
    %c8_i32_154 = arith.constant 8 : i32
    %c0_155 = arith.constant 0 : index
    %c0_156 = arith.constant 0 : index
    %351 = vector.load %arg12[%c0_155, %c0_156] : memref<8x64xf32, #tpu.memory_space<vmem>>, vector<8x64xf32>
    %352 = vector.shape_cast %351 : vector<8x64xf32> to vector<8x64x1xf32>
    %353 = vector.shape_cast %351 : vector<8x64xf32> to vector<8x1x64xf32>
    %354 = vector.broadcast %352 : vector<8x64x1xf32> to vector<8x64x64xf32>
    %355 = vector.broadcast %353 : vector<8x1x64xf32> to vector<8x64x64xf32>
    %356 = arith.mulf %354, %355 : vector<8x64x64xf32>
    %357 = vector.shape_cast %356 : vector<8x64x64xf32> to vector<8x4096xf32>
    %358 = arith.truncf %357 : vector<8x4096xf32> to vector<8x4096xbf16>
    %cst_157 = arith.constant dense<0.000000e+00> : vector<8x32xf32>
    %359 = tpu.matmul %358, %2, %cst_157 {dimension_numbers = #tpu.dot_dimension_numbers<[1], [0], [0], [1], [0, 0, 1, 1], [], []>} : vector<8x4096xbf16>, vector<4096x32xbf16>, vector<8x32xf32> -> vector<8x32xf32>
    %cst_158 = arith.constant dense<0.000000e+00> : vector<8x32xf32>
    %360 = tpu.matmul %351, %3, %cst_158 {dimension_numbers = #tpu.dot_dimension_numbers<[1], [0], [0], [1], [0, 0, 1, 1], [], []>} : vector<8x64xf32>, vector<64x32xf32>, vector<8x32xf32> -> vector<8x32xf32>
    %361 = arith.addf %359, %360 : vector<8x32xf32>
    %362 = vector.broadcast %4 : vector<1x32xf32> to vector<8x32xf32>
    %363 = arith.addf %361, %362 : vector<8x32xf32>
    %364 = math.tanh %363 : vector<8x32xf32>
    %c0_159 = arith.constant 0 : index
    %c0_160 = arith.constant 0 : index
    %365 = vector.load %arg13[%c0_159, %c0_160] : memref<8x32xf32, #tpu.memory_space<vmem>>, vector<8x32xf32>
    tpu.vector_store %arg13[%c0_159, %c0_160], %364 {strides = array<i32>} : memref<8x32xf32, #tpu.memory_space<vmem>>, vector<8x32xf32>,
    %c0_i32_161 = arith.constant 0 : i32
    %366 = arith.addi %222, %c0_i32_161 : i32
    %367 = arith.index_cast %366 : i32 to index
    %368 = memref.load %arg1[%367] : memref<48xi32, #tpu.memory_space<smem>>
    %369 = arith.index_cast %c0_i32_161 : i32 to index
    %c0_162 = arith.constant 0 : index
    %370 = vector.load %arg13[%369, %c0_162] : memref<8x32xf32, #tpu.memory_space<vmem>>, vector<1x32xf32>
    %c0_163 = arith.constant 0 : index
    %371 = arith.index_cast %368 : i32 to index
    %c0_164 = arith.constant 0 : index
    %372 = vector.load %arg11[%c0_163, %371, %c0_164] : memref<1x16x32xf32, #tpu.memory_space<vmem>>, vector<1x1x32xf32>
    %373 = vector.shape_cast %372 : vector<1x1x32xf32> to vector<1x32xf32>
    %374 = vector.shape_cast %370 : vector<1x32xf32> to vector<1x1x32xf32>
    tpu.vector_store %arg11[%c0_163, %371, %c0_164], %374 {strides = array<i32>} : memref<1x16x32xf32, #tpu.memory_space<vmem>>, vector<1x1x32xf32>,
    %c1_i32_165 = arith.constant 1 : i32
    %375 = arith.addi %222, %c1_i32_165 : i32
    %376 = arith.index_cast %375 : i32 to index
    %377 = memref.load %arg1[%376] : memref<48xi32, #tpu.memory_space<smem>>
    %378 = arith.index_cast %c1_i32_165 : i32 to index
    %c0_166 = arith.constant 0 : index
    %379 = vector.load %arg13[%378, %c0_166] : memref<8x32xf32, #tpu.memory_space<vmem>>, vector<1x32xf32>
    %c0_167 = arith.constant 0 : index
    %380 = arith.index_cast %377 : i32 to index
    %c0_168 = arith.constant 0 : index
    %381 = vector.load %arg11[%c0_167, %380, %c0_168] : memref<1x16x32xf32, #tpu.memory_space<vmem>>, vector<1x1x32xf32>
    %382 = vector.shape_cast %381 : vector<1x1x32xf32> to vector<1x32xf32>
    %383 = vector.shape_cast %379 : vector<1x32xf32> to vector<1x1x32xf32>
    tpu.vector_store %arg11[%c0_167, %380, %c0_168], %383 {strides = array<i32>} : memref<1x16x32xf32, #tpu.memory_space<vmem>>, vector<1x1x32xf32>,
    %c2_i32_169 = arith.constant 2 : i32
    %384 = arith.addi %222, %c2_i32_169 : i32
    %385 = arith.index_cast %384 : i32 to index
    %386 = memref.load %arg1[%385] : memref<48xi32, #tpu.memory_space<smem>>
    %387 = arith.index_cast %c2_i32_169 : i32 to index
    %c0_170 = arith.constant 0 : index
    %388 = vector.load %arg13[%387, %c0_170] : memref<8x32xf32, #tpu.memory_space<vmem>>, vector<1x32xf32>
    %c0_171 = arith.constant 0 : index
    %389 = arith.index_cast %386 : i32 to index
    %c0_172 = arith.constant 0 : index
    %390 = vector.load %arg11[%c0_171, %389, %c0_172] : memref<1x16x32xf32, #tpu.memory_space<vmem>>, vector<1x1x32xf32>
    %391 = vector.shape_cast %390 : vector<1x1x32xf32> to vector<1x32xf32>
    %392 = vector.shape_cast %388 : vector<1x32xf32> to vector<1x1x32xf32>
    tpu.vector_store %arg11[%c0_171, %389, %c0_172], %392 {strides = array<i32>} : memref<1x16x32xf32, #tpu.memory_space<vmem>>, vector<1x1x32xf32>,
    %c3_i32_173 = arith.constant 3 : i32
    %393 = arith.addi %222, %c3_i32_173 : i32
    %394 = arith.index_cast %393 : i32 to index
    %395 = memref.load %arg1[%394] : memref<48xi32, #tpu.memory_space<smem>>
    %396 = arith.index_cast %c3_i32_173 : i32 to index
    %c0_174 = arith.constant 0 : index
    %397 = vector.load %arg13[%396, %c0_174] : memref<8x32xf32, #tpu.memory_space<vmem>>, vector<1x32xf32>
    %c0_175 = arith.constant 0 : index
    %398 = arith.index_cast %395 : i32 to index
    %c0_176 = arith.constant 0 : index
    %399 = vector.load %arg11[%c0_175, %398, %c0_176] : memref<1x16x32xf32, #tpu.memory_space<vmem>>, vector<1x1x32xf32>
    %400 = vector.shape_cast %399 : vector<1x1x32xf32> to vector<1x32xf32>
    %401 = vector.shape_cast %397 : vector<1x32xf32> to vector<1x1x32xf32>
    tpu.vector_store %arg11[%c0_175, %398, %c0_176], %401 {strides = array<i32>} : memref<1x16x32xf32, #tpu.memory_space<vmem>>, vector<1x1x32xf32>,
    %c4_i32_177 = arith.constant 4 : i32
    %402 = arith.addi %222, %c4_i32_177 : i32
    %403 = arith.index_cast %402 : i32 to index
    %404 = memref.load %arg1[%403] : memref<48xi32, #tpu.memory_space<smem>>
    %405 = arith.index_cast %c4_i32_177 : i32 to index
    %c0_178 = arith.constant 0 : index
    %406 = vector.load %arg13[%405, %c0_178] : memref<8x32xf32, #tpu.memory_space<vmem>>, vector<1x32xf32>
    %c0_179 = arith.constant 0 : index
    %407 = arith.index_cast %404 : i32 to index
    %c0_180 = arith.constant 0 : index
    %408 = vector.load %arg11[%c0_179, %407, %c0_180] : memref<1x16x32xf32, #tpu.memory_space<vmem>>, vector<1x1x32xf32>
    %409 = vector.shape_cast %408 : vector<1x1x32xf32> to vector<1x32xf32>
    %410 = vector.shape_cast %406 : vector<1x32xf32> to vector<1x1x32xf32>
    tpu.vector_store %arg11[%c0_179, %407, %c0_180], %410 {strides = array<i32>} : memref<1x16x32xf32, #tpu.memory_space<vmem>>, vector<1x1x32xf32>,
    %c5_i32_181 = arith.constant 5 : i32
    %411 = arith.addi %222, %c5_i32_181 : i32
    %412 = arith.index_cast %411 : i32 to index
    %413 = memref.load %arg1[%412] : memref<48xi32, #tpu.memory_space<smem>>
    %414 = arith.index_cast %c5_i32_181 : i32 to index
    %c0_182 = arith.constant 0 : index
    %415 = vector.load %arg13[%414, %c0_182] : memref<8x32xf32, #tpu.memory_space<vmem>>, vector<1x32xf32>
    %c0_183 = arith.constant 0 : index
    %416 = arith.index_cast %413 : i32 to index
    %c0_184 = arith.constant 0 : index
    %417 = vector.load %arg11[%c0_183, %416, %c0_184] : memref<1x16x32xf32, #tpu.memory_space<vmem>>, vector<1x1x32xf32>
    %418 = vector.shape_cast %417 : vector<1x1x32xf32> to vector<1x32xf32>
    %419 = vector.shape_cast %415 : vector<1x32xf32> to vector<1x1x32xf32>
    tpu.vector_store %arg11[%c0_183, %416, %c0_184], %419 {strides = array<i32>} : memref<1x16x32xf32, #tpu.memory_space<vmem>>, vector<1x1x32xf32>,
    %c6_i32_185 = arith.constant 6 : i32
    %420 = arith.addi %222, %c6_i32_185 : i32
    %421 = arith.index_cast %420 : i32 to index
    %422 = memref.load %arg1[%421] : memref<48xi32, #tpu.memory_space<smem>>
    %423 = arith.index_cast %c6_i32_185 : i32 to index
    %c0_186 = arith.constant 0 : index
    %424 = vector.load %arg13[%423, %c0_186] : memref<8x32xf32, #tpu.memory_space<vmem>>, vector<1x32xf32>
    %c0_187 = arith.constant 0 : index
    %425 = arith.index_cast %422 : i32 to index
    %c0_188 = arith.constant 0 : index
    %426 = vector.load %arg11[%c0_187, %425, %c0_188] : memref<1x16x32xf32, #tpu.memory_space<vmem>>, vector<1x1x32xf32>
    %427 = vector.shape_cast %426 : vector<1x1x32xf32> to vector<1x32xf32>
    %428 = vector.shape_cast %424 : vector<1x32xf32> to vector<1x1x32xf32>
    tpu.vector_store %arg11[%c0_187, %425, %c0_188], %428 {strides = array<i32>} : memref<1x16x32xf32, #tpu.memory_space<vmem>>, vector<1x1x32xf32>,
    %c7_i32_189 = arith.constant 7 : i32
    %429 = arith.addi %222, %c7_i32_189 : i32
    %430 = arith.index_cast %429 : i32 to index
    %431 = memref.load %arg1[%430] : memref<48xi32, #tpu.memory_space<smem>>
    %432 = arith.index_cast %c7_i32_189 : i32 to index
    %c0_190 = arith.constant 0 : index
    %433 = vector.load %arg13[%432, %c0_190] : memref<8x32xf32, #tpu.memory_space<vmem>>, vector<1x32xf32>
    %c0_191 = arith.constant 0 : index
    %434 = arith.index_cast %431 : i32 to index
    %c0_192 = arith.constant 0 : index
    %435 = vector.load %arg11[%c0_191, %434, %c0_192] : memref<1x16x32xf32, #tpu.memory_space<vmem>>, vector<1x1x32xf32>
    %436 = vector.shape_cast %435 : vector<1x1x32xf32> to vector<1x32xf32>
    %437 = vector.shape_cast %433 : vector<1x32xf32> to vector<1x1x32xf32>
    tpu.vector_store %arg11[%c0_191, %434, %c0_192], %437 {strides = array<i32>} : memref<1x16x32xf32, #tpu.memory_space<vmem>>, vector<1x1x32xf32>,
    %c8_i32_193 = arith.constant 8 : i32
    %c16_i32 = arith.constant 16 : i32
    %438 = arith.addi %5, %c16_i32 : i32
    %c0_i32_194 = arith.constant 0 : i32
    %439 = arith.addi %438, %c0_i32_194 : i32
    %440 = arith.index_cast %439 : i32 to index
    %441 = memref.load %arg2[%440] : memref<48xi32, #tpu.memory_space<smem>>
    %442 = arith.addi %438, %c0_i32_194 : i32
    %443 = arith.index_cast %442 : i32 to index
    %444 = memref.load %arg3[%443] : memref<48xi32, #tpu.memory_space<smem>>
    %c0_195 = arith.constant 0 : index
    %445 = arith.index_cast %441 : i32 to index
    %c0_196 = arith.constant 0 : index
    %446 = vector.load %arg11[%c0_195, %445, %c0_196] : memref<1x16x32xf32, #tpu.memory_space<vmem>>, vector<1x1x32xf32>
    %447 = vector.shape_cast %446 : vector<1x1x32xf32> to vector<1x32xf32>
    %448 = arith.index_cast %c0_i32_194 : i32 to index
    %c0_197 = arith.constant 0 : index
    %449 = vector.load %arg12[%448, %c0_197] : memref<8x64xf32, #tpu.memory_space<vmem>>, vector<1x32xf32>
    tpu.vector_store %arg12[%448, %c0_197], %447 {strides = array<i32>} : memref<8x64xf32, #tpu.memory_space<vmem>>, vector<1x32xf32>,
    %c0_198 = arith.constant 0 : index
    %450 = arith.index_cast %444 : i32 to index
    %c0_199 = arith.constant 0 : index
    %451 = vector.load %arg11[%c0_198, %450, %c0_199] : memref<1x16x32xf32, #tpu.memory_space<vmem>>, vector<1x1x32xf32>
    %452 = vector.shape_cast %451 : vector<1x1x32xf32> to vector<1x32xf32>
    %453 = arith.index_cast %c0_i32_194 : i32 to index
    %c32_200 = arith.constant 32 : index
    %454 = vector.load %arg12[%453, %c32_200] : memref<8x64xf32, #tpu.memory_space<vmem>>, vector<1x32xf32>
    tpu.vector_store %arg12[%453, %c32_200], %452 {strides = array<i32>} : memref<8x64xf32, #tpu.memory_space<vmem>>, vector<1x32xf32>,
    %c1_i32_201 = arith.constant 1 : i32
    %455 = arith.addi %438, %c1_i32_201 : i32
    %456 = arith.index_cast %455 : i32 to index
    %457 = memref.load %arg2[%456] : memref<48xi32, #tpu.memory_space<smem>>
    %458 = arith.addi %438, %c1_i32_201 : i32
    %459 = arith.index_cast %458 : i32 to index
    %460 = memref.load %arg3[%459] : memref<48xi32, #tpu.memory_space<smem>>
    %c0_202 = arith.constant 0 : index
    %461 = arith.index_cast %457 : i32 to index
    %c0_203 = arith.constant 0 : index
    %462 = vector.load %arg11[%c0_202, %461, %c0_203] : memref<1x16x32xf32, #tpu.memory_space<vmem>>, vector<1x1x32xf32>
    %463 = vector.shape_cast %462 : vector<1x1x32xf32> to vector<1x32xf32>
    %464 = arith.index_cast %c1_i32_201 : i32 to index
    %c0_204 = arith.constant 0 : index
    %465 = vector.load %arg12[%464, %c0_204] : memref<8x64xf32, #tpu.memory_space<vmem>>, vector<1x32xf32>
    tpu.vector_store %arg12[%464, %c0_204], %463 {strides = array<i32>} : memref<8x64xf32, #tpu.memory_space<vmem>>, vector<1x32xf32>,
    %c0_205 = arith.constant 0 : index
    %466 = arith.index_cast %460 : i32 to index
    %c0_206 = arith.constant 0 : index
    %467 = vector.load %arg11[%c0_205, %466, %c0_206] : memref<1x16x32xf32, #tpu.memory_space<vmem>>, vector<1x1x32xf32>
    %468 = vector.shape_cast %467 : vector<1x1x32xf32> to vector<1x32xf32>
    %469 = arith.index_cast %c1_i32_201 : i32 to index
    %c32_207 = arith.constant 32 : index
    %470 = vector.load %arg12[%469, %c32_207] : memref<8x64xf32, #tpu.memory_space<vmem>>, vector<1x32xf32>
    tpu.vector_store %arg12[%469, %c32_207], %468 {strides = array<i32>} : memref<8x64xf32, #tpu.memory_space<vmem>>, vector<1x32xf32>,
    %c2_i32_208 = arith.constant 2 : i32
    %471 = arith.addi %438, %c2_i32_208 : i32
    %472 = arith.index_cast %471 : i32 to index
    %473 = memref.load %arg2[%472] : memref<48xi32, #tpu.memory_space<smem>>
    %474 = arith.addi %438, %c2_i32_208 : i32
    %475 = arith.index_cast %474 : i32 to index
    %476 = memref.load %arg3[%475] : memref<48xi32, #tpu.memory_space<smem>>
    %c0_209 = arith.constant 0 : index
    %477 = arith.index_cast %473 : i32 to index
    %c0_210 = arith.constant 0 : index
    %478 = vector.load %arg11[%c0_209, %477, %c0_210] : memref<1x16x32xf32, #tpu.memory_space<vmem>>, vector<1x1x32xf32>
    %479 = vector.shape_cast %478 : vector<1x1x32xf32> to vector<1x32xf32>
    %480 = arith.index_cast %c2_i32_208 : i32 to index
    %c0_211 = arith.constant 0 : index
    %481 = vector.load %arg12[%480, %c0_211] : memref<8x64xf32, #tpu.memory_space<vmem>>, vector<1x32xf32>
    tpu.vector_store %arg12[%480, %c0_211], %479 {strides = array<i32>} : memref<8x64xf32, #tpu.memory_space<vmem>>, vector<1x32xf32>,
    %c0_212 = arith.constant 0 : index
    %482 = arith.index_cast %476 : i32 to index
    %c0_213 = arith.constant 0 : index
    %483 = vector.load %arg11[%c0_212, %482, %c0_213] : memref<1x16x32xf32, #tpu.memory_space<vmem>>, vector<1x1x32xf32>
    %484 = vector.shape_cast %483 : vector<1x1x32xf32> to vector<1x32xf32>
    %485 = arith.index_cast %c2_i32_208 : i32 to index
    %c32_214 = arith.constant 32 : index
    %486 = vector.load %arg12[%485, %c32_214] : memref<8x64xf32, #tpu.memory_space<vmem>>, vector<1x32xf32>
    tpu.vector_store %arg12[%485, %c32_214], %484 {strides = array<i32>} : memref<8x64xf32, #tpu.memory_space<vmem>>, vector<1x32xf32>,
    %c3_i32_215 = arith.constant 3 : i32
    %487 = arith.addi %438, %c3_i32_215 : i32
    %488 = arith.index_cast %487 : i32 to index
    %489 = memref.load %arg2[%488] : memref<48xi32, #tpu.memory_space<smem>>
    %490 = arith.addi %438, %c3_i32_215 : i32
    %491 = arith.index_cast %490 : i32 to index
    %492 = memref.load %arg3[%491] : memref<48xi32, #tpu.memory_space<smem>>
    %c0_216 = arith.constant 0 : index
    %493 = arith.index_cast %489 : i32 to index
    %c0_217 = arith.constant 0 : index
    %494 = vector.load %arg11[%c0_216, %493, %c0_217] : memref<1x16x32xf32, #tpu.memory_space<vmem>>, vector<1x1x32xf32>
    %495 = vector.shape_cast %494 : vector<1x1x32xf32> to vector<1x32xf32>
    %496 = arith.index_cast %c3_i32_215 : i32 to index
    %c0_218 = arith.constant 0 : index
    %497 = vector.load %arg12[%496, %c0_218] : memref<8x64xf32, #tpu.memory_space<vmem>>, vector<1x32xf32>
    tpu.vector_store %arg12[%496, %c0_218], %495 {strides = array<i32>} : memref<8x64xf32, #tpu.memory_space<vmem>>, vector<1x32xf32>,
    %c0_219 = arith.constant 0 : index
    %498 = arith.index_cast %492 : i32 to index
    %c0_220 = arith.constant 0 : index
    %499 = vector.load %arg11[%c0_219, %498, %c0_220] : memref<1x16x32xf32, #tpu.memory_space<vmem>>, vector<1x1x32xf32>
    %500 = vector.shape_cast %499 : vector<1x1x32xf32> to vector<1x32xf32>
    %501 = arith.index_cast %c3_i32_215 : i32 to index
    %c32_221 = arith.constant 32 : index
    %502 = vector.load %arg12[%501, %c32_221] : memref<8x64xf32, #tpu.memory_space<vmem>>, vector<1x32xf32>
    tpu.vector_store %arg12[%501, %c32_221], %500 {strides = array<i32>} : memref<8x64xf32, #tpu.memory_space<vmem>>, vector<1x32xf32>,
    %c4_i32_222 = arith.constant 4 : i32
    %503 = arith.addi %438, %c4_i32_222 : i32
    %504 = arith.index_cast %503 : i32 to index
    %505 = memref.load %arg2[%504] : memref<48xi32, #tpu.memory_space<smem>>
    %506 = arith.addi %438, %c4_i32_222 : i32
    %507 = arith.index_cast %506 : i32 to index
    %508 = memref.load %arg3[%507] : memref<48xi32, #tpu.memory_space<smem>>
    %c0_223 = arith.constant 0 : index
    %509 = arith.index_cast %505 : i32 to index
    %c0_224 = arith.constant 0 : index
    %510 = vector.load %arg11[%c0_223, %509, %c0_224] : memref<1x16x32xf32, #tpu.memory_space<vmem>>, vector<1x1x32xf32>
    %511 = vector.shape_cast %510 : vector<1x1x32xf32> to vector<1x32xf32>
    %512 = arith.index_cast %c4_i32_222 : i32 to index
    %c0_225 = arith.constant 0 : index
    %513 = vector.load %arg12[%512, %c0_225] : memref<8x64xf32, #tpu.memory_space<vmem>>, vector<1x32xf32>
    tpu.vector_store %arg12[%512, %c0_225], %511 {strides = array<i32>} : memref<8x64xf32, #tpu.memory_space<vmem>>, vector<1x32xf32>,
    %c0_226 = arith.constant 0 : index
    %514 = arith.index_cast %508 : i32 to index
    %c0_227 = arith.constant 0 : index
    %515 = vector.load %arg11[%c0_226, %514, %c0_227] : memref<1x16x32xf32, #tpu.memory_space<vmem>>, vector<1x1x32xf32>
    %516 = vector.shape_cast %515 : vector<1x1x32xf32> to vector<1x32xf32>
    %517 = arith.index_cast %c4_i32_222 : i32 to index
    %c32_228 = arith.constant 32 : index
    %518 = vector.load %arg12[%517, %c32_228] : memref<8x64xf32, #tpu.memory_space<vmem>>, vector<1x32xf32>
    tpu.vector_store %arg12[%517, %c32_228], %516 {strides = array<i32>} : memref<8x64xf32, #tpu.memory_space<vmem>>, vector<1x32xf32>,
    %c5_i32_229 = arith.constant 5 : i32
    %519 = arith.addi %438, %c5_i32_229 : i32
    %520 = arith.index_cast %519 : i32 to index
    %521 = memref.load %arg2[%520] : memref<48xi32, #tpu.memory_space<smem>>
    %522 = arith.addi %438, %c5_i32_229 : i32
    %523 = arith.index_cast %522 : i32 to index
    %524 = memref.load %arg3[%523] : memref<48xi32, #tpu.memory_space<smem>>
    %c0_230 = arith.constant 0 : index
    %525 = arith.index_cast %521 : i32 to index
    %c0_231 = arith.constant 0 : index
    %526 = vector.load %arg11[%c0_230, %525, %c0_231] : memref<1x16x32xf32, #tpu.memory_space<vmem>>, vector<1x1x32xf32>
    %527 = vector.shape_cast %526 : vector<1x1x32xf32> to vector<1x32xf32>
    %528 = arith.index_cast %c5_i32_229 : i32 to index
    %c0_232 = arith.constant 0 : index
    %529 = vector.load %arg12[%528, %c0_232] : memref<8x64xf32, #tpu.memory_space<vmem>>, vector<1x32xf32>
    tpu.vector_store %arg12[%528, %c0_232], %527 {strides = array<i32>} : memref<8x64xf32, #tpu.memory_space<vmem>>, vector<1x32xf32>,
    %c0_233 = arith.constant 0 : index
    %530 = arith.index_cast %524 : i32 to index
    %c0_234 = arith.constant 0 : index
    %531 = vector.load %arg11[%c0_233, %530, %c0_234] : memref<1x16x32xf32, #tpu.memory_space<vmem>>, vector<1x1x32xf32>
    %532 = vector.shape_cast %531 : vector<1x1x32xf32> to vector<1x32xf32>
    %533 = arith.index_cast %c5_i32_229 : i32 to index
    %c32_235 = arith.constant 32 : index
    %534 = vector.load %arg12[%533, %c32_235] : memref<8x64xf32, #tpu.memory_space<vmem>>, vector<1x32xf32>
    tpu.vector_store %arg12[%533, %c32_235], %532 {strides = array<i32>} : memref<8x64xf32, #tpu.memory_space<vmem>>, vector<1x32xf32>,
    %c6_i32_236 = arith.constant 6 : i32
    %535 = arith.addi %438, %c6_i32_236 : i32
    %536 = arith.index_cast %535 : i32 to index
    %537 = memref.load %arg2[%536] : memref<48xi32, #tpu.memory_space<smem>>
    %538 = arith.addi %438, %c6_i32_236 : i32
    %539 = arith.index_cast %538 : i32 to index
    %540 = memref.load %arg3[%539] : memref<48xi32, #tpu.memory_space<smem>>
    %c0_237 = arith.constant 0 : index
    %541 = arith.index_cast %537 : i32 to index
    %c0_238 = arith.constant 0 : index
    %542 = vector.load %arg11[%c0_237, %541, %c0_238] : memref<1x16x32xf32, #tpu.memory_space<vmem>>, vector<1x1x32xf32>
    %543 = vector.shape_cast %542 : vector<1x1x32xf32> to vector<1x32xf32>
    %544 = arith.index_cast %c6_i32_236 : i32 to index
    %c0_239 = arith.constant 0 : index
    %545 = vector.load %arg12[%544, %c0_239] : memref<8x64xf32, #tpu.memory_space<vmem>>, vector<1x32xf32>
    tpu.vector_store %arg12[%544, %c0_239], %543 {strides = array<i32>} : memref<8x64xf32, #tpu.memory_space<vmem>>, vector<1x32xf32>,
    %c0_240 = arith.constant 0 : index
    %546 = arith.index_cast %540 : i32 to index
    %c0_241 = arith.constant 0 : index
    %547 = vector.load %arg11[%c0_240, %546, %c0_241] : memref<1x16x32xf32, #tpu.memory_space<vmem>>, vector<1x1x32xf32>
    %548 = vector.shape_cast %547 : vector<1x1x32xf32> to vector<1x32xf32>
    %549 = arith.index_cast %c6_i32_236 : i32 to index
    %c32_242 = arith.constant 32 : index
    %550 = vector.load %arg12[%549, %c32_242] : memref<8x64xf32, #tpu.memory_space<vmem>>, vector<1x32xf32>
    tpu.vector_store %arg12[%549, %c32_242], %548 {strides = array<i32>} : memref<8x64xf32, #tpu.memory_space<vmem>>, vector<1x32xf32>,
    %c7_i32_243 = arith.constant 7 : i32
    %551 = arith.addi %438, %c7_i32_243 : i32
    %552 = arith.index_cast %551 : i32 to index
    %553 = memref.load %arg2[%552] : memref<48xi32, #tpu.memory_space<smem>>
    %554 = arith.addi %438, %c7_i32_243 : i32
    %555 = arith.index_cast %554 : i32 to index
    %556 = memref.load %arg3[%555] : memref<48xi32, #tpu.memory_space<smem>>
    %c0_244 = arith.constant 0 : index
    %557 = arith.index_cast %553 : i32 to index
    %c0_245 = arith.constant 0 : index
    %558 = vector.load %arg11[%c0_244, %557, %c0_245] : memref<1x16x32xf32, #tpu.memory_space<vmem>>, vector<1x1x32xf32>
    %559 = vector.shape_cast %558 : vector<1x1x32xf32> to vector<1x32xf32>
    %560 = arith.index_cast %c7_i32_243 : i32 to index
    %c0_246 = arith.constant 0 : index
    %561 = vector.load %arg12[%560, %c0_246] : memref<8x64xf32, #tpu.memory_space<vmem>>, vector<1x32xf32>
    tpu.vector_store %arg12[%560, %c0_246], %559 {strides = array<i32>} : memref<8x64xf32, #tpu.memory_space<vmem>>, vector<1x32xf32>,
    %c0_247 = arith.constant 0 : index
    %562 = arith.index_cast %556 : i32 to index
    %c0_248 = arith.constant 0 : index
    %563 = vector.load %arg11[%c0_247, %562, %c0_248] : memref<1x16x32xf32, #tpu.memory_space<vmem>>, vector<1x1x32xf32>
    %564 = vector.shape_cast %563 : vector<1x1x32xf32> to vector<1x32xf32>
    %565 = arith.index_cast %c7_i32_243 : i32 to index
    %c32_249 = arith.constant 32 : index
    %566 = vector.load %arg12[%565, %c32_249] : memref<8x64xf32, #tpu.memory_space<vmem>>, vector<1x32xf32>
    tpu.vector_store %arg12[%565, %c32_249], %564 {strides = array<i32>} : memref<8x64xf32, #tpu.memory_space<vmem>>, vector<1x32xf32>,
    %c8_i32_250 = arith.constant 8 : i32
    %c0_251 = arith.constant 0 : index
    %c0_252 = arith.constant 0 : index
    %567 = vector.load %arg12[%c0_251, %c0_252] : memref<8x64xf32, #tpu.memory_space<vmem>>, vector<8x64xf32>
    %568 = vector.shape_cast %567 : vector<8x64xf32> to vector<8x64x1xf32>
    %569 = vector.shape_cast %567 : vector<8x64xf32> to vector<8x1x64xf32>
    %570 = vector.broadcast %568 : vector<8x64x1xf32> to vector<8x64x64xf32>
    %571 = vector.broadcast %569 : vector<8x1x64xf32> to vector<8x64x64xf32>
    %572 = arith.mulf %570, %571 : vector<8x64x64xf32>
    %573 = vector.shape_cast %572 : vector<8x64x64xf32> to vector<8x4096xf32>
    %574 = arith.truncf %573 : vector<8x4096xf32> to vector<8x4096xbf16>
    %cst_253 = arith.constant dense<0.000000e+00> : vector<8x32xf32>
    %575 = tpu.matmul %574, %2, %cst_253 {dimension_numbers = #tpu.dot_dimension_numbers<[1], [0], [0], [1], [0, 0, 1, 1], [], []>} : vector<8x4096xbf16>, vector<4096x32xbf16>, vector<8x32xf32> -> vector<8x32xf32>
    %cst_254 = arith.constant dense<0.000000e+00> : vector<8x32xf32>
    %576 = tpu.matmul %567, %3, %cst_254 {dimension_numbers = #tpu.dot_dimension_numbers<[1], [0], [0], [1], [0, 0, 1, 1], [], []>} : vector<8x64xf32>, vector<64x32xf32>, vector<8x32xf32> -> vector<8x32xf32>
    %577 = arith.addf %575, %576 : vector<8x32xf32>
    %578 = vector.broadcast %4 : vector<1x32xf32> to vector<8x32xf32>
    %579 = arith.addf %577, %578 : vector<8x32xf32>
    %580 = math.tanh %579 : vector<8x32xf32>
    %c0_255 = arith.constant 0 : index
    %c0_256 = arith.constant 0 : index
    %581 = vector.load %arg13[%c0_255, %c0_256] : memref<8x32xf32, #tpu.memory_space<vmem>>, vector<8x32xf32>
    tpu.vector_store %arg13[%c0_255, %c0_256], %580 {strides = array<i32>} : memref<8x32xf32, #tpu.memory_space<vmem>>, vector<8x32xf32>,
    %c0_i32_257 = arith.constant 0 : i32
    %582 = arith.addi %438, %c0_i32_257 : i32
    %583 = arith.index_cast %582 : i32 to index
    %584 = memref.load %arg1[%583] : memref<48xi32, #tpu.memory_space<smem>>
    %585 = arith.index_cast %c0_i32_257 : i32 to index
    %c0_258 = arith.constant 0 : index
    %586 = vector.load %arg13[%585, %c0_258] : memref<8x32xf32, #tpu.memory_space<vmem>>, vector<1x32xf32>
    %c0_259 = arith.constant 0 : index
    %587 = arith.index_cast %584 : i32 to index
    %c0_260 = arith.constant 0 : index
    %588 = vector.load %arg11[%c0_259, %587, %c0_260] : memref<1x16x32xf32, #tpu.memory_space<vmem>>, vector<1x1x32xf32>
    %589 = vector.shape_cast %588 : vector<1x1x32xf32> to vector<1x32xf32>
    %590 = vector.shape_cast %586 : vector<1x32xf32> to vector<1x1x32xf32>
    tpu.vector_store %arg11[%c0_259, %587, %c0_260], %590 {strides = array<i32>} : memref<1x16x32xf32, #tpu.memory_space<vmem>>, vector<1x1x32xf32>,
    %c1_i32_261 = arith.constant 1 : i32
    %591 = arith.addi %438, %c1_i32_261 : i32
    %592 = arith.index_cast %591 : i32 to index
    %593 = memref.load %arg1[%592] : memref<48xi32, #tpu.memory_space<smem>>
    %594 = arith.index_cast %c1_i32_261 : i32 to index
    %c0_262 = arith.constant 0 : index
    %595 = vector.load %arg13[%594, %c0_262] : memref<8x32xf32, #tpu.memory_space<vmem>>, vector<1x32xf32>
    %c0_263 = arith.constant 0 : index
    %596 = arith.index_cast %593 : i32 to index
    %c0_264 = arith.constant 0 : index
    %597 = vector.load %arg11[%c0_263, %596, %c0_264] : memref<1x16x32xf32, #tpu.memory_space<vmem>>, vector<1x1x32xf32>
    %598 = vector.shape_cast %597 : vector<1x1x32xf32> to vector<1x32xf32>
    %599 = vector.shape_cast %595 : vector<1x32xf32> to vector<1x1x32xf32>
    tpu.vector_store %arg11[%c0_263, %596, %c0_264], %599 {strides = array<i32>} : memref<1x16x32xf32, #tpu.memory_space<vmem>>, vector<1x1x32xf32>,
    %c2_i32_265 = arith.constant 2 : i32
    %600 = arith.addi %438, %c2_i32_265 : i32
    %601 = arith.index_cast %600 : i32 to index
    %602 = memref.load %arg1[%601] : memref<48xi32, #tpu.memory_space<smem>>
    %603 = arith.index_cast %c2_i32_265 : i32 to index
    %c0_266 = arith.constant 0 : index
    %604 = vector.load %arg13[%603, %c0_266] : memref<8x32xf32, #tpu.memory_space<vmem>>, vector<1x32xf32>
    %c0_267 = arith.constant 0 : index
    %605 = arith.index_cast %602 : i32 to index
    %c0_268 = arith.constant 0 : index
    %606 = vector.load %arg11[%c0_267, %605, %c0_268] : memref<1x16x32xf32, #tpu.memory_space<vmem>>, vector<1x1x32xf32>
    %607 = vector.shape_cast %606 : vector<1x1x32xf32> to vector<1x32xf32>
    %608 = vector.shape_cast %604 : vector<1x32xf32> to vector<1x1x32xf32>
    tpu.vector_store %arg11[%c0_267, %605, %c0_268], %608 {strides = array<i32>} : memref<1x16x32xf32, #tpu.memory_space<vmem>>, vector<1x1x32xf32>,
    %c3_i32_269 = arith.constant 3 : i32
    %609 = arith.addi %438, %c3_i32_269 : i32
    %610 = arith.index_cast %609 : i32 to index
    %611 = memref.load %arg1[%610] : memref<48xi32, #tpu.memory_space<smem>>
    %612 = arith.index_cast %c3_i32_269 : i32 to index
    %c0_270 = arith.constant 0 : index
    %613 = vector.load %arg13[%612, %c0_270] : memref<8x32xf32, #tpu.memory_space<vmem>>, vector<1x32xf32>
    %c0_271 = arith.constant 0 : index
    %614 = arith.index_cast %611 : i32 to index
    %c0_272 = arith.constant 0 : index
    %615 = vector.load %arg11[%c0_271, %614, %c0_272] : memref<1x16x32xf32, #tpu.memory_space<vmem>>, vector<1x1x32xf32>
    %616 = vector.shape_cast %615 : vector<1x1x32xf32> to vector<1x32xf32>
    %617 = vector.shape_cast %613 : vector<1x32xf32> to vector<1x1x32xf32>
    tpu.vector_store %arg11[%c0_271, %614, %c0_272], %617 {strides = array<i32>} : memref<1x16x32xf32, #tpu.memory_space<vmem>>, vector<1x1x32xf32>,
    %c4_i32_273 = arith.constant 4 : i32
    %618 = arith.addi %438, %c4_i32_273 : i32
    %619 = arith.index_cast %618 : i32 to index
    %620 = memref.load %arg1[%619] : memref<48xi32, #tpu.memory_space<smem>>
    %621 = arith.index_cast %c4_i32_273 : i32 to index
    %c0_274 = arith.constant 0 : index
    %622 = vector.load %arg13[%621, %c0_274] : memref<8x32xf32, #tpu.memory_space<vmem>>, vector<1x32xf32>
    %c0_275 = arith.constant 0 : index
    %623 = arith.index_cast %620 : i32 to index
    %c0_276 = arith.constant 0 : index
    %624 = vector.load %arg11[%c0_275, %623, %c0_276] : memref<1x16x32xf32, #tpu.memory_space<vmem>>, vector<1x1x32xf32>
    %625 = vector.shape_cast %624 : vector<1x1x32xf32> to vector<1x32xf32>
    %626 = vector.shape_cast %622 : vector<1x32xf32> to vector<1x1x32xf32>
    tpu.vector_store %arg11[%c0_275, %623, %c0_276], %626 {strides = array<i32>} : memref<1x16x32xf32, #tpu.memory_space<vmem>>, vector<1x1x32xf32>,
    %c5_i32_277 = arith.constant 5 : i32
    %627 = arith.addi %438, %c5_i32_277 : i32
    %628 = arith.index_cast %627 : i32 to index
    %629 = memref.load %arg1[%628] : memref<48xi32, #tpu.memory_space<smem>>
    %630 = arith.index_cast %c5_i32_277 : i32 to index
    %c0_278 = arith.constant 0 : index
    %631 = vector.load %arg13[%630, %c0_278] : memref<8x32xf32, #tpu.memory_space<vmem>>, vector<1x32xf32>
    %c0_279 = arith.constant 0 : index
    %632 = arith.index_cast %629 : i32 to index
    %c0_280 = arith.constant 0 : index
    %633 = vector.load %arg11[%c0_279, %632, %c0_280] : memref<1x16x32xf32, #tpu.memory_space<vmem>>, vector<1x1x32xf32>
    %634 = vector.shape_cast %633 : vector<1x1x32xf32> to vector<1x32xf32>
    %635 = vector.shape_cast %631 : vector<1x32xf32> to vector<1x1x32xf32>
    tpu.vector_store %arg11[%c0_279, %632, %c0_280], %635 {strides = array<i32>} : memref<1x16x32xf32, #tpu.memory_space<vmem>>, vector<1x1x32xf32>,
    %c6_i32_281 = arith.constant 6 : i32
    %636 = arith.addi %438, %c6_i32_281 : i32
    %637 = arith.index_cast %636 : i32 to index
    %638 = memref.load %arg1[%637] : memref<48xi32, #tpu.memory_space<smem>>
    %639 = arith.index_cast %c6_i32_281 : i32 to index
    %c0_282 = arith.constant 0 : index
    %640 = vector.load %arg13[%639, %c0_282] : memref<8x32xf32, #tpu.memory_space<vmem>>, vector<1x32xf32>
    %c0_283 = arith.constant 0 : index
    %641 = arith.index_cast %638 : i32 to index
    %c0_284 = arith.constant 0 : index
    %642 = vector.load %arg11[%c0_283, %641, %c0_284] : memref<1x16x32xf32, #tpu.memory_space<vmem>>, vector<1x1x32xf32>
    %643 = vector.shape_cast %642 : vector<1x1x32xf32> to vector<1x32xf32>
    %644 = vector.shape_cast %640 : vector<1x32xf32> to vector<1x1x32xf32>
    tpu.vector_store %arg11[%c0_283, %641, %c0_284], %644 {strides = array<i32>} : memref<1x16x32xf32, #tpu.memory_space<vmem>>, vector<1x1x32xf32>,
    %c7_i32_285 = arith.constant 7 : i32
    %645 = arith.addi %438, %c7_i32_285 : i32
    %646 = arith.index_cast %645 : i32 to index
    %647 = memref.load %arg1[%646] : memref<48xi32, #tpu.memory_space<smem>>
    %648 = arith.index_cast %c7_i32_285 : i32 to index
    %c0_286 = arith.constant 0 : index
    %649 = vector.load %arg13[%648, %c0_286] : memref<8x32xf32, #tpu.memory_space<vmem>>, vector<1x32xf32>
    %c0_287 = arith.constant 0 : index
    %650 = arith.index_cast %647 : i32 to index
    %c0_288 = arith.constant 0 : index
    %651 = vector.load %arg11[%c0_287, %650, %c0_288] : memref<1x16x32xf32, #tpu.memory_space<vmem>>, vector<1x1x32xf32>
    %652 = vector.shape_cast %651 : vector<1x1x32xf32> to vector<1x32xf32>
    %653 = vector.shape_cast %649 : vector<1x32xf32> to vector<1x1x32xf32>
    tpu.vector_store %arg11[%c0_287, %650, %c0_288], %653 {strides = array<i32>} : memref<1x16x32xf32, #tpu.memory_space<vmem>>, vector<1x1x32xf32>,
    %c8_i32_289 = arith.constant 8 : i32
    %c0_290 = arith.constant 0 : index
    %c0_291 = arith.constant 0 : index
    %c0_292 = arith.constant 0 : index
    %654 = vector.load %arg11[%c0_290, %c0_291, %c0_292] : memref<1x16x32xf32, #tpu.memory_space<vmem>>, vector<1x16x32xf32>
    %655 = vector.shape_cast %654 : vector<1x16x32xf32> to vector<16x32xf32>
    %c0_293 = arith.constant 0 : index
    %c0_294 = arith.constant 0 : index
    %656 = vector.load %arg8[%c0_293, %c0_294] : memref<32x128xf32, #tpu.memory_space<vmem>>, vector<32x128xf32>
    %cst_295 = arith.constant dense<0.000000e+00> : vector<16x128xf32>
    %657 = tpu.matmul %655, %656, %cst_295 {dimension_numbers = #tpu.dot_dimension_numbers<[1], [0], [0], [1], [0, 0, 1, 1], [], []>} : vector<16x32xf32>, vector<32x128xf32>, vector<16x128xf32> -> vector<16x128xf32>
    %c0_296 = arith.constant 0 : index
    %c0_297 = arith.constant 0 : index
    %658 = vector.load %arg9[%c0_296, %c0_297] : memref<1x128xf32, #tpu.memory_space<vmem>>, vector<1x128xf32>
    %659 = vector.broadcast %658 : vector<1x128xf32> to vector<16x128xf32>
    %660 = arith.addf %657, %659 : vector<16x128xf32>
    %cst_298 = arith.constant dense<0xFF800000> : vector<16xf32>
    %661 = vector.multi_reduction <maximumf>, %660, %cst_298 [1] : vector<16x128xf32> to vector<16xf32>
    %662 = vector.shape_cast %661 : vector<16xf32> to vector<16x1xf32>
    %663 = vector.broadcast %662 : vector<16x1xf32> to vector<16x128xf32>
    %664 = arith.subf %660, %663 : vector<16x128xf32>
    %665 = math.exp %664 : vector<16x128xf32>
    %cst_299 = arith.constant dense<0.000000e+00> : vector<16xf32>
    %666 = vector.multi_reduction <add>, %665, %cst_299 [1] : vector<16x128xf32> to vector<16xf32>
    %667 = vector.shape_cast %666 : vector<16xf32> to vector<16x1xf32>
    %668 = math.log %667 : vector<16x1xf32>
    %669 = vector.broadcast %668 : vector<16x1xf32> to vector<16x128xf32>
    %670 = arith.subf %664, %669 : vector<16x128xf32>
    %c0_300 = arith.constant 0 : index
    %c0_301 = arith.constant 0 : index
    %c0_302 = arith.constant 0 : index
    %671 = vector.load %arg10[%c0_300, %c0_301, %c0_302] : memref<1x16x128xf32, #tpu.memory_space<vmem>>, vector<1x16x128xf32>
    %672 = vector.shape_cast %671 : vector<1x16x128xf32> to vector<16x128xf32>
    %673 = vector.shape_cast %670 : vector<16x128xf32> to vector<1x16x128xf32>
    tpu.vector_store %arg10[%c0_300, %c0_301, %c0_302], %673 {strides = array<i32>} : memref<1x16x128xf32, #tpu.memory_space<vmem>>, vector<1x16x128xf32>,
    return
  }
  func.func @transform_0(%arg0: i32, %arg1: memref<48xi32, #tpu.memory_space<smem>>, %arg2: memref<48xi32, #tpu.memory_space<smem>>, %arg3: memref<48xi32, #tpu.memory_space<smem>>) -> (i32, i32, i32) {
    %c0_i32 = arith.constant 0 : i32
    %c0_i32_0 = arith.constant 0 : i32
    %c0_i32_1 = arith.constant 0 : i32
    return %arg0, %c0_i32, %c0_i32_0 : i32, i32, i32
  }
  func.func @transform_1(%arg0: i32, %arg1: memref<48xi32, #tpu.memory_space<smem>>, %arg2: memref<48xi32, #tpu.memory_space<smem>>, %arg3: memref<48xi32, #tpu.memory_space<smem>>) -> (i32, i32) {
    %c0_i32 = arith.constant 0 : i32
    %c0_i32_0 = arith.constant 0 : i32
    %c0_i32_1 = arith.constant 0 : i32
    return %c0_i32, %c0_i32_0 : i32, i32
  }
  func.func @transform_2(%arg0: i32, %arg1: memref<48xi32, #tpu.memory_space<smem>>, %arg2: memref<48xi32, #tpu.memory_space<smem>>, %arg3: memref<48xi32, #tpu.memory_space<smem>>) -> (i32, i32) {
    %c0_i32 = arith.constant 0 : i32
    %c0_i32_0 = arith.constant 0 : i32
    %c0_i32_1 = arith.constant 0 : i32
    return %c0_i32, %c0_i32_0 : i32, i32
  }
  func.func @transform_3(%arg0: i32, %arg1: memref<48xi32, #tpu.memory_space<smem>>, %arg2: memref<48xi32, #tpu.memory_space<smem>>, %arg3: memref<48xi32, #tpu.memory_space<smem>>) -> (i32, i32) {
    %c0_i32 = arith.constant 0 : i32
    %c0_i32_0 = arith.constant 0 : i32
    %c0_i32_1 = arith.constant 0 : i32
    return %c0_i32, %c0_i32_0 : i32, i32
  }
  func.func @transform_4(%arg0: i32, %arg1: memref<48xi32, #tpu.memory_space<smem>>, %arg2: memref<48xi32, #tpu.memory_space<smem>>, %arg3: memref<48xi32, #tpu.memory_space<smem>>) -> (i32, i32) {
    %c0_i32 = arith.constant 0 : i32
    %c0_i32_0 = arith.constant 0 : i32
    %c0_i32_1 = arith.constant 0 : i32
    return %c0_i32, %c0_i32_0 : i32, i32
  }
  func.func @transform_5(%arg0: i32, %arg1: memref<48xi32, #tpu.memory_space<smem>>, %arg2: memref<48xi32, #tpu.memory_space<smem>>, %arg3: memref<48xi32, #tpu.memory_space<smem>>) -> (i32, i32) {
    %c0_i32 = arith.constant 0 : i32
    %c0_i32_0 = arith.constant 0 : i32
    %c0_i32_1 = arith.constant 0 : i32
    return %c0_i32, %c0_i32_0 : i32, i32
  }
  func.func @transform_6(%arg0: i32, %arg1: memref<48xi32, #tpu.memory_space<smem>>, %arg2: memref<48xi32, #tpu.memory_space<smem>>, %arg3: memref<48xi32, #tpu.memory_space<smem>>) -> (i32, i32, i32) {
    %c0_i32 = arith.constant 0 : i32
    %c0_i32_0 = arith.constant 0 : i32
    %c0_i32_1 = arith.constant 0 : i32
    return %arg0, %c0_i32, %c0_i32_0 : i32, i32, i32
  }
  func.func @transform_7(%arg0: i32, %arg1: memref<48xi32, #tpu.memory_space<smem>>, %arg2: memref<48xi32, #tpu.memory_space<smem>>, %arg3: memref<48xi32, #tpu.memory_space<smem>>) -> (i32, i32, i32) {
    %c0_i32 = arith.constant 0 : i32
    %c0_i32_0 = arith.constant 0 : i32
    %c0_i32_1 = arith.constant 0 : i32
    return %arg0, %c0_i32, %c0_i32_0 : i32, i32, i32
  }
}

</mosaic_0001>

<llo_original>
// kernel: tpu_custom_call.1
$region0: #{tpu_custom_call.1}
  #allocation0 [shape = 'u32[]', space=smem, size = 0x4, offset = 0x4, fixed_abs, tag = 'smem constant byte address 0x4 - core index']
  #allocation1 [shape = 'u32[72,128]{1,0:T(1,128)}', space=vmem, size = 0x9000, scoped, tag = 'internal scratch']
  #allocation2 [shape = 'f32[8,64]{1,0:T(8,128)}', space=vmem, size = 0x1000, scoped, tag = 'scratch operand']
  #allocation3 [shape = 'f32[8,32]{1,0:T(8,128)}', space=vmem, size = 0x1000, scoped, tag = 'scratch operand']
  #allocation4 [shape = 's32[1]{0}', space=sflag, size = 0x4, scoped, tag = 'scoped memory for tpu_custom_call.1']
  #allocation5 [shape = 'u8[512]{0}', space=smem, size = 0x200, scoped, tag = 'prefetched SMEM operand 0']
  #allocation6 [shape = 'u8[512]{0}', space=smem, size = 0x200, scoped, tag = 'prefetched SMEM operand 1']
  #allocation7 [shape = 'u8[512]{0}', space=smem, size = 0x200, scoped, tag = 'prefetched SMEM operand 2']
  %s0 = inlined_call_operand.vmem [shape: s32[48], index: 0, kind: input, shape index: {}]
  %s1 = inlined_call_operand.vmem [shape: s32[48], index: 1, kind: input, shape index: {}]
  %s2 = inlined_call_operand.vmem [shape: s32[48], index: 2, kind: input, shape index: {}]
  %s3 = inlined_call_operand.vmem [shape: f32[2,16,32], index: 3, kind: input, shape index: {}]
  %s4 = inlined_call_operand.vmem [shape: bf16[4096,32], index: 4, kind: input, shape index: {}]
  %s5 = inlined_call_operand.vmem [shape: f32[64,32], index: 5, kind: input, shape index: {}]
  %s6 = inlined_call_operand.vmem [shape: f32[1,32], index: 6, kind: input, shape index: {}]
  %s7 = inlined_call_operand.vmem [shape: f32[32,128], index: 7, kind: input, shape index: {}]
  %s8 = inlined_call_operand.vmem [shape: f32[1,128], index: 8, kind: input, shape index: {}]
  %s9 = inlined_call_operand.hbm [shape: f32[2,16,128], index: 9, kind: output, shape index: {0}]
  %s10 = inlined_call_operand.hbm [shape: f32[2,16,32], index: 10, kind: output, shape index: {1}]
  %11 = xla_tuple %s9, %s10
  %s12 = sld [smem:[#allocation0]]
  $region65: #{tpu_custom_call.1} parent=0
    _
  %s14 = ssub.s32 1, %s12
  %s15 = scalar_select 0, %s14, %s12
  %s17 = sshll.u32 %s0, 4
  %s18 = int_to_ptr.vmem [resolvable:$true] %s17
  %20 = dma.vmem_to_smem %s18, 16, [#allocation5], [#allocation4]
  %s22 = sshll.u32 %s1, 4
  %s23 = int_to_ptr.vmem [resolvable:$true] %s22
  %25 = dma.vmem_to_smem %s23, 16, [#allocation6], [#allocation4]
  %s27 = sshll.u32 %s2, 4
  %s28 = int_to_ptr.vmem [resolvable:$true] %s27
  %30 = dma.vmem_to_smem %s28, 16, [#allocation7], [#allocation4]
  %32 = dma.done [#allocation4], 48
  %33 = sfence
  $region1: #{tpu_custom_call.1} parent=0
    #allocation8 [shape = 'u8[16384]{0}', space=vmem, size = 0x4000, scoped, tag = 'output window, operand 0']
    #allocation9 [shape = 's32[2]{0}', space=sflag, size = 0x8, scoped, tag = 'scoped memory for tpu_custom_call.1']
    #allocation10 [shape = 'u8[16384]{0}', space=vmem, size = 0x4000, scoped, tag = 'output window, operand 1']
    #allocation11 [shape = 's32[2]{0}', space=sflag, size = 0x8, scoped, tag = 'scoped memory for tpu_custom_call.1']
    %34 = vsyncpa [#allocation9], 0
    %s35 = scalar_lea.sflag [#allocation9], 1
    %36 = vsyncpa %s35, 0
    %37 = vsyncpa [#allocation11], 0
    %s38 = scalar_lea.sflag [#allocation11], 1
    %39 = vsyncpa %s38, 0
    loop: start=0, step=1, limit=4
    $region2: #{tpu_custom_call.1} parent=1 // loop_pre_header
      _
    $region3: #{tpu_custom_call.1} parent=1 // loop_header
      %s41 = sphi 0, %s45
      %p42 = scmp.ge.s32.totalorder %s41, 4
      %s51 = sphi 0, %s53
      %s54 = sphi 0, %s51
      %s55 = sphi 0, %s54
      %s71 = sphi 0, %s55
      %s75 = sphi 0, %s75
      %s77 = sphi 0, %s75
      %s78 = sphi 0, %s77
      %s92 = sphi 0, %s78
      %s96 = sphi 0, %s96
      %s98 = sphi 0, %s96
      %s99 = sphi 0, %s98
      %s113 = sphi 0, %s99
      %s117 = sphi 0, %s117
      %s119 = sphi 0, %s117
      %s120 = sphi 0, %s119
      %s134 = sphi 0, %s120
      %s138 = sphi 0, %s138
      %s140 = sphi 0, %s138
      %s141 = sphi 0, %s140
      %s155 = sphi 0, %s141
      %s159 = sphi 0, %s159
      %s161 = sphi 0, %s159
      %s162 = sphi 0, %s161
      %s176 = sphi 0, %s162
      %s182 = sphi 0, %s184
      %s185 = sphi 0, %s182
      %s186 = sphi 0, %s185
      %s202 = sphi 0, %s186
      %s208 = sphi 0, %s210
      %s211 = sphi 0, %s208
      %s212 = sphi 0, %s211
      %s228 = sphi 0, %s212
    $region4: #{tpu_custom_call.1} parent=1 // loop_header_branch
      %44 = sbr.rel (%p42) target = $region8
    $region5: #{tpu_custom_call.1} parent=1 // loop_body
      %s46 = ssub.s32 %s41, 1
      %s47 = ssub.s32 %s41, 2
      %s48 = sadd.s32 %s41, 1
      %s49 = ssub.s32 %s41, %s48
      %p50 = scmp.eq.s32.totalorder %s49, 0
      %s52 = sadd.s32 %s51, 1
      %s53 = scalar_select %p50, %s51, %s52
      %p56 = pneg %p50
      %p57 = scmp.eq.s32.totalorder %s41, 1
      %p58 = por %p56, %p57
      %p59 = scmp.ne.s32.totalorder %s51, %s54
      %p60 = scmp.eq.s32.totalorder %s41, 0
      %p61 = por %p59, %p60
      %p62 = scmp.ne.s32.totalorder %s51, %s54
      %p63 = scmp.eq.s32.totalorder %s46, 1
      %p64 = por %p62, %p63
      %p65 = scmp.ne.s32.totalorder %s54, %s55
      %p66 = scmp.eq.s32.totalorder %s46, 0
      %p67 = por %p65, %p66
      %p68 = scmp.ne.s32.totalorder %s54, %s55
      %p69 = scmp.eq.s32.totalorder %s47, 1
      %p70 = por %p68, %p69
      %p72 = scmp.ne.s32.totalorder %s55, %s71
      %p73 = scmp.eq.s32.totalorder %s47, 0
      %p74 = por %p72, %p73
      %s76 = sadd.s32 %s75, 1
      %p79 = scmp.eq.s32.totalorder %s41, 1
      %p80 = scmp.ne.s32.totalorder %s75, %s77
      %p81 = scmp.eq.s32.totalorder %s41, 0
      %p82 = por %p80, %p81
      %p83 = scmp.ne.s32.totalorder %s75, %s77
      %p84 = scmp.eq.s32.totalorder %s46, 1
      %p85 = por %p83, %p84
      %p86 = scmp.ne.s32.totalorder %s77, %s78
      %p87 = scmp.eq.s32.totalorder %s46, 0
      %p88 = por %p86, %p87
      %p89 = scmp.ne.s32.totalorder %s77, %s78
      %p90 = scmp.eq.s32.totalorder %s47, 1
      %p91 = por %p89, %p90
      %p93 = scmp.ne.s32.totalorder %s78, %s92
      %p94 = scmp.eq.s32.totalorder %s47, 0
      %p95 = por %p93, %p94
      %s97 = sadd.s32 %s96, 1
      %p100 = scmp.eq.s32.totalorder %s41, 1
      %p101 = scmp.ne.s32.totalorder %s96, %s98
      %p102 = scmp.eq.s32.totalorder %s41, 0
      %p103 = por %p101, %p102
      %p104 = scmp.ne.s32.totalorder %s96, %s98
      %p105 = scmp.eq.s32.totalorder %s46, 1
      %p106 = por %p104, %p105
      %p107 = scmp.ne.s32.totalorder %s98, %s99
      %p108 = scmp.eq.s32.totalorder %s46, 0
      %p109 = por %p107, %p108
      %p110 = scmp.ne.s32.totalorder %s98, %s99
      %p111 = scmp.eq.s32.totalorder %s47, 1
      %p112 = por %p110, %p111
      %p114 = scmp.ne.s32.totalorder %s99, %s113
      %p115 = scmp.eq.s32.totalorder %s47, 0
      %p116 = por %p114, %p115
      %s118 = sadd.s32 %s117, 1
      %p121 = scmp.eq.s32.totalorder %s41, 1
      %p122 = scmp.ne.s32.totalorder %s117, %s119
      %p123 = scmp.eq.s32.totalorder %s41, 0
      %p124 = por %p122, %p123
      %p125 = scmp.ne.s32.totalorder %s117, %s119
      %p126 = scmp.eq.s32.totalorder %s46, 1
      %p127 = por %p125, %p126
      %p128 = scmp.ne.s32.totalorder %s119, %s120
      %p129 = scmp.eq.s32.totalorder %s46, 0
      %p130 = por %p128, %p129
      %p131 = scmp.ne.s32.totalorder %s119, %s120
      %p132 = scmp.eq.s32.totalorder %s47, 1
      %p133 = por %p131, %p132
      %p135 = scmp.ne.s32.totalorder %s120, %s134
      %p136 = scmp.eq.s32.totalorder %s47, 0
      %p137 = por %p135, %p136
      %s139 = sadd.s32 %s138, 1
      %p142 = scmp.eq.s32.totalorder %s41, 1
      %p143 = scmp.ne.s32.totalorder %s138, %s140
      %p144 = scmp.eq.s32.totalorder %s41, 0
      %p145 = por %p143, %p144
      %p146 = scmp.ne.s32.totalorder %s138, %s140
      %p147 = scmp.eq.s32.totalorder %s46, 1
      %p148 = por %p146, %p147
      %p149 = scmp.ne.s32.totalorder %s140, %s141
      %p150 = scmp.eq.s32.totalorder %s46, 0
      %p151 = por %p149, %p150
      %p152 = scmp.ne.s32.totalorder %s140, %s141
      %p153 = scmp.eq.s32.totalorder %s47, 1
      %p154 = por %p152, %p153
      %p156 = scmp.ne.s32.totalorder %s141, %s155
      %p157 = scmp.eq.s32.totalorder %s47, 0
      %p158 = por %p156, %p157
      %s160 = sadd.s32 %s159, 1
      %p163 = scmp.eq.s32.totalorder %s41, 1
      %p164 = scmp.ne.s32.totalorder %s159, %s161
      %p165 = scmp.eq.s32.totalorder %s41, 0
      %p166 = por %p164, %p165
      %p167 = scmp.ne.s32.totalorder %s159, %s161
      %p168 = scmp.eq.s32.totalorder %s46, 1
      %p169 = por %p167, %p168
      %p170 = scmp.ne.s32.totalorder %s161, %s162
      %p171 = scmp.eq.s32.totalorder %s46, 0
      %p172 = por %p170, %p171
      %p173 = scmp.ne.s32.totalorder %s161, %s162
      %p174 = scmp.eq.s32.totalorder %s47, 1
      %p175 = por %p173, %p174
      %p177 = scmp.ne.s32.totalorder %s162, %s176
      %p178 = scmp.eq.s32.totalorder %s47, 0
      %p179 = por %p177, %p178
      %s180 = ssub.s32 %s41, %s48
      %p181 = scmp.eq.s32.totalorder %s180, 0
      %s183 = sadd.s32 %s182, 1
      %s184 = scalar_select %p181, %s182, %s183
      %p187 = pneg %p181
      %p188 = scmp.eq.s32.totalorder %s41, 1
      %p189 = por %p187, %p188
      %p190 = scmp.ne.s32.totalorder %s182, %s185
      %p191 = scmp.eq.s32.totalorder %s41, 0
      %p192 = por %p190, %p191
      %p193 = scmp.ne.s32.totalorder %s182, %s185
      %p194 = scmp.eq.s32.totalorder %s46, 1
      %p195 = por %p193, %p194
      %p196 = scmp.ne.s32.totalorder %s185, %s186
      %p197 = scmp.eq.s32.totalorder %s46, 0
      %p198 = por %p196, %p197
      %p199 = scmp.ne.s32.totalorder %s185, %s186
      %p200 = scmp.eq.s32.totalorder %s47, 1
      %p201 = por %p199, %p200
      %p203 = scmp.ne.s32.totalorder %s186, %s202
      %p204 = scmp.eq.s32.totalorder %s47, 0
      %p205 = por %p203, %p204
      %s206 = ssub.s32 %s41, %s48
      %p207 = scmp.eq.s32.totalorder %s206, 0
      %s209 = sadd.s32 %s208, 1
      %s210 = scalar_select %p207, %s208, %s209
      %p213 = pneg %p207
      %p214 = scmp.eq.s32.totalorder %s41, 1
      %p215 = por %p213, %p214
      %p216 = scmp.ne.s32.totalorder %s208, %s211
      %p217 = scmp.eq.s32.totalorder %s41, 0
      %p218 = por %p216, %p217
      %p219 = scmp.ne.s32.totalorder %s208, %s211
      %p220 = scmp.eq.s32.totalorder %s46, 1
      %p221 = por %p219, %p220
      %p222 = scmp.ne.s32.totalorder %s211, %s212
      %p223 = scmp.eq.s32.totalorder %s46, 0
      %p224 = por %p222, %p223
      %p225 = scmp.ne.s32.totalorder %s211, %s212
      %p226 = scmp.eq.s32.totalorder %s47, 1
      %p227 = por %p225, %p226
      %p229 = scmp.ne.s32.totalorder %s212, %s228
      %p230 = scmp.eq.s32.totalorder %s47, 0
      %p231 = por %p229, %p230
      %p232 = scmp.le.s32.totalorder 1, %s41
      %p233 = scmp.lt.s32.totalorder %s41, 3
      %p234 = pnand %p232, %p233
      %p235 = pneg %p234
      // Predicated region
      $region9: #{tpu_custom_call.1} parent=5 // pred_check
        _
      $region10: #{tpu_custom_call.1} parent=5 // pred_check_branch
        %237 = sbr.rel (%p234) target = $region12
      $region11: #{tpu_custom_call.1} parent=5 // pred_region
        %s238 = ssub.s32 %s41, 1
        // Predicated region
        $region13: #{tpu_custom_call.1} parent=11 // pred_check
          %p239 = pneg %p88
        $region14: #{tpu_custom_call.1} parent=11 // pred_check_branch
          %241 = sbr.rel (%p239) target = $region16
        $region15: #{tpu_custom_call.1} parent=11 // pred_region
          _
        $region16: #{tpu_custom_call.1} parent=11 // pred_fallthru
          _
        // Predicated region
        $region17: #{tpu_custom_call.1} parent=11 // pred_check
          %p242 = pneg %p109
        $region18: #{tpu_custom_call.1} parent=11 // pred_check_branch
          %244 = sbr.rel (%p242) target = $region20
        $region19: #{tpu_custom_call.1} parent=11 // pred_region
          _
        $region20: #{tpu_custom_call.1} parent=11 // pred_fallthru
          _
        // Predicated region
        $region21: #{tpu_custom_call.1} parent=11 // pred_check
          %p245 = pneg %p130
        $region22: #{tpu_custom_call.1} parent=11 // pred_check_branch
          %247 = sbr.rel (%p245) target = $region24
        $region23: #{tpu_custom_call.1} parent=11 // pred_region
          _
        $region24: #{tpu_custom_call.1} parent=11 // pred_fallthru
          _
        // Predicated region
        $region25: #{tpu_custom_call.1} parent=11 // pred_check
          %p248 = pneg %p151
        $region26: #{tpu_custom_call.1} parent=11 // pred_check_branch
          %250 = sbr.rel (%p248) target = $region28
        $region27: #{tpu_custom_call.1} parent=11 // pred_region
          _
        $region28: #{tpu_custom_call.1} parent=11 // pred_fallthru
          _
        // Predicated region
        $region29: #{tpu_custom_call.1} parent=11 // pred_check
          %p251 = pneg %p172
        $region30: #{tpu_custom_call.1} parent=11 // pred_check_branch
          %253 = sbr.rel (%p251) target = $region32
        $region31: #{tpu_custom_call.1} parent=11 // pred_region
          _
        $region32: #{tpu_custom_call.1} parent=11 // pred_fallthru
          _
      $region12: #{tpu_custom_call.1} parent=5 // pred_fallthru
        _
      %p254 = scmp.lt.s32.totalorder %s41, 2
      // Predicated region
      $region33: #{tpu_custom_call.1} parent=5 // pred_check
        %p255 = pneg %p254
      $region34: #{tpu_custom_call.1} parent=5 // pred_check_branch
        %257 = sbr.rel (%p255) target = $region36
      $region35: #{tpu_custom_call.1} parent=5 // pred_region
        // Predicated region
        $region37: #{tpu_custom_call.1} parent=35 // pred_check
          %p258 = pneg %p61
        $region38: #{tpu_custom_call.1} parent=35 // pred_check_branch
          %260 = sbr.rel (%p258) target = $region40
        $region39: #{tpu_custom_call.1} parent=35 // pred_region
          %p261 = scmp.lt.s32.totalorder %s41, 1
          %s262 = scalar_select %p261, %s41, 1
          %s263 = smul.addr %s262, 2
          %s264 = smul.addr %s263, 8
          %s265 = scalar_lea.vmem %s3, %s264
        $region40: #{tpu_custom_call.1} parent=35 // pred_fallthru
          _
      $region36: #{tpu_custom_call.1} parent=5 // pred_fallthru
        _
      %p266 = scmp.le.s32.totalorder 1, %s41
      %p267 = scmp.lt.s32.totalorder %s41, 3
      %p268 = pnand %p266, %p267
      %p269 = pneg %p268
      // Predicated region
      $region41: #{tpu_custom_call.1} parent=5 // pred_check
        _
      $region42: #{tpu_custom_call.1} parent=5 // pred_check_branch
        %271 = sbr.rel (%p268) target = $region44
      $region43: #{tpu_custom_call.1} parent=5 // pred_region
        %s272 = ssub.s32 %s41, 1
        %p273 = scmp.lt.s32.totalorder %s46, 1
        %s274 = scalar_select %p273, %s46, 1
        %s275 = smul.addr %s274, 2
        %s276 = smul.addr %s275, 8
        %s277 = scalar_lea.vmem %s3, %s276
        %p278 = pneg %p67
        %p279 = pneg %p64
        %p280 = pneg %p88
        %p281 = pneg %p85
        %p282 = pneg %p109
        %p283 = pneg %p106
        %p284 = pneg %p130
        %p285 = pneg %p127
        %p286 = pneg %p151
        %p287 = pneg %p148
        %p288 = pneg %p172
        %p289 = pneg %p169
        %p290 = pneg %p198
        %p291 = pneg %p195
        %s292 = sand.u32 %s185, 1
        %s293 = scalar_lea.sflag [#allocation9], %s292
        %s294 = sand.u32 %s185, 1
        %s295 = smul.addr %s294, 16
        %s296 = scalar_lea.vmem [#allocation8], %s295
        %p297 = pneg %p224
        %p298 = pneg %p221
        %s299 = sand.u32 %s211, 1
        %s300 = scalar_lea.sflag [#allocation11], %s299
        %s301 = sand.u32 %s211, 1
        %s302 = smul.addr %s301, 16
        %s303 = scalar_lea.vmem [#allocation10], %s302
        %p304 = scmp.lt.s32.totalorder %s46, 1
        %s305 = scalar_select %p304, %s46, 1
        %s306 = smul.addr %s305, 2
        %s307 = smul.addr %s306, 8
        %s308 = scalar_lea.vmem %s3, %s307
        %v309 = vld [vmem:[%s308] sm:$0xff]
        %v310 = vld [vmem:[%s308 + $0x8] sm:$0xff]
        %vm311 = vcmask 261120
        %312 = vst.msk [vmem:[%s303] sm:$0xff] %vm311, %v309
        %313 = vst.msk [vmem:[%s303 + $0x8] sm:$0xff] %vm311, %v310
        %v314 = vld [vmem:[%s4] sm:$0xf]
        %v315 = vld [vmem:[%s4 + $0x4] sm:$0xf]
        %v316 = vld [vmem:[%s4 + $0x8] sm:$0xf]
        %v317 = vld [vmem:[%s4 + $0xc] sm:$0xf]
        %v318 = vld [vmem:[%s4 + $0x10] sm:$0xf]
        %v319 = vld [vmem:[%s4 + $0x14] sm:$0xf]
        %v320 = vld [vmem:[%s4 + $0x18] sm:$0xf]
        %v321 = vld [vmem:[%s4 + $0x1c] sm:$0xf]
        %v322 = vld [vmem:[%s4 + $0x20] sm:$0xf]
        %v323 = vld [vmem:[%s4 + $0x24] sm:$0xf]
        %v324 = vld [vmem:[%s4 + $0x28] sm:$0xf]
        %v325 = vld [vmem:[%s4 + $0x2c] sm:$0xf]
        %v326 = vld [vmem:[%s4 + $0x30] sm:$0xf]
        %v327 = vld [vmem:[%s4 + $0x34] sm:$0xf]
        %v328 = vld [vmem:[%s4 + $0x38] sm:$0xf]
        %v329 = vld [vmem:[%s4 + $0x3c] sm:$0xf]
        %v330 = vld [vmem:[%s4 + $0x40] sm:$0xf]
        %v331 = vld [vmem:[%s4 + $0x44] sm:$0xf]
        %v332 = vld [vmem:[%s4 + $0x48] sm:$0xf]
        %v333 = vld [vmem:[%s4 + $0x4c] sm:$0xf]
        %v334 = vld [vmem:[%s4 + $0x50] sm:$0xf]
        %v335 = vld [vmem:[%s4 + $0x54] sm:$0xf]
        %v336 = vld [vmem:[%s4 + $0x58] sm:$0xf]
        %v337 = vld [vmem:[%s4 + $0x5c] sm:$0xf]
        %v338 = vld [vmem:[%s4 + $0x60] sm:$0xf]
        %v339 = vld [vmem:[%s4 + $0x64] sm:$0xf]
        %v340 = vld [vmem:[%s4 + $0x68] sm:$0xf]
        %v341 = vld [vmem:[%s4 + $0x6c] sm:$0xf]
        %v342 = vld [vmem:[%s4 + $0x70] sm:$0xf]
        %v343 = vld [vmem:[%s4 + $0x74] sm:$0xf]
        %v344 = vld [vmem:[%s4 + $0x78] sm:$0xf]
        %v345 = vld [vmem:[%s4 + $0x7c] sm:$0xf]
        %v346 = vld [vmem:[%s4 + $0x80] sm:$0xf]
        %v347 = vld [vmem:[%s4 + $0x84] sm:$0xf]
        %v348 = vld [vmem:[%s4 + $0x88] sm:$0xf]
        %v349 = vld [vmem:[%s4 + $0x8c] sm:$0xf]
        %v350 = vld [vmem:[%s4 + $0x90] sm:$0xf]
        %v351 = vld [vmem:[%s4 + $0x94] sm:$0xf]
        %v352 = vld [vmem:[%s4 + $0x98] sm:$0xf]
        %v353 = vld [vmem:[%s4 + $0x9c] sm:$0xf]
        %v354 = vld [vmem:[%s4 + $0xa0] sm:$0xf]
        %v355 = vld [vmem:[%s4 + $0xa4] sm:$0xf]
        %v356 = vld [vmem:[%s4 + $0xa8] sm:$0xf]
        %v357 = vld [vmem:[%s4 + $0xac] sm:$0xf]
        %v358 = vld [vmem:[%s4 + $0xb0] sm:$0xf]
        %v359 = vld [vmem:[%s4 + $0xb4] sm:$0xf]
        %v360 = vld [vmem:[%s4 + $0xb8] sm:$0xf]
        %v361 = vld [vmem:[%s4 + $0xbc] sm:$0xf]
        %v362 = vld [vmem:[%s4 + $0xc0] sm:$0xf]
        %v363 = vld [vmem:[%s4 + $0xc4] sm:$0xf]
        %v364 = vld [vmem:[%s4 + $0xc8] sm:$0xf]
        %v365 = vld [vmem:[%s4 + $0xcc] sm:$0xf]
        %v366 = vld [vmem:[%s4 + $0xd0] sm:$0xf]
        %v367 = vld [vmem:[%s4 + $0xd4] sm:$0xf]
        %v368 = vld [vmem:[%s4 + $0xd8] sm:$0xf]
        %v369 = vld [vmem:[%s4 + $0xdc] sm:$0xf]
        %v370 = vld [vmem:[%s4 + $0xe0] sm:$0xf]
        %v371 = vld [vmem:[%s4 + $0xe4] sm:$0xf]
        %v372 = vld [vmem:[%s4 + $0xe8] sm:$0xf]
        %v373 = vld [vmem:[%s4 + $0xec] sm:$0xf]
        %v374 = vld [vmem:[%s4 + $0xf0] sm:$0xf]
        %v375 = vld [vmem:[%s4 + $0xf4] sm:$0xf]
        %v376 = vld [vmem:[%s4 + $0xf8] sm:$0xf]
        %v377 = vld [vmem:[%s4 + $0xfc] sm:$0xf]
        %v378 = vld [vmem:[%s4 + $0x100] sm:$0xf]
        %v379 = vld [vmem:[%s4 + $0x104] sm:$0xf]
        %v380 = vld [vmem:[%s4 + $0x108] sm:$0xf]
        %v381 = vld [vmem:[%s4 + $0x10c] sm:$0xf]
        %v382 = vld [vmem:[%s4 + $0x110] sm:$0xf]
        %v383 = vld [vmem:[%s4 + $0x114] sm:$0xf]
        %v384 = vld [vmem:[%s4 + $0x118] sm:$0xf]
        %v385 = vld [vmem:[%s4 + $0x11c] sm:$0xf]
        %v386 = vld [vmem:[%s4 + $0x120] sm:$0xf]
        %v387 = vld [vmem:[%s4 + $0x124] sm:$0xf]
        %v388 = vld [vmem:[%s4 + $0x128] sm:$0xf]
        %v389 = vld [vmem:[%s4 + $0x12c] sm:$0xf]
        %v390 = vld [vmem:[%s4 + $0x130] sm:$0xf]
        %v391 = vld [vmem:[%s4 + $0x134] sm:$0xf]
        %v392 = vld [vmem:[%s4 + $0x138] sm:$0xf]
        %v393 = vld [vmem:[%s4 + $0x13c] sm:$0xf]
        %v394 = vld [vmem:[%s4 + $0x140] sm:$0xf]
        %v395 = vld [vmem:[%s4 + $0x144] sm:$0xf]
        %v396 = vld [vmem:[%s4 + $0x148] sm:$0xf]
        %v397 = vld [vmem:[%s4 + $0x14c] sm:$0xf]
        %v398 = vld [vmem:[%s4 + $0x150] sm:$0xf]
        %v399 = vld [vmem:[%s4 + $0x154] sm:$0xf]
        %v400 = vld [vmem:[%s4 + $0x158] sm:$0xf]
        %v401 = vld [vmem:[%s4 + $0x15c] sm:$0xf]
        %v402 = vld [vmem:[%s4 + $0x160] sm:$0xf]
        %v403 = vld [vmem:[%s4 + $0x164] sm:$0xf]
        %v404 = vld [vmem:[%s4 + $0x168] sm:$0xf]
        %v405 = vld [vmem:[%s4 + $0x16c] sm:$0xf]
        %v406 = vld [vmem:[%s4 + $0x170] sm:$0xf]
        %v407 = vld [vmem:[%s4 + $0x174] sm:$0xf]
        %v408 = vld [vmem:[%s4 + $0x178] sm:$0xf]
        %v409 = vld [vmem:[%s4 + $0x17c] sm:$0xf]
        %v410 = vld [vmem:[%s4 + $0x180] sm:$0xf]
        %v411 = vld [vmem:[%s4 + $0x184] sm:$0xf]
        %v412 = vld [vmem:[%s4 + $0x188] sm:$0xf]
        %v413 = vld [vmem:[%s4 + $0x18c] sm:$0xf]
        %v414 = vld [vmem:[%s4 + $0x190] sm:$0xf]
        %v415 = vld [vmem:[%s4 + $0x194] sm:$0xf]
        %v416 = vld [vmem:[%s4 + $0x198] sm:$0xf]
        %v417 = vld [vmem:[%s4 + $0x19c] sm:$0xf]
        %v418 = vld [vmem:[%s4 + $0x1a0] sm:$0xf]
        %v419 = vld [vmem:[%s4 + $0x1a4] sm:$0xf]
        %v420 = vld [vmem:[%s4 + $0x1a8] sm:$0xf]
        %v421 = vld [vmem:[%s4 + $0x1ac] sm:$0xf]
        %v422 = vld [vmem:[%s4 + $0x1b0] sm:$0xf]
        %v423 = vld [vmem:[%s4 + $0x1b4] sm:$0xf]
        %v424 = vld [vmem:[%s4 + $0x1b8] sm:$0xf]
        %v425 = vld [vmem:[%s4 + $0x1bc] sm:$0xf]
        %v426 = vld [vmem:[%s4 + $0x1c0] sm:$0xf]
        %v427 = vld [vmem:[%s4 + $0x1c4] sm:$0xf]
        %v428 = vld [vmem:[%s4 + $0x1c8] sm:$0xf]
        %v429 = vld [vmem:[%s4 + $0x1cc] sm:$0xf]
        %v430 = vld [vmem:[%s4 + $0x1d0] sm:$0xf]
        %v431 = vld [vmem:[%s4 + $0x1d4] sm:$0xf]
        %v432 = vld [vmem:[%s4 + $0x1d8] sm:$0xf]
        %v433 = vld [vmem:[%s4 + $0x1dc] sm:$0xf]
        %v434 = vld [vmem:[%s4 + $0x1e0] sm:$0xf]
        %v435 = vld [vmem:[%s4 + $0x1e4] sm:$0xf]
        %v436 = vld [vmem:[%s4 + $0x1e8] sm:$0xf]
        %v437 = vld [vmem:[%s4 + $0x1ec] sm:$0xf]
        %v438 = vld [vmem:[%s4 + $0x1f0] sm:$0xf]
        %v439 = vld [vmem:[%s4 + $0x1f4] sm:$0xf]
        %v440 = vld [vmem:[%s4 + $0x1f8] sm:$0xf]
        %v441 = vld [vmem:[%s4 + $0x1fc] sm:$0xf]
        %v442 = vld [vmem:[%s4 + $0x200] sm:$0xf]
        %v443 = vld [vmem:[%s4 + $0x204] sm:$0xf]
        %v444 = vld [vmem:[%s4 + $0x208] sm:$0xf]
        %v445 = vld [vmem:[%s4 + $0x20c] sm:$0xf]
        %v446 = vld [vmem:[%s4 + $0x210] sm:$0xf]
        %v447 = vld [vmem:[%s4 + $0x214] sm:$0xf]
        %v448 = vld [vmem:[%s4 + $0x218] sm:$0xf]
        %v449 = vld [vmem:[%s4 + $0x21c] sm:$0xf]
        %v450 = vld [vmem:[%s4 + $0x220] sm:$0xf]
        %v451 = vld [vmem:[%s4 + $0x224] sm:$0xf]
        %v452 = vld [vmem:[%s4 + $0x228] sm:$0xf]
        %v453 = vld [vmem:[%s4 + $0x22c] sm:$0xf]
        %v454 = vld [vmem:[%s4 + $0x230] sm:$0xf]
        %v455 = vld [vmem:[%s4 + $0x234] sm:$0xf]
        %v456 = vld [vmem:[%s4 + $0x238] sm:$0xf]
        %v457 = vld [vmem:[%s4 + $0x23c] sm:$0xf]
        %v458 = vld [vmem:[%s4 + $0x240] sm:$0xf]
        %v459 = vld [vmem:[%s4 + $0x244] sm:$0xf]
        %v460 = vld [vmem:[%s4 + $0x248] sm:$0xf]
        %v461 = vld [vmem:[%s4 + $0x24c] sm:$0xf]
        %v462 = vld [vmem:[%s4 + $0x250] sm:$0xf]
        %v463 = vld [vmem:[%s4 + $0x254] sm:$0xf]
        %v464 = vld [vmem:[%s4 + $0x258] sm:$0xf]
        %v465 = vld [vmem:[%s4 + $0x25c] sm:$0xf]
        %v466 = vld [vmem:[%s4 + $0x260] sm:$0xf]
        %v467 = vld [vmem:[%s4 + $0x264] sm:$0xf]
        %v468 = vld [vmem:[%s4 + $0x268] sm:$0xf]
        %v469 = vld [vmem:[%s4 + $0x26c] sm:$0xf]
        %v470 = vld [vmem:[%s4 + $0x270] sm:$0xf]
        %v471 = vld [vmem:[%s4 + $0x274] sm:$0xf]
        %v472 = vld [vmem:[%s4 + $0x278] sm:$0xf]
        %v473 = vld [vmem:[%s4 + $0x27c] sm:$0xf]
        %v474 = vld [vmem:[%s4 + $0x280] sm:$0xf]
        %v475 = vld [vmem:[%s4 + $0x284] sm:$0xf]
        %v476 = vld [vmem:[%s4 + $0x288] sm:$0xf]
        %v477 = vld [vmem:[%s4 + $0x28c] sm:$0xf]
        %v478 = vld [vmem:[%s4 + $0x290] sm:$0xf]
        %v479 = vld [vmem:[%s4 + $0x294] sm:$0xf]
        %v480 = vld [vmem:[%s4 + $0x298] sm:$0xf]
        %v481 = vld [vmem:[%s4 + $0x29c] sm:$0xf]
        %v482 = vld [vmem:[%s4 + $0x2a0] sm:$0xf]
        %v483 = vld [vmem:[%s4 + $0x2a4] sm:$0xf]
        %v484 = vld [vmem:[%s4 + $0x2a8] sm:$0xf]
        %v485 = vld [vmem:[%s4 + $0x2ac] sm:$0xf]
        %v486 = vld [vmem:[%s4 + $0x2b0] sm:$0xf]
        %v487 = vld [vmem:[%s4 + $0x2b4] sm:$0xf]
        %v488 = vld [vmem:[%s4 + $0x2b8] sm:$0xf]
        %v489 = vld [vmem:[%s4 + $0x2bc] sm:$0xf]
        %v490 = vld [vmem:[%s4 + $0x2c0] sm:$0xf]
        %v491 = vld [vmem:[%s4 + $0x2c4] sm:$0xf]
        %v492 = vld [vmem:[%s4 + $0x2c8] sm:$0xf]
        %v493 = vld [vmem:[%s4 + $0x2cc] sm:$0xf]
        %v494 = vld [vmem:[%s4 + $0x2d0] sm:$0xf]
        %v495 = vld [vmem:[%s4 + $0x2d4] sm:$0xf]
        %v496 = vld [vmem:[%s4 + $0x2d8] sm:$0xf]
        %v497 = vld [vmem:[%s4 + $0x2dc] sm:$0xf]
        %v498 = vld [vmem:[%s4 + $0x2e0] sm:$0xf]
        %v499 = vld [vmem:[%s4 + $0x2e4] sm:$0xf]
        %v500 = vld [vmem:[%s4 + $0x2e8] sm:$0xf]
        %v501 = vld [vmem:[%s4 + $0x2ec] sm:$0xf]
        %v502 = vld [vmem:[%s4 + $0x2f0] sm:$0xf]
        %v503 = vld [vmem:[%s4 + $0x2f4] sm:$0xf]
        %v504 = vld [vmem:[%s4 + $0x2f8] sm:$0xf]
        %v505 = vld [vmem:[%s4 + $0x2fc] sm:$0xf]
        %v506 = vld [vmem:[%s4 + $0x300] sm:$0xf]
        %v507 = vld [vmem:[%s4 + $0x304] sm:$0xf]
        %v508 = vld [vmem:[%s4 + $0x308] sm:$0xf]
        %v509 = vld [vmem:[%s4 + $0x30c] sm:$0xf]
        %v510 = vld [vmem:[%s4 + $0x310] sm:$0xf]
        %v511 = vld [vmem:[%s4 + $0x314] sm:$0xf]
        %v512 = vld [vmem:[%s4 + $0x318] sm:$0xf]
        %v513 = vld [vmem:[%s4 + $0x31c] sm:$0xf]
        %v514 = vld [vmem:[%s4 + $0x320] sm:$0xf]
        %v515 = vld [vmem:[%s4 + $0x324] sm:$0xf]
        %v516 = vld [vmem:[%s4 + $0x328] sm:$0xf]
        %v517 = vld [vmem:[%s4 + $0x32c] sm:$0xf]
        %v518 = vld [vmem:[%s4 + $0x330] sm:$0xf]
        %v519 = vld [vmem:[%s4 + $0x334] sm:$0xf]
        %v520 = vld [vmem:[%s4 + $0x338] sm:$0xf]
        %v521 = vld [vmem:[%s4 + $0x33c] sm:$0xf]
        %v522 = vld [vmem:[%s4 + $0x340] sm:$0xf]
        %v523 = vld [vmem:[%s4 + $0x344] sm:$0xf]
        %v524 = vld [vmem:[%s4 + $0x348] sm:$0xf]
        %v525 = vld [vmem:[%s4 + $0x34c] sm:$0xf]
        %v526 = vld [vmem:[%s4 + $0x350] sm:$0xf]
        %v527 = vld [vmem:[%s4 + $0x354] sm:$0xf]
        %v528 = vld [vmem:[%s4 + $0x358] sm:$0xf]
        %v529 = vld [vmem:[%s4 + $0x35c] sm:$0xf]
        %v530 = vld [vmem:[%s4 + $0x360] sm:$0xf]
        %v531 = vld [vmem:[%s4 + $0x364] sm:$0xf]
        %v532 = vld [vmem:[%s4 + $0x368] sm:$0xf]
        %v533 = vld [vmem:[%s4 + $0x36c] sm:$0xf]
        %v534 = vld [vmem:[%s4 + $0x370] sm:$0xf]
        %v535 = vld [vmem:[%s4 + $0x374] sm:$0xf]
        %v536 = vld [vmem:[%s4 + $0x378] sm:$0xf]
        %v537 = vld [vmem:[%s4 + $0x37c] sm:$0xf]
        %v538 = vld [vmem:[%s4 + $0x380] sm:$0xf]
        %v539 = vld [vmem:[%s4 + $0x384] sm:$0xf]
        %v540 = vld [vmem:[%s4 + $0x388] sm:$0xf]
        %v541 = vld [vmem:[%s4 + $0x38c] sm:$0xf]
        %v542 = vld [vmem:[%s4 + $0x390] sm:$0xf]
        %v543 = vld [vmem:[%s4 + $0x394] sm:$0xf]
        %v544 = vld [vmem:[%s4 + $0x398] sm:$0xf]
        %v545 = vld [vmem:[%s4 + $0x39c] sm:$0xf]
        %v546 = vld [vmem:[%s4 + $0x3a0] sm:$0xf]
        %v547 = vld [vmem:[%s4 + $0x3a4] sm:$0xf]
        %v548 = vld [vmem:[%s4 + $0x3a8] sm:$0xf]
        %v549 = vld [vmem:[%s4 + $0x3ac] sm:$0xf]
        %v550 = vld [vmem:[%s4 + $0x3b0] sm:$0xf]
        %v551 = vld [vmem:[%s4 + $0x3b4] sm:$0xf]
        %v552 = vld [vmem:[%s4 + $0x3b8] sm:$0xf]
        %v553 = vld [vmem:[%s4 + $0x3bc] sm:$0xf]
        %v554 = vld [vmem:[%s4 + $0x3c0] sm:$0xf]
        %v555 = vld [vmem:[%s4 + $0x3c4] sm:$0xf]
        %v556 = vld [vmem:[%s4 + $0x3c8] sm:$0xf]
        %v557 = vld [vmem:[%s4 + $0x3cc] sm:$0xf]
        %v558 = vld [vmem:[%s4 + $0x3d0] sm:$0xf]
        %v559 = vld [vmem:[%s4 + $0x3d4] sm:$0xf]
        %v560 = vld [vmem:[%s4 + $0x3d8] sm:$0xf]
        %v561 = vld [vmem:[%s4 + $0x3dc] sm:$0xf]
        %v562 = vld [vmem:[%s4 + $0x3e0] sm:$0xf]
        %v563 = vld [vmem:[%s4 + $0x3e4] sm:$0xf]
        %v564 = vld [vmem:[%s4 + $0x3e8] sm:$0xf]
        %v565 = vld [vmem:[%s4 + $0x3ec] sm:$0xf]
        %v566 = vld [vmem:[%s4 + $0x3f0] sm:$0xf]
        %v567 = vld [vmem:[%s4 + $0x3f4] sm:$0xf]
        %v568 = vld [vmem:[%s4 + $0x3f8] sm:$0xf]
        %v569 = vld [vmem:[%s4 + $0x3fc] sm:$0xf]
        %v570 = vld [vmem:[%s4 + $0x400] sm:$0xf]
        %v571 = vld [vmem:[%s4 + $0x404] sm:$0xf]
        %v572 = vld [vmem:[%s4 + $0x408] sm:$0xf]
        %v573 = vld [vmem:[%s4 + $0x40c] sm:$0xf]
        %v574 = vld [vmem:[%s4 + $0x410] sm:$0xf]
        %v575 = vld [vmem:[%s4 + $0x414] sm:$0xf]
        %v576 = vld [vmem:[%s4 + $0x418] sm:$0xf]
        %v577 = vld [vmem:[%s4 + $0x41c] sm:$0xf]
        %v578 = vld [vmem:[%s4 + $0x420] sm:$0xf]
        %v579 = vld [vmem:[%s4 + $0x424] sm:$0xf]
        %v580 = vld [vmem:[%s4 + $0x428] sm:$0xf]
        %v581 = vld [vmem:[%s4 + $0x42c] sm:$0xf]
        %v582 = vld [vmem:[%s4 + $0x430] sm:$0xf]
        %v583 = vld [vmem:[%s4 + $0x434] sm:$0xf]
        %v584 = vld [vmem:[%s4 + $0x438] sm:$0xf]
        %v585 = vld [vmem:[%s4 + $0x43c] sm:$0xf]
        %v586 = vld [vmem:[%s4 + $0x440] sm:$0xf]
        %v587 = vld [vmem:[%s4 + $0x444] sm:$0xf]
        %v588 = vld [vmem:[%s4 + $0x448] sm:$0xf]
        %v589 = vld [vmem:[%s4 + $0x44c] sm:$0xf]
        %v590 = vld [vmem:[%s4 + $0x450] sm:$0xf]
        %v591 = vld [vmem:[%s4 + $0x454] sm:$0xf]
        %v592 = vld [vmem:[%s4 + $0x458] sm:$0xf]
        %v593 = vld [vmem:[%s4 + $0x45c] sm:$0xf]
        %v594 = vld [vmem:[%s4 + $0x460] sm:$0xf]
        %v595 = vld [vmem:[%s4 + $0x464] sm:$0xf]
        %v596 = vld [vmem:[%s4 + $0x468] sm:$0xf]
        %v597 = vld [vmem:[%s4 + $0x46c] sm:$0xf]
        %v598 = vld [vmem:[%s4 + $0x470] sm:$0xf]
        %v599 = vld [vmem:[%s4 + $0x474] sm:$0xf]
        %v600 = vld [vmem:[%s4 + $0x478] sm:$0xf]
        %v601 = vld [vmem:[%s4 + $0x47c] sm:$0xf]
        %v602 = vld [vmem:[%s4 + $0x480] sm:$0xf]
        %v603 = vld [vmem:[%s4 + $0x484] sm:$0xf]
        %v604 = vld [vmem:[%s4 + $0x488] sm:$0xf]
        %v605 = vld [vmem:[%s4 + $0x48c] sm:$0xf]
        %v606 = vld [vmem:[%s4 + $0x490] sm:$0xf]
        %v607 = vld [vmem:[%s4 + $0x494] sm:$0xf]
        %v608 = vld [vmem:[%s4 + $0x498] sm:$0xf]
        %v609 = vld [vmem:[%s4 + $0x49c] sm:$0xf]
        %v610 = vld [vmem:[%s4 + $0x4a0] sm:$0xf]
        %v611 = vld [vmem:[%s4 + $0x4a4] sm:$0xf]
        %v612 = vld [vmem:[%s4 + $0x4a8] sm:$0xf]
        %v613 = vld [vmem:[%s4 + $0x4ac] sm:$0xf]
        %v614 = vld [vmem:[%s4 + $0x4b0] sm:$0xf]
        %v615 = vld [vmem:[%s4 + $0x4b4] sm:$0xf]
        %v616 = vld [vmem:[%s4 + $0x4b8] sm:$0xf]
        %v617 = vld [vmem:[%s4 + $0x4bc] sm:$0xf]
        %v618 = vld [vmem:[%s4 + $0x4c0] sm:$0xf]
        %v619 = vld [vmem:[%s4 + $0x4c4] sm:$0xf]
        %v620 = vld [vmem:[%s4 + $0x4c8] sm:$0xf]
        %v621 = vld [vmem:[%s4 + $0x4cc] sm:$0xf]
        %v622 = vld [vmem:[%s4 + $0x4d0] sm:$0xf]
        %v623 = vld [vmem:[%s4 + $0x4d4] sm:$0xf]
        %v624 = vld [vmem:[%s4 + $0x4d8] sm:$0xf]
        %v625 = vld [vmem:[%s4 + $0x4dc] sm:$0xf]
        %v626 = vld [vmem:[%s4 + $0x4e0] sm:$0xf]
        %v627 = vld [vmem:[%s4 + $0x4e4] sm:$0xf]
        %v628 = vld [vmem:[%s4 + $0x4e8] sm:$0xf]
        %v629 = vld [vmem:[%s4 + $0x4ec] sm:$0xf]
        %v630 = vld [vmem:[%s4 + $0x4f0] sm:$0xf]
        %v631 = vld [vmem:[%s4 + $0x4f4] sm:$0xf]
        %v632 = vld [vmem:[%s4 + $0x4f8] sm:$0xf]
        %v633 = vld [vmem:[%s4 + $0x4fc] sm:$0xf]
        %v634 = vld [vmem:[%s4 + $0x500] sm:$0xf]
        %v635 = vld [vmem:[%s4 + $0x504] sm:$0xf]
        %v636 = vld [vmem:[%s4 + $0x508] sm:$0xf]
        %v637 = vld [vmem:[%s4 + $0x50c] sm:$0xf]
        %v638 = vld [vmem:[%s4 + $0x510] sm:$0xf]
        %v639 = vld [vmem:[%s4 + $0x514] sm:$0xf]
        %v640 = vld [vmem:[%s4 + $0x518] sm:$0xf]
        %v641 = vld [vmem:[%s4 + $0x51c] sm:$0xf]
        %v642 = vld [vmem:[%s4 + $0x520] sm:$0xf]
        %v643 = vld [vmem:[%s4 + $0x524] sm:$0xf]
        %v644 = vld [vmem:[%s4 + $0x528] sm:$0xf]
        %v645 = vld [vmem:[%s4 + $0x52c] sm:$0xf]
        %v646 = vld [vmem:[%s4 + $0x530] sm:$0xf]
        %v647 = vld [vmem:[%s4 + $0x534] sm:$0xf]
        %v648 = vld [vmem:[%s4 + $0x538] sm:$0xf]
        %v649 = vld [vmem:[%s4 + $0x53c] sm:$0xf]
        %v650 = vld [vmem:[%s4 + $0x540] sm:$0xf]
        %v651 = vld [vmem:[%s4 + $0x544] sm:$0xf]
        %v652 = vld [vmem:[%s4 + $0x548] sm:$0xf]
        %v653 = vld [vmem:[%s4 + $0x54c] sm:$0xf]
        %v654 = vld [vmem:[%s4 + $0x550] sm:$0xf]
        %v655 = vld [vmem:[%s4 + $0x554] sm:$0xf]
        %v656 = vld [vmem:[%s4 + $0x558] sm:$0xf]
        %v657 = vld [vmem:[%s4 + $0x55c] sm:$0xf]
        %v658 = vld [vmem:[%s4 + $0x560] sm:$0xf]
        %v659 = vld [vmem:[%s4 + $0x564] sm:$0xf]
        %v660 = vld [vmem:[%s4 + $0x568] sm:$0xf]
        %v661 = vld [vmem:[%s4 + $0x56c] sm:$0xf]
        %v662 = vld [vmem:[%s4 + $0x570] sm:$0xf]
        %v663 = vld [vmem:[%s4 + $0x574] sm:$0xf]
        %v664 = vld [vmem:[%s4 + $0x578] sm:$0xf]
        %v665 = vld [vmem:[%s4 + $0x57c] sm:$0xf]
        %v666 = vld [vmem:[%s4 + $0x580] sm:$0xf]
        %v667 = vld [vmem:[%s4 + $0x584] sm:$0xf]
        %v668 = vld [vmem:[%s4 + $0x588] sm:$0xf]
        %v669 = vld [vmem:[%s4 + $0x58c] sm:$0xf]
        %v670 = vld [vmem:[%s4 + $0x590] sm:$0xf]
        %v671 = vld [vmem:[%s4 + $0x594] sm:$0xf]
        %v672 = vld [vmem:[%s4 + $0x598] sm:$0xf]
        %v673 = vld [vmem:[%s4 + $0x59c] sm:$0xf]
        %v674 = vld [vmem:[%s4 + $0x5a0] sm:$0xf]
        %v675 = vld [vmem:[%s4 + $0x5a4] sm:$0xf]
        %v676 = vld [vmem:[%s4 + $0x5a8] sm:$0xf]
        %v677 = vld [vmem:[%s4 + $0x5ac] sm:$0xf]
        %v678 = vld [vmem:[%s4 + $0x5b0] sm:$0xf]
        %v679 = vld [vmem:[%s4 + $0x5b4] sm:$0xf]
        %v680 = vld [vmem:[%s4 + $0x5b8] sm:$0xf]
        %v681 = vld [vmem:[%s4 + $0x5bc] sm:$0xf]
        %v682 = vld [vmem:[%s4 + $0x5c0] sm:$0xf]
        %v683 = vld [vmem:[%s4 + $0x5c4] sm:$0xf]
        %v684 = vld [vmem:[%s4 + $0x5c8] sm:$0xf]
        %v685 = vld [vmem:[%s4 + $0x5cc] sm:$0xf]
        %v686 = vld [vmem:[%s4 + $0x5d0] sm:$0xf]
        %v687 = vld [vmem:[%s4 + $0x5d4] sm:$0xf]
        %v688 = vld [vmem:[%s4 + $0x5d8] sm:$0xf]
        %v689 = vld [vmem:[%s4 + $0x5dc] sm:$0xf]
        %v690 = vld [vmem:[%s4 + $0x5e0] sm:$0xf]
        %v691 = vld [vmem:[%s4 + $0x5e4] sm:$0xf]
        %v692 = vld [vmem:[%s4 + $0x5e8] sm:$0xf]
        %v693 = vld [vmem:[%s4 + $0x5ec] sm:$0xf]
        %v694 = vld [vmem:[%s4 + $0x5f0] sm:$0xf]
        %v695 = vld [vmem:[%s4 + $0x5f4] sm:$0xf]
        %v696 = vld [vmem:[%s4 + $0x5f8] sm:$0xf]
        %v697 = vld [vmem:[%s4 + $0x5fc] sm:$0xf]
        %v698 = vld [vmem:[%s4 + $0x600] sm:$0xf]
        %v699 = vld [vmem:[%s4 + $0x604] sm:$0xf]
        %v700 = vld [vmem:[%s4 + $0x608] sm:$0xf]
        %v701 = vld [vmem:[%s4 + $0x60c] sm:$0xf]
        %v702 = vld [vmem:[%s4 + $0x610] sm:$0xf]
        %v703 = vld [vmem:[%s4 + $0x614] sm:$0xf]
        %v704 = vld [vmem:[%s4 + $0x618] sm:$0xf]
        %v705 = vld [vmem:[%s4 + $0x61c] sm:$0xf]
        %v706 = vld [vmem:[%s4 + $0x620] sm:$0xf]
        %v707 = vld [vmem:[%s4 + $0x624] sm:$0xf]
        %v708 = vld [vmem:[%s4 + $0x628] sm:$0xf]
        %v709 = vld [vmem:[%s4 + $0x62c] sm:$0xf]
        %v710 = vld [vmem:[%s4 + $0x630] sm:$0xf]
        %v711 = vld [vmem:[%s4 + $0x634] sm:$0xf]
        %v712 = vld [vmem:[%s4 + $0x638] sm:$0xf]
        %v713 = vld [vmem:[%s4 + $0x63c] sm:$0xf]
        %v714 = vld [vmem:[%s4 + $0x640] sm:$0xf]
        %v715 = vld [vmem:[%s4 + $0x644] sm:$0xf]
        %v716 = vld [vmem:[%s4 + $0x648] sm:$0xf]
        %v717 = vld [vmem:[%s4 + $0x64c] sm:$0xf]
        %v718 = vld [vmem:[%s4 + $0x650] sm:$0xf]
        %v719 = vld [vmem:[%s4 + $0x654] sm:$0xf]
        %v720 = vld [vmem:[%s4 + $0x658] sm:$0xf]
        %v721 = vld [vmem:[%s4 + $0x65c] sm:$0xf]
        %v722 = vld [vmem:[%s4 + $0x660] sm:$0xf]
        %v723 = vld [vmem:[%s4 + $0x664] sm:$0xf]
        %v724 = vld [vmem:[%s4 + $0x668] sm:$0xf]
        %v725 = vld [vmem:[%s4 + $0x66c] sm:$0xf]
        %v726 = vld [vmem:[%s4 + $0x670] sm:$0xf]
        %v727 = vld [vmem:[%s4 + $0x674] sm:$0xf]
        %v728 = vld [vmem:[%s4 + $0x678] sm:$0xf]
        %v729 = vld [vmem:[%s4 + $0x67c] sm:$0xf]
        %v730 = vld [vmem:[%s4 + $0x680] sm:$0xf]
        %v731 = vld [vmem:[%s4 + $0x684] sm:$0xf]
        %v732 = vld [vmem:[%s4 + $0x688] sm:$0xf]
        %v733 = vld [vmem:[%s4 + $0x68c] sm:$0xf]
        %v734 = vld [vmem:[%s4 + $0x690] sm:$0xf]
        %v735 = vld [vmem:[%s4 + $0x694] sm:$0xf]
        %v736 = vld [vmem:[%s4 + $0x698] sm:$0xf]
        %v737 = vld [vmem:[%s4 + $0x69c] sm:$0xf]
        %v738 = vld [vmem:[%s4 + $0x6a0] sm:$0xf]
        %v739 = vld [vmem:[%s4 + $0x6a4] sm:$0xf]
        %v740 = vld [vmem:[%s4 + $0x6a8] sm:$0xf]
        %v741 = vld [vmem:[%s4 + $0x6ac] sm:$0xf]
        %v742 = vld [vmem:[%s4 + $0x6b0] sm:$0xf]
        %v743 = vld [vmem:[%s4 + $0x6b4] sm:$0xf]
        %v744 = vld [vmem:[%s4 + $0x6b8] sm:$0xf]
        %v745 = vld [vmem:[%s4 + $0x6bc] sm:$0xf]
        %v746 = vld [vmem:[%s4 + $0x6c0] sm:$0xf]
        %v747 = vld [vmem:[%s4 + $0x6c4] sm:$0xf]
        %v748 = vld [vmem:[%s4 + $0x6c8] sm:$0xf]
        %v749 = vld [vmem:[%s4 + $0x6cc] sm:$0xf]
        %v750 = vld [vmem:[%s4 + $0x6d0] sm:$0xf]
        %v751 = vld [vmem:[%s4 + $0x6d4] sm:$0xf]
        %v752 = vld [vmem:[%s4 + $0x6d8] sm:$0xf]
        %v753 = vld [vmem:[%s4 + $0x6dc] sm:$0xf]
        %v754 = vld [vmem:[%s4 + $0x6e0] sm:$0xf]
        %v755 = vld [vmem:[%s4 + $0x6e4] sm:$0xf]
        %v756 = vld [vmem:[%s4 + $0x6e8] sm:$0xf]
        %v757 = vld [vmem:[%s4 + $0x6ec] sm:$0xf]
        %v758 = vld [vmem:[%s4 + $0x6f0] sm:$0xf]
        %v759 = vld [vmem:[%s4 + $0x6f4] sm:$0xf]
        %v760 = vld [vmem:[%s4 + $0x6f8] sm:$0xf]
        %v761 = vld [vmem:[%s4 + $0x6fc] sm:$0xf]
        %v762 = vld [vmem:[%s4 + $0x700] sm:$0xf]
        %v763 = vld [vmem:[%s4 + $0x704] sm:$0xf]
        %v764 = vld [vmem:[%s4 + $0x708] sm:$0xf]
        %v765 = vld [vmem:[%s4 + $0x70c] sm:$0xf]
        %v766 = vld [vmem:[%s4 + $0x710] sm:$0xf]
        %v767 = vld [vmem:[%s4 + $0x714] sm:$0xf]
        %v768 = vld [vmem:[%s4 + $0x718] sm:$0xf]
        %v769 = vld [vmem:[%s4 + $0x71c] sm:$0xf]
        %v770 = vld [vmem:[%s4 + $0x720] sm:$0xf]
        %v771 = vld [vmem:[%s4 + $0x724] sm:$0xf]
        %v772 = vld [vmem:[%s4 + $0x728] sm:$0xf]
        %v773 = vld [vmem:[%s4 + $0x72c] sm:$0xf]
        %v774 = vld [vmem:[%s4 + $0x730] sm:$0xf]
        %v775 = vld [vmem:[%s4 + $0x734] sm:$0xf]
        %v776 = vld [vmem:[%s4 + $0x738] sm:$0xf]
        %v777 = vld [vmem:[%s4 + $0x73c] sm:$0xf]
        %v778 = vld [vmem:[%s4 + $0x740] sm:$0xf]
        %v779 = vld [vmem:[%s4 + $0x744] sm:$0xf]
        %v780 = vld [vmem:[%s4 + $0x748] sm:$0xf]
        %v781 = vld [vmem:[%s4 + $0x74c] sm:$0xf]
        %v782 = vld [vmem:[%s4 + $0x750] sm:$0xf]
        %v783 = vld [vmem:[%s4 + $0x754] sm:$0xf]
        %v784 = vld [vmem:[%s4 + $0x758] sm:$0xf]
        %v785 = vld [vmem:[%s4 + $0x75c] sm:$0xf]
        %v786 = vld [vmem:[%s4 + $0x760] sm:$0xf]
        %v787 = vld [vmem:[%s4 + $0x764] sm:$0xf]
        %v788 = vld [vmem:[%s4 + $0x768] sm:$0xf]
        %v789 = vld [vmem:[%s4 + $0x76c] sm:$0xf]
        %v790 = vld [vmem:[%s4 + $0x770] sm:$0xf]
        %v791 = vld [vmem:[%s4 + $0x774] sm:$0xf]
        %v792 = vld [vmem:[%s4 + $0x778] sm:$0xf]
        %v793 = vld [vmem:[%s4 + $0x77c] sm:$0xf]
        %v794 = vld [vmem:[%s4 + $0x780] sm:$0xf]
        %v795 = vld [vmem:[%s4 + $0x784] sm:$0xf]
        %v796 = vld [vmem:[%s4 + $0x788] sm:$0xf]
        %v797 = vld [vmem:[%s4 + $0x78c] sm:$0xf]
        %v798 = vld [vmem:[%s4 + $0x790] sm:$0xf]
        %v799 = vld [vmem:[%s4 + $0x794] sm:$0xf]
        %v800 = vld [vmem:[%s4 + $0x798] sm:$0xf]
        %v801 = vld [vmem:[%s4 + $0x79c] sm:$0xf]
        %v802 = vld [vmem:[%s4 + $0x7a0] sm:$0xf]
        %v803 = vld [vmem:[%s4 + $0x7a4] sm:$0xf]
        %v804 = vld [vmem:[%s4 + $0x7a8] sm:$0xf]
        %v805 = vld [vmem:[%s4 + $0x7ac] sm:$0xf]
        %v806 = vld [vmem:[%s4 + $0x7b0] sm:$0xf]
        %v807 = vld [vmem:[%s4 + $0x7b4] sm:$0xf]
        %v808 = vld [vmem:[%s4 + $0x7b8] sm:$0xf]
        %v809 = vld [vmem:[%s4 + $0x7bc] sm:$0xf]
        %v810 = vld [vmem:[%s4 + $0x7c0] sm:$0xf]
        %v811 = vld [vmem:[%s4 + $0x7c4] sm:$0xf]
        %v812 = vld [vmem:[%s4 + $0x7c8] sm:$0xf]
        %v813 = vld [vmem:[%s4 + $0x7cc] sm:$0xf]
        %v814 = vld [vmem:[%s4 + $0x7d0] sm:$0xf]
        %v815 = vld [vmem:[%s4 + $0x7d4] sm:$0xf]
        %v816 = vld [vmem:[%s4 + $0x7d8] sm:$0xf]
        %v817 = vld [vmem:[%s4 + $0x7dc] sm:$0xf]
        %v818 = vld [vmem:[%s4 + $0x7e0] sm:$0xf]
        %v819 = vld [vmem:[%s4 + $0x7e4] sm:$0xf]
        %v820 = vld [vmem:[%s4 + $0x7e8] sm:$0xf]
        %v821 = vld [vmem:[%s4 + $0x7ec] sm:$0xf]
        %v822 = vld [vmem:[%s4 + $0x7f0] sm:$0xf]
        %v823 = vld [vmem:[%s4 + $0x7f4] sm:$0xf]
        %v824 = vld [vmem:[%s4 + $0x7f8] sm:$0xf]
        %v825 = vld [vmem:[%s4 + $0x7fc] sm:$0xf]
        %v826 = vld [vmem:[%s5] sm:$0xff]
        %v827 = vld [vmem:[%s5 + $0x8] sm:$0xff]
        %v828 = vld [vmem:[%s5 + $0x10] sm:$0xff]
        %v829 = vld [vmem:[%s5 + $0x18] sm:$0xff]
        %v830 = vld [vmem:[%s5 + $0x20] sm:$0xff]
        %v831 = vld [vmem:[%s5 + $0x28] sm:$0xff]
        %v832 = vld [vmem:[%s5 + $0x30] sm:$0xff]
        %v833 = vld [vmem:[%s5 + $0x38] sm:$0xff]
        %v834 = vld [vmem:[%s6] sm:$0x1]
        %s835 = smul.u32 %s46, 24
        %s836 = sld [smem:[#allocation6 + %s835]]
        %s837 = sld [smem:[#allocation7 + %s835]]
        %s838 = scalar_lea.vmem %s303, %s836 [#allocation10]
        %v839 = vld [vmem:[%s838] sm:$0x1]
        %vm840 = vcmask 253952
        %841 = vst.msk [vmem:[#allocation2] sm:$0x1] %vm840, %v839
        %s842 = scalar_lea.vmem %s303, %s837 [#allocation10]
        %v843 = vld [vmem:[%s842] sm:$0x1]
        %845 = vrot.lane.b32.xlu0 %v843, 32
        %v846 = vpop.permute.xlu0 %845
        %vm848 = vcmask 516352
        %849 = vst.msk [vmem:[#allocation2] sm:$0x1] %vm848, %v846
        %s850 = sadd.s32 %s835, 1
        %s851 = sld [smem:[#allocation6 + %s850]]
        %s852 = sld [smem:[#allocation7 + %s850]]
        %s853 = scalar_lea.vmem %s303, %s851 [#allocation10]
        %v854 = vld [vmem:[%s853] sm:$0x1]
        %855 = vst.msk [vmem:[#allocation2 + $0x1] sm:$0x1] %vm840, %v854
        %s856 = scalar_lea.vmem %s303, %s852 [#allocation10]
        %v857 = vld [vmem:[%s856] sm:$0x1]
        %859 = vrot.lane.b32.xlu0 %v857, 32
        %v860 = vpop.permute.xlu0 %859
        %862 = vst.msk [vmem:[#allocation2 + $0x1] sm:$0x1] %vm848, %v860
        %s863 = sadd.s32 %s835, 2
        %s864 = sld [smem:[#allocation6 + %s863]]
        %s865 = sld [smem:[#allocation7 + %s863]]
        %s866 = scalar_lea.vmem %s303, %s864 [#allocation10]
        %v867 = vld [vmem:[%s866] sm:$0x1]
        %868 = vst.msk [vmem:[#allocation2 + $0x2] sm:$0x1] %vm840, %v867
        %s869 = scalar_lea.vmem %s303, %s865 [#allocation10]
        %v870 = vld [vmem:[%s869] sm:$0x1]
        %872 = vrot.lane.b32.xlu0 %v870, 32
        %v873 = vpop.permute.xlu0 %872
        %875 = vst.msk [vmem:[#allocation2 + $0x2] sm:$0x1] %vm848, %v873
        %s876 = sadd.s32 %s835, 3
        %s877 = sld [smem:[#allocation6 + %s876]]
        %s878 = sld [smem:[#allocation7 + %s876]]
        %s879 = scalar_lea.vmem %s303, %s877 [#allocation10]
        %v880 = vld [vmem:[%s879] sm:$0x1]
        %881 = vst.msk [vmem:[#allocation2 + $0x3] sm:$0x1] %vm840, %v880
        %s882 = scalar_lea.vmem %s303, %s878 [#allocation10]
        %v883 = vld [vmem:[%s882] sm:$0x1]
        %885 = vrot.lane.b32.xlu0 %v883, 32
        %v886 = vpop.permute.xlu0 %885
        %888 = vst.msk [vmem:[#allocation2 + $0x3] sm:$0x1] %vm848, %v886
        %s889 = sadd.s32 %s835, 4
        %s890 = sld [smem:[#allocation6 + %s889]]
        %s891 = sld [smem:[#allocation7 + %s889]]
        %s892 = scalar_lea.vmem %s303, %s890 [#allocation10]
        %v893 = vld [vmem:[%s892] sm:$0x1]
        %894 = vst.msk [vmem:[#allocation2 + $0x4] sm:$0x1] %vm840, %v893
        %s895 = scalar_lea.vmem %s303, %s891 [#allocation10]
        %v896 = vld [vmem:[%s895] sm:$0x1]
        %898 = vrot.lane.b32.xlu0 %v896, 32
        %v899 = vpop.permute.xlu0 %898
        %901 = vst.msk [vmem:[#allocation2 + $0x4] sm:$0x1] %vm848, %v899
        %s902 = sadd.s32 %s835, 5
        %s903 = sld [smem:[#allocation6 + %s902]]
        %s904 = sld [smem:[#allocation7 + %s902]]
        %s905 = scalar_lea.vmem %s303, %s903 [#allocation10]
        %v906 = vld [vmem:[%s905] sm:$0x1]
        %907 = vst.msk [vmem:[#allocation2 + $0x5] sm:$0x1] %vm840, %v906
        %s908 = scalar_lea.vmem %s303, %s904 [#allocation10]
        %v909 = vld [vmem:[%s908] sm:$0x1]
        %911 = vrot.lane.b32.xlu0 %v909, 32
        %v912 = vpop.permute.xlu0 %911
        %914 = vst.msk [vmem:[#allocation2 + $0x5] sm:$0x1] %vm848, %v912
        %s915 = sadd.s32 %s835, 6
        %s916 = sld [smem:[#allocation6 + %s915]]
        %s917 = sld [smem:[#allocation7 + %s915]]
        %s918 = scalar_lea.vmem %s303, %s916 [#allocation10]
        %v919 = vld [vmem:[%s918] sm:$0x1]
        %920 = vst.msk [vmem:[#allocation2 + $0x6] sm:$0x1] %vm840, %v919
        %s921 = scalar_lea.vmem %s303, %s917 [#allocation10]
        %v922 = vld [vmem:[%s921] sm:$0x1]
        %924 = vrot.lane.b32.xlu0 %v922, 32
        %v925 = vpop.permute.xlu0 %924
        %927 = vst.msk [vmem:[#allocation2 + $0x6] sm:$0x1] %vm848, %v925
        %s928 = sadd.s32 %s835, 7
        %s929 = sld [smem:[#allocation6 + %s928]]
        %s930 = sld [smem:[#allocation7 + %s928]]
        %s931 = scalar_lea.vmem %s303, %s929 [#allocation10]
        %v932 = vld [vmem:[%s931] sm:$0x1]
        %933 = vst.msk [vmem:[#allocation2 + $0x7] sm:$0x1] %vm840, %v932
        %s934 = scalar_lea.vmem %s303, %s930 [#allocation10]
        %v935 = vld [vmem:[%s934] sm:$0x1]
        %937 = vrot.lane.b32.xlu0 %v935, 32
        %v938 = vpop.permute.xlu0 %937
        %940 = vst.msk [vmem:[#allocation2 + $0x7] sm:$0x1] %vm848, %v938
        %v941 = vld [vmem:[#allocation2] sm:$0xff]
        %v942 = vperm.slane %v941, 0
        %v943 = vlaneseq
        %v944 = vshrl.u32 %v943, 7
        %946 = vset.pattern.permute.xlu0 %v944
        %947 = vperm.xlu0 %946, %v942
        %v948 = vpop.permute.xlu0 %947
        %v949 = vlaneseq
        %v950 = vshrl.u32 %v949, 7
        %v951 = vadd.s32 %v950, 8
        %952 = vset.pattern.permute.xlu0 %v951
        %953 = vperm.xlu0 %952, %v942
        %v954 = vpop.permute.xlu0 %953
        %v955 = vlaneseq
        %v956 = vshrl.u32 %v955, 7
        %v957 = vadd.s32 %v956, 16
        %958 = vset.pattern.permute.xlu0 %v957
        %959 = vperm.xlu0 %958, %v942
        %v960 = vpop.permute.xlu0 %959
        %v961 = vlaneseq
        %v962 = vshrl.u32 %v961, 7
        %v963 = vadd.s32 %v962, 24
        %964 = vset.pattern.permute.xlu0 %v963
        %965 = vperm.xlu0 %964, %v942
        %v966 = vpop.permute.xlu0 %965
        %v967 = vlaneseq
        %v968 = vshrl.u32 %v967, 7
        %v969 = vadd.s32 %v968, 32
        %970 = vset.pattern.permute.xlu0 %v969
        %971 = vperm.xlu0 %970, %v942
        %v972 = vpop.permute.xlu0 %971
        %v973 = vlaneseq
        %v974 = vshrl.u32 %v973, 7
        %v975 = vadd.s32 %v974, 40
        %976 = vset.pattern.permute.xlu0 %v975
        %977 = vperm.xlu0 %976, %v942
        %v978 = vpop.permute.xlu0 %977
        %v979 = vlaneseq
        %v980 = vshrl.u32 %v979, 7
        %v981 = vadd.s32 %v980, 48
        %982 = vset.pattern.permute.xlu0 %v981
        %983 = vperm.xlu0 %982, %v942
        %v984 = vpop.permute.xlu0 %983
        %v985 = vlaneseq
        %v986 = vshrl.u32 %v985, 7
        %v987 = vadd.s32 %v986, 56
        %988 = vset.pattern.permute.xlu0 %v987
        %989 = vperm.xlu0 %988, %v942
        %v990 = vpop.permute.xlu0 %989
        %v991 = vperm.slane %v941, 1
        %v992 = vlaneseq
        %v993 = vshrl.u32 %v992, 7
        %995 = vset.pattern.permute.xlu0 %v993
        %996 = vperm.xlu0 %995, %v991
        %v997 = vpop.permute.xlu0 %996
        %v998 = vlaneseq
        %v999 = vshrl.u32 %v998, 7
        %v1000 = vadd.s32 %v999, 8
        %1001 = vset.pattern.permute.xlu0 %v1000
        %1002 = vperm.xlu0 %1001, %v991
        %v1003 = vpop.permute.xlu0 %1002
        %v1004 = vlaneseq
        %v1005 = vshrl.u32 %v1004, 7
        %v1006 = vadd.s32 %v1005, 16
        %1007 = vset.pattern.permute.xlu0 %v1006
        %1008 = vperm.xlu0 %1007, %v991
        %v1009 = vpop.permute.xlu0 %1008
        %v1010 = vlaneseq
        %v1011 = vshrl.u32 %v1010, 7
        %v1012 = vadd.s32 %v1011, 24
        %1013 = vset.pattern.permute.xlu0 %v1012
        %1014 = vperm.xlu0 %1013, %v991
        %v1015 = vpop.permute.xlu0 %1014
        %v1016 = vlaneseq
        %v1017 = vshrl.u32 %v1016, 7
        %v1018 = vadd.s32 %v1017, 32
        %1019 = vset.pattern.permute.xlu0 %v1018
        %1020 = vperm.xlu0 %1019, %v991
        %v1021 = vpop.permute.xlu0 %1020
        %v1022 = vlaneseq
        %v1023 = vshrl.u32 %v1022, 7
        %v1024 = vadd.s32 %v1023, 40
        %1025 = vset.pattern.permute.xlu0 %v1024
        %1026 = vperm.xlu0 %1025, %v991
        %v1027 = vpop.permute.xlu0 %1026
        %v1028 = vlaneseq
        %v1029 = vshrl.u32 %v1028, 7
        %v1030 = vadd.s32 %v1029, 48
        %1031 = vset.pattern.permute.xlu0 %v1030
        %1032 = vperm.xlu0 %1031, %v991
        %v1033 = vpop.permute.xlu0 %1032
        %v1034 = vlaneseq
        %v1035 = vshrl.u32 %v1034, 7
        %v1036 = vadd.s32 %v1035, 56
        %1037 = vset.pattern.permute.xlu0 %v1036
        %1038 = vperm.xlu0 %1037, %v991
        %v1039 = vpop.permute.xlu0 %1038
        %v1040 = vperm.slane %v941, 2
        %v1041 = vlaneseq
        %v1042 = vshrl.u32 %v1041, 7
        %1044 = vset.pattern.permute.xlu0 %v1042
        %1045 = vperm.xlu0 %1044, %v1040
        %v1046 = vpop.permute.xlu0 %1045
        %v1047 = vlaneseq
        %v1048 = vshrl.u32 %v1047, 7
        %v1049 = vadd.s32 %v1048, 8
        %1050 = vset.pattern.permute.xlu0 %v1049
        %1051 = vperm.xlu0 %1050, %v1040
        %v1052 = vpop.permute.xlu0 %1051
        %v1053 = vlaneseq
        %v1054 = vshrl.u32 %v1053, 7
        %v1055 = vadd.s32 %v1054, 16
        %1056 = vset.pattern.permute.xlu0 %v1055
        %1057 = vperm.xlu0 %1056, %v1040
        %v1058 = vpop.permute.xlu0 %1057
        %v1059 = vlaneseq
        %v1060 = vshrl.u32 %v1059, 7
        %v1061 = vadd.s32 %v1060, 24
        %1062 = vset.pattern.permute.xlu0 %v1061
        %1063 = vperm.xlu0 %1062, %v1040
        %v1064 = vpop.permute.xlu0 %1063
        %v1065 = vlaneseq
        %v1066 = vshrl.u32 %v1065, 7
        %v1067 = vadd.s32 %v1066, 32
        %1068 = vset.pattern.permute.xlu0 %v1067
        %1069 = vperm.xlu0 %1068, %v1040
        %v1070 = vpop.permute.xlu0 %1069
        %v1071 = vlaneseq
        %v1072 = vshrl.u32 %v1071, 7
        %v1073 = vadd.s32 %v1072, 40
        %1074 = vset.pattern.permute.xlu0 %v1073
        %1075 = vperm.xlu0 %1074, %v1040
        %v1076 = vpop.permute.xlu0 %1075
        %v1077 = vlaneseq
        %v1078 = vshrl.u32 %v1077, 7
        %v1079 = vadd.s32 %v1078, 48
        %1080 = vset.pattern.permute.xlu0 %v1079
        %1081 = vperm.xlu0 %1080, %v1040
        %v1082 = vpop.permute.xlu0 %1081
        %v1083 = vlaneseq
        %v1084 = vshrl.u32 %v1083, 7
        %v1085 = vadd.s32 %v1084, 56
        %1086 = vset.pattern.permute.xlu0 %v1085
        %1087 = vperm.xlu0 %1086, %v1040
        %v1088 = vpop.permute.xlu0 %1087
        %v1089 = vperm.slane %v941, 3
        %v1090 = vlaneseq
        %v1091 = vshrl.u32 %v1090, 7
        %1093 = vset.pattern.permute.xlu0 %v1091
        %1094 = vperm.xlu0 %1093, %v1089
        %v1095 = vpop.permute.xlu0 %1094
        %v1096 = vlaneseq
        %v1097 = vshrl.u32 %v1096, 7
        %v1098 = vadd.s32 %v1097, 8
        %1099 = vset.pattern.permute.xlu0 %v1098
        %1100 = vperm.xlu0 %1099, %v1089
        %v1101 = vpop.permute.xlu0 %1100
        %v1102 = vlaneseq
        %v1103 = vshrl.u32 %v1102, 7
        %v1104 = vadd.s32 %v1103, 16
        %1105 = vset.pattern.permute.xlu0 %v1104
        %1106 = vperm.xlu0 %1105, %v1089
        %v1107 = vpop.permute.xlu0 %1106
        %v1108 = vlaneseq
        %v1109 = vshrl.u32 %v1108, 7
        %v1110 = vadd.s32 %v1109, 24
        %1111 = vset.pattern.permute.xlu0 %v1110
        %1112 = vperm.xlu0 %1111, %v1089
        %v1113 = vpop.permute.xlu0 %1112
        %v1114 = vlaneseq
        %v1115 = vshrl.u32 %v1114, 7
        %v1116 = vadd.s32 %v1115, 32
        %1117 = vset.pattern.permute.xlu0 %v1116
        %1118 = vperm.xlu0 %1117, %v1089
        %v1119 = vpop.permute.xlu0 %1118
        %v1120 = vlaneseq
        %v1121 = vshrl.u32 %v1120, 7
        %v1122 = vadd.s32 %v1121, 40
        %1123 = vset.pattern.permute.xlu0 %v1122
        %1124 = vperm.xlu0 %1123, %v1089
        %v1125 = vpop.permute.xlu0 %1124
        %v1126 = vlaneseq
        %v1127 = vshrl.u32 %v1126, 7
        %v1128 = vadd.s32 %v1127, 48
        %1129 = vset.pattern.permute.xlu0 %v1128
        %1130 = vperm.xlu0 %1129, %v1089
        %v1131 = vpop.permute.xlu0 %1130
        %v1132 = vlaneseq
        %v1133 = vshrl.u32 %v1132, 7
        %v1134 = vadd.s32 %v1133, 56
        %1135 = vset.pattern.permute.xlu0 %v1134
        %1136 = vperm.xlu0 %1135, %v1089
        %v1137 = vpop.permute.xlu0 %1136
        %v1138 = vperm.slane %v941, 4
        %v1139 = vlaneseq
        %v1140 = vshrl.u32 %v1139, 7
        %1142 = vset.pattern.permute.xlu0 %v1140
        %1143 = vperm.xlu0 %1142, %v1138
        %v1144 = vpop.permute.xlu0 %1143
        %v1145 = vlaneseq
        %v1146 = vshrl.u32 %v1145, 7
        %v1147 = vadd.s32 %v1146, 8
        %1148 = vset.pattern.permute.xlu0 %v1147
        %1149 = vperm.xlu0 %1148, %v1138
        %v1150 = vpop.permute.xlu0 %1149
        %v1151 = vlaneseq
        %v1152 = vshrl.u32 %v1151, 7
        %v1153 = vadd.s32 %v1152, 16
        %1154 = vset.pattern.permute.xlu0 %v1153
        %1155 = vperm.xlu0 %1154, %v1138
        %v1156 = vpop.permute.xlu0 %1155
        %v1157 = vlaneseq
        %v1158 = vshrl.u32 %v1157, 7
        %v1159 = vadd.s32 %v1158, 24
        %1160 = vset.pattern.permute.xlu0 %v1159
        %1161 = vperm.xlu0 %1160, %v1138
        %v1162 = vpop.permute.xlu0 %1161
        %v1163 = vlaneseq
        %v1164 = vshrl.u32 %v1163, 7
        %v1165 = vadd.s32 %v1164, 32
        %1166 = vset.pattern.permute.xlu0 %v1165
        %1167 = vperm.xlu0 %1166, %v1138
        %v1168 = vpop.permute.xlu0 %1167
        %v1169 = vlaneseq
        %v1170 = vshrl.u32 %v1169, 7
        %v1171 = vadd.s32 %v1170, 40
        %1172 = vset.pattern.permute.xlu0 %v1171
        %1173 = vperm.xlu0 %1172, %v1138
        %v1174 = vpop.permute.xlu0 %1173
        %v1175 = vlaneseq
        %v1176 = vshrl.u32 %v1175, 7
        %v1177 = vadd.s32 %v1176, 48
        %1178 = vset.pattern.permute.xlu0 %v1177
        %1179 = vperm.xlu0 %1178, %v1138
        %v1180 = vpop.permute.xlu0 %1179
        %v1181 = vlaneseq
        %v1182 = vshrl.u32 %v1181, 7
        %v1183 = vadd.s32 %v1182, 56
        %1184 = vset.pattern.permute.xlu0 %v1183
        %1185 = vperm.xlu0 %1184, %v1138
        %v1186 = vpop.permute.xlu0 %1185
        %v1187 = vperm.slane %v941, 5
        %v1188 = vlaneseq
        %v1189 = vshrl.u32 %v1188, 7
        %1191 = vset.pattern.permute.xlu0 %v1189
        %1192 = vperm.xlu0 %1191, %v1187
        %v1193 = vpop.permute.xlu0 %1192
        %v1194 = vlaneseq
        %v1195 = vshrl.u32 %v1194, 7
        %v1196 = vadd.s32 %v1195, 8
        %1197 = vset.pattern.permute.xlu0 %v1196
        %1198 = vperm.xlu0 %1197, %v1187
        %v1199 = vpop.permute.xlu0 %1198
        %v1200 = vlaneseq
        %v1201 = vshrl.u32 %v1200, 7
        %v1202 = vadd.s32 %v1201, 16
        %1203 = vset.pattern.permute.xlu0 %v1202
        %1204 = vperm.xlu0 %1203, %v1187
        %v1205 = vpop.permute.xlu0 %1204
        %v1206 = vlaneseq
        %v1207 = vshrl.u32 %v1206, 7
        %v1208 = vadd.s32 %v1207, 24
        %1209 = vset.pattern.permute.xlu0 %v1208
        %1210 = vperm.xlu0 %1209, %v1187
        %v1211 = vpop.permute.xlu0 %1210
        %v1212 = vlaneseq
        %v1213 = vshrl.u32 %v1212, 7
        %v1214 = vadd.s32 %v1213, 32
        %1215 = vset.pattern.permute.xlu0 %v1214
        %1216 = vperm.xlu0 %1215, %v1187
        %v1217 = vpop.permute.xlu0 %1216
        %v1218 = vlaneseq
        %v1219 = vshrl.u32 %v1218, 7
        %v1220 = vadd.s32 %v1219, 40
        %1221 = vset.pattern.permute.xlu0 %v1220
        %1222 = vperm.xlu0 %1221, %v1187
        %v1223 = vpop.permute.xlu0 %1222
        %v1224 = vlaneseq
        %v1225 = vshrl.u32 %v1224, 7
        %v1226 = vadd.s32 %v1225, 48
        %1227 = vset.pattern.permute.xlu0 %v1226
        %1228 = vperm.xlu0 %1227, %v1187
        %v1229 = vpop.permute.xlu0 %1228
        %v1230 = vlaneseq
        %v1231 = vshrl.u32 %v1230, 7
        %v1232 = vadd.s32 %v1231, 56
        %1233 = vset.pattern.permute.xlu0 %v1232
        %1234 = vperm.xlu0 %1233, %v1187
        %v1235 = vpop.permute.xlu0 %1234
        %v1236 = vperm.slane %v941, 6
        %v1237 = vlaneseq
        %v1238 = vshrl.u32 %v1237, 7
        %1240 = vset.pattern.permute.xlu0 %v1238
        %1241 = vperm.xlu0 %1240, %v1236
        %v1242 = vpop.permute.xlu0 %1241
        %v1243 = vlaneseq
        %v1244 = vshrl.u32 %v1243, 7
        %v1245 = vadd.s32 %v1244, 8
        %1246 = vset.pattern.permute.xlu0 %v1245
        %1247 = vperm.xlu0 %1246, %v1236
        %v1248 = vpop.permute.xlu0 %1247
        %v1249 = vlaneseq
        %v1250 = vshrl.u32 %v1249, 7
        %v1251 = vadd.s32 %v1250, 16
        %1252 = vset.pattern.permute.xlu0 %v1251
        %1253 = vperm.xlu0 %1252, %v1236
        %v1254 = vpop.permute.xlu0 %1253
        %v1255 = vlaneseq
        %v1256 = vshrl.u32 %v1255, 7
        %v1257 = vadd.s32 %v1256, 24
        %1258 = vset.pattern.permute.xlu0 %v1257
        %1259 = vperm.xlu0 %1258, %v1236
        %v1260 = vpop.permute.xlu0 %1259
        %v1261 = vlaneseq
        %v1262 = vshrl.u32 %v1261, 7
        %v1263 = vadd.s32 %v1262, 32
        %1264 = vset.pattern.permute.xlu0 %v1263
        %1265 = vperm.xlu0 %1264, %v1236
        %v1266 = vpop.permute.xlu0 %1265
        %v1267 = vlaneseq
        %v1268 = vshrl.u32 %v1267, 7
        %v1269 = vadd.s32 %v1268, 40
        %1270 = vset.pattern.permute.xlu0 %v1269
        %1271 = vperm.xlu0 %1270, %v1236
        %v1272 = vpop.permute.xlu0 %1271
        %v1273 = vlaneseq
        %v1274 = vshrl.u32 %v1273, 7
        %v1275 = vadd.s32 %v1274, 48
        %1276 = vset.pattern.permute.xlu0 %v1275
        %1277 = vperm.xlu0 %1276, %v1236
        %v1278 = vpop.permute.xlu0 %1277
        %v1279 = vlaneseq
        %v1280 = vshrl.u32 %v1279, 7
        %v1281 = vadd.s32 %v1280, 56
        %1282 = vset.pattern.permute.xlu0 %v1281
        %1283 = vperm.xlu0 %1282, %v1236
        %v1284 = vpop.permute.xlu0 %1283
        %v1285 = vperm.slane %v941, 7
        %v1286 = vlaneseq
        %v1287 = vshrl.u32 %v1286, 7
        %1289 = vset.pattern.permute.xlu0 %v1287
        %1290 = vperm.xlu0 %1289, %v1285
        %v1291 = vpop.permute.xlu0 %1290
        %v1292 = vlaneseq
        %v1293 = vshrl.u32 %v1292, 7
        %v1294 = vadd.s32 %v1293, 8
        %1295 = vset.pattern.permute.xlu0 %v1294
        %1296 = vperm.xlu0 %1295, %v1285
        %v1297 = vpop.permute.xlu0 %1296
        %v1298 = vlaneseq
        %v1299 = vshrl.u32 %v1298, 7
        %v1300 = vadd.s32 %v1299, 16
        %1301 = vset.pattern.permute.xlu0 %v1300
        %1302 = vperm.xlu0 %1301, %v1285
        %v1303 = vpop.permute.xlu0 %1302
        %v1304 = vlaneseq
        %v1305 = vshrl.u32 %v1304, 7
        %v1306 = vadd.s32 %v1305, 24
        %1307 = vset.pattern.permute.xlu0 %v1306
        %1308 = vperm.xlu0 %1307, %v1285
        %v1309 = vpop.permute.xlu0 %1308
        %v1310 = vlaneseq
        %v1311 = vshrl.u32 %v1310, 7
        %v1312 = vadd.s32 %v1311, 32
        %1313 = vset.pattern.permute.xlu0 %v1312
        %1314 = vperm.xlu0 %1313, %v1285
        %v1315 = vpop.permute.xlu0 %1314
        %v1316 = vlaneseq
        %v1317 = vshrl.u32 %v1316, 7
        %v1318 = vadd.s32 %v1317, 40
        %1319 = vset.pattern.permute.xlu0 %v1318
        %1320 = vperm.xlu0 %1319, %v1285
        %v1321 = vpop.permute.xlu0 %1320
        %v1322 = vlaneseq
        %v1323 = vshrl.u32 %v1322, 7
        %v1324 = vadd.s32 %v1323, 48
        %1325 = vset.pattern.permute.xlu0 %v1324
        %1326 = vperm.xlu0 %1325, %v1285
        %v1327 = vpop.permute.xlu0 %1326
        %v1328 = vlaneseq
        %v1329 = vshrl.u32 %v1328, 7
        %v1330 = vadd.s32 %v1329, 56
        %1331 = vset.pattern.permute.xlu0 %v1330
        %1332 = vperm.xlu0 %1331, %v1285
        %v1333 = vpop.permute.xlu0 %1332
        %v1335 = vrot.slane %v941, 1
        %v1336 = vrot.slane %v941, 2
        %v1337 = vrot.slane %v941, 3
        %v1338 = vrot.slane %v941, 4
        %v1339 = vrot.slane %v941, 5
        %v1340 = vrot.slane %v941, 6
        %v1341 = vrot.slane %v941, 7
        %v1342 = vperm.slane %v941, 0
        %v1343 = vperm.slane %v1335, 0
        %v1344 = vperm.slane %v1336, 0
        %v1345 = vperm.slane %v1337, 0
        %v1346 = vperm.slane %v1338, 0
        %v1347 = vperm.slane %v1339, 0
        %v1348 = vperm.slane %v1340, 0
        %v1349 = vperm.slane %v1341, 0
        %v1358 = vmul.f32 %v948, %v1342
        %v1359 = vmul.f32 %v954, %v1342
        %v1360 = vmul.f32 %v960, %v1342
        %v1361 = vmul.f32 %v966, %v1342
        %v1362 = vmul.f32 %v972, %v1342
        %v1363 = vmul.f32 %v978, %v1342
        %v1364 = vmul.f32 %v984, %v1342
        %v1365 = vmul.f32 %v990, %v1342
        %v1366 = vmul.f32 %v997, %v1343
        %v1367 = vmul.f32 %v1003, %v1343
        %v1368 = vmul.f32 %v1009, %v1343
        %v1369 = vmul.f32 %v1015, %v1343
        %v1370 = vmul.f32 %v1021, %v1343
        %v1371 = vmul.f32 %v1027, %v1343
        %v1372 = vmul.f32 %v1033, %v1343
        %v1373 = vmul.f32 %v1039, %v1343
        %v1374 = vmul.f32 %v1046, %v1344
        %v1375 = vmul.f32 %v1052, %v1344
        %v1376 = vmul.f32 %v1058, %v1344
        %v1377 = vmul.f32 %v1064, %v1344
        %v1378 = vmul.f32 %v1070, %v1344
        %v1379 = vmul.f32 %v1076, %v1344
        %v1380 = vmul.f32 %v1082, %v1344
        %v1381 = vmul.f32 %v1088, %v1344
        %v1382 = vmul.f32 %v1095, %v1345
        %v1383 = vmul.f32 %v1101, %v1345
        %v1384 = vmul.f32 %v1107, %v1345
        %v1385 = vmul.f32 %v1113, %v1345
        %v1386 = vmul.f32 %v1119, %v1345
        %v1387 = vmul.f32 %v1125, %v1345
        %v1388 = vmul.f32 %v1131, %v1345
        %v1389 = vmul.f32 %v1137, %v1345
        %v1390 = vmul.f32 %v1144, %v1346
        %v1391 = vmul.f32 %v1150, %v1346
        %v1392 = vmul.f32 %v1156, %v1346
        %v1393 = vmul.f32 %v1162, %v1346
        %v1394 = vmul.f32 %v1168, %v1346
        %v1395 = vmul.f32 %v1174, %v1346
        %v1396 = vmul.f32 %v1180, %v1346
        %v1397 = vmul.f32 %v1186, %v1346
        %v1398 = vmul.f32 %v1193, %v1347
        %v1399 = vmul.f32 %v1199, %v1347
        %v1400 = vmul.f32 %v1205, %v1347
        %v1401 = vmul.f32 %v1211, %v1347
        %v1402 = vmul.f32 %v1217, %v1347
        %v1403 = vmul.f32 %v1223, %v1347
        %v1404 = vmul.f32 %v1229, %v1347
        %v1405 = vmul.f32 %v1235, %v1347
        %v1406 = vmul.f32 %v1242, %v1348
        %v1407 = vmul.f32 %v1248, %v1348
        %v1408 = vmul.f32 %v1254, %v1348
        %v1409 = vmul.f32 %v1260, %v1348
        %v1410 = vmul.f32 %v1266, %v1348
        %v1411 = vmul.f32 %v1272, %v1348
        %v1412 = vmul.f32 %v1278, %v1348
        %v1413 = vmul.f32 %v1284, %v1348
        %v1414 = vmul.f32 %v1291, %v1349
        %v1415 = vmul.f32 %v1297, %v1349
        %v1416 = vmul.f32 %v1303, %v1349
        %v1417 = vmul.f32 %v1309, %v1349
        %v1418 = vmul.f32 %v1315, %v1349
        %v1419 = vmul.f32 %v1321, %v1349
        %v1420 = vmul.f32 %v1327, %v1349
        %v1421 = vmul.f32 %v1333, %v1349
        %v1422 = vrot.slane %v1374, 4
        %vm1423 = vcmask 1047556
        %v1424 = vsel %vm1423, %v1422, %v1358
        %v1425 = vrot.slane %v1358, 4
        %v1426 = vsel %vm1423, %v1374, %v1425
        %v1428 = vunpack.c.l.s4 1983009808
        %v1429 = vunpack.c.0.s8 %v1428
        %v1430 = vperm.slane %v1424, %v1429
        %v1432 = vunpack.c.l.s4 1983009808
        %v1433 = vunpack.c.0.s8 %v1432
        %v1434 = vperm.slane %v1426, %v1433
        %v1435 = vrot.slane %v1382, 4
        %v1436 = vsel %vm1423, %v1435, %v1366
        %v1437 = vrot.slane %v1366, 4
        %v1438 = vsel %vm1423, %v1382, %v1437
        %v1440 = vunpack.c.l.s4 1983009808
        %v1441 = vunpack.c.0.s8 %v1440
        %v1442 = vperm.slane %v1436, %v1441
        %v1444 = vunpack.c.l.s4 1983009808
        %v1445 = vunpack.c.0.s8 %v1444
        %v1446 = vperm.slane %v1438, %v1445
        %v1447 = vrot.slane %v1406, 4
        %v1448 = vsel %vm1423, %v1447, %v1390
        %v1449 = vrot.slane %v1390, 4
        %v1450 = vsel %vm1423, %v1406, %v1449
        %v1452 = vunpack.c.l.s4 1983009808
        %v1453 = vunpack.c.0.s8 %v1452
        %v1454 = vperm.slane %v1448, %v1453
        %v1456 = vunpack.c.l.s4 1983009808
        %v1457 = vunpack.c.0.s8 %v1456
        %v1458 = vperm.slane %v1450, %v1457
        %v1459 = vrot.slane %v1414, 4
        %v1460 = vsel %vm1423, %v1459, %v1398
        %v1461 = vrot.slane %v1398, 4
        %v1462 = vsel %vm1423, %v1414, %v1461
        %v1464 = vunpack.c.l.s4 1983009808
        %v1465 = vunpack.c.0.s8 %v1464
        %v1466 = vperm.slane %v1460, %v1465
        %v1468 = vunpack.c.l.s4 1983009808
        %v1469 = vunpack.c.0.s8 %v1468
        %v1470 = vperm.slane %v1462, %v1469
        %v1471 = vrot.slane %v1442, 4
        %v1472 = vsel %vm1423, %v1471, %v1430
        %v1473 = vrot.slane %v1430, 4
        %v1474 = vsel %vm1423, %v1442, %v1473
        %v1476 = vunpack.c.l.s4 1934713408
        %v1477 = vunpack.c.0.s8 %v1476
        %v1478 = vperm.slane %v1472, %v1477
        %v1480 = vunpack.c.l.s4 1934713408
        %v1481 = vunpack.c.0.s8 %v1480
        %v1482 = vperm.slane %v1474, %v1481
        %v1483 = vrot.slane %v1446, 4
        %v1484 = vsel %vm1423, %v1483, %v1434
        %v1485 = vrot.slane %v1434, 4
        %v1486 = vsel %vm1423, %v1446, %v1485
        %v1488 = vunpack.c.l.s4 1934713408
        %v1489 = vunpack.c.0.s8 %v1488
        %v1490 = vperm.slane %v1484, %v1489
        %v1492 = vunpack.c.l.s4 1934713408
        %v1493 = vunpack.c.0.s8 %v1492
        %v1494 = vperm.slane %v1486, %v1493
        %v1495 = vrot.slane %v1466, 4
        %v1496 = vsel %vm1423, %v1495, %v1454
        %v1497 = vrot.slane %v1454, 4
        %v1498 = vsel %vm1423, %v1466, %v1497
        %v1500 = vunpack.c.l.s4 1934713408
        %v1501 = vunpack.c.0.s8 %v1500
        %v1502 = vperm.slane %v1496, %v1501
        %v1504 = vunpack.c.l.s4 1934713408
        %v1505 = vunpack.c.0.s8 %v1504
        %v1506 = vperm.slane %v1498, %v1505
        %v1507 = vrot.slane %v1470, 4
        %v1508 = vsel %vm1423, %v1507, %v1458
        %v1509 = vrot.slane %v1458, 4
        %v1510 = vsel %vm1423, %v1470, %v1509
        %v1512 = vunpack.c.l.s4 1934713408
        %v1513 = vunpack.c.0.s8 %v1512
        %v1514 = vperm.slane %v1508, %v1513
        %v1516 = vunpack.c.l.s4 1934713408
        %v1517 = vunpack.c.0.s8 %v1516
        %v1518 = vperm.slane %v1510, %v1517
        %v1519 = vrot.slane %v1502, 4
        %v1520 = vsel %vm1423, %v1519, %v1478
        %v1521 = vrot.slane %v1478, 4
        %v1522 = vsel %vm1423, %v1502, %v1521
        %v1523 = vrot.slane %v1506, 4
        %v1524 = vsel %vm1423, %v1523, %v1482
        %v1525 = vrot.slane %v1482, 4
        %v1526 = vsel %vm1423, %v1506, %v1525
        %v1527 = vrot.slane %v1514, 4
        %v1528 = vsel %vm1423, %v1527, %v1490
        %v1529 = vrot.slane %v1490, 4
        %v1530 = vsel %vm1423, %v1514, %v1529
        %v1531 = vrot.slane %v1518, 4
        %v1532 = vsel %vm1423, %v1531, %v1494
        %v1533 = vrot.slane %v1494, 4
        %v1534 = vsel %vm1423, %v1518, %v1533
        %v1535 = vrot.slane %v1375, 4
        %v1536 = vsel %vm1423, %v1535, %v1359
        %v1537 = vrot.slane %v1359, 4
        %v1538 = vsel %vm1423, %v1375, %v1537
        %v1540 = vunpack.c.l.s4 1983009808
        %v1541 = vunpack.c.0.s8 %v1540
        %v1542 = vperm.slane %v1536, %v1541
        %v1544 = vunpack.c.l.s4 1983009808
        %v1545 = vunpack.c.0.s8 %v1544
        %v1546 = vperm.slane %v1538, %v1545
        %v1547 = vrot.slane %v1383, 4
        %v1548 = vsel %vm1423, %v1547, %v1367
        %v1549 = vrot.slane %v1367, 4
        %v1550 = vsel %vm1423, %v1383, %v1549
        %v1552 = vunpack.c.l.s4 1983009808
        %v1553 = vunpack.c.0.s8 %v1552
        %v1554 = vperm.slane %v1548, %v1553
        %v1556 = vunpack.c.l.s4 1983009808
        %v1557 = vunpack.c.0.s8 %v1556
        %v1558 = vperm.slane %v1550, %v1557
        %v1559 = vrot.slane %v1407, 4
        %v1560 = vsel %vm1423, %v1559, %v1391
        %v1561 = vrot.slane %v1391, 4
        %v1562 = vsel %vm1423, %v1407, %v1561
        %v1564 = vunpack.c.l.s4 1983009808
        %v1565 = vunpack.c.0.s8 %v1564
        %v1566 = vperm.slane %v1560, %v1565
        %v1568 = vunpack.c.l.s4 1983009808
        %v1569 = vunpack.c.0.s8 %v1568
        %v1570 = vperm.slane %v1562, %v1569
        %v1571 = vrot.slane %v1415, 4
        %v1572 = vsel %vm1423, %v1571, %v1399
        %v1573 = vrot.slane %v1399, 4
        %v1574 = vsel %vm1423, %v1415, %v1573
        %v1576 = vunpack.c.l.s4 1983009808
        %v1577 = vunpack.c.0.s8 %v1576
        %v1578 = vperm.slane %v1572, %v1577
        %v1580 = vunpack.c.l.s4 1983009808
        %v1581 = vunpack.c.0.s8 %v1580
        %v1582 = vperm.slane %v1574, %v1581
        %v1583 = vrot.slane %v1554, 4
        %v1584 = vsel %vm1423, %v1583, %v1542
        %v1585 = vrot.slane %v1542, 4
        %v1586 = vsel %vm1423, %v1554, %v1585
        %v1588 = vunpack.c.l.s4 1934713408
        %v1589 = vunpack.c.0.s8 %v1588
        %v1590 = vperm.slane %v1584, %v1589
        %v1592 = vunpack.c.l.s4 1934713408
        %v1593 = vunpack.c.0.s8 %v1592
        %v1594 = vperm.slane %v1586, %v1593
        %v1595 = vrot.slane %v1558, 4
        %v1596 = vsel %vm1423, %v1595, %v1546
        %v1597 = vrot.slane %v1546, 4
        %v1598 = vsel %vm1423, %v1558, %v1597
        %v1600 = vunpack.c.l.s4 1934713408
        %v1601 = vunpack.c.0.s8 %v1600
        %v1602 = vperm.slane %v1596, %v1601
        %v1604 = vunpack.c.l.s4 1934713408
        %v1605 = vunpack.c.0.s8 %v1604
        %v1606 = vperm.slane %v1598, %v1605
        %v1607 = vrot.slane %v1578, 4
        %v1608 = vsel %vm1423, %v1607, %v1566
        %v1609 = vrot.slane %v1566, 4
        %v1610 = vsel %vm1423, %v1578, %v1609
        %v1612 = vunpack.c.l.s4 1934713408
        %v1613 = vunpack.c.0.s8 %v1612
        %v1614 = vperm.slane %v1608, %v1613
        %v1616 = vunpack.c.l.s4 1934713408
        %v1617 = vunpack.c.0.s8 %v1616
        %v1618 = vperm.slane %v1610, %v1617
        %v1619 = vrot.slane %v1582, 4
        %v1620 = vsel %vm1423, %v1619, %v1570
        %v1621 = vrot.slane %v1570, 4
        %v1622 = vsel %vm1423, %v1582, %v1621
        %v1624 = vunpack.c.l.s4 1934713408
        %v1625 = vunpack.c.0.s8 %v1624
        %v1626 = vperm.slane %v1620, %v1625
        %v1628 = vunpack.c.l.s4 1934713408
        %v1629 = vunpack.c.0.s8 %v1628
        %v1630 = vperm.slane %v1622, %v1629
        %v1631 = vrot.slane %v1614, 4
        %v1632 = vsel %vm1423, %v1631, %v1590
        %v1633 = vrot.slane %v1590, 4
        %v1634 = vsel %vm1423, %v1614, %v1633
        %v1635 = vrot.slane %v1618, 4
        %v1636 = vsel %vm1423, %v1635, %v1594
        %v1637 = vrot.slane %v1594, 4
        %v1638 = vsel %vm1423, %v1618, %v1637
        %v1639 = vrot.slane %v1626, 4
        %v1640 = vsel %vm1423, %v1639, %v1602
        %v1641 = vrot.slane %v1602, 4
        %v1642 = vsel %vm1423, %v1626, %v1641
        %v1643 = vrot.slane %v1630, 4
        %v1644 = vsel %vm1423, %v1643, %v1606
        %v1645 = vrot.slane %v1606, 4
        %v1646 = vsel %vm1423, %v1630, %v1645
        %v1647 = vrot.slane %v1376, 4
        %v1648 = vsel %vm1423, %v1647, %v1360
        %v1649 = vrot.slane %v1360, 4
        %v1650 = vsel %vm1423, %v1376, %v1649
        %v1652 = vunpack.c.l.s4 1983009808
        %v1653 = vunpack.c.0.s8 %v1652
        %v1654 = vperm.slane %v1648, %v1653
        %v1656 = vunpack.c.l.s4 1983009808
        %v1657 = vunpack.c.0.s8 %v1656
        %v1658 = vperm.slane %v1650, %v1657
        %v1659 = vrot.slane %v1384, 4
        %v1660 = vsel %vm1423, %v1659, %v1368
        %v1661 = vrot.slane %v1368, 4
        %v1662 = vsel %vm1423, %v1384, %v1661
        %v1664 = vunpack.c.l.s4 1983009808
        %v1665 = vunpack.c.0.s8 %v1664
        %v1666 = vperm.slane %v1660, %v1665
        %v1668 = vunpack.c.l.s4 1983009808
        %v1669 = vunpack.c.0.s8 %v1668
        %v1670 = vperm.slane %v1662, %v1669
        %v1671 = vrot.slane %v1408, 4
        %v1672 = vsel %vm1423, %v1671, %v1392
        %v1673 = vrot.slane %v1392, 4
        %v1674 = vsel %vm1423, %v1408, %v1673
        %v1676 = vunpack.c.l.s4 1983009808
        %v1677 = vunpack.c.0.s8 %v1676
        %v1678 = vperm.slane %v1672, %v1677
        %v1680 = vunpack.c.l.s4 1983009808
        %v1681 = vunpack.c.0.s8 %v1680
        %v1682 = vperm.slane %v1674, %v1681
        %v1683 = vrot.slane %v1416, 4
        %v1684 = vsel %vm1423, %v1683, %v1400
        %v1685 = vrot.slane %v1400, 4
        %v1686 = vsel %vm1423, %v1416, %v1685
        %v1688 = vunpack.c.l.s4 1983009808
        %v1689 = vunpack.c.0.s8 %v1688
        %v1690 = vperm.slane %v1684, %v1689
        %v1692 = vunpack.c.l.s4 1983009808
        %v1693 = vunpack.c.0.s8 %v1692
        %v1694 = vperm.slane %v1686, %v1693
        %v1695 = vrot.slane %v1666, 4
        %v1696 = vsel %vm1423, %v1695, %v1654
        %v1697 = vrot.slane %v1654, 4
        %v1698 = vsel %vm1423, %v1666, %v1697
        %v1700 = vunpack.c.l.s4 1934713408
        %v1701 = vunpack.c.0.s8 %v1700
        %v1702 = vperm.slane %v1696, %v1701
        %v1704 = vunpack.c.l.s4 1934713408
        %v1705 = vunpack.c.0.s8 %v1704
        %v1706 = vperm.slane %v1698, %v1705
        %v1707 = vrot.slane %v1670, 4
        %v1708 = vsel %vm1423, %v1707, %v1658
        %v1709 = vrot.slane %v1658, 4
        %v1710 = vsel %vm1423, %v1670, %v1709
        %v1712 = vunpack.c.l.s4 1934713408
        %v1713 = vunpack.c.0.s8 %v1712
        %v1714 = vperm.slane %v1708, %v1713
        %v1716 = vunpack.c.l.s4 1934713408
        %v1717 = vunpack.c.0.s8 %v1716
        %v1718 = vperm.slane %v1710, %v1717
        %v1719 = vrot.slane %v1690, 4
        %v1720 = vsel %vm1423, %v1719, %v1678
        %v1721 = vrot.slane %v1678, 4
        %v1722 = vsel %vm1423, %v1690, %v1721
        %v1724 = vunpack.c.l.s4 1934713408
        %v1725 = vunpack.c.0.s8 %v1724
        %v1726 = vperm.slane %v1720, %v1725
        %v1728 = vunpack.c.l.s4 1934713408
        %v1729 = vunpack.c.0.s8 %v1728
        %v1730 = vperm.slane %v1722, %v1729
        %v1731 = vrot.slane %v1694, 4
        %v1732 = vsel %vm1423, %v1731, %v1682
        %v1733 = vrot.slane %v1682, 4
        %v1734 = vsel %vm1423, %v1694, %v1733
        %v1736 = vunpack.c.l.s4 1934713408
        %v1737 = vunpack.c.0.s8 %v1736
        %v1738 = vperm.slane %v1732, %v1737
        %v1740 = vunpack.c.l.s4 1934713408
        %v1741 = vunpack.c.0.s8 %v1740
        %v1742 = vperm.slane %v1734, %v1741
        %v1743 = vrot.slane %v1726, 4
        %v1744 = vsel %vm1423, %v1743, %v1702
        %v1745 = vrot.slane %v1702, 4
        %v1746 = vsel %vm1423, %v1726, %v1745
        %v1747 = vrot.slane %v1730, 4
        %v1748 = vsel %vm1423, %v1747, %v1706
        %v1749 = vrot.slane %v1706, 4
        %v1750 = vsel %vm1423, %v1730, %v1749
        %v1751 = vrot.slane %v1738, 4
        %v1752 = vsel %vm1423, %v1751, %v1714
        %v1753 = vrot.slane %v1714, 4
        %v1754 = vsel %vm1423, %v1738, %v1753
        %v1755 = vrot.slane %v1742, 4
        %v1756 = vsel %vm1423, %v1755, %v1718
        %v1757 = vrot.slane %v1718, 4
        %v1758 = vsel %vm1423, %v1742, %v1757
        %v1759 = vrot.slane %v1377, 4
        %v1760 = vsel %vm1423, %v1759, %v1361
        %v1761 = vrot.slane %v1361, 4
        %v1762 = vsel %vm1423, %v1377, %v1761
        %v1764 = vunpack.c.l.s4 1983009808
        %v1765 = vunpack.c.0.s8 %v1764
        %v1766 = vperm.slane %v1760, %v1765
        %v1768 = vunpack.c.l.s4 1983009808
        %v1769 = vunpack.c.0.s8 %v1768
        %v1770 = vperm.slane %v1762, %v1769
        %v1771 = vrot.slane %v1385, 4
        %v1772 = vsel %vm1423, %v1771, %v1369
        %v1773 = vrot.slane %v1369, 4
        %v1774 = vsel %vm1423, %v1385, %v1773
        %v1776 = vunpack.c.l.s4 1983009808
        %v1777 = vunpack.c.0.s8 %v1776
        %v1778 = vperm.slane %v1772, %v1777
        %v1780 = vunpack.c.l.s4 1983009808
        %v1781 = vunpack.c.0.s8 %v1780
        %v1782 = vperm.slane %v1774, %v1781
        %v1783 = vrot.slane %v1409, 4
        %v1784 = vsel %vm1423, %v1783, %v1393
        %v1785 = vrot.slane %v1393, 4
        %v1786 = vsel %vm1423, %v1409, %v1785
        %v1788 = vunpack.c.l.s4 1983009808
        %v1789 = vunpack.c.0.s8 %v1788
        %v1790 = vperm.slane %v1784, %v1789
        %v1792 = vunpack.c.l.s4 1983009808
        %v1793 = vunpack.c.0.s8 %v1792
        %v1794 = vperm.slane %v1786, %v1793
        %v1795 = vrot.slane %v1417, 4
        %v1796 = vsel %vm1423, %v1795, %v1401
        %v1797 = vrot.slane %v1401, 4
        %v1798 = vsel %vm1423, %v1417, %v1797
        %v1800 = vunpack.c.l.s4 1983009808
        %v1801 = vunpack.c.0.s8 %v1800
        %v1802 = vperm.slane %v1796, %v1801
        %v1804 = vunpack.c.l.s4 1983009808
        %v1805 = vunpack.c.0.s8 %v1804
        %v1806 = vperm.slane %v1798, %v1805
        %v1807 = vrot.slane %v1778, 4
        %v1808 = vsel %vm1423, %v1807, %v1766
        %v1809 = vrot.slane %v1766, 4
        %v1810 = vsel %vm1423, %v1778, %v1809
        %v1812 = vunpack.c.l.s4 1934713408
        %v1813 = vunpack.c.0.s8 %v1812
        %v1814 = vperm.slane %v1808, %v1813
        %v1816 = vunpack.c.l.s4 1934713408
        %v1817 = vunpack.c.0.s8 %v1816
        %v1818 = vperm.slane %v1810, %v1817
        %v1819 = vrot.slane %v1782, 4
        %v1820 = vsel %vm1423, %v1819, %v1770
        %v1821 = vrot.slane %v1770, 4
        %v1822 = vsel %vm1423, %v1782, %v1821
        %v1824 = vunpack.c.l.s4 1934713408
        %v1825 = vunpack.c.0.s8 %v1824
        %v1826 = vperm.slane %v1820, %v1825
        %v1828 = vunpack.c.l.s4 1934713408
        %v1829 = vunpack.c.0.s8 %v1828
        %v1830 = vperm.slane %v1822, %v1829
        %v1831 = vrot.slane %v1802, 4
        %v1832 = vsel %vm1423, %v1831, %v1790
        %v1833 = vrot.slane %v1790, 4
        %v1834 = vsel %vm1423, %v1802, %v1833
        %v1836 = vunpack.c.l.s4 1934713408
        %v1837 = vunpack.c.0.s8 %v1836
        %v1838 = vperm.slane %v1832, %v1837
        %v1840 = vunpack.c.l.s4 1934713408
        %v1841 = vunpack.c.0.s8 %v1840
        %v1842 = vperm.slane %v1834, %v1841
        %v1843 = vrot.slane %v1806, 4
        %v1844 = vsel %vm1423, %v1843, %v1794
        %v1845 = vrot.slane %v1794, 4
        %v1846 = vsel %vm1423, %v1806, %v1845
        %v1848 = vunpack.c.l.s4 1934713408
        %v1849 = vunpack.c.0.s8 %v1848
        %v1850 = vperm.slane %v1844, %v1849
        %v1852 = vunpack.c.l.s4 1934713408
        %v1853 = vunpack.c.0.s8 %v1852
        %v1854 = vperm.slane %v1846, %v1853
        %v1855 = vrot.slane %v1838, 4
        %v1856 = vsel %vm1423, %v1855, %v1814
        %v1857 = vrot.slane %v1814, 4
        %v1858 = vsel %vm1423, %v1838, %v1857
        %v1859 = vrot.slane %v1842, 4
        %v1860 = vsel %vm1423, %v1859, %v1818
        %v1861 = vrot.slane %v1818, 4
        %v1862 = vsel %vm1423, %v1842, %v1861
        %v1863 = vrot.slane %v1850, 4
        %v1864 = vsel %vm1423, %v1863, %v1826
        %v1865 = vrot.slane %v1826, 4
        %v1866 = vsel %vm1423, %v1850, %v1865
        %v1867 = vrot.slane %v1854, 4
        %v1868 = vsel %vm1423, %v1867, %v1830
        %v1869 = vrot.slane %v1830, 4
        %v1870 = vsel %vm1423, %v1854, %v1869
        %v1871 = vrot.slane %v1378, 4
        %v1872 = vsel %vm1423, %v1871, %v1362
        %v1873 = vrot.slane %v1362, 4
        %v1874 = vsel %vm1423, %v1378, %v1873
        %v1876 = vunpack.c.l.s4 1983009808
        %v1877 = vunpack.c.0.s8 %v1876
        %v1878 = vperm.slane %v1872, %v1877
        %v1880 = vunpack.c.l.s4 1983009808
        %v1881 = vunpack.c.0.s8 %v1880
        %v1882 = vperm.slane %v1874, %v1881
        %v1883 = vrot.slane %v1386, 4
        %v1884 = vsel %vm1423, %v1883, %v1370
        %v1885 = vrot.slane %v1370, 4
        %v1886 = vsel %vm1423, %v1386, %v1885
        %v1888 = vunpack.c.l.s4 1983009808
        %v1889 = vunpack.c.0.s8 %v1888
        %v1890 = vperm.slane %v1884, %v1889
        %v1892 = vunpack.c.l.s4 1983009808
        %v1893 = vunpack.c.0.s8 %v1892
        %v1894 = vperm.slane %v1886, %v1893
        %v1895 = vrot.slane %v1410, 4
        %v1896 = vsel %vm1423, %v1895, %v1394
        %v1897 = vrot.slane %v1394, 4
        %v1898 = vsel %vm1423, %v1410, %v1897
        %v1900 = vunpack.c.l.s4 1983009808
        %v1901 = vunpack.c.0.s8 %v1900
        %v1902 = vperm.slane %v1896, %v1901
        %v1904 = vunpack.c.l.s4 1983009808
        %v1905 = vunpack.c.0.s8 %v1904
        %v1906 = vperm.slane %v1898, %v1905
        %v1907 = vrot.slane %v1418, 4
        %v1908 = vsel %vm1423, %v1907, %v1402
        %v1909 = vrot.slane %v1402, 4
        %v1910 = vsel %vm1423, %v1418, %v1909
        %v1912 = vunpack.c.l.s4 1983009808
        %v1913 = vunpack.c.0.s8 %v1912
        %v1914 = vperm.slane %v1908, %v1913
        %v1916 = vunpack.c.l.s4 1983009808
        %v1917 = vunpack.c.0.s8 %v1916
        %v1918 = vperm.slane %v1910, %v1917
        %v1919 = vrot.slane %v1890, 4
        %v1920 = vsel %vm1423, %v1919, %v1878
        %v1921 = vrot.slane %v1878, 4
        %v1922 = vsel %vm1423, %v1890, %v1921
        %v1924 = vunpack.c.l.s4 1934713408
        %v1925 = vunpack.c.0.s8 %v1924
        %v1926 = vperm.slane %v1920, %v1925
        %v1928 = vunpack.c.l.s4 1934713408
        %v1929 = vunpack.c.0.s8 %v1928
        %v1930 = vperm.slane %v1922, %v1929
        %v1931 = vrot.slane %v1894, 4
        %v1932 = vsel %vm1423, %v1931, %v1882
        %v1933 = vrot.slane %v1882, 4
        %v1934 = vsel %vm1423, %v1894, %v1933
        %v1936 = vunpack.c.l.s4 1934713408
        %v1937 = vunpack.c.0.s8 %v1936
        %v1938 = vperm.slane %v1932, %v1937
        %v1940 = vunpack.c.l.s4 1934713408
        %v1941 = vunpack.c.0.s8 %v1940
        %v1942 = vperm.slane %v1934, %v1941
        %v1943 = vrot.slane %v1914, 4
        %v1944 = vsel %vm1423, %v1943, %v1902
        %v1945 = vrot.slane %v1902, 4
        %v1946 = vsel %vm1423, %v1914, %v1945
        %v1948 = vunpack.c.l.s4 1934713408
        %v1949 = vunpack.c.0.s8 %v1948
        %v1950 = vperm.slane %v1944, %v1949
        %v1952 = vunpack.c.l.s4 1934713408
        %v1953 = vunpack.c.0.s8 %v1952
        %v1954 = vperm.slane %v1946, %v1953
        %v1955 = vrot.slane %v1918, 4
        %v1956 = vsel %vm1423, %v1955, %v1906
        %v1957 = vrot.slane %v1906, 4
        %v1958 = vsel %vm1423, %v1918, %v1957
        %v1960 = vunpack.c.l.s4 1934713408
        %v1961 = vunpack.c.0.s8 %v1960
        %v1962 = vperm.slane %v1956, %v1961
        %v1964 = vunpack.c.l.s4 1934713408
        %v1965 = vunpack.c.0.s8 %v1964
        %v1966 = vperm.slane %v1958, %v1965
        %v1967 = vrot.slane %v1950, 4
        %v1968 = vsel %vm1423, %v1967, %v1926
        %v1969 = vrot.slane %v1926, 4
        %v1970 = vsel %vm1423, %v1950, %v1969
        %v1971 = vrot.slane %v1954, 4
        %v1972 = vsel %vm1423, %v1971, %v1930
        %v1973 = vrot.slane %v1930, 4
        %v1974 = vsel %vm1423, %v1954, %v1973
        %v1975 = vrot.slane %v1962, 4
        %v1976 = vsel %vm1423, %v1975, %v1938
        %v1977 = vrot.slane %v1938, 4
        %v1978 = vsel %vm1423, %v1962, %v1977
        %v1979 = vrot.slane %v1966, 4
        %v1980 = vsel %vm1423, %v1979, %v1942
        %v1981 = vrot.slane %v1942, 4
        %v1982 = vsel %vm1423, %v1966, %v1981
        %v1983 = vrot.slane %v1379, 4
        %v1984 = vsel %vm1423, %v1983, %v1363
        %v1985 = vrot.slane %v1363, 4
        %v1986 = vsel %vm1423, %v1379, %v1985
        %v1988 = vunpack.c.l.s4 1983009808
        %v1989 = vunpack.c.0.s8 %v1988
        %v1990 = vperm.slane %v1984, %v1989
        %v1992 = vunpack.c.l.s4 1983009808
        %v1993 = vunpack.c.0.s8 %v1992
        %v1994 = vperm.slane %v1986, %v1993
        %v1995 = vrot.slane %v1387, 4
        %v1996 = vsel %vm1423, %v1995, %v1371
        %v1997 = vrot.slane %v1371, 4
        %v1998 = vsel %vm1423, %v1387, %v1997
        %v2000 = vunpack.c.l.s4 1983009808
        %v2001 = vunpack.c.0.s8 %v2000
        %v2002 = vperm.slane %v1996, %v2001
        %v2004 = vunpack.c.l.s4 1983009808
        %v2005 = vunpack.c.0.s8 %v2004
        %v2006 = vperm.slane %v1998, %v2005
        %v2007 = vrot.slane %v1411, 4
        %v2008 = vsel %vm1423, %v2007, %v1395
        %v2009 = vrot.slane %v1395, 4
        %v2010 = vsel %vm1423, %v1411, %v2009
        %v2012 = vunpack.c.l.s4 1983009808
        %v2013 = vunpack.c.0.s8 %v2012
        %v2014 = vperm.slane %v2008, %v2013
        %v2016 = vunpack.c.l.s4 1983009808
        %v2017 = vunpack.c.0.s8 %v2016
        %v2018 = vperm.slane %v2010, %v2017
        %v2019 = vrot.slane %v1419, 4
        %v2020 = vsel %vm1423, %v2019, %v1403
        %v2021 = vrot.slane %v1403, 4
        %v2022 = vsel %vm1423, %v1419, %v2021
        %v2024 = vunpack.c.l.s4 1983009808
        %v2025 = vunpack.c.0.s8 %v2024
        %v2026 = vperm.slane %v2020, %v2025
        %v2028 = vunpack.c.l.s4 1983009808
        %v2029 = vunpack.c.0.s8 %v2028
        %v2030 = vperm.slane %v2022, %v2029
        %v2031 = vrot.slane %v2002, 4
        %v2032 = vsel %vm1423, %v2031, %v1990
        %v2033 = vrot.slane %v1990, 4
        %v2034 = vsel %vm1423, %v2002, %v2033
        %v2036 = vunpack.c.l.s4 1934713408
        %v2037 = vunpack.c.0.s8 %v2036
        %v2038 = vperm.slane %v2032, %v2037
        %v2040 = vunpack.c.l.s4 1934713408
        %v2041 = vunpack.c.0.s8 %v2040
        %v2042 = vperm.slane %v2034, %v2041
        %v2043 = vrot.slane %v2006, 4
        %v2044 = vsel %vm1423, %v2043, %v1994
        %v2045 = vrot.slane %v1994, 4
        %v2046 = vsel %vm1423, %v2006, %v2045
        %v2048 = vunpack.c.l.s4 1934713408
        %v2049 = vunpack.c.0.s8 %v2048
        %v2050 = vperm.slane %v2044, %v2049
        %v2052 = vunpack.c.l.s4 1934713408
        %v2053 = vunpack.c.0.s8 %v2052
        %v2054 = vperm.slane %v2046, %v2053
        %v2055 = vrot.slane %v2026, 4
        %v2056 = vsel %vm1423, %v2055, %v2014
        %v2057 = vrot.slane %v2014, 4
        %v2058 = vsel %vm1423, %v2026, %v2057
        %v2060 = vunpack.c.l.s4 1934713408
        %v2061 = vunpack.c.0.s8 %v2060
        %v2062 = vperm.slane %v2056, %v2061
        %v2064 = vunpack.c.l.s4 1934713408
        %v2065 = vunpack.c.0.s8 %v2064
        %v2066 = vperm.slane %v2058, %v2065
        %v2067 = vrot.slane %v2030, 4
        %v2068 = vsel %vm1423, %v2067, %v2018
        %v2069 = vrot.slane %v2018, 4
        %v2070 = vsel %vm1423, %v2030, %v2069
        %v2072 = vunpack.c.l.s4 1934713408
        %v2073 = vunpack.c.0.s8 %v2072
        %v2074 = vperm.slane %v2068, %v2073
        %v2076 = vunpack.c.l.s4 1934713408
        %v2077 = vunpack.c.0.s8 %v2076
        %v2078 = vperm.slane %v2070, %v2077
        %v2079 = vrot.slane %v2062, 4
        %v2080 = vsel %vm1423, %v2079, %v2038
        %v2081 = vrot.slane %v2038, 4
        %v2082 = vsel %vm1423, %v2062, %v2081
        %v2083 = vrot.slane %v2066, 4
        %v2084 = vsel %vm1423, %v2083, %v2042
        %v2085 = vrot.slane %v2042, 4
        %v2086 = vsel %vm1423, %v2066, %v2085
        %v2087 = vrot.slane %v2074, 4
        %v2088 = vsel %vm1423, %v2087, %v2050
        %v2089 = vrot.slane %v2050, 4
        %v2090 = vsel %vm1423, %v2074, %v2089
        %v2091 = vrot.slane %v2078, 4
        %v2092 = vsel %vm1423, %v2091, %v2054
        %v2093 = vrot.slane %v2054, 4
        %v2094 = vsel %vm1423, %v2078, %v2093
        %v2095 = vrot.slane %v1380, 4
        %v2096 = vsel %vm1423, %v2095, %v1364
        %v2097 = vrot.slane %v1364, 4
        %v2098 = vsel %vm1423, %v1380, %v2097
        %v2100 = vunpack.c.l.s4 1983009808
        %v2101 = vunpack.c.0.s8 %v2100
        %v2102 = vperm.slane %v2096, %v2101
        %v2104 = vunpack.c.l.s4 1983009808
        %v2105 = vunpack.c.0.s8 %v2104
        %v2106 = vperm.slane %v2098, %v2105
        %v2107 = vrot.slane %v1388, 4
        %v2108 = vsel %vm1423, %v2107, %v1372
        %v2109 = vrot.slane %v1372, 4
        %v2110 = vsel %vm1423, %v1388, %v2109
        %v2112 = vunpack.c.l.s4 1983009808
        %v2113 = vunpack.c.0.s8 %v2112
        %v2114 = vperm.slane %v2108, %v2113
        %v2116 = vunpack.c.l.s4 1983009808
        %v2117 = vunpack.c.0.s8 %v2116
        %v2118 = vperm.slane %v2110, %v2117
        %v2119 = vrot.slane %v1412, 4
        %v2120 = vsel %vm1423, %v2119, %v1396
        %v2121 = vrot.slane %v1396, 4
        %v2122 = vsel %vm1423, %v1412, %v2121
        %v2124 = vunpack.c.l.s4 1983009808
        %v2125 = vunpack.c.0.s8 %v2124
        %v2126 = vperm.slane %v2120, %v2125
        %v2128 = vunpack.c.l.s4 1983009808
        %v2129 = vunpack.c.0.s8 %v2128
        %v2130 = vperm.slane %v2122, %v2129
        %v2131 = vrot.slane %v1420, 4
        %v2132 = vsel %vm1423, %v2131, %v1404
        %v2133 = vrot.slane %v1404, 4
        %v2134 = vsel %vm1423, %v1420, %v2133
        %v2136 = vunpack.c.l.s4 1983009808
        %v2137 = vunpack.c.0.s8 %v2136
        %v2138 = vperm.slane %v2132, %v2137
        %v2140 = vunpack.c.l.s4 1983009808
        %v2141 = vunpack.c.0.s8 %v2140
        %v2142 = vperm.slane %v2134, %v2141
        %v2143 = vrot.slane %v2114, 4
        %v2144 = vsel %vm1423, %v2143, %v2102
        %v2145 = vrot.slane %v2102, 4
        %v2146 = vsel %vm1423, %v2114, %v2145
        %v2148 = vunpack.c.l.s4 1934713408
        %v2149 = vunpack.c.0.s8 %v2148
        %v2150 = vperm.slane %v2144, %v2149
        %v2152 = vunpack.c.l.s4 1934713408
        %v2153 = vunpack.c.0.s8 %v2152
        %v2154 = vperm.slane %v2146, %v2153
        %v2155 = vrot.slane %v2118, 4
        %v2156 = vsel %vm1423, %v2155, %v2106
        %v2157 = vrot.slane %v2106, 4
        %v2158 = vsel %vm1423, %v2118, %v2157
        %v2160 = vunpack.c.l.s4 1934713408
        %v2161 = vunpack.c.0.s8 %v2160
        %v2162 = vperm.slane %v2156, %v2161
        %v2164 = vunpack.c.l.s4 1934713408
        %v2165 = vunpack.c.0.s8 %v2164
        %v2166 = vperm.slane %v2158, %v2165
        %v2167 = vrot.slane %v2138, 4
        %v2168 = vsel %vm1423, %v2167, %v2126
        %v2169 = vrot.slane %v2126, 4
        %v2170 = vsel %vm1423, %v2138, %v2169
        %v2172 = vunpack.c.l.s4 1934713408
        %v2173 = vunpack.c.0.s8 %v2172
        %v2174 = vperm.slane %v2168, %v2173
        %v2176 = vunpack.c.l.s4 1934713408
        %v2177 = vunpack.c.0.s8 %v2176
        %v2178 = vperm.slane %v2170, %v2177
        %v2179 = vrot.slane %v2142, 4
        %v2180 = vsel %vm1423, %v2179, %v2130
        %v2181 = vrot.slane %v2130, 4
        %v2182 = vsel %vm1423, %v2142, %v2181
        %v2184 = vunpack.c.l.s4 1934713408
        %v2185 = vunpack.c.0.s8 %v2184
        %v2186 = vperm.slane %v2180, %v2185
        %v2188 = vunpack.c.l.s4 1934713408
        %v2189 = vunpack.c.0.s8 %v2188
        %v2190 = vperm.slane %v2182, %v2189
        %v2191 = vrot.slane %v2174, 4
        %v2192 = vsel %vm1423, %v2191, %v2150
        %v2193 = vrot.slane %v2150, 4
        %v2194 = vsel %vm1423, %v2174, %v2193
        %v2195 = vrot.slane %v2178, 4
        %v2196 = vsel %vm1423, %v2195, %v2154
        %v2197 = vrot.slane %v2154, 4
        %v2198 = vsel %vm1423, %v2178, %v2197
        %v2199 = vrot.slane %v2186, 4
        %v2200 = vsel %vm1423, %v2199, %v2162
        %v2201 = vrot.slane %v2162, 4
        %v2202 = vsel %vm1423, %v2186, %v2201
        %v2203 = vrot.slane %v2190, 4
        %v2204 = vsel %vm1423, %v2203, %v2166
        %v2205 = vrot.slane %v2166, 4
        %v2206 = vsel %vm1423, %v2190, %v2205
        %v2207 = vrot.slane %v1381, 4
        %v2208 = vsel %vm1423, %v2207, %v1365
        %v2209 = vrot.slane %v1365, 4
        %v2210 = vsel %vm1423, %v1381, %v2209
        %v2212 = vunpack.c.l.s4 1983009808
        %v2213 = vunpack.c.0.s8 %v2212
        %v2214 = vperm.slane %v2208, %v2213
        %v2216 = vunpack.c.l.s4 1983009808
        %v2217 = vunpack.c.0.s8 %v2216
        %v2218 = vperm.slane %v2210, %v2217
        %v2219 = vrot.slane %v1389, 4
        %v2220 = vsel %vm1423, %v2219, %v1373
        %v2221 = vrot.slane %v1373, 4
        %v2222 = vsel %vm1423, %v1389, %v2221
        %v2224 = vunpack.c.l.s4 1983009808
        %v2225 = vunpack.c.0.s8 %v2224
        %v2226 = vperm.slane %v2220, %v2225
        %v2228 = vunpack.c.l.s4 1983009808
        %v2229 = vunpack.c.0.s8 %v2228
        %v2230 = vperm.slane %v2222, %v2229
        %v2231 = vrot.slane %v1413, 4
        %v2232 = vsel %vm1423, %v2231, %v1397
        %v2233 = vrot.slane %v1397, 4
        %v2234 = vsel %vm1423, %v1413, %v2233
        %v2236 = vunpack.c.l.s4 1983009808
        %v2237 = vunpack.c.0.s8 %v2236
        %v2238 = vperm.slane %v2232, %v2237
        %v2240 = vunpack.c.l.s4 1983009808
        %v2241 = vunpack.c.0.s8 %v2240
        %v2242 = vperm.slane %v2234, %v2241
        %v2243 = vrot.slane %v1421, 4
        %v2244 = vsel %vm1423, %v2243, %v1405
        %v2245 = vrot.slane %v1405, 4
        %v2246 = vsel %vm1423, %v1421, %v2245
        %v2248 = vunpack.c.l.s4 1983009808
        %v2249 = vunpack.c.0.s8 %v2248
        %v2250 = vperm.slane %v2244, %v2249
        %v2252 = vunpack.c.l.s4 1983009808
        %v2253 = vunpack.c.0.s8 %v2252
        %v2254 = vperm.slane %v2246, %v2253
        %v2255 = vrot.slane %v2226, 4
        %v2256 = vsel %vm1423, %v2255, %v2214
        %v2257 = vrot.slane %v2214, 4
        %v2258 = vsel %vm1423, %v2226, %v2257
        %v2260 = vunpack.c.l.s4 1934713408
        %v2261 = vunpack.c.0.s8 %v2260
        %v2262 = vperm.slane %v2256, %v2261
        %v2264 = vunpack.c.l.s4 1934713408
        %v2265 = vunpack.c.0.s8 %v2264
        %v2266 = vperm.slane %v2258, %v2265
        %v2267 = vrot.slane %v2230, 4
        %v2268 = vsel %vm1423, %v2267, %v2218
        %v2269 = vrot.slane %v2218, 4
        %v2270 = vsel %vm1423, %v2230, %v2269
        %v2272 = vunpack.c.l.s4 1934713408
        %v2273 = vunpack.c.0.s8 %v2272
        %v2274 = vperm.slane %v2268, %v2273
        %v2276 = vunpack.c.l.s4 1934713408
        %v2277 = vunpack.c.0.s8 %v2276
        %v2278 = vperm.slane %v2270, %v2277
        %v2279 = vrot.slane %v2250, 4
        %v2280 = vsel %vm1423, %v2279, %v2238
        %v2281 = vrot.slane %v2238, 4
        %v2282 = vsel %vm1423, %v2250, %v2281
        %v2284 = vunpack.c.l.s4 1934713408
        %v2285 = vunpack.c.0.s8 %v2284
        %v2286 = vperm.slane %v2280, %v2285
        %v2288 = vunpack.c.l.s4 1934713408
        %v2289 = vunpack.c.0.s8 %v2288
        %v2290 = vperm.slane %v2282, %v2289
        %v2291 = vrot.slane %v2254, 4
        %v2292 = vsel %vm1423, %v2291, %v2242
        %v2293 = vrot.slane %v2242, 4
        %v2294 = vsel %vm1423, %v2254, %v2293
        %v2296 = vunpack.c.l.s4 1934713408
        %v2297 = vunpack.c.0.s8 %v2296
        %v2298 = vperm.slane %v2292, %v2297
        %v2300 = vunpack.c.l.s4 1934713408
        %v2301 = vunpack.c.0.s8 %v2300
        %v2302 = vperm.slane %v2294, %v2301
        %v2303 = vrot.slane %v2286, 4
        %v2304 = vsel %vm1423, %v2303, %v2262
        %v2305 = vrot.slane %v2262, 4
        %v2306 = vsel %vm1423, %v2286, %v2305
        %v2307 = vrot.slane %v2290, 4
        %v2308 = vsel %vm1423, %v2307, %v2266
        %v2309 = vrot.slane %v2266, 4
        %v2310 = vsel %vm1423, %v2290, %v2309
        %v2311 = vrot.slane %v2298, 4
        %v2312 = vsel %vm1423, %v2311, %v2274
        %v2313 = vrot.slane %v2274, 4
        %v2314 = vsel %vm1423, %v2298, %v2313
        %v2315 = vrot.slane %v2302, 4
        %v2316 = vsel %vm1423, %v2315, %v2278
        %v2317 = vrot.slane %v2278, 4
        %v2318 = vsel %vm1423, %v2302, %v2317
        %2320 = vrot.lane.b32.xlu0 %v1522, 64
        %v2321 = vpop.permute.xlu0 %2320
        %2324 = vrot.lane.b32.xlu0 %v1526, 64
        %v2325 = vpop.permute.xlu0 %2324
        %2328 = vrot.lane.b32.xlu0 %v1530, 64
        %v2329 = vpop.permute.xlu0 %2328
        %2332 = vrot.lane.b32.xlu0 %v1534, 64
        %v2333 = vpop.permute.xlu0 %2332
        %2336 = vrot.lane.b32.xlu0 %v1634, 64
        %v2337 = vpop.permute.xlu0 %2336
        %2340 = vrot.lane.b32.xlu0 %v1638, 64
        %v2341 = vpop.permute.xlu0 %2340
        %2344 = vrot.lane.b32.xlu0 %v1642, 64
        %v2345 = vpop.permute.xlu0 %2344
        %2348 = vrot.lane.b32.xlu0 %v1646, 64
        %v2349 = vpop.permute.xlu0 %2348
        %2352 = vrot.lane.b32.xlu0 %v1746, 64
        %v2353 = vpop.permute.xlu0 %2352
        %2356 = vrot.lane.b32.xlu0 %v1750, 64
        %v2357 = vpop.permute.xlu0 %2356
        %2360 = vrot.lane.b32.xlu0 %v1754, 64
        %v2361 = vpop.permute.xlu0 %2360
        %2364 = vrot.lane.b32.xlu0 %v1758, 64
        %v2365 = vpop.permute.xlu0 %2364
        %2368 = vrot.lane.b32.xlu0 %v1858, 64
        %v2369 = vpop.permute.xlu0 %2368
        %2372 = vrot.lane.b32.xlu0 %v1862, 64
        %v2373 = vpop.permute.xlu0 %2372
        %2376 = vrot.lane.b32.xlu0 %v1866, 64
        %v2377 = vpop.permute.xlu0 %2376
        %2380 = vrot.lane.b32.xlu0 %v1870, 64
        %v2381 = vpop.permute.xlu0 %2380
        %2384 = vrot.lane.b32.xlu0 %v1970, 64
        %v2385 = vpop.permute.xlu0 %2384
        %2388 = vrot.lane.b32.xlu0 %v1974, 64
        %v2389 = vpop.permute.xlu0 %2388
        %2392 = vrot.lane.b32.xlu0 %v1978, 64
        %v2393 = vpop.permute.xlu0 %2392
        %2396 = vrot.lane.b32.xlu0 %v1982, 64
        %v2397 = vpop.permute.xlu0 %2396
        %2400 = vrot.lane.b32.xlu0 %v2082, 64
        %v2401 = vpop.permute.xlu0 %2400
        %2404 = vrot.lane.b32.xlu0 %v2086, 64
        %v2405 = vpop.permute.xlu0 %2404
        %2408 = vrot.lane.b32.xlu0 %v2090, 64
        %v2409 = vpop.permute.xlu0 %2408
        %2412 = vrot.lane.b32.xlu0 %v2094, 64
        %v2413 = vpop.permute.xlu0 %2412
        %2416 = vrot.lane.b32.xlu0 %v2194, 64
        %v2417 = vpop.permute.xlu0 %2416
        %2420 = vrot.lane.b32.xlu0 %v2198, 64
        %v2421 = vpop.permute.xlu0 %2420
        %2424 = vrot.lane.b32.xlu0 %v2202, 64
        %v2425 = vpop.permute.xlu0 %2424
        %2428 = vrot.lane.b32.xlu0 %v2206, 64
        %v2429 = vpop.permute.xlu0 %2428
        %2432 = vrot.lane.b32.xlu0 %v2306, 64
        %v2433 = vpop.permute.xlu0 %2432
        %2436 = vrot.lane.b32.xlu0 %v2310, 64
        %v2437 = vpop.permute.xlu0 %2436
        %2440 = vrot.lane.b32.xlu0 %v2314, 64
        %v2441 = vpop.permute.xlu0 %2440
        %2444 = vrot.lane.b32.xlu0 %v2318, 64
        %v2445 = vpop.permute.xlu0 %2444
        %vm2447 = vcmask 523264
        %v2448 = vsel %vm2447, %v1520, %v2321
        %v2449 = vsel %vm2447, %v1524, %v2325
        %v2450 = vsel %vm2447, %v1528, %v2329
        %v2451 = vsel %vm2447, %v1532, %v2333
        %v2452 = vsel %vm2447, %v1632, %v2337
        %v2453 = vsel %vm2447, %v1636, %v2341
        %v2454 = vsel %vm2447, %v1640, %v2345
        %v2455 = vsel %vm2447, %v1644, %v2349
        %v2456 = vsel %vm2447, %v1744, %v2353
        %v2457 = vsel %vm2447, %v1748, %v2357
        %v2458 = vsel %vm2447, %v1752, %v2361
        %v2459 = vsel %vm2447, %v1756, %v2365
        %v2460 = vsel %vm2447, %v1856, %v2369
        %v2461 = vsel %vm2447, %v1860, %v2373
        %v2462 = vsel %vm2447, %v1864, %v2377
        %v2463 = vsel %vm2447, %v1868, %v2381
        %v2464 = vsel %vm2447, %v1968, %v2385
        %v2465 = vsel %vm2447, %v1972, %v2389
        %v2466 = vsel %vm2447, %v1976, %v2393
        %v2467 = vsel %vm2447, %v1980, %v2397
        %v2468 = vsel %vm2447, %v2080, %v2401
        %v2469 = vsel %vm2447, %v2084, %v2405
        %v2470 = vsel %vm2447, %v2088, %v2409
        %v2471 = vsel %vm2447, %v2092, %v2413
        %v2472 = vsel %vm2447, %v2192, %v2417
        %v2473 = vsel %vm2447, %v2196, %v2421
        %v2474 = vsel %vm2447, %v2200, %v2425
        %v2475 = vsel %vm2447, %v2204, %v2429
        %v2476 = vsel %vm2447, %v2304, %v2433
        %v2477 = vsel %vm2447, %v2308, %v2437
        %v2478 = vsel %vm2447, %v2312, %v2441
        %v2479 = vsel %vm2447, %v2316, %v2445
        %v2480 = vpack.c.bf16 %v2448, %v2448
        %v2481 = vpack.c.bf16 %v2449, %v2449
        %v2482 = vpack.c.bf16 %v2450, %v2450
        %v2483 = vpack.c.bf16 %v2451, %v2451
        %v2484 = vpack.c.bf16 %v2452, %v2452
        %v2485 = vpack.c.bf16 %v2453, %v2453
        %v2486 = vpack.c.bf16 %v2454, %v2454
        %v2487 = vpack.c.bf16 %v2455, %v2455
        %v2488 = vpack.c.bf16 %v2456, %v2456
        %v2489 = vpack.c.bf16 %v2457, %v2457
        %v2490 = vpack.c.bf16 %v2458, %v2458
        %v2491 = vpack.c.bf16 %v2459, %v2459
        %v2492 = vpack.c.bf16 %v2460, %v2460
        %v2493 = vpack.c.bf16 %v2461, %v2461
        %v2494 = vpack.c.bf16 %v2462, %v2462
        %v2495 = vpack.c.bf16 %v2463, %v2463
        %v2496 = vpack.c.bf16 %v2464, %v2464
        %v2497 = vpack.c.bf16 %v2465, %v2465
        %v2498 = vpack.c.bf16 %v2466, %v2466
        %v2499 = vpack.c.bf16 %v2467, %v2467
        %v2500 = vpack.c.bf16 %v2468, %v2468
        %v2501 = vpack.c.bf16 %v2469, %v2469
        %v2502 = vpack.c.bf16 %v2470, %v2470
        %v2503 = vpack.c.bf16 %v2471, %v2471
        %v2504 = vpack.c.bf16 %v2472, %v2472
        %v2505 = vpack.c.bf16 %v2473, %v2473
        %v2506 = vpack.c.bf16 %v2474, %v2474
        %v2507 = vpack.c.bf16 %v2475, %v2475
        %v2508 = vpack.c.bf16 %v2476, %v2476
        %v2509 = vpack.c.bf16 %v2477, %v2477
        %v2510 = vpack.c.bf16 %v2478, %v2478
        %v2511 = vpack.c.bf16 %v2479, %v2479
        %v2512 = vsel %vm2447, %v941, 0
        %2514 = vmatpush.msra.mxu0 0.0
        %2515 = vmatpush.msra.mxu0 0.0
        %2516 = vmatpush.msra.mxu0 0.0
        %2517 = vmatpush.msra.mxu0 0.0
        %2518 = vmatpush.msra.mxu0 0.0
        %2519 = vmatpush.msra.mxu0 0.0
        %2520 = vmatpush.msra.mxu0 0.0
        %2521 = vmatpush.msra.mxu0 0.0
        %2522 = vmatpush.msra.mxu0 %v833
        %2523 = vmatpush.msra.mxu0 %v832
        %2524 = vmatpush.msra.mxu0 %v831
        %2525 = vmatpush.msra.mxu0 %v830
        %2526 = vmatpush.msra.mxu0 %v829
        %2527 = vmatpush.msra.mxu0 %v828
        %2528 = vmatpush.msra.mxu0 %v827
        %2529 = vmatpush.msra.mxu0 %v826
        %2530 = vmatmul.f32.gmra.mxu0 %v2512
        %v2531 = vpop.f32.mrf.mxu0
        %v2532 = vadd.f32 0.0, %v2531
        %2533 = vdwg.mxu0
        %v3046 = vunpack.c.l.b16 %v314
        %v3047 = vunpack.c.l.b16 %v315
        %v3048 = vunpack.c.l.b16 %v316
        %v3049 = vunpack.c.l.b16 %v317
        %v3050 = vunpack.c.l.b16 %v318
        %v3051 = vunpack.c.l.b16 %v319
        %v3052 = vunpack.c.l.b16 %v320
        %v3053 = vunpack.c.l.b16 %v321
        %v3054 = vunpack.c.l.b16 %v322
        %v3055 = vunpack.c.l.b16 %v323
        %v3056 = vunpack.c.l.b16 %v324
        %v3057 = vunpack.c.l.b16 %v325
        %v3058 = vunpack.c.l.b16 %v326
        %v3059 = vunpack.c.l.b16 %v327
        %v3060 = vunpack.c.l.b16 %v328
        %v3061 = vunpack.c.l.b16 %v329
        %v3062 = vunpack.c.l.b16 %v330
        %v3063 = vunpack.c.l.b16 %v331
        %v3064 = vunpack.c.l.b16 %v332
        %v3065 = vunpack.c.l.b16 %v333
        %v3066 = vunpack.c.l.b16 %v334
        %v3067 = vunpack.c.l.b16 %v335
        %v3068 = vunpack.c.l.b16 %v336
        %v3069 = vunpack.c.l.b16 %v337
        %v3070 = vunpack.c.l.b16 %v338
        %v3071 = vunpack.c.l.b16 %v339
        %v3072 = vunpack.c.l.b16 %v340
        %v3073 = vunpack.c.l.b16 %v341
        %v3074 = vunpack.c.l.b16 %v342
        %v3075 = vunpack.c.l.b16 %v343
        %v3076 = vunpack.c.l.b16 %v344
        %v3077 = vunpack.c.l.b16 %v345
        %v3078 = vunpack.c.l.b16 %v346
        %v3079 = vunpack.c.l.b16 %v347
        %v3080 = vunpack.c.l.b16 %v348
        %v3081 = vunpack.c.l.b16 %v349
        %v3082 = vunpack.c.l.b16 %v350
        %v3083 = vunpack.c.l.b16 %v351
        %v3084 = vunpack.c.l.b16 %v352
        %v3085 = vunpack.c.l.b16 %v353
        %v3086 = vunpack.c.l.b16 %v354
        %v3087 = vunpack.c.l.b16 %v355
        %v3088 = vunpack.c.l.b16 %v356
        %v3089 = vunpack.c.l.b16 %v357
        %v3090 = vunpack.c.l.b16 %v358
        %v3091 = vunpack.c.l.b16 %v359
        %v3092 = vunpack.c.l.b16 %v360
        %v3093 = vunpack.c.l.b16 %v361
        %v3094 = vunpack.c.l.b16 %v362
        %v3095 = vunpack.c.l.b16 %v363
        %v3096 = vunpack.c.l.b16 %v364
        %v3097 = vunpack.c.l.b16 %v365
        %v3098 = vunpack.c.l.b16 %v366
        %v3099 = vunpack.c.l.b16 %v367
        %v3100 = vunpack.c.l.b16 %v368
        %v3101 = vunpack.c.l.b16 %v369
        %v3102 = vunpack.c.l.b16 %v370
        %v3103 = vunpack.c.l.b16 %v371
        %v3104 = vunpack.c.l.b16 %v372
        %v3105 = vunpack.c.l.b16 %v373
        %v3106 = vunpack.c.l.b16 %v374
        %v3107 = vunpack.c.l.b16 %v375
        %v3108 = vunpack.c.l.b16 %v376
        %v3109 = vunpack.c.l.b16 %v377
        %v3110 = vunpack.c.l.b16 %v378
        %v3111 = vunpack.c.l.b16 %v379
        %v3112 = vunpack.c.l.b16 %v380
        %v3113 = vunpack.c.l.b16 %v381
        %v3114 = vunpack.c.l.b16 %v382
        %v3115 = vunpack.c.l.b16 %v383
        %v3116 = vunpack.c.l.b16 %v384
        %v3117 = vunpack.c.l.b16 %v385
        %v3118 = vunpack.c.l.b16 %v386
        %v3119 = vunpack.c.l.b16 %v387
        %v3120 = vunpack.c.l.b16 %v388
        %v3121 = vunpack.c.l.b16 %v389
        %v3122 = vunpack.c.l.b16 %v390
        %v3123 = vunpack.c.l.b16 %v391
        %v3124 = vunpack.c.l.b16 %v392
        %v3125 = vunpack.c.l.b16 %v393
        %v3126 = vunpack.c.l.b16 %v394
        %v3127 = vunpack.c.l.b16 %v395
        %v3128 = vunpack.c.l.b16 %v396
        %v3129 = vunpack.c.l.b16 %v397
        %v3130 = vunpack.c.l.b16 %v398
        %v3131 = vunpack.c.l.b16 %v399
        %v3132 = vunpack.c.l.b16 %v400
        %v3133 = vunpack.c.l.b16 %v401
        %v3134 = vunpack.c.l.b16 %v402
        %v3135 = vunpack.c.l.b16 %v403
        %v3136 = vunpack.c.l.b16 %v404
        %v3137 = vunpack.c.l.b16 %v405
        %v3138 = vunpack.c.l.b16 %v406
        %v3139 = vunpack.c.l.b16 %v407
        %v3140 = vunpack.c.l.b16 %v408
        %v3141 = vunpack.c.l.b16 %v409
        %v3142 = vunpack.c.l.b16 %v410
        %v3143 = vunpack.c.l.b16 %v411
        %v3144 = vunpack.c.l.b16 %v412
        %v3145 = vunpack.c.l.b16 %v413
        %v3146 = vunpack.c.l.b16 %v414
        %v3147 = vunpack.c.l.b16 %v415
        %v3148 = vunpack.c.l.b16 %v416
        %v3149 = vunpack.c.l.b16 %v417
        %v3150 = vunpack.c.l.b16 %v418
        %v3151 = vunpack.c.l.b16 %v419
        %v3152 = vunpack.c.l.b16 %v420
        %v3153 = vunpack.c.l.b16 %v421
        %v3154 = vunpack.c.l.b16 %v422
        %v3155 = vunpack.c.l.b16 %v423
        %v3156 = vunpack.c.l.b16 %v424
        %v3157 = vunpack.c.l.b16 %v425
        %v3158 = vunpack.c.l.b16 %v426
        %v3159 = vunpack.c.l.b16 %v427
        %v3160 = vunpack.c.l.b16 %v428
        %v3161 = vunpack.c.l.b16 %v429
        %v3162 = vunpack.c.l.b16 %v430
        %v3163 = vunpack.c.l.b16 %v431
        %v3164 = vunpack.c.l.b16 %v432
        %v3165 = vunpack.c.l.b16 %v433
        %v3166 = vunpack.c.l.b16 %v434
        %v3167 = vunpack.c.l.b16 %v435
        %v3168 = vunpack.c.l.b16 %v436
        %v3169 = vunpack.c.l.b16 %v437
        %v3170 = vunpack.c.l.b16 %v438
        %v3171 = vunpack.c.l.b16 %v439
        %v3172 = vunpack.c.l.b16 %v440
        %v3173 = vunpack.c.l.b16 %v441
        %v3174 = vunpack.c.l.b16 %v442
        %v3175 = vunpack.c.l.b16 %v443
        %v3176 = vunpack.c.l.b16 %v444
        %v3177 = vunpack.c.l.b16 %v445
        %v3178 = vunpack.c.l.b16 %v446
        %v3179 = vunpack.c.l.b16 %v447
        %v3180 = vunpack.c.l.b16 %v448
        %v3181 = vunpack.c.l.b16 %v449
        %v3182 = vunpack.c.l.b16 %v450
        %v3183 = vunpack.c.l.b16 %v451
        %v3184 = vunpack.c.l.b16 %v452
        %v3185 = vunpack.c.l.b16 %v453
        %v3186 = vunpack.c.l.b16 %v454
        %v3187 = vunpack.c.l.b16 %v455
        %v3188 = vunpack.c.l.b16 %v456
        %v3189 = vunpack.c.l.b16 %v457
        %v3190 = vunpack.c.l.b16 %v458
        %v3191 = vunpack.c.l.b16 %v459
        %v3192 = vunpack.c.l.b16 %v460
        %v3193 = vunpack.c.l.b16 %v461
        %v3194 = vunpack.c.l.b16 %v462
        %v3195 = vunpack.c.l.b16 %v463
        %v3196 = vunpack.c.l.b16 %v464
        %v3197 = vunpack.c.l.b16 %v465
        %v3198 = vunpack.c.l.b16 %v466
        %v3199 = vunpack.c.l.b16 %v467
        %v3200 = vunpack.c.l.b16 %v468
        %v3201 = vunpack.c.l.b16 %v469
        %v3202 = vunpack.c.l.b16 %v470
        %v3203 = vunpack.c.l.b16 %v471
        %v3204 = vunpack.c.l.b16 %v472
        %v3205 = vunpack.c.l.b16 %v473
        %v3206 = vunpack.c.l.b16 %v474
        %v3207 = vunpack.c.l.b16 %v475
        %v3208 = vunpack.c.l.b16 %v476
        %v3209 = vunpack.c.l.b16 %v477
        %v3210 = vunpack.c.l.b16 %v478
        %v3211 = vunpack.c.l.b16 %v479
        %v3212 = vunpack.c.l.b16 %v480
        %v3213 = vunpack.c.l.b16 %v481
        %v3214 = vunpack.c.l.b16 %v482
        %v3215 = vunpack.c.l.b16 %v483
        %v3216 = vunpack.c.l.b16 %v484
        %v3217 = vunpack.c.l.b16 %v485
        %v3218 = vunpack.c.l.b16 %v486
        %v3219 = vunpack.c.l.b16 %v487
        %v3220 = vunpack.c.l.b16 %v488
        %v3221 = vunpack.c.l.b16 %v489
        %v3222 = vunpack.c.l.b16 %v490
        %v3223 = vunpack.c.l.b16 %v491
        %v3224 = vunpack.c.l.b16 %v492
        %v3225 = vunpack.c.l.b16 %v493
        %v3226 = vunpack.c.l.b16 %v494
        %v3227 = vunpack.c.l.b16 %v495
        %v3228 = vunpack.c.l.b16 %v496
        %v3229 = vunpack.c.l.b16 %v497
        %v3230 = vunpack.c.l.b16 %v498
        %v3231 = vunpack.c.l.b16 %v499
        %v3232 = vunpack.c.l.b16 %v500
        %v3233 = vunpack.c.l.b16 %v501
        %v3234 = vunpack.c.l.b16 %v502
        %v3235 = vunpack.c.l.b16 %v503
        %v3236 = vunpack.c.l.b16 %v504
        %v3237 = vunpack.c.l.b16 %v505
        %v3238 = vunpack.c.l.b16 %v506
        %v3239 = vunpack.c.l.b16 %v507
        %v3240 = vunpack.c.l.b16 %v508
        %v3241 = vunpack.c.l.b16 %v509
        %v3242 = vunpack.c.l.b16 %v510
        %v3243 = vunpack.c.l.b16 %v511
        %v3244 = vunpack.c.l.b16 %v512
        %v3245 = vunpack.c.l.b16 %v513
        %v3246 = vunpack.c.l.b16 %v514
        %v3247 = vunpack.c.l.b16 %v515
        %v3248 = vunpack.c.l.b16 %v516
        %v3249 = vunpack.c.l.b16 %v517
        %v3250 = vunpack.c.l.b16 %v518
        %v3251 = vunpack.c.l.b16 %v519
        %v3252 = vunpack.c.l.b16 %v520
        %v3253 = vunpack.c.l.b16 %v521
        %v3254 = vunpack.c.l.b16 %v522
        %v3255 = vunpack.c.l.b16 %v523
        %v3256 = vunpack.c.l.b16 %v524
        %v3257 = vunpack.c.l.b16 %v525
        %v3258 = vunpack.c.l.b16 %v526
        %v3259 = vunpack.c.l.b16 %v527
        %v3260 = vunpack.c.l.b16 %v528
        %v3261 = vunpack.c.l.b16 %v529
        %v3262 = vunpack.c.l.b16 %v530
        %v3263 = vunpack.c.l.b16 %v531
        %v3264 = vunpack.c.l.b16 %v532
        %v3265 = vunpack.c.l.b16 %v533
        %v3266 = vunpack.c.l.b16 %v534
        %v3267 = vunpack.c.l.b16 %v535
        %v3268 = vunpack.c.l.b16 %v536
        %v3269 = vunpack.c.l.b16 %v537
        %v3270 = vunpack.c.l.b16 %v538
        %v3271 = vunpack.c.l.b16 %v539
        %v3272 = vunpack.c.l.b16 %v540
        %v3273 = vunpack.c.l.b16 %v541
        %v3274 = vunpack.c.l.b16 %v542
        %v3275 = vunpack.c.l.b16 %v543
        %v3276 = vunpack.c.l.b16 %v544
        %v3277 = vunpack.c.l.b16 %v545
        %v3278 = vunpack.c.l.b16 %v546
        %v3279 = vunpack.c.l.b16 %v547
        %v3280 = vunpack.c.l.b16 %v548
        %v3281 = vunpack.c.l.b16 %v549
        %v3282 = vunpack.c.l.b16 %v550
        %v3283 = vunpack.c.l.b16 %v551
        %v3284 = vunpack.c.l.b16 %v552
        %v3285 = vunpack.c.l.b16 %v553
        %v3286 = vunpack.c.l.b16 %v554
        %v3287 = vunpack.c.l.b16 %v555
        %v3288 = vunpack.c.l.b16 %v556
        %v3289 = vunpack.c.l.b16 %v557
        %v3290 = vunpack.c.l.b16 %v558
        %v3291 = vunpack.c.l.b16 %v559
        %v3292 = vunpack.c.l.b16 %v560
        %v3293 = vunpack.c.l.b16 %v561
        %v3294 = vunpack.c.l.b16 %v562
        %v3295 = vunpack.c.l.b16 %v563
        %v3296 = vunpack.c.l.b16 %v564
        %v3297 = vunpack.c.l.b16 %v565
        %v3298 = vunpack.c.l.b16 %v566
        %v3299 = vunpack.c.l.b16 %v567
        %v3300 = vunpack.c.l.b16 %v568
        %v3301 = vunpack.c.l.b16 %v569
        %v3302 = vunpack.c.l.b16 %v570
        %v3303 = vunpack.c.l.b16 %v571
        %v3304 = vunpack.c.l.b16 %v572
        %v3305 = vunpack.c.l.b16 %v573
        %v3306 = vunpack.c.l.b16 %v574
        %v3307 = vunpack.c.l.b16 %v575
        %v3308 = vunpack.c.l.b16 %v576
        %v3309 = vunpack.c.l.b16 %v577
        %v3310 = vunpack.c.l.b16 %v578
        %v3311 = vunpack.c.l.b16 %v579
        %v3312 = vunpack.c.l.b16 %v580
        %v3313 = vunpack.c.l.b16 %v581
        %v3314 = vunpack.c.l.b16 %v582
        %v3315 = vunpack.c.l.b16 %v583
        %v3316 = vunpack.c.l.b16 %v584
        %v3317 = vunpack.c.l.b16 %v585
        %v3318 = vunpack.c.l.b16 %v586
        %v3319 = vunpack.c.l.b16 %v587
        %v3320 = vunpack.c.l.b16 %v588
        %v3321 = vunpack.c.l.b16 %v589
        %v3322 = vunpack.c.l.b16 %v590
        %v3323 = vunpack.c.l.b16 %v591
        %v3324 = vunpack.c.l.b16 %v592
        %v3325 = vunpack.c.l.b16 %v593
        %v3326 = vunpack.c.l.b16 %v594
        %v3327 = vunpack.c.l.b16 %v595
        %v3328 = vunpack.c.l.b16 %v596
        %v3329 = vunpack.c.l.b16 %v597
        %v3330 = vunpack.c.l.b16 %v598
        %v3331 = vunpack.c.l.b16 %v599
        %v3332 = vunpack.c.l.b16 %v600
        %v3333 = vunpack.c.l.b16 %v601
        %v3334 = vunpack.c.l.b16 %v602
        %v3335 = vunpack.c.l.b16 %v603
        %v3336 = vunpack.c.l.b16 %v604
        %v3337 = vunpack.c.l.b16 %v605
        %v3338 = vunpack.c.l.b16 %v606
        %v3339 = vunpack.c.l.b16 %v607
        %v3340 = vunpack.c.l.b16 %v608
        %v3341 = vunpack.c.l.b16 %v609
        %v3342 = vunpack.c.l.b16 %v610
        %v3343 = vunpack.c.l.b16 %v611
        %v3344 = vunpack.c.l.b16 %v612
        %v3345 = vunpack.c.l.b16 %v613
        %v3346 = vunpack.c.l.b16 %v614
        %v3347 = vunpack.c.l.b16 %v615
        %v3348 = vunpack.c.l.b16 %v616
        %v3349 = vunpack.c.l.b16 %v617
        %v3350 = vunpack.c.l.b16 %v618
        %v3351 = vunpack.c.l.b16 %v619
        %v3352 = vunpack.c.l.b16 %v620
        %v3353 = vunpack.c.l.b16 %v621
        %v3354 = vunpack.c.l.b16 %v622
        %v3355 = vunpack.c.l.b16 %v623
        %v3356 = vunpack.c.l.b16 %v624
        %v3357 = vunpack.c.l.b16 %v625
        %v3358 = vunpack.c.l.b16 %v626
        %v3359 = vunpack.c.l.b16 %v627
        %v3360 = vunpack.c.l.b16 %v628
        %v3361 = vunpack.c.l.b16 %v629
        %v3362 = vunpack.c.l.b16 %v630
        %v3363 = vunpack.c.l.b16 %v631
        %v3364 = vunpack.c.l.b16 %v632
        %v3365 = vunpack.c.l.b16 %v633
        %v3366 = vunpack.c.l.b16 %v634
        %v3367 = vunpack.c.l.b16 %v635
        %v3368 = vunpack.c.l.b16 %v636
        %v3369 = vunpack.c.l.b16 %v637
        %v3370 = vunpack.c.l.b16 %v638
        %v3371 = vunpack.c.l.b16 %v639
        %v3372 = vunpack.c.l.b16 %v640
        %v3373 = vunpack.c.l.b16 %v641
        %v3374 = vunpack.c.l.b16 %v642
        %v3375 = vunpack.c.l.b16 %v643
        %v3376 = vunpack.c.l.b16 %v644
        %v3377 = vunpack.c.l.b16 %v645
        %v3378 = vunpack.c.l.b16 %v646
        %v3379 = vunpack.c.l.b16 %v647
        %v3380 = vunpack.c.l.b16 %v648
        %v3381 = vunpack.c.l.b16 %v649
        %v3382 = vunpack.c.l.b16 %v650
        %v3383 = vunpack.c.l.b16 %v651
        %v3384 = vunpack.c.l.b16 %v652
        %v3385 = vunpack.c.l.b16 %v653
        %v3386 = vunpack.c.l.b16 %v654
        %v3387 = vunpack.c.l.b16 %v655
        %v3388 = vunpack.c.l.b16 %v656
        %v3389 = vunpack.c.l.b16 %v657
        %v3390 = vunpack.c.l.b16 %v658
        %v3391 = vunpack.c.l.b16 %v659
        %v3392 = vunpack.c.l.b16 %v660
        %v3393 = vunpack.c.l.b16 %v661
        %v3394 = vunpack.c.l.b16 %v662
        %v3395 = vunpack.c.l.b16 %v663
        %v3396 = vunpack.c.l.b16 %v664
        %v3397 = vunpack.c.l.b16 %v665
        %v3398 = vunpack.c.l.b16 %v666
        %v3399 = vunpack.c.l.b16 %v667
        %v3400 = vunpack.c.l.b16 %v668
        %v3401 = vunpack.c.l.b16 %v669
        %v3402 = vunpack.c.l.b16 %v670
        %v3403 = vunpack.c.l.b16 %v671
        %v3404 = vunpack.c.l.b16 %v672
        %v3405 = vunpack.c.l.b16 %v673
        %v3406 = vunpack.c.l.b16 %v674
        %v3407 = vunpack.c.l.b16 %v675
        %v3408 = vunpack.c.l.b16 %v676
        %v3409 = vunpack.c.l.b16 %v677
        %v3410 = vunpack.c.l.b16 %v678
        %v3411 = vunpack.c.l.b16 %v679
        %v3412 = vunpack.c.l.b16 %v680
        %v3413 = vunpack.c.l.b16 %v681
        %v3414 = vunpack.c.l.b16 %v682
        %v3415 = vunpack.c.l.b16 %v683
        %v3416 = vunpack.c.l.b16 %v684
        %v3417 = vunpack.c.l.b16 %v685
        %v3418 = vunpack.c.l.b16 %v686
        %v3419 = vunpack.c.l.b16 %v687
        %v3420 = vunpack.c.l.b16 %v688
        %v3421 = vunpack.c.l.b16 %v689
        %v3422 = vunpack.c.l.b16 %v690
        %v3423 = vunpack.c.l.b16 %v691
        %v3424 = vunpack.c.l.b16 %v692
        %v3425 = vunpack.c.l.b16 %v693
        %v3426 = vunpack.c.l.b16 %v694
        %v3427 = vunpack.c.l.b16 %v695
        %v3428 = vunpack.c.l.b16 %v696
        %v3429 = vunpack.c.l.b16 %v697
        %v3430 = vunpack.c.l.b16 %v698
        %v3431 = vunpack.c.l.b16 %v699
        %v3432 = vunpack.c.l.b16 %v700
        %v3433 = vunpack.c.l.b16 %v701
        %v3434 = vunpack.c.l.b16 %v702
        %v3435 = vunpack.c.l.b16 %v703
        %v3436 = vunpack.c.l.b16 %v704
        %v3437 = vunpack.c.l.b16 %v705
        %v3438 = vunpack.c.l.b16 %v706
        %v3439 = vunpack.c.l.b16 %v707
        %v3440 = vunpack.c.l.b16 %v708
        %v3441 = vunpack.c.l.b16 %v709
        %v3442 = vunpack.c.l.b16 %v710
        %v3443 = vunpack.c.l.b16 %v711
        %v3444 = vunpack.c.l.b16 %v712
        %v3445 = vunpack.c.l.b16 %v713
        %v3446 = vunpack.c.l.b16 %v714
        %v3447 = vunpack.c.l.b16 %v715
        %v3448 = vunpack.c.l.b16 %v716
        %v3449 = vunpack.c.l.b16 %v717
        %v3450 = vunpack.c.l.b16 %v718
        %v3451 = vunpack.c.l.b16 %v719
        %v3452 = vunpack.c.l.b16 %v720
        %v3453 = vunpack.c.l.b16 %v721
        %v3454 = vunpack.c.l.b16 %v722
        %v3455 = vunpack.c.l.b16 %v723
        %v3456 = vunpack.c.l.b16 %v724
        %v3457 = vunpack.c.l.b16 %v725
        %v3458 = vunpack.c.l.b16 %v726
        %v3459 = vunpack.c.l.b16 %v727
        %v3460 = vunpack.c.l.b16 %v728
        %v3461 = vunpack.c.l.b16 %v729
        %v3462 = vunpack.c.l.b16 %v730
        %v3463 = vunpack.c.l.b16 %v731
        %v3464 = vunpack.c.l.b16 %v732
        %v3465 = vunpack.c.l.b16 %v733
        %v3466 = vunpack.c.l.b16 %v734
        %v3467 = vunpack.c.l.b16 %v735
        %v3468 = vunpack.c.l.b16 %v736
        %v3469 = vunpack.c.l.b16 %v737
        %v3470 = vunpack.c.l.b16 %v738
        %v3471 = vunpack.c.l.b16 %v739
        %v3472 = vunpack.c.l.b16 %v740
        %v3473 = vunpack.c.l.b16 %v741
        %v3474 = vunpack.c.l.b16 %v742
        %v3475 = vunpack.c.l.b16 %v743
        %v3476 = vunpack.c.l.b16 %v744
        %v3477 = vunpack.c.l.b16 %v745
        %v3478 = vunpack.c.l.b16 %v746
        %v3479 = vunpack.c.l.b16 %v747
        %v3480 = vunpack.c.l.b16 %v748
        %v3481 = vunpack.c.l.b16 %v749
        %v3482 = vunpack.c.l.b16 %v750
        %v3483 = vunpack.c.l.b16 %v751
        %v3484 = vunpack.c.l.b16 %v752
        %v3485 = vunpack.c.l.b16 %v753
        %v3486 = vunpack.c.l.b16 %v754
        %v3487 = vunpack.c.l.b16 %v755
        %v3488 = vunpack.c.l.b16 %v756
        %v3489 = vunpack.c.l.b16 %v757
        %v3490 = vunpack.c.l.b16 %v758
        %v3491 = vunpack.c.l.b16 %v759
        %v3492 = vunpack.c.l.b16 %v760
        %v3493 = vunpack.c.l.b16 %v761
        %v3494 = vunpack.c.l.b16 %v762
        %v3495 = vunpack.c.l.b16 %v763
        %v3496 = vunpack.c.l.b16 %v764
        %v3497 = vunpack.c.l.b16 %v765
        %v3498 = vunpack.c.l.b16 %v766
        %v3499 = vunpack.c.l.b16 %v767
        %v3500 = vunpack.c.l.b16 %v768
        %v3501 = vunpack.c.l.b16 %v769
        %v3502 = vunpack.c.l.b16 %v770
        %v3503 = vunpack.c.l.b16 %v771
        %v3504 = vunpack.c.l.b16 %v772
        %v3505 = vunpack.c.l.b16 %v773
        %v3506 = vunpack.c.l.b16 %v774
        %v3507 = vunpack.c.l.b16 %v775
        %v3508 = vunpack.c.l.b16 %v776
        %v3509 = vunpack.c.l.b16 %v777
        %v3510 = vunpack.c.l.b16 %v778
        %v3511 = vunpack.c.l.b16 %v779
        %v3512 = vunpack.c.l.b16 %v780
        %v3513 = vunpack.c.l.b16 %v781
        %v3514 = vunpack.c.l.b16 %v782
        %v3515 = vunpack.c.l.b16 %v783
        %v3516 = vunpack.c.l.b16 %v784
        %v3517 = vunpack.c.l.b16 %v785
        %v3518 = vunpack.c.l.b16 %v786
        %v3519 = vunpack.c.l.b16 %v787
        %v3520 = vunpack.c.l.b16 %v788
        %v3521 = vunpack.c.l.b16 %v789
        %v3522 = vunpack.c.l.b16 %v790
        %v3523 = vunpack.c.l.b16 %v791
        %v3524 = vunpack.c.l.b16 %v792
        %v3525 = vunpack.c.l.b16 %v793
        %v3526 = vunpack.c.l.b16 %v794
        %v3527 = vunpack.c.l.b16 %v795
        %v3528 = vunpack.c.l.b16 %v796
        %v3529 = vunpack.c.l.b16 %v797
        %v3530 = vunpack.c.l.b16 %v798
        %v3531 = vunpack.c.l.b16 %v799
        %v3532 = vunpack.c.l.b16 %v800
        %v3533 = vunpack.c.l.b16 %v801
        %v3534 = vunpack.c.l.b16 %v802
        %v3535 = vunpack.c.l.b16 %v803
        %v3536 = vunpack.c.l.b16 %v804
        %v3537 = vunpack.c.l.b16 %v805
        %v3538 = vunpack.c.l.b16 %v806
        %v3539 = vunpack.c.l.b16 %v807
        %v3540 = vunpack.c.l.b16 %v808
        %v3541 = vunpack.c.l.b16 %v809
        %v3542 = vunpack.c.l.b16 %v810
        %v3543 = vunpack.c.l.b16 %v811
        %v3544 = vunpack.c.l.b16 %v812
        %v3545 = vunpack.c.l.b16 %v813
        %v3546 = vunpack.c.l.b16 %v814
        %v3547 = vunpack.c.l.b16 %v815
        %v3548 = vunpack.c.l.b16 %v816
        %v3549 = vunpack.c.l.b16 %v817
        %v3550 = vunpack.c.l.b16 %v818
        %v3551 = vunpack.c.l.b16 %v819
        %v3552 = vunpack.c.l.b16 %v820
        %v3553 = vunpack.c.l.b16 %v821
        %v3554 = vunpack.c.l.b16 %v822
        %v3555 = vunpack.c.l.b16 %v823
        %v3556 = vunpack.c.l.b16 %v824
        %v3557 = vunpack.c.l.b16 %v825
        %v3558 = vpack.c.b16 %v3047, %v3046
        %v3559 = vpack.c.b16 %v3049, %v3048
        %v3560 = vpack.c.b16 %v3051, %v3050
        %v3561 = vpack.c.b16 %v3053, %v3052
        %v3562 = vpack.c.b16 %v3055, %v3054
        %v3563 = vpack.c.b16 %v3057, %v3056
        %v3564 = vpack.c.b16 %v3059, %v3058
        %v3565 = vpack.c.b16 %v3061, %v3060
        %v3566 = vpack.c.b16 %v3063, %v3062
        %v3567 = vpack.c.b16 %v3065, %v3064
        %v3568 = vpack.c.b16 %v3067, %v3066
        %v3569 = vpack.c.b16 %v3069, %v3068
        %v3570 = vpack.c.b16 %v3071, %v3070
        %v3571 = vpack.c.b16 %v3073, %v3072
        %v3572 = vpack.c.b16 %v3075, %v3074
        %v3573 = vpack.c.b16 %v3077, %v3076
        %v3574 = vpack.c.b16 %v3079, %v3078
        %v3575 = vpack.c.b16 %v3081, %v3080
        %v3576 = vpack.c.b16 %v3083, %v3082
        %v3577 = vpack.c.b16 %v3085, %v3084
        %v3578 = vpack.c.b16 %v3087, %v3086
        %v3579 = vpack.c.b16 %v3089, %v3088
        %v3580 = vpack.c.b16 %v3091, %v3090
        %v3581 = vpack.c.b16 %v3093, %v3092
        %v3582 = vpack.c.b16 %v3095, %v3094
        %v3583 = vpack.c.b16 %v3097, %v3096
        %v3584 = vpack.c.b16 %v3099, %v3098
        %v3585 = vpack.c.b16 %v3101, %v3100
        %v3586 = vpack.c.b16 %v3103, %v3102
        %v3587 = vpack.c.b16 %v3105, %v3104
        %v3588 = vpack.c.b16 %v3107, %v3106
        %v3589 = vpack.c.b16 %v3109, %v3108
        %v3590 = vpack.c.b16 %v3111, %v3110
        %v3591 = vpack.c.b16 %v3113, %v3112
        %v3592 = vpack.c.b16 %v3115, %v3114
        %v3593 = vpack.c.b16 %v3117, %v3116
        %v3594 = vpack.c.b16 %v3119, %v3118
        %v3595 = vpack.c.b16 %v3121, %v3120
        %v3596 = vpack.c.b16 %v3123, %v3122
        %v3597 = vpack.c.b16 %v3125, %v3124
        %v3598 = vpack.c.b16 %v3127, %v3126
        %v3599 = vpack.c.b16 %v3129, %v3128
        %v3600 = vpack.c.b16 %v3131, %v3130
        %v3601 = vpack.c.b16 %v3133, %v3132
        %v3602 = vpack.c.b16 %v3135, %v3134
        %v3603 = vpack.c.b16 %v3137, %v3136
        %v3604 = vpack.c.b16 %v3139, %v3138
        %v3605 = vpack.c.b16 %v3141, %v3140
        %v3606 = vpack.c.b16 %v3143, %v3142
        %v3607 = vpack.c.b16 %v3145, %v3144
        %v3608 = vpack.c.b16 %v3147, %v3146
        %v3609 = vpack.c.b16 %v3149, %v3148
        %v3610 = vpack.c.b16 %v3151, %v3150
        %v3611 = vpack.c.b16 %v3153, %v3152
        %v3612 = vpack.c.b16 %v3155, %v3154
        %v3613 = vpack.c.b16 %v3157, %v3156
        %v3614 = vpack.c.b16 %v3159, %v3158
        %v3615 = vpack.c.b16 %v3161, %v3160
        %v3616 = vpack.c.b16 %v3163, %v3162
        %v3617 = vpack.c.b16 %v3165, %v3164
        %v3618 = vpack.c.b16 %v3167, %v3166
        %v3619 = vpack.c.b16 %v3169, %v3168
        %v3620 = vpack.c.b16 %v3171, %v3170
        %v3621 = vpack.c.b16 %v3173, %v3172
        %v3622 = vpack.c.b16 %v3175, %v3174
        %v3623 = vpack.c.b16 %v3177, %v3176
        %v3624 = vpack.c.b16 %v3179, %v3178
        %v3625 = vpack.c.b16 %v3181, %v3180
        %v3626 = vpack.c.b16 %v3183, %v3182
        %v3627 = vpack.c.b16 %v3185, %v3184
        %v3628 = vpack.c.b16 %v3187, %v3186
        %v3629 = vpack.c.b16 %v3189, %v3188
        %v3630 = vpack.c.b16 %v3191, %v3190
        %v3631 = vpack.c.b16 %v3193, %v3192
        %v3632 = vpack.c.b16 %v3195, %v3194
        %v3633 = vpack.c.b16 %v3197, %v3196
        %v3634 = vpack.c.b16 %v3199, %v3198
        %v3635 = vpack.c.b16 %v3201, %v3200
        %v3636 = vpack.c.b16 %v3203, %v3202
        %v3637 = vpack.c.b16 %v3205, %v3204
        %v3638 = vpack.c.b16 %v3207, %v3206
        %v3639 = vpack.c.b16 %v3209, %v3208
        %v3640 = vpack.c.b16 %v3211, %v3210
        %v3641 = vpack.c.b16 %v3213, %v3212
        %v3642 = vpack.c.b16 %v3215, %v3214
        %v3643 = vpack.c.b16 %v3217, %v3216
        %v3644 = vpack.c.b16 %v3219, %v3218
        %v3645 = vpack.c.b16 %v3221, %v3220
        %v3646 = vpack.c.b16 %v3223, %v3222
        %v3647 = vpack.c.b16 %v3225, %v3224
        %v3648 = vpack.c.b16 %v3227, %v3226
        %v3649 = vpack.c.b16 %v3229, %v3228
        %v3650 = vpack.c.b16 %v3231, %v3230
        %v3651 = vpack.c.b16 %v3233, %v3232
        %v3652 = vpack.c.b16 %v3235, %v3234
        %v3653 = vpack.c.b16 %v3237, %v3236
        %v3654 = vpack.c.b16 %v3239, %v3238
        %v3655 = vpack.c.b16 %v3241, %v3240
        %v3656 = vpack.c.b16 %v3243, %v3242
        %v3657 = vpack.c.b16 %v3245, %v3244
        %v3658 = vpack.c.b16 %v3247, %v3246
        %v3659 = vpack.c.b16 %v3249, %v3248
        %v3660 = vpack.c.b16 %v3251, %v3250
        %v3661 = vpack.c.b16 %v3253, %v3252
        %v3662 = vpack.c.b16 %v3255, %v3254
        %v3663 = vpack.c.b16 %v3257, %v3256
        %v3664 = vpack.c.b16 %v3259, %v3258
        %v3665 = vpack.c.b16 %v3261, %v3260
        %v3666 = vpack.c.b16 %v3263, %v3262
        %v3667 = vpack.c.b16 %v3265, %v3264
        %v3668 = vpack.c.b16 %v3267, %v3266
        %v3669 = vpack.c.b16 %v3269, %v3268
        %v3670 = vpack.c.b16 %v3271, %v3270
        %v3671 = vpack.c.b16 %v3273, %v3272
        %v3672 = vpack.c.b16 %v3275, %v3274
        %v3673 = vpack.c.b16 %v3277, %v3276
        %v3674 = vpack.c.b16 %v3279, %v3278
        %v3675 = vpack.c.b16 %v3281, %v3280
        %v3676 = vpack.c.b16 %v3283, %v3282
        %v3677 = vpack.c.b16 %v3285, %v3284
        %v3678 = vpack.c.b16 %v3287, %v3286
        %v3679 = vpack.c.b16 %v3289, %v3288
        %v3680 = vpack.c.b16 %v3291, %v3290
        %v3681 = vpack.c.b16 %v3293, %v3292
        %v3682 = vpack.c.b16 %v3295, %v3294
        %v3683 = vpack.c.b16 %v3297, %v3296
        %v3684 = vpack.c.b16 %v3299, %v3298
        %v3685 = vpack.c.b16 %v3301, %v3300
        %v3686 = vpack.c.b16 %v3303, %v3302
        %v3687 = vpack.c.b16 %v3305, %v3304
        %v3688 = vpack.c.b16 %v3307, %v3306
        %v3689 = vpack.c.b16 %v3309, %v3308
        %v3690 = vpack.c.b16 %v3311, %v3310
        %v3691 = vpack.c.b16 %v3313, %v3312
        %v3692 = vpack.c.b16 %v3315, %v3314
        %v3693 = vpack.c.b16 %v3317, %v3316
        %v3694 = vpack.c.b16 %v3319, %v3318
        %v3695 = vpack.c.b16 %v3321, %v3320
        %v3696 = vpack.c.b16 %v3323, %v3322
        %v3697 = vpack.c.b16 %v3325, %v3324
        %v3698 = vpack.c.b16 %v3327, %v3326
        %v3699 = vpack.c.b16 %v3329, %v3328
        %v3700 = vpack.c.b16 %v3331, %v3330
        %v3701 = vpack.c.b16 %v3333, %v3332
        %v3702 = vpack.c.b16 %v3335, %v3334
        %v3703 = vpack.c.b16 %v3337, %v3336
        %v3704 = vpack.c.b16 %v3339, %v3338
        %v3705 = vpack.c.b16 %v3341, %v3340
        %v3706 = vpack.c.b16 %v3343, %v3342
        %v3707 = vpack.c.b16 %v3345, %v3344
        %v3708 = vpack.c.b16 %v3347, %v3346
        %v3709 = vpack.c.b16 %v3349, %v3348
        %v3710 = vpack.c.b16 %v3351, %v3350
        %v3711 = vpack.c.b16 %v3353, %v3352
        %v3712 = vpack.c.b16 %v3355, %v3354
        %v3713 = vpack.c.b16 %v3357, %v3356
        %v3714 = vpack.c.b16 %v3359, %v3358
        %v3715 = vpack.c.b16 %v3361, %v3360
        %v3716 = vpack.c.b16 %v3363, %v3362
        %v3717 = vpack.c.b16 %v3365, %v3364
        %v3718 = vpack.c.b16 %v3367, %v3366
        %v3719 = vpack.c.b16 %v3369, %v3368
        %v3720 = vpack.c.b16 %v3371, %v3370
        %v3721 = vpack.c.b16 %v3373, %v3372
        %v3722 = vpack.c.b16 %v3375, %v3374
        %v3723 = vpack.c.b16 %v3377, %v3376
        %v3724 = vpack.c.b16 %v3379, %v3378
        %v3725 = vpack.c.b16 %v3381, %v3380
        %v3726 = vpack.c.b16 %v3383, %v3382
        %v3727 = vpack.c.b16 %v3385, %v3384
        %v3728 = vpack.c.b16 %v3387, %v3386
        %v3729 = vpack.c.b16 %v3389, %v3388
        %v3730 = vpack.c.b16 %v3391, %v3390
        %v3731 = vpack.c.b16 %v3393, %v3392
        %v3732 = vpack.c.b16 %v3395, %v3394
        %v3733 = vpack.c.b16 %v3397, %v3396
        %v3734 = vpack.c.b16 %v3399, %v3398
        %v3735 = vpack.c.b16 %v3401, %v3400
        %v3736 = vpack.c.b16 %v3403, %v3402
        %v3737 = vpack.c.b16 %v3405, %v3404
        %v3738 = vpack.c.b16 %v3407, %v3406
        %v3739 = vpack.c.b16 %v3409, %v3408
        %v3740 = vpack.c.b16 %v3411, %v3410
        %v3741 = vpack.c.b16 %v3413, %v3412
        %v3742 = vpack.c.b16 %v3415, %v3414
        %v3743 = vpack.c.b16 %v3417, %v3416
        %v3744 = vpack.c.b16 %v3419, %v3418
        %v3745 = vpack.c.b16 %v3421, %v3420
        %v3746 = vpack.c.b16 %v3423, %v3422
        %v3747 = vpack.c.b16 %v3425, %v3424
        %v3748 = vpack.c.b16 %v3427, %v3426
        %v3749 = vpack.c.b16 %v3429, %v3428
        %v3750 = vpack.c.b16 %v3431, %v3430
        %v3751 = vpack.c.b16 %v3433, %v3432
        %v3752 = vpack.c.b16 %v3435, %v3434
        %v3753 = vpack.c.b16 %v3437, %v3436
        %v3754 = vpack.c.b16 %v3439, %v3438
        %v3755 = vpack.c.b16 %v3441, %v3440
        %v3756 = vpack.c.b16 %v3443, %v3442
        %v3757 = vpack.c.b16 %v3445, %v3444
        %v3758 = vpack.c.b16 %v3447, %v3446
        %v3759 = vpack.c.b16 %v3449, %v3448
        %v3760 = vpack.c.b16 %v3451, %v3450
        %v3761 = vpack.c.b16 %v3453, %v3452
        %v3762 = vpack.c.b16 %v3455, %v3454
        %v3763 = vpack.c.b16 %v3457, %v3456
        %v3764 = vpack.c.b16 %v3459, %v3458
        %v3765 = vpack.c.b16 %v3461, %v3460
        %v3766 = vpack.c.b16 %v3463, %v3462
        %v3767 = vpack.c.b16 %v3465, %v3464
        %v3768 = vpack.c.b16 %v3467, %v3466
        %v3769 = vpack.c.b16 %v3469, %v3468
        %v3770 = vpack.c.b16 %v3471, %v3470
        %v3771 = vpack.c.b16 %v3473, %v3472
        %v3772 = vpack.c.b16 %v3475, %v3474
        %v3773 = vpack.c.b16 %v3477, %v3476
        %v3774 = vpack.c.b16 %v3479, %v3478
        %v3775 = vpack.c.b16 %v3481, %v3480
        %v3776 = vpack.c.b16 %v3483, %v3482
        %v3777 = vpack.c.b16 %v3485, %v3484
        %v3778 = vpack.c.b16 %v3487, %v3486
        %v3779 = vpack.c.b16 %v3489, %v3488
        %v3780 = vpack.c.b16 %v3491, %v3490
        %v3781 = vpack.c.b16 %v3493, %v3492
        %v3782 = vpack.c.b16 %v3495, %v3494
        %v3783 = vpack.c.b16 %v3497, %v3496
        %v3784 = vpack.c.b16 %v3499, %v3498
        %v3785 = vpack.c.b16 %v3501, %v3500
        %v3786 = vpack.c.b16 %v3503, %v3502
        %v3787 = vpack.c.b16 %v3505, %v3504
        %v3788 = vpack.c.b16 %v3507, %v3506
        %v3789 = vpack.c.b16 %v3509, %v3508
        %v3790 = vpack.c.b16 %v3511, %v3510
        %v3791 = vpack.c.b16 %v3513, %v3512
        %v3792 = vpack.c.b16 %v3515, %v3514
        %v3793 = vpack.c.b16 %v3517, %v3516
        %v3794 = vpack.c.b16 %v3519, %v3518
        %v3795 = vpack.c.b16 %v3521, %v3520
        %v3796 = vpack.c.b16 %v3523, %v3522
        %v3797 = vpack.c.b16 %v3525, %v3524
        %v3798 = vpack.c.b16 %v3527, %v3526
        %v3799 = vpack.c.b16 %v3529, %v3528
        %v3800 = vpack.c.b16 %v3531, %v3530
        %v3801 = vpack.c.b16 %v3533, %v3532
        %v3802 = vpack.c.b16 %v3535, %v3534
        %v3803 = vpack.c.b16 %v3537, %v3536
        %v3804 = vpack.c.b16 %v3539, %v3538
        %v3805 = vpack.c.b16 %v3541, %v3540
        %v3806 = vpack.c.b16 %v3543, %v3542
        %v3807 = vpack.c.b16 %v3545, %v3544
        %v3808 = vpack.c.b16 %v3547, %v3546
        %v3809 = vpack.c.b16 %v3549, %v3548
        %v3810 = vpack.c.b16 %v3551, %v3550
        %v3811 = vpack.c.b16 %v3553, %v3552
        %v3812 = vpack.c.b16 %v3555, %v3554
        %v3813 = vpack.c.b16 %v3557, %v3556
        %4070 = vmatpush.bf16.msra.mxu0 %v3565
        %4071 = vmatpush.bf16.msra.mxu0 %v3564
        %4072 = vmatpush.bf16.msra.mxu0 %v3563
        %4073 = vmatpush.bf16.msra.mxu0 %v3562
        %4074 = vmatpush.bf16.msra.mxu0 %v3561
        %4075 = vmatpush.bf16.msra.mxu0 %v3560
        %4076 = vmatpush.bf16.msra.mxu0 %v3559
        %4077 = vmatpush.bf16.msra.mxu0 %v3558
        %4078 = vmatmul.bf16.gmra.mxu0 %v2480
        %v4079 = vpop.f32.mrf.mxu0
        %v4080 = vadd.f32 %v2532, %v4079
        %v4081 = vpop.f32.mrf.mxu0
        %4082 = vdwg.mxu0
        %4083 = vmatpush.bf16.msra.mxu0 %v3573
        %4084 = vmatpush.bf16.msra.mxu0 %v3572
        %4085 = vmatpush.bf16.msra.mxu0 %v3571
        %4086 = vmatpush.bf16.msra.mxu0 %v3570
        %4087 = vmatpush.bf16.msra.mxu0 %v3569
        %4088 = vmatpush.bf16.msra.mxu0 %v3568
        %4089 = vmatpush.bf16.msra.mxu0 %v3567
        %4090 = vmatpush.bf16.msra.mxu0 %v3566
        %4091 = vmatmul.bf16.gmra.mxu0 %v2481
        %v4092 = vpop.f32.mrf.mxu0
        %v4093 = vadd.f32 %v4080, %v4092
        %v4094 = vpop.f32.mrf.mxu0
        %4095 = vdwg.mxu0
        %4096 = vmatpush.bf16.msra.mxu0 %v3581
        %4097 = vmatpush.bf16.msra.mxu0 %v3580
        %4098 = vmatpush.bf16.msra.mxu0 %v3579
        %4099 = vmatpush.bf16.msra.mxu0 %v3578
        %4100 = vmatpush.bf16.msra.mxu0 %v3577
        %4101 = vmatpush.bf16.msra.mxu0 %v3576
        %4102 = vmatpush.bf16.msra.mxu0 %v3575
        %4103 = vmatpush.bf16.msra.mxu0 %v3574
        %4104 = vmatmul.bf16.gmra.mxu0 %v2482
        %v4105 = vpop.f32.mrf.mxu0
        %v4106 = vadd.f32 %v4093, %v4105
        %v4107 = vpop.f32.mrf.mxu0
        %4108 = vdwg.mxu0
        %4109 = vmatpush.bf16.msra.mxu0 %v3589
        %4110 = vmatpush.bf16.msra.mxu0 %v3588
        %4111 = vmatpush.bf16.msra.mxu0 %v3587
        %4112 = vmatpush.bf16.msra.mxu0 %v3586
        %4113 = vmatpush.bf16.msra.mxu0 %v3585
        %4114 = vmatpush.bf16.msra.mxu0 %v3584
        %4115 = vmatpush.bf16.msra.mxu0 %v3583
        %4116 = vmatpush.bf16.msra.mxu0 %v3582
        %4117 = vmatmul.bf16.gmra.mxu0 %v2483
        %v4118 = vpop.f32.mrf.mxu0
        %v4119 = vadd.f32 %v4106, %v4118
        %v4120 = vpop.f32.mrf.mxu0
        %4121 = vdwg.mxu0
        %4122 = vmatpush.bf16.msra.mxu0 %v3597
        %4123 = vmatpush.bf16.msra.mxu0 %v3596
        %4124 = vmatpush.bf16.msra.mxu0 %v3595
        %4125 = vmatpush.bf16.msra.mxu0 %v3594
        %4126 = vmatpush.bf16.msra.mxu0 %v3593
        %4127 = vmatpush.bf16.msra.mxu0 %v3592
        %4128 = vmatpush.bf16.msra.mxu0 %v3591
        %4129 = vmatpush.bf16.msra.mxu0 %v3590
        %4130 = vmatmul.bf16.gmra.mxu0 %v2484
        %v4131 = vpop.f32.mrf.mxu0
        %v4132 = vadd.f32 %v4119, %v4131
        %v4133 = vpop.f32.mrf.mxu0
        %4134 = vdwg.mxu0
        %4135 = vmatpush.bf16.msra.mxu0 %v3605
        %4136 = vmatpush.bf16.msra.mxu0 %v3604
        %4137 = vmatpush.bf16.msra.mxu0 %v3603
        %4138 = vmatpush.bf16.msra.mxu0 %v3602
        %4139 = vmatpush.bf16.msra.mxu0 %v3601
        %4140 = vmatpush.bf16.msra.mxu0 %v3600
        %4141 = vmatpush.bf16.msra.mxu0 %v3599
        %4142 = vmatpush.bf16.msra.mxu0 %v3598
        %4143 = vmatmul.bf16.gmra.mxu0 %v2485
        %v4144 = vpop.f32.mrf.mxu0
        %v4145 = vadd.f32 %v4132, %v4144
        %v4146 = vpop.f32.mrf.mxu0
        %4147 = vdwg.mxu0
        %4148 = vmatpush.bf16.msra.mxu0 %v3613
        %4149 = vmatpush.bf16.msra.mxu0 %v3612
        %4150 = vmatpush.bf16.msra.mxu0 %v3611
        %4151 = vmatpush.bf16.msra.mxu0 %v3610
        %4152 = vmatpush.bf16.msra.mxu0 %v3609
        %4153 = vmatpush.bf16.msra.mxu0 %v3608
        %4154 = vmatpush.bf16.msra.mxu0 %v3607
        %4155 = vmatpush.bf16.msra.mxu0 %v3606
        %4156 = vmatmul.bf16.gmra.mxu0 %v2486
        %v4157 = vpop.f32.mrf.mxu0
        %v4158 = vadd.f32 %v4145, %v4157
        %v4159 = vpop.f32.mrf.mxu0
        %4160 = vdwg.mxu0
        %4161 = vmatpush.bf16.msra.mxu0 %v3621
        %4162 = vmatpush.bf16.msra.mxu0 %v3620
        %4163 = vmatpush.bf16.msra.mxu0 %v3619
        %4164 = vmatpush.bf16.msra.mxu0 %v3618
        %4165 = vmatpush.bf16.msra.mxu0 %v3617
        %4166 = vmatpush.bf16.msra.mxu0 %v3616
        %4167 = vmatpush.bf16.msra.mxu0 %v3615
        %4168 = vmatpush.bf16.msra.mxu0 %v3614
        %4169 = vmatmul.bf16.gmra.mxu0 %v2487
        %v4170 = vpop.f32.mrf.mxu0
        %v4171 = vadd.f32 %v4158, %v4170
        %v4172 = vpop.f32.mrf.mxu0
        %4173 = vdwg.mxu0
        %4174 = vmatpush.bf16.msra.mxu0 %v3629
        %4175 = vmatpush.bf16.msra.mxu0 %v3628
        %4176 = vmatpush.bf16.msra.mxu0 %v3627
        %4177 = vmatpush.bf16.msra.mxu0 %v3626
        %4178 = vmatpush.bf16.msra.mxu0 %v3625
        %4179 = vmatpush.bf16.msra.mxu0 %v3624
        %4180 = vmatpush.bf16.msra.mxu0 %v3623
        %4181 = vmatpush.bf16.msra.mxu0 %v3622
        %4182 = vmatmul.bf16.gmra.mxu0 %v2488
        %v4183 = vpop.f32.mrf.mxu0
        %v4184 = vadd.f32 %v4171, %v4183
        %v4185 = vpop.f32.mrf.mxu0
        %4186 = vdwg.mxu0
        %4187 = vmatpush.bf16.msra.mxu0 %v3637
        %4188 = vmatpush.bf16.msra.mxu0 %v3636
        %4189 = vmatpush.bf16.msra.mxu0 %v3635
        %4190 = vmatpush.bf16.msra.mxu0 %v3634
        %4191 = vmatpush.bf16.msra.mxu0 %v3633
        %4192 = vmatpush.bf16.msra.mxu0 %v3632
        %4193 = vmatpush.bf16.msra.mxu0 %v3631
        %4194 = vmatpush.bf16.msra.mxu0 %v3630
        %4195 = vmatmul.bf16.gmra.mxu0 %v2489
        %v4196 = vpop.f32.mrf.mxu0
        %v4197 = vadd.f32 %v4184, %v4196
        %v4198 = vpop.f32.mrf.mxu0
        %4199 = vdwg.mxu0
        %4200 = vmatpush.bf16.msra.mxu0 %v3645
        %4201 = vmatpush.bf16.msra.mxu0 %v3644
        %4202 = vmatpush.bf16.msra.mxu0 %v3643
        %4203 = vmatpush.bf16.msra.mxu0 %v3642
        %4204 = vmatpush.bf16.msra.mxu0 %v3641
        %4205 = vmatpush.bf16.msra.mxu0 %v3640
        %4206 = vmatpush.bf16.msra.mxu0 %v3639
        %4207 = vmatpush.bf16.msra.mxu0 %v3638
        %4208 = vmatmul.bf16.gmra.mxu0 %v2490
        %v4209 = vpop.f32.mrf.mxu0
        %v4210 = vadd.f32 %v4197, %v4209
        %v4211 = vpop.f32.mrf.mxu0
        %4212 = vdwg.mxu0
        %4213 = vmatpush.bf16.msra.mxu0 %v3653
        %4214 = vmatpush.bf16.msra.mxu0 %v3652
        %4215 = vmatpush.bf16.msra.mxu0 %v3651
        %4216 = vmatpush.bf16.msra.mxu0 %v3650
        %4217 = vmatpush.bf16.msra.mxu0 %v3649
        %4218 = vmatpush.bf16.msra.mxu0 %v3648
        %4219 = vmatpush.bf16.msra.mxu0 %v3647
        %4220 = vmatpush.bf16.msra.mxu0 %v3646
        %4221 = vmatmul.bf16.gmra.mxu0 %v2491
        %v4222 = vpop.f32.mrf.mxu0
        %v4223 = vadd.f32 %v4210, %v4222
        %v4224 = vpop.f32.mrf.mxu0
        %4225 = vdwg.mxu0
        %4226 = vmatpush.bf16.msra.mxu0 %v3661
        %4227 = vmatpush.bf16.msra.mxu0 %v3660
        %4228 = vmatpush.bf16.msra.mxu0 %v3659
        %4229 = vmatpush.bf16.msra.mxu0 %v3658
        %4230 = vmatpush.bf16.msra.mxu0 %v3657
        %4231 = vmatpush.bf16.msra.mxu0 %v3656
        %4232 = vmatpush.bf16.msra.mxu0 %v3655
        %4233 = vmatpush.bf16.msra.mxu0 %v3654
        %4234 = vmatmul.bf16.gmra.mxu0 %v2492
        %v4235 = vpop.f32.mrf.mxu0
        %v4236 = vadd.f32 %v4223, %v4235
        %v4237 = vpop.f32.mrf.mxu0
        %4238 = vdwg.mxu0
        %4239 = vmatpush.bf16.msra.mxu0 %v3669
        %4240 = vmatpush.bf16.msra.mxu0 %v3668
        %4241 = vmatpush.bf16.msra.mxu0 %v3667
        %4242 = vmatpush.bf16.msra.mxu0 %v3666
        %4243 = vmatpush.bf16.msra.mxu0 %v3665
        %4244 = vmatpush.bf16.msra.mxu0 %v3664
        %4245 = vmatpush.bf16.msra.mxu0 %v3663
        %4246 = vmatpush.bf16.msra.mxu0 %v3662
        %4247 = vmatmul.bf16.gmra.mxu0 %v2493
        %v4248 = vpop.f32.mrf.mxu0
        %v4249 = vadd.f32 %v4236, %v4248
        %v4250 = vpop.f32.mrf.mxu0
        %4251 = vdwg.mxu0
        %4252 = vmatpush.bf16.msra.mxu0 %v3677
        %4253 = vmatpush.bf16.msra.mxu0 %v3676
        %4254 = vmatpush.bf16.msra.mxu0 %v3675
        %4255 = vmatpush.bf16.msra.mxu0 %v3674
        %4256 = vmatpush.bf16.msra.mxu0 %v3673
        %4257 = vmatpush.bf16.msra.mxu0 %v3672
        %4258 = vmatpush.bf16.msra.mxu0 %v3671
        %4259 = vmatpush.bf16.msra.mxu0 %v3670
        %4260 = vmatmul.bf16.gmra.mxu0 %v2494
        %v4261 = vpop.f32.mrf.mxu0
        %v4262 = vadd.f32 %v4249, %v4261
        %v4263 = vpop.f32.mrf.mxu0
        %4264 = vdwg.mxu0
        %4265 = vmatpush.bf16.msra.mxu0 %v3685
        %4266 = vmatpush.bf16.msra.mxu0 %v3684
        %4267 = vmatpush.bf16.msra.mxu0 %v3683
        %4268 = vmatpush.bf16.msra.mxu0 %v3682
        %4269 = vmatpush.bf16.msra.mxu0 %v3681
        %4270 = vmatpush.bf16.msra.mxu0 %v3680
        %4271 = vmatpush.bf16.msra.mxu0 %v3679
        %4272 = vmatpush.bf16.msra.mxu0 %v3678
        %4273 = vmatmul.bf16.gmra.mxu0 %v2495
        %v4274 = vpop.f32.mrf.mxu0
        %v4275 = vadd.f32 %v4262, %v4274
        %v4276 = vpop.f32.mrf.mxu0
        %4277 = vdwg.mxu0
        %4278 = vmatpush.bf16.msra.mxu0 %v3693
        %4279 = vmatpush.bf16.msra.mxu0 %v3692
        %4280 = vmatpush.bf16.msra.mxu0 %v3691
        %4281 = vmatpush.bf16.msra.mxu0 %v3690
        %4282 = vmatpush.bf16.msra.mxu0 %v3689
        %4283 = vmatpush.bf16.msra.mxu0 %v3688
        %4284 = vmatpush.bf16.msra.mxu0 %v3687
        %4285 = vmatpush.bf16.msra.mxu0 %v3686
        %4286 = vmatmul.bf16.gmra.mxu0 %v2496
        %v4287 = vpop.f32.mrf.mxu0
        %v4288 = vadd.f32 %v4275, %v4287
        %v4289 = vpop.f32.mrf.mxu0
        %4290 = vdwg.mxu0
        %4291 = vmatpush.bf16.msra.mxu0 %v3701
        %4292 = vmatpush.bf16.msra.mxu0 %v3700
        %4293 = vmatpush.bf16.msra.mxu0 %v3699
        %4294 = vmatpush.bf16.msra.mxu0 %v3698
        %4295 = vmatpush.bf16.msra.mxu0 %v3697
        %4296 = vmatpush.bf16.msra.mxu0 %v3696
        %4297 = vmatpush.bf16.msra.mxu0 %v3695
        %4298 = vmatpush.bf16.msra.mxu0 %v3694
        %4299 = vmatmul.bf16.gmra.mxu0 %v2497
        %v4300 = vpop.f32.mrf.mxu0
        %v4301 = vadd.f32 %v4288, %v4300
        %v4302 = vpop.f32.mrf.mxu0
        %4303 = vdwg.mxu0
        %4304 = vmatpush.bf16.msra.mxu0 %v3709
        %4305 = vmatpush.bf16.msra.mxu0 %v3708
        %4306 = vmatpush.bf16.msra.mxu0 %v3707
        %4307 = vmatpush.bf16.msra.mxu0 %v3706
        %4308 = vmatpush.bf16.msra.mxu0 %v3705
        %4309 = vmatpush.bf16.msra.mxu0 %v3704
        %4310 = vmatpush.bf16.msra.mxu0 %v3703
        %4311 = vmatpush.bf16.msra.mxu0 %v3702
        %4312 = vmatmul.bf16.gmra.mxu0 %v2498
        %v4313 = vpop.f32.mrf.mxu0
        %v4314 = vadd.f32 %v4301, %v4313
        %v4315 = vpop.f32.mrf.mxu0
        %4316 = vdwg.mxu0
        %4317 = vmatpush.bf16.msra.mxu0 %v3717
        %4318 = vmatpush.bf16.msra.mxu0 %v3716
        %4319 = vmatpush.bf16.msra.mxu0 %v3715
        %4320 = vmatpush.bf16.msra.mxu0 %v3714
        %4321 = vmatpush.bf16.msra.mxu0 %v3713
        %4322 = vmatpush.bf16.msra.mxu0 %v3712
        %4323 = vmatpush.bf16.msra.mxu0 %v3711
        %4324 = vmatpush.bf16.msra.mxu0 %v3710
        %4325 = vmatmul.bf16.gmra.mxu0 %v2499
        %v4326 = vpop.f32.mrf.mxu0
        %v4327 = vadd.f32 %v4314, %v4326
        %v4328 = vpop.f32.mrf.mxu0
        %4329 = vdwg.mxu0
        %4330 = vmatpush.bf16.msra.mxu0 %v3725
        %4331 = vmatpush.bf16.msra.mxu0 %v3724
        %4332 = vmatpush.bf16.msra.mxu0 %v3723
        %4333 = vmatpush.bf16.msra.mxu0 %v3722
        %4334 = vmatpush.bf16.msra.mxu0 %v3721
        %4335 = vmatpush.bf16.msra.mxu0 %v3720
        %4336 = vmatpush.bf16.msra.mxu0 %v3719
        %4337 = vmatpush.bf16.msra.mxu0 %v3718
        %4338 = vmatmul.bf16.gmra.mxu0 %v2500
        %v4339 = vpop.f32.mrf.mxu0
        %v4340 = vadd.f32 %v4327, %v4339
        %v4341 = vpop.f32.mrf.mxu0
        %4342 = vdwg.mxu0
        %4343 = vmatpush.bf16.msra.mxu0 %v3733
        %4344 = vmatpush.bf16.msra.mxu0 %v3732
        %4345 = vmatpush.bf16.msra.mxu0 %v3731
        %4346 = vmatpush.bf16.msra.mxu0 %v3730
        %4347 = vmatpush.bf16.msra.mxu0 %v3729
        %4348 = vmatpush.bf16.msra.mxu0 %v3728
        %4349 = vmatpush.bf16.msra.mxu0 %v3727
        %4350 = vmatpush.bf16.msra.mxu0 %v3726
        %4351 = vmatmul.bf16.gmra.mxu0 %v2501
        %v4352 = vpop.f32.mrf.mxu0
        %v4353 = vadd.f32 %v4340, %v4352
        %v4354 = vpop.f32.mrf.mxu0
        %4355 = vdwg.mxu0
        %4356 = vmatpush.bf16.msra.mxu0 %v3741
        %4357 = vmatpush.bf16.msra.mxu0 %v3740
        %4358 = vmatpush.bf16.msra.mxu0 %v3739
        %4359 = vmatpush.bf16.msra.mxu0 %v3738
        %4360 = vmatpush.bf16.msra.mxu0 %v3737
        %4361 = vmatpush.bf16.msra.mxu0 %v3736
        %4362 = vmatpush.bf16.msra.mxu0 %v3735
        %4363 = vmatpush.bf16.msra.mxu0 %v3734
        %4364 = vmatmul.bf16.gmra.mxu0 %v2502
        %v4365 = vpop.f32.mrf.mxu0
        %v4366 = vadd.f32 %v4353, %v4365
        %v4367 = vpop.f32.mrf.mxu0
        %4368 = vdwg.mxu0
        %4369 = vmatpush.bf16.msra.mxu0 %v3749
        %4370 = vmatpush.bf16.msra.mxu0 %v3748
        %4371 = vmatpush.bf16.msra.mxu0 %v3747
        %4372 = vmatpush.bf16.msra.mxu0 %v3746
        %4373 = vmatpush.bf16.msra.mxu0 %v3745
        %4374 = vmatpush.bf16.msra.mxu0 %v3744
        %4375 = vmatpush.bf16.msra.mxu0 %v3743
        %4376 = vmatpush.bf16.msra.mxu0 %v3742
        %4377 = vmatmul.bf16.gmra.mxu0 %v2503
        %v4378 = vpop.f32.mrf.mxu0
        %v4379 = vadd.f32 %v4366, %v4378
        %v4380 = vpop.f32.mrf.mxu0
        %4381 = vdwg.mxu0
        %4382 = vmatpush.bf16.msra.mxu0 %v3757
        %4383 = vmatpush.bf16.msra.mxu0 %v3756
        %4384 = vmatpush.bf16.msra.mxu0 %v3755
        %4385 = vmatpush.bf16.msra.mxu0 %v3754
        %4386 = vmatpush.bf16.msra.mxu0 %v3753
        %4387 = vmatpush.bf16.msra.mxu0 %v3752
        %4388 = vmatpush.bf16.msra.mxu0 %v3751
        %4389 = vmatpush.bf16.msra.mxu0 %v3750
        %4390 = vmatmul.bf16.gmra.mxu0 %v2504
        %v4391 = vpop.f32.mrf.mxu0
        %v4392 = vadd.f32 %v4379, %v4391
        %v4393 = vpop.f32.mrf.mxu0
        %4394 = vdwg.mxu0
        %4395 = vmatpush.bf16.msra.mxu0 %v3765
        %4396 = vmatpush.bf16.msra.mxu0 %v3764
        %4397 = vmatpush.bf16.msra.mxu0 %v3763
        %4398 = vmatpush.bf16.msra.mxu0 %v3762
        %4399 = vmatpush.bf16.msra.mxu0 %v3761
        %4400 = vmatpush.bf16.msra.mxu0 %v3760
        %4401 = vmatpush.bf16.msra.mxu0 %v3759
        %4402 = vmatpush.bf16.msra.mxu0 %v3758
        %4403 = vmatmul.bf16.gmra.mxu0 %v2505
        %v4404 = vpop.f32.mrf.mxu0
        %v4405 = vadd.f32 %v4392, %v4404
        %v4406 = vpop.f32.mrf.mxu0
        %4407 = vdwg.mxu0
        %4408 = vmatpush.bf16.msra.mxu0 %v3773
        %4409 = vmatpush.bf16.msra.mxu0 %v3772
        %4410 = vmatpush.bf16.msra.mxu0 %v3771
        %4411 = vmatpush.bf16.msra.mxu0 %v3770
        %4412 = vmatpush.bf16.msra.mxu0 %v3769
        %4413 = vmatpush.bf16.msra.mxu0 %v3768
        %4414 = vmatpush.bf16.msra.mxu0 %v3767
        %4415 = vmatpush.bf16.msra.mxu0 %v3766
        %4416 = vmatmul.bf16.gmra.mxu0 %v2506
        %v4417 = vpop.f32.mrf.mxu0
        %v4418 = vadd.f32 %v4405, %v4417
        %v4419 = vpop.f32.mrf.mxu0
        %4420 = vdwg.mxu0
        %4421 = vmatpush.bf16.msra.mxu0 %v3781
        %4422 = vmatpush.bf16.msra.mxu0 %v3780
        %4423 = vmatpush.bf16.msra.mxu0 %v3779
        %4424 = vmatpush.bf16.msra.mxu0 %v3778
        %4425 = vmatpush.bf16.msra.mxu0 %v3777
        %4426 = vmatpush.bf16.msra.mxu0 %v3776
        %4427 = vmatpush.bf16.msra.mxu0 %v3775
        %4428 = vmatpush.bf16.msra.mxu0 %v3774
        %4429 = vmatmul.bf16.gmra.mxu0 %v2507
        %v4430 = vpop.f32.mrf.mxu0
        %v4431 = vadd.f32 %v4418, %v4430
        %v4432 = vpop.f32.mrf.mxu0
        %4433 = vdwg.mxu0
        %4434 = vmatpush.bf16.msra.mxu0 %v3789
        %4435 = vmatpush.bf16.msra.mxu0 %v3788
        %4436 = vmatpush.bf16.msra.mxu0 %v3787
        %4437 = vmatpush.bf16.msra.mxu0 %v3786
        %4438 = vmatpush.bf16.msra.mxu0 %v3785
        %4439 = vmatpush.bf16.msra.mxu0 %v3784
        %4440 = vmatpush.bf16.msra.mxu0 %v3783
        %4441 = vmatpush.bf16.msra.mxu0 %v3782
        %4442 = vmatmul.bf16.gmra.mxu0 %v2508
        %v4443 = vpop.f32.mrf.mxu0
        %v4444 = vadd.f32 %v4431, %v4443
        %v4445 = vpop.f32.mrf.mxu0
        %4446 = vdwg.mxu0
        %4447 = vmatpush.bf16.msra.mxu0 %v3797
        %4448 = vmatpush.bf16.msra.mxu0 %v3796
        %4449 = vmatpush.bf16.msra.mxu0 %v3795
        %4450 = vmatpush.bf16.msra.mxu0 %v3794
        %4451 = vmatpush.bf16.msra.mxu0 %v3793
        %4452 = vmatpush.bf16.msra.mxu0 %v3792
        %4453 = vmatpush.bf16.msra.mxu0 %v3791
        %4454 = vmatpush.bf16.msra.mxu0 %v3790
        %4455 = vmatmul.bf16.gmra.mxu0 %v2509
        %v4456 = vpop.f32.mrf.mxu0
        %v4457 = vadd.f32 %v4444, %v4456
        %v4458 = vpop.f32.mrf.mxu0
        %4459 = vdwg.mxu0
        %4460 = vmatpush.bf16.msra.mxu0 %v3805
        %4461 = vmatpush.bf16.msra.mxu0 %v3804
        %4462 = vmatpush.bf16.msra.mxu0 %v3803
        %4463 = vmatpush.bf16.msra.mxu0 %v3802
        %4464 = vmatpush.bf16.msra.mxu0 %v3801
        %4465 = vmatpush.bf16.msra.mxu0 %v3800
        %4466 = vmatpush.bf16.msra.mxu0 %v3799
        %4467 = vmatpush.bf16.msra.mxu0 %v3798
        %4468 = vmatmul.bf16.gmra.mxu0 %v2510
        %v4469 = vpop.f32.mrf.mxu0
        %v4470 = vadd.f32 %v4457, %v4469
        %v4471 = vpop.f32.mrf.mxu0
        %4472 = vdwg.mxu0
        %4473 = vmatpush.bf16.msra.mxu0 %v3813
        %4474 = vmatpush.bf16.msra.mxu0 %v3812
        %4475 = vmatpush.bf16.msra.mxu0 %v3811
        %4476 = vmatpush.bf16.msra.mxu0 %v3810
        %4477 = vmatpush.bf16.msra.mxu0 %v3809
        %4478 = vmatpush.bf16.msra.mxu0 %v3808
        %4479 = vmatpush.bf16.msra.mxu0 %v3807
        %4480 = vmatpush.bf16.msra.mxu0 %v3806
        %4481 = vmatmul.bf16.gmra.mxu0 %v2511
        %v4482 = vpop.f32.mrf.mxu0
        %v4483 = vadd.f32 %v4470, %v4482
        %v4484 = vpop.f32.mrf.mxu0
        %4485 = vdwg.mxu0
        %v4487 = vperm.slane %v834, 0
        %v4489 = vadd.f32 %v4483, %v4487
        %v4490 = vtanh.pop %v4489
        %4491 = vst.msk [vmem:[#allocation3] sm:$0xff] %vm311, %v4490
        %s4492 = sld [smem:[#allocation5 + %s835]]
        %v4493 = vld [vmem:[#allocation3] sm:$0x1]
        %s4494 = scalar_lea.vmem %s303, %s4492 [#allocation10]
        %4495 = vst.msk [vmem:[%s4494] sm:$0x1] %vm840, %v4493
        %s4496 = sld [smem:[#allocation5 + %s850]]
        %v4497 = vld [vmem:[#allocation3 + $0x1] sm:$0x1]
        %s4498 = scalar_lea.vmem %s303, %s4496 [#allocation10]
        %4499 = vst.msk [vmem:[%s4498] sm:$0x1] %vm840, %v4497
        %s4500 = sld [smem:[#allocation5 + %s863]]
        %v4501 = vld [vmem:[#allocation3 + $0x2] sm:$0x1]
        %s4502 = scalar_lea.vmem %s303, %s4500 [#allocation10]
        %4503 = vst.msk [vmem:[%s4502] sm:$0x1] %vm840, %v4501
        %s4504 = sld [smem:[#allocation5 + %s876]]
        %v4505 = vld [vmem:[#allocation3 + $0x3] sm:$0x1]
        %s4506 = scalar_lea.vmem %s303, %s4504 [#allocation10]
        %4507 = vst.msk [vmem:[%s4506] sm:$0x1] %vm840, %v4505
        %s4508 = sld [smem:[#allocation5 + %s889]]
        %v4509 = vld [vmem:[#allocation3 + $0x4] sm:$0x1]
        %s4510 = scalar_lea.vmem %s303, %s4508 [#allocation10]
        %4511 = vst.msk [vmem:[%s4510] sm:$0x1] %vm840, %v4509
        %s4512 = sld [smem:[#allocation5 + %s902]]
        %v4513 = vld [vmem:[#allocation3 + $0x5] sm:$0x1]
        %s4514 = scalar_lea.vmem %s303, %s4512 [#allocation10]
        %4515 = vst.msk [vmem:[%s4514] sm:$0x1] %vm840, %v4513
        %s4516 = sld [smem:[#allocation5 + %s915]]
        %v4517 = vld [vmem:[#allocation3 + $0x6] sm:$0x1]
        %s4518 = scalar_lea.vmem %s303, %s4516 [#allocation10]
        %4519 = vst.msk [vmem:[%s4518] sm:$0x1] %vm840, %v4517
        %s4520 = sld [smem:[#allocation5 + %s928]]
        %v4521 = vld [vmem:[#allocation3 + $0x7] sm:$0x1]
        %s4522 = scalar_lea.vmem %s303, %s4520 [#allocation10]
        %4523 = vst.msk [vmem:[%s4522] sm:$0x1] %vm840, %v4521
        %s4524 = sadd.s32 %s835, 8
        %s4525 = sld [smem:[#allocation6 + %s4524]]
        %s4526 = sld [smem:[#allocation7 + %s4524]]
        %s4527 = scalar_lea.vmem %s303, %s4525 [#allocation10]
        %v4528 = vld [vmem:[%s4527] sm:$0x1]
        %4529 = vst.msk [vmem:[#allocation2] sm:$0x1] %vm840, %v4528
        %s4530 = scalar_lea.vmem %s303, %s4526 [#allocation10]
        %v4531 = vld [vmem:[%s4530] sm:$0x1]
        %4533 = vrot.lane.b32.xlu0 %v4531, 32
        %v4534 = vpop.permute.xlu0 %4533
        %4536 = vst.msk [vmem:[#allocation2] sm:$0x1] %vm848, %v4534
        %s4537 = sadd.s32 %s835, 9
        %s4538 = sld [smem:[#allocation6 + %s4537]]
        %s4539 = sld [smem:[#allocation7 + %s4537]]
        %s4540 = scalar_lea.vmem %s303, %s4538 [#allocation10]
        %v4541 = vld [vmem:[%s4540] sm:$0x1]
        %4542 = vst.msk [vmem:[#allocation2 + $0x1] sm:$0x1] %vm840, %v4541
        %s4543 = scalar_lea.vmem %s303, %s4539 [#allocation10]
        %v4544 = vld [vmem:[%s4543] sm:$0x1]
        %4546 = vrot.lane.b32.xlu0 %v4544, 32
        %v4547 = vpop.permute.xlu0 %4546
        %4549 = vst.msk [vmem:[#allocation2 + $0x1] sm:$0x1] %vm848, %v4547
        %s4550 = sadd.s32 %s835, 10
        %s4551 = sld [smem:[#allocation6 + %s4550]]
        %s4552 = sld [smem:[#allocation7 + %s4550]]
        %s4553 = scalar_lea.vmem %s303, %s4551 [#allocation10]
        %v4554 = vld [vmem:[%s4553] sm:$0x1]
        %4555 = vst.msk [vmem:[#allocation2 + $0x2] sm:$0x1] %vm840, %v4554
        %s4556 = scalar_lea.vmem %s303, %s4552 [#allocation10]
        %v4557 = vld [vmem:[%s4556] sm:$0x1]
        %4559 = vrot.lane.b32.xlu0 %v4557, 32
        %v4560 = vpop.permute.xlu0 %4559
        %4562 = vst.msk [vmem:[#allocation2 + $0x2] sm:$0x1] %vm848, %v4560
        %s4563 = sadd.s32 %s835, 11
        %s4564 = sld [smem:[#allocation6 + %s4563]]
        %s4565 = sld [smem:[#allocation7 + %s4563]]
        %s4566 = scalar_lea.vmem %s303, %s4564 [#allocation10]
        %v4567 = vld [vmem:[%s4566] sm:$0x1]
        %4568 = vst.msk [vmem:[#allocation2 + $0x3] sm:$0x1] %vm840, %v4567
        %s4569 = scalar_lea.vmem %s303, %s4565 [#allocation10]
        %v4570 = vld [vmem:[%s4569] sm:$0x1]
        %4572 = vrot.lane.b32.xlu0 %v4570, 32
        %v4573 = vpop.permute.xlu0 %4572
        %4575 = vst.msk [vmem:[#allocation2 + $0x3] sm:$0x1] %vm848, %v4573
        %s4576 = sadd.s32 %s835, 12
        %s4577 = sld [smem:[#allocation6 + %s4576]]
        %s4578 = sld [smem:[#allocation7 + %s4576]]
        %s4579 = scalar_lea.vmem %s303, %s4577 [#allocation10]
        %v4580 = vld [vmem:[%s4579] sm:$0x1]
        %4581 = vst.msk [vmem:[#allocation2 + $0x4] sm:$0x1] %vm840, %v4580
        %s4582 = scalar_lea.vmem %s303, %s4578 [#allocation10]
        %v4583 = vld [vmem:[%s4582] sm:$0x1]
        %4585 = vrot.lane.b32.xlu0 %v4583, 32
        %v4586 = vpop.permute.xlu0 %4585
        %4588 = vst.msk [vmem:[#allocation2 + $0x4] sm:$0x1] %vm848, %v4586
        %s4589 = sadd.s32 %s835, 13
        %s4590 = sld [smem:[#allocation6 + %s4589]]
        %s4591 = sld [smem:[#allocation7 + %s4589]]
        %s4592 = scalar_lea.vmem %s303, %s4590 [#allocation10]
        %v4593 = vld [vmem:[%s4592] sm:$0x1]
        %4594 = vst.msk [vmem:[#allocation2 + $0x5] sm:$0x1] %vm840, %v4593
        %s4595 = scalar_lea.vmem %s303, %s4591 [#allocation10]
        %v4596 = vld [vmem:[%s4595] sm:$0x1]
        %4598 = vrot.lane.b32.xlu0 %v4596, 32
        %v4599 = vpop.permute.xlu0 %4598
        %4601 = vst.msk [vmem:[#allocation2 + $0x5] sm:$0x1] %vm848, %v4599
        %s4602 = sadd.s32 %s835, 14
        %s4603 = sld [smem:[#allocation6 + %s4602]]
        %s4604 = sld [smem:[#allocation7 + %s4602]]
        %s4605 = scalar_lea.vmem %s303, %s4603 [#allocation10]
        %v4606 = vld [vmem:[%s4605] sm:$0x1]
        %4607 = vst.msk [vmem:[#allocation2 + $0x6] sm:$0x1] %vm840, %v4606
        %s4608 = scalar_lea.vmem %s303, %s4604 [#allocation10]
        %v4609 = vld [vmem:[%s4608] sm:$0x1]
        %4611 = vrot.lane.b32.xlu0 %v4609, 32
        %v4612 = vpop.permute.xlu0 %4611
        %4614 = vst.msk [vmem:[#allocation2 + $0x6] sm:$0x1] %vm848, %v4612
        %s4615 = sadd.s32 %s835, 15
        %s4616 = sld [smem:[#allocation6 + %s4615]]
        %s4617 = sld [smem:[#allocation7 + %s4615]]
        %s4618 = scalar_lea.vmem %s303, %s4616 [#allocation10]
        %v4619 = vld [vmem:[%s4618] sm:$0x1]
        %4620 = vst.msk [vmem:[#allocation2 + $0x7] sm:$0x1] %vm840, %v4619
        %s4621 = scalar_lea.vmem %s303, %s4617 [#allocation10]
        %v4622 = vld [vmem:[%s4621] sm:$0x1]
        %4624 = vrot.lane.b32.xlu0 %v4622, 32
        %v4625 = vpop.permute.xlu0 %4624
        %4627 = vst.msk [vmem:[#allocation2 + $0x7] sm:$0x1] %vm848, %v4625
        %v4628 = vld [vmem:[#allocation2] sm:$0xff]
        %v4629 = vperm.slane %v4628, 0
        %v4630 = vlaneseq
        %v4631 = vshrl.u32 %v4630, 7
        %4633 = vset.pattern.permute.xlu0 %v4631
        %4634 = vperm.xlu0 %4633, %v4629
        %v4635 = vpop.permute.xlu0 %4634
        %v4636 = vlaneseq
        %v4637 = vshrl.u32 %v4636, 7
        %v4638 = vadd.s32 %v4637, 8
        %4639 = vset.pattern.permute.xlu0 %v4638
        %4640 = vperm.xlu0 %4639, %v4629
        %v4641 = vpop.permute.xlu0 %4640
        %v4642 = vlaneseq
        %v4643 = vshrl.u32 %v4642, 7
        %v4644 = vadd.s32 %v4643, 16
        %4645 = vset.pattern.permute.xlu0 %v4644
        %4646 = vperm.xlu0 %4645, %v4629
        %v4647 = vpop.permute.xlu0 %4646
        %v4648 = vlaneseq
        %v4649 = vshrl.u32 %v4648, 7
        %v4650 = vadd.s32 %v4649, 24
        %4651 = vset.pattern.permute.xlu0 %v4650
        %4652 = vperm.xlu0 %4651, %v4629
        %v4653 = vpop.permute.xlu0 %4652
        %v4654 = vlaneseq
        %v4655 = vshrl.u32 %v4654, 7
        %v4656 = vadd.s32 %v4655, 32
        %4657 = vset.pattern.permute.xlu0 %v4656
        %4658 = vperm.xlu0 %4657, %v4629
        %v4659 = vpop.permute.xlu0 %4658
        %v4660 = vlaneseq
        %v4661 = vshrl.u32 %v4660, 7
        %v4662 = vadd.s32 %v4661, 40
        %4663 = vset.pattern.permute.xlu0 %v4662
        %4664 = vperm.xlu0 %4663, %v4629
        %v4665 = vpop.permute.xlu0 %4664
        %v4666 = vlaneseq
        %v4667 = vshrl.u32 %v4666, 7
        %v4668 = vadd.s32 %v4667, 48
        %4669 = vset.pattern.permute.xlu0 %v4668
        %4670 = vperm.xlu0 %4669, %v4629
        %v4671 = vpop.permute.xlu0 %4670
        %v4672 = vlaneseq
        %v4673 = vshrl.u32 %v4672, 7
        %v4674 = vadd.s32 %v4673, 56
        %4675 = vset.pattern.permute.xlu0 %v4674
        %4676 = vperm.xlu0 %4675, %v4629
        %v4677 = vpop.permute.xlu0 %4676
        %v4678 = vperm.slane %v4628, 1
        %v4679 = vlaneseq
        %v4680 = vshrl.u32 %v4679, 7
        %4682 = vset.pattern.permute.xlu0 %v4680
        %4683 = vperm.xlu0 %4682, %v4678
        %v4684 = vpop.permute.xlu0 %4683
        %v4685 = vlaneseq
        %v4686 = vshrl.u32 %v4685, 7
        %v4687 = vadd.s32 %v4686, 8
        %4688 = vset.pattern.permute.xlu0 %v4687
        %4689 = vperm.xlu0 %4688, %v4678
        %v4690 = vpop.permute.xlu0 %4689
        %v4691 = vlaneseq
        %v4692 = vshrl.u32 %v4691, 7
        %v4693 = vadd.s32 %v4692, 16
        %4694 = vset.pattern.permute.xlu0 %v4693
        %4695 = vperm.xlu0 %4694, %v4678
        %v4696 = vpop.permute.xlu0 %4695
        %v4697 = vlaneseq
        %v4698 = vshrl.u32 %v4697, 7
        %v4699 = vadd.s32 %v4698, 24
        %4700 = vset.pattern.permute.xlu0 %v4699
        %4701 = vperm.xlu0 %4700, %v4678
        %v4702 = vpop.permute.xlu0 %4701
        %v4703 = vlaneseq
        %v4704 = vshrl.u32 %v4703, 7
        %v4705 = vadd.s32 %v4704, 32
        %4706 = vset.pattern.permute.xlu0 %v4705
        %4707 = vperm.xlu0 %4706, %v4678
        %v4708 = vpop.permute.xlu0 %4707
        %v4709 = vlaneseq
        %v4710 = vshrl.u32 %v4709, 7
        %v4711 = vadd.s32 %v4710, 40
        %4712 = vset.pattern.permute.xlu0 %v4711
        %4713 = vperm.xlu0 %4712, %v4678
        %v4714 = vpop.permute.xlu0 %4713
        %v4715 = vlaneseq
        %v4716 = vshrl.u32 %v4715, 7
        %v4717 = vadd.s32 %v4716, 48
        %4718 = vset.pattern.permute.xlu0 %v4717
        %4719 = vperm.xlu0 %4718, %v4678
        %v4720 = vpop.permute.xlu0 %4719
        %v4721 = vlaneseq
        %v4722 = vshrl.u32 %v4721, 7
        %v4723 = vadd.s32 %v4722, 56
        %4724 = vset.pattern.permute.xlu0 %v4723
        %4725 = vperm.xlu0 %4724, %v4678
        %v4726 = vpop.permute.xlu0 %4725
        %v4727 = vperm.slane %v4628, 2
        %v4728 = vlaneseq
        %v4729 = vshrl.u32 %v4728, 7
        %4731 = vset.pattern.permute.xlu0 %v4729
        %4732 = vperm.xlu0 %4731, %v4727
        %v4733 = vpop.permute.xlu0 %4732
        %v4734 = vlaneseq
        %v4735 = vshrl.u32 %v4734, 7
        %v4736 = vadd.s32 %v4735, 8
        %4737 = vset.pattern.permute.xlu0 %v4736
        %4738 = vperm.xlu0 %4737, %v4727
        %v4739 = vpop.permute.xlu0 %4738
        %v4740 = vlaneseq
        %v4741 = vshrl.u32 %v4740, 7
        %v4742 = vadd.s32 %v4741, 16
        %4743 = vset.pattern.permute.xlu0 %v4742
        %4744 = vperm.xlu0 %4743, %v4727
        %v4745 = vpop.permute.xlu0 %4744
        %v4746 = vlaneseq
        %v4747 = vshrl.u32 %v4746, 7
        %v4748 = vadd.s32 %v4747, 24
        %4749 = vset.pattern.permute.xlu0 %v4748
        %4750 = vperm.xlu0 %4749, %v4727
        %v4751 = vpop.permute.xlu0 %4750
        %v4752 = vlaneseq
        %v4753 = vshrl.u32 %v4752, 7
        %v4754 = vadd.s32 %v4753, 32
        %4755 = vset.pattern.permute.xlu0 %v4754
        %4756 = vperm.xlu0 %4755, %v4727
        %v4757 = vpop.permute.xlu0 %4756
        %v4758 = vlaneseq
        %v4759 = vshrl.u32 %v4758, 7
        %v4760 = vadd.s32 %v4759, 40
        %4761 = vset.pattern.permute.xlu0 %v4760
        %4762 = vperm.xlu0 %4761, %v4727
        %v4763 = vpop.permute.xlu0 %4762
        %v4764 = vlaneseq
        %v4765 = vshrl.u32 %v4764, 7
        %v4766 = vadd.s32 %v4765, 48
        %4767 = vset.pattern.permute.xlu0 %v4766
        %4768 = vperm.xlu0 %4767, %v4727
        %v4769 = vpop.permute.xlu0 %4768
        %v4770 = vlaneseq
        %v4771 = vshrl.u32 %v4770, 7
        %v4772 = vadd.s32 %v4771, 56
        %4773 = vset.pattern.permute.xlu0 %v4772
        %4774 = vperm.xlu0 %4773, %v4727
        %v4775 = vpop.permute.xlu0 %4774
        %v4776 = vperm.slane %v4628, 3
        %v4777 = vlaneseq
        %v4778 = vshrl.u32 %v4777, 7
        %4780 = vset.pattern.permute.xlu0 %v4778
        %4781 = vperm.xlu0 %4780, %v4776
        %v4782 = vpop.permute.xlu0 %4781
        %v4783 = vlaneseq
        %v4784 = vshrl.u32 %v4783, 7
        %v4785 = vadd.s32 %v4784, 8
        %4786 = vset.pattern.permute.xlu0 %v4785
        %4787 = vperm.xlu0 %4786, %v4776
        %v4788 = vpop.permute.xlu0 %4787
        %v4789 = vlaneseq
        %v4790 = vshrl.u32 %v4789, 7
        %v4791 = vadd.s32 %v4790, 16
        %4792 = vset.pattern.permute.xlu0 %v4791
        %4793 = vperm.xlu0 %4792, %v4776
        %v4794 = vpop.permute.xlu0 %4793
        %v4795 = vlaneseq
        %v4796 = vshrl.u32 %v4795, 7
        %v4797 = vadd.s32 %v4796, 24
        %4798 = vset.pattern.permute.xlu0 %v4797
        %4799 = vperm.xlu0 %4798, %v4776
        %v4800 = vpop.permute.xlu0 %4799
        %v4801 = vlaneseq
        %v4802 = vshrl.u32 %v4801, 7
        %v4803 = vadd.s32 %v4802, 32
        %4804 = vset.pattern.permute.xlu0 %v4803
        %4805 = vperm.xlu0 %4804, %v4776
        %v4806 = vpop.permute.xlu0 %4805
        %v4807 = vlaneseq
        %v4808 = vshrl.u32 %v4807, 7
        %v4809 = vadd.s32 %v4808, 40
        %4810 = vset.pattern.permute.xlu0 %v4809
        %4811 = vperm.xlu0 %4810, %v4776
        %v4812 = vpop.permute.xlu0 %4811
        %v4813 = vlaneseq
        %v4814 = vshrl.u32 %v4813, 7
        %v4815 = vadd.s32 %v4814, 48
        %4816 = vset.pattern.permute.xlu0 %v4815
        %4817 = vperm.xlu0 %4816, %v4776
        %v4818 = vpop.permute.xlu0 %4817
        %v4819 = vlaneseq
        %v4820 = vshrl.u32 %v4819, 7
        %v4821 = vadd.s32 %v4820, 56
        %4822 = vset.pattern.permute.xlu0 %v4821
        %4823 = vperm.xlu0 %4822, %v4776
        %v4824 = vpop.permute.xlu0 %4823
        %v4825 = vperm.slane %v4628, 4
        %v4826 = vlaneseq
        %v4827 = vshrl.u32 %v4826, 7
        %4829 = vset.pattern.permute.xlu0 %v4827
        %4830 = vperm.xlu0 %4829, %v4825
        %v4831 = vpop.permute.xlu0 %4830
        %v4832 = vlaneseq
        %v4833 = vshrl.u32 %v4832, 7
        %v4834 = vadd.s32 %v4833, 8
        %4835 = vset.pattern.permute.xlu0 %v4834
        %4836 = vperm.xlu0 %4835, %v4825
        %v4837 = vpop.permute.xlu0 %4836
        %v4838 = vlaneseq
        %v4839 = vshrl.u32 %v4838, 7
        %v4840 = vadd.s32 %v4839, 16
        %4841 = vset.pattern.permute.xlu0 %v4840
        %4842 = vperm.xlu0 %4841, %v4825
        %v4843 = vpop.permute.xlu0 %4842
        %v4844 = vlaneseq
        %v4845 = vshrl.u32 %v4844, 7
        %v4846 = vadd.s32 %v4845, 24
        %4847 = vset.pattern.permute.xlu0 %v4846
        %4848 = vperm.xlu0 %4847, %v4825
        %v4849 = vpop.permute.xlu0 %4848
        %v4850 = vlaneseq
        %v4851 = vshrl.u32 %v4850, 7
        %v4852 = vadd.s32 %v4851, 32
        %4853 = vset.pattern.permute.xlu0 %v4852
        %4854 = vperm.xlu0 %4853, %v4825
        %v4855 = vpop.permute.xlu0 %4854
        %v4856 = vlaneseq
        %v4857 = vshrl.u32 %v4856, 7
        %v4858 = vadd.s32 %v4857, 40
        %4859 = vset.pattern.permute.xlu0 %v4858
        %4860 = vperm.xlu0 %4859, %v4825
        %v4861 = vpop.permute.xlu0 %4860
        %v4862 = vlaneseq
        %v4863 = vshrl.u32 %v4862, 7
        %v4864 = vadd.s32 %v4863, 48
        %4865 = vset.pattern.permute.xlu0 %v4864
        %4866 = vperm.xlu0 %4865, %v4825
        %v4867 = vpop.permute.xlu0 %4866
        %v4868 = vlaneseq
        %v4869 = vshrl.u32 %v4868, 7
        %v4870 = vadd.s32 %v4869, 56
        %4871 = vset.pattern.permute.xlu0 %v4870
        %4872 = vperm.xlu0 %4871, %v4825
        %v4873 = vpop.permute.xlu0 %4872
        %v4874 = vperm.slane %v4628, 5
        %v4875 = vlaneseq
        %v4876 = vshrl.u32 %v4875, 7
        %4878 = vset.pattern.permute.xlu0 %v4876
        %4879 = vperm.xlu0 %4878, %v4874
        %v4880 = vpop.permute.xlu0 %4879
        %v4881 = vlaneseq
        %v4882 = vshrl.u32 %v4881, 7
        %v4883 = vadd.s32 %v4882, 8
        %4884 = vset.pattern.permute.xlu0 %v4883
        %4885 = vperm.xlu0 %4884, %v4874
        %v4886 = vpop.permute.xlu0 %4885
        %v4887 = vlaneseq
        %v4888 = vshrl.u32 %v4887, 7
        %v4889 = vadd.s32 %v4888, 16
        %4890 = vset.pattern.permute.xlu0 %v4889
        %4891 = vperm.xlu0 %4890, %v4874
        %v4892 = vpop.permute.xlu0 %4891
        %v4893 = vlaneseq
        %v4894 = vshrl.u32 %v4893, 7
        %v4895 = vadd.s32 %v4894, 24
        %4896 = vset.pattern.permute.xlu0 %v4895
        %4897 = vperm.xlu0 %4896, %v4874
        %v4898 = vpop.permute.xlu0 %4897
        %v4899 = vlaneseq
        %v4900 = vshrl.u32 %v4899, 7
        %v4901 = vadd.s32 %v4900, 32
        %4902 = vset.pattern.permute.xlu0 %v4901
        %4903 = vperm.xlu0 %4902, %v4874
        %v4904 = vpop.permute.xlu0 %4903
        %v4905 = vlaneseq
        %v4906 = vshrl.u32 %v4905, 7
        %v4907 = vadd.s32 %v4906, 40
        %4908 = vset.pattern.permute.xlu0 %v4907
        %4909 = vperm.xlu0 %4908, %v4874
        %v4910 = vpop.permute.xlu0 %4909
        %v4911 = vlaneseq
        %v4912 = vshrl.u32 %v4911, 7
        %v4913 = vadd.s32 %v4912, 48
        %4914 = vset.pattern.permute.xlu0 %v4913
        %4915 = vperm.xlu0 %4914, %v4874
        %v4916 = vpop.permute.xlu0 %4915
        %v4917 = vlaneseq
        %v4918 = vshrl.u32 %v4917, 7
        %v4919 = vadd.s32 %v4918, 56
        %4920 = vset.pattern.permute.xlu0 %v4919
        %4921 = vperm.xlu0 %4920, %v4874
        %v4922 = vpop.permute.xlu0 %4921
        %v4923 = vperm.slane %v4628, 6
        %v4924 = vlaneseq
        %v4925 = vshrl.u32 %v4924, 7
        %4927 = vset.pattern.permute.xlu0 %v4925
        %4928 = vperm.xlu0 %4927, %v4923
        %v4929 = vpop.permute.xlu0 %4928
        %v4930 = vlaneseq
        %v4931 = vshrl.u32 %v4930, 7
        %v4932 = vadd.s32 %v4931, 8
        %4933 = vset.pattern.permute.xlu0 %v4932
        %4934 = vperm.xlu0 %4933, %v4923
        %v4935 = vpop.permute.xlu0 %4934
        %v4936 = vlaneseq
        %v4937 = vshrl.u32 %v4936, 7
        %v4938 = vadd.s32 %v4937, 16
        %4939 = vset.pattern.permute.xlu0 %v4938
        %4940 = vperm.xlu0 %4939, %v4923
        %v4941 = vpop.permute.xlu0 %4940
        %v4942 = vlaneseq
        %v4943 = vshrl.u32 %v4942, 7
        %v4944 = vadd.s32 %v4943, 24
        %4945 = vset.pattern.permute.xlu0 %v4944
        %4946 = vperm.xlu0 %4945, %v4923
        %v4947 = vpop.permute.xlu0 %4946
        %v4948 = vlaneseq
        %v4949 = vshrl.u32 %v4948, 7
        %v4950 = vadd.s32 %v4949, 32
        %4951 = vset.pattern.permute.xlu0 %v4950
        %4952 = vperm.xlu0 %4951, %v4923
        %v4953 = vpop.permute.xlu0 %4952
        %v4954 = vlaneseq
        %v4955 = vshrl.u32 %v4954, 7
        %v4956 = vadd.s32 %v4955, 40
        %4957 = vset.pattern.permute.xlu0 %v4956
        %4958 = vperm.xlu0 %4957, %v4923
        %v4959 = vpop.permute.xlu0 %4958
        %v4960 = vlaneseq
        %v4961 = vshrl.u32 %v4960, 7
        %v4962 = vadd.s32 %v4961, 48
        %4963 = vset.pattern.permute.xlu0 %v4962
        %4964 = vperm.xlu0 %4963, %v4923
        %v4965 = vpop.permute.xlu0 %4964
        %v4966 = vlaneseq
        %v4967 = vshrl.u32 %v4966, 7
        %v4968 = vadd.s32 %v4967, 56
        %4969 = vset.pattern.permute.xlu0 %v4968
        %4970 = vperm.xlu0 %4969, %v4923
        %v4971 = vpop.permute.xlu0 %4970
        %v4972 = vperm.slane %v4628, 7
        %v4973 = vlaneseq
        %v4974 = vshrl.u32 %v4973, 7
        %4976 = vset.pattern.permute.xlu0 %v4974
        %4977 = vperm.xlu0 %4976, %v4972
        %v4978 = vpop.permute.xlu0 %4977
        %v4979 = vlaneseq
        %v4980 = vshrl.u32 %v4979, 7
        %v4981 = vadd.s32 %v4980, 8
        %4982 = vset.pattern.permute.xlu0 %v4981
        %4983 = vperm.xlu0 %4982, %v4972
        %v4984 = vpop.permute.xlu0 %4983
        %v4985 = vlaneseq
        %v4986 = vshrl.u32 %v4985, 7
        %v4987 = vadd.s32 %v4986, 16
        %4988 = vset.pattern.permute.xlu0 %v4987
        %4989 = vperm.xlu0 %4988, %v4972
        %v4990 = vpop.permute.xlu0 %4989
        %v4991 = vlaneseq
        %v4992 = vshrl.u32 %v4991, 7
        %v4993 = vadd.s32 %v4992, 24
        %4994 = vset.pattern.permute.xlu0 %v4993
        %4995 = vperm.xlu0 %4994, %v4972
        %v4996 = vpop.permute.xlu0 %4995
        %v4997 = vlaneseq
        %v4998 = vshrl.u32 %v4997, 7
        %v4999 = vadd.s32 %v4998, 32
        %5000 = vset.pattern.permute.xlu0 %v4999
        %5001 = vperm.xlu0 %5000, %v4972
        %v5002 = vpop.permute.xlu0 %5001
        %v5003 = vlaneseq
        %v5004 = vshrl.u32 %v5003, 7
        %v5005 = vadd.s32 %v5004, 40
        %5006 = vset.pattern.permute.xlu0 %v5005
        %5007 = vperm.xlu0 %5006, %v4972
        %v5008 = vpop.permute.xlu0 %5007
        %v5009 = vlaneseq
        %v5010 = vshrl.u32 %v5009, 7
        %v5011 = vadd.s32 %v5010, 48
        %5012 = vset.pattern.permute.xlu0 %v5011
        %5013 = vperm.xlu0 %5012, %v4972
        %v5014 = vpop.permute.xlu0 %5013
        %v5015 = vlaneseq
        %v5016 = vshrl.u32 %v5015, 7
        %v5017 = vadd.s32 %v5016, 56
        %5018 = vset.pattern.permute.xlu0 %v5017
        %5019 = vperm.xlu0 %5018, %v4972
        %v5020 = vpop.permute.xlu0 %5019
        %v5022 = vrot.slane %v4628, 1
        %v5023 = vrot.slane %v4628, 2
        %v5024 = vrot.slane %v4628, 3
        %v5025 = vrot.slane %v4628, 4
        %v5026 = vrot.slane %v4628, 5
        %v5027 = vrot.slane %v4628, 6
        %v5028 = vrot.slane %v4628, 7
        %v5029 = vperm.slane %v4628, 0
        %v5030 = vperm.slane %v5022, 0
        %v5031 = vperm.slane %v5023, 0
        %v5032 = vperm.slane %v5024, 0
        %v5033 = vperm.slane %v5025, 0
        %v5034 = vperm.slane %v5026, 0
        %v5035 = vperm.slane %v5027, 0
        %v5036 = vperm.slane %v5028, 0
        %v5045 = vmul.f32 %v4635, %v5029
        %v5046 = vmul.f32 %v4641, %v5029
        %v5047 = vmul.f32 %v4647, %v5029
        %v5048 = vmul.f32 %v4653, %v5029
        %v5049 = vmul.f32 %v4659, %v5029
        %v5050 = vmul.f32 %v4665, %v5029
        %v5051 = vmul.f32 %v4671, %v5029
        %v5052 = vmul.f32 %v4677, %v5029
        %v5053 = vmul.f32 %v4684, %v5030
        %v5054 = vmul.f32 %v4690, %v5030
        %v5055 = vmul.f32 %v4696, %v5030
        %v5056 = vmul.f32 %v4702, %v5030
        %v5057 = vmul.f32 %v4708, %v5030
        %v5058 = vmul.f32 %v4714, %v5030
        %v5059 = vmul.f32 %v4720, %v5030
        %v5060 = vmul.f32 %v4726, %v5030
        %v5061 = vmul.f32 %v4733, %v5031
        %v5062 = vmul.f32 %v4739, %v5031
        %v5063 = vmul.f32 %v4745, %v5031
        %v5064 = vmul.f32 %v4751, %v5031
        %v5065 = vmul.f32 %v4757, %v5031
        %v5066 = vmul.f32 %v4763, %v5031
        %v5067 = vmul.f32 %v4769, %v5031
        %v5068 = vmul.f32 %v4775, %v5031
        %v5069 = vmul.f32 %v4782, %v5032
        %v5070 = vmul.f32 %v4788, %v5032
        %v5071 = vmul.f32 %v4794, %v5032
        %v5072 = vmul.f32 %v4800, %v5032
        %v5073 = vmul.f32 %v4806, %v5032
        %v5074 = vmul.f32 %v4812, %v5032
        %v5075 = vmul.f32 %v4818, %v5032
        %v5076 = vmul.f32 %v4824, %v5032
        %v5077 = vmul.f32 %v4831, %v5033
        %v5078 = vmul.f32 %v4837, %v5033
        %v5079 = vmul.f32 %v4843, %v5033
        %v5080 = vmul.f32 %v4849, %v5033
        %v5081 = vmul.f32 %v4855, %v5033
        %v5082 = vmul.f32 %v4861, %v5033
        %v5083 = vmul.f32 %v4867, %v5033
        %v5084 = vmul.f32 %v4873, %v5033
        %v5085 = vmul.f32 %v4880, %v5034
        %v5086 = vmul.f32 %v4886, %v5034
        %v5087 = vmul.f32 %v4892, %v5034
        %v5088 = vmul.f32 %v4898, %v5034
        %v5089 = vmul.f32 %v4904, %v5034
        %v5090 = vmul.f32 %v4910, %v5034
        %v5091 = vmul.f32 %v4916, %v5034
        %v5092 = vmul.f32 %v4922, %v5034
        %v5093 = vmul.f32 %v4929, %v5035
        %v5094 = vmul.f32 %v4935, %v5035
        %v5095 = vmul.f32 %v4941, %v5035
        %v5096 = vmul.f32 %v4947, %v5035
        %v5097 = vmul.f32 %v4953, %v5035
        %v5098 = vmul.f32 %v4959, %v5035
        %v5099 = vmul.f32 %v4965, %v5035
        %v5100 = vmul.f32 %v4971, %v5035
        %v5101 = vmul.f32 %v4978, %v5036
        %v5102 = vmul.f32 %v4984, %v5036
        %v5103 = vmul.f32 %v4990, %v5036
        %v5104 = vmul.f32 %v4996, %v5036
        %v5105 = vmul.f32 %v5002, %v5036
        %v5106 = vmul.f32 %v5008, %v5036
        %v5107 = vmul.f32 %v5014, %v5036
        %v5108 = vmul.f32 %v5020, %v5036
        %v5109 = vrot.slane %v5061, 4
        %v5110 = vsel %vm1423, %v5109, %v5045
        %v5111 = vrot.slane %v5045, 4
        %v5112 = vsel %vm1423, %v5061, %v5111
        %v5114 = vunpack.c.l.s4 1983009808
        %v5115 = vunpack.c.0.s8 %v5114
        %v5116 = vperm.slane %v5110, %v5115
        %v5118 = vunpack.c.l.s4 1983009808
        %v5119 = vunpack.c.0.s8 %v5118
        %v5120 = vperm.slane %v5112, %v5119
        %v5121 = vrot.slane %v5069, 4
        %v5122 = vsel %vm1423, %v5121, %v5053
        %v5123 = vrot.slane %v5053, 4
        %v5124 = vsel %vm1423, %v5069, %v5123
        %v5126 = vunpack.c.l.s4 1983009808
        %v5127 = vunpack.c.0.s8 %v5126
        %v5128 = vperm.slane %v5122, %v5127
        %v5130 = vunpack.c.l.s4 1983009808
        %v5131 = vunpack.c.0.s8 %v5130
        %v5132 = vperm.slane %v5124, %v5131
        %v5133 = vrot.slane %v5093, 4
        %v5134 = vsel %vm1423, %v5133, %v5077
        %v5135 = vrot.slane %v5077, 4
        %v5136 = vsel %vm1423, %v5093, %v5135
        %v5138 = vunpack.c.l.s4 1983009808
        %v5139 = vunpack.c.0.s8 %v5138
        %v5140 = vperm.slane %v5134, %v5139
        %v5142 = vunpack.c.l.s4 1983009808
        %v5143 = vunpack.c.0.s8 %v5142
        %v5144 = vperm.slane %v5136, %v5143
        %v5145 = vrot.slane %v5101, 4
        %v5146 = vsel %vm1423, %v5145, %v5085
        %v5147 = vrot.slane %v5085, 4
        %v5148 = vsel %vm1423, %v5101, %v5147
        %v5150 = vunpack.c.l.s4 1983009808
        %v5151 = vunpack.c.0.s8 %v5150
        %v5152 = vperm.slane %v5146, %v5151
        %v5154 = vunpack.c.l.s4 1983009808
        %v5155 = vunpack.c.0.s8 %v5154
        %v5156 = vperm.slane %v5148, %v5155
        %v5157 = vrot.slane %v5128, 4
        %v5158 = vsel %vm1423, %v5157, %v5116
        %v5159 = vrot.slane %v5116, 4
        %v5160 = vsel %vm1423, %v5128, %v5159
        %v5162 = vunpack.c.l.s4 1934713408
        %v5163 = vunpack.c.0.s8 %v5162
        %v5164 = vperm.slane %v5158, %v5163
        %v5166 = vunpack.c.l.s4 1934713408
        %v5167 = vunpack.c.0.s8 %v5166
        %v5168 = vperm.slane %v5160, %v5167
        %v5169 = vrot.slane %v5132, 4
        %v5170 = vsel %vm1423, %v5169, %v5120
        %v5171 = vrot.slane %v5120, 4
        %v5172 = vsel %vm1423, %v5132, %v5171
        %v5174 = vunpack.c.l.s4 1934713408
        %v5175 = vunpack.c.0.s8 %v5174
        %v5176 = vperm.slane %v5170, %v5175
        %v5178 = vunpack.c.l.s4 1934713408
        %v5179 = vunpack.c.0.s8 %v5178
        %v5180 = vperm.slane %v5172, %v5179
        %v5181 = vrot.slane %v5152, 4
        %v5182 = vsel %vm1423, %v5181, %v5140
        %v5183 = vrot.slane %v5140, 4
        %v5184 = vsel %vm1423, %v5152, %v5183
        %v5186 = vunpack.c.l.s4 1934713408
        %v5187 = vunpack.c.0.s8 %v5186
        %v5188 = vperm.slane %v5182, %v5187
        %v5190 = vunpack.c.l.s4 1934713408
        %v5191 = vunpack.c.0.s8 %v5190
        %v5192 = vperm.slane %v5184, %v5191
        %v5193 = vrot.slane %v5156, 4
        %v5194 = vsel %vm1423, %v5193, %v5144
        %v5195 = vrot.slane %v5144, 4
        %v5196 = vsel %vm1423, %v5156, %v5195
        %v5198 = vunpack.c.l.s4 1934713408
        %v5199 = vunpack.c.0.s8 %v5198
        %v5200 = vperm.slane %v5194, %v5199
        %v5202 = vunpack.c.l.s4 1934713408
        %v5203 = vunpack.c.0.s8 %v5202
        %v5204 = vperm.slane %v5196, %v5203
        %v5205 = vrot.slane %v5188, 4
        %v5206 = vsel %vm1423, %v5205, %v5164
        %v5207 = vrot.slane %v5164, 4
        %v5208 = vsel %vm1423, %v5188, %v5207
        %v5209 = vrot.slane %v5192, 4
        %v5210 = vsel %vm1423, %v5209, %v5168
        %v5211 = vrot.slane %v5168, 4
        %v5212 = vsel %vm1423, %v5192, %v5211
        %v5213 = vrot.slane %v5200, 4
        %v5214 = vsel %vm1423, %v5213, %v5176
        %v5215 = vrot.slane %v5176, 4
        %v5216 = vsel %vm1423, %v5200, %v5215
        %v5217 = vrot.slane %v5204, 4
        %v5218 = vsel %vm1423, %v5217, %v5180
        %v5219 = vrot.slane %v5180, 4
        %v5220 = vsel %vm1423, %v5204, %v5219
        %v5221 = vrot.slane %v5062, 4
        %v5222 = vsel %vm1423, %v5221, %v5046
        %v5223 = vrot.slane %v5046, 4
        %v5224 = vsel %vm1423, %v5062, %v5223
        %v5226 = vunpack.c.l.s4 1983009808
        %v5227 = vunpack.c.0.s8 %v5226
        %v5228 = vperm.slane %v5222, %v5227
        %v5230 = vunpack.c.l.s4 1983009808
        %v5231 = vunpack.c.0.s8 %v5230
        %v5232 = vperm.slane %v5224, %v5231
        %v5233 = vrot.slane %v5070, 4
        %v5234 = vsel %vm1423, %v5233, %v5054
        %v5235 = vrot.slane %v5054, 4
        %v5236 = vsel %vm1423, %v5070, %v5235
        %v5238 = vunpack.c.l.s4 1983009808
        %v5239 = vunpack.c.0.s8 %v5238
        %v5240 = vperm.slane %v5234, %v5239
        %v5242 = vunpack.c.l.s4 1983009808
        %v5243 = vunpack.c.0.s8 %v5242
        %v5244 = vperm.slane %v5236, %v5243
        %v5245 = vrot.slane %v5094, 4
        %v5246 = vsel %vm1423, %v5245, %v5078
        %v5247 = vrot.slane %v5078, 4
        %v5248 = vsel %vm1423, %v5094, %v5247
        %v5250 = vunpack.c.l.s4 1983009808
        %v5251 = vunpack.c.0.s8 %v5250
        %v5252 = vperm.slane %v5246, %v5251
        %v5254 = vunpack.c.l.s4 1983009808
        %v5255 = vunpack.c.0.s8 %v5254
        %v5256 = vperm.slane %v5248, %v5255
        %v5257 = vrot.slane %v5102, 4
        %v5258 = vsel %vm1423, %v5257, %v5086
        %v5259 = vrot.slane %v5086, 4
        %v5260 = vsel %vm1423, %v5102, %v5259
        %v5262 = vunpack.c.l.s4 1983009808
        %v5263 = vunpack.c.0.s8 %v5262
        %v5264 = vperm.slane %v5258, %v5263
        %v5266 = vunpack.c.l.s4 1983009808
        %v5267 = vunpack.c.0.s8 %v5266
        %v5268 = vperm.slane %v5260, %v5267
        %v5269 = vrot.slane %v5240, 4
        %v5270 = vsel %vm1423, %v5269, %v5228
        %v5271 = vrot.slane %v5228, 4
        %v5272 = vsel %vm1423, %v5240, %v5271
        %v5274 = vunpack.c.l.s4 1934713408
        %v5275 = vunpack.c.0.s8 %v5274
        %v5276 = vperm.slane %v5270, %v5275
        %v5278 = vunpack.c.l.s4 1934713408
        %v5279 = vunpack.c.0.s8 %v5278
        %v5280 = vperm.slane %v5272, %v5279
        %v5281 = vrot.slane %v5244, 4
        %v5282 = vsel %vm1423, %v5281, %v5232
        %v5283 = vrot.slane %v5232, 4
        %v5284 = vsel %vm1423, %v5244, %v5283
        %v5286 = vunpack.c.l.s4 1934713408
        %v5287 = vunpack.c.0.s8 %v5286
        %v5288 = vperm.slane %v5282, %v5287
        %v5290 = vunpack.c.l.s4 1934713408
        %v5291 = vunpack.c.0.s8 %v5290
        %v5292 = vperm.slane %v5284, %v5291
        %v5293 = vrot.slane %v5264, 4
        %v5294 = vsel %vm1423, %v5293, %v5252
        %v5295 = vrot.slane %v5252, 4
        %v5296 = vsel %vm1423, %v5264, %v5295
        %v5298 = vunpack.c.l.s4 1934713408
        %v5299 = vunpack.c.0.s8 %v5298
        %v5300 = vperm.slane %v5294, %v5299
        %v5302 = vunpack.c.l.s4 1934713408
        %v5303 = vunpack.c.0.s8 %v5302
        %v5304 = vperm.slane %v5296, %v5303
        %v5305 = vrot.slane %v5268, 4
        %v5306 = vsel %vm1423, %v5305, %v5256
        %v5307 = vrot.slane %v5256, 4
        %v5308 = vsel %vm1423, %v5268, %v5307
        %v5310 = vunpack.c.l.s4 1934713408
        %v5311 = vunpack.c.0.s8 %v5310
        %v5312 = vperm.slane %v5306, %v5311
        %v5314 = vunpack.c.l.s4 1934713408
        %v5315 = vunpack.c.0.s8 %v5314
        %v5316 = vperm.slane %v5308, %v5315
        %v5317 = vrot.slane %v5300, 4
        %v5318 = vsel %vm1423, %v5317, %v5276
        %v5319 = vrot.slane %v5276, 4
        %v5320 = vsel %vm1423, %v5300, %v5319
        %v5321 = vrot.slane %v5304, 4
        %v5322 = vsel %vm1423, %v5321, %v5280
        %v5323 = vrot.slane %v5280, 4
        %v5324 = vsel %vm1423, %v5304, %v5323
        %v5325 = vrot.slane %v5312, 4
        %v5326 = vsel %vm1423, %v5325, %v5288
        %v5327 = vrot.slane %v5288, 4
        %v5328 = vsel %vm1423, %v5312, %v5327
        %v5329 = vrot.slane %v5316, 4
        %v5330 = vsel %vm1423, %v5329, %v5292
        %v5331 = vrot.slane %v5292, 4
        %v5332 = vsel %vm1423, %v5316, %v5331
        %v5333 = vrot.slane %v5063, 4
        %v5334 = vsel %vm1423, %v5333, %v5047
        %v5335 = vrot.slane %v5047, 4
        %v5336 = vsel %vm1423, %v5063, %v5335
        %v5338 = vunpack.c.l.s4 1983009808
        %v5339 = vunpack.c.0.s8 %v5338
        %v5340 = vperm.slane %v5334, %v5339
        %v5342 = vunpack.c.l.s4 1983009808
        %v5343 = vunpack.c.0.s8 %v5342
        %v5344 = vperm.slane %v5336, %v5343
        %v5345 = vrot.slane %v5071, 4
        %v5346 = vsel %vm1423, %v5345, %v5055
        %v5347 = vrot.slane %v5055, 4
        %v5348 = vsel %vm1423, %v5071, %v5347
        %v5350 = vunpack.c.l.s4 1983009808
        %v5351 = vunpack.c.0.s8 %v5350
        %v5352 = vperm.slane %v5346, %v5351
        %v5354 = vunpack.c.l.s4 1983009808
        %v5355 = vunpack.c.0.s8 %v5354
        %v5356 = vperm.slane %v5348, %v5355
        %v5357 = vrot.slane %v5095, 4
        %v5358 = vsel %vm1423, %v5357, %v5079
        %v5359 = vrot.slane %v5079, 4
        %v5360 = vsel %vm1423, %v5095, %v5359
        %v5362 = vunpack.c.l.s4 1983009808
        %v5363 = vunpack.c.0.s8 %v5362
        %v5364 = vperm.slane %v5358, %v5363
        %v5366 = vunpack.c.l.s4 1983009808
        %v5367 = vunpack.c.0.s8 %v5366
        %v5368 = vperm.slane %v5360, %v5367
        %v5369 = vrot.slane %v5103, 4
        %v5370 = vsel %vm1423, %v5369, %v5087
        %v5371 = vrot.slane %v5087, 4
        %v5372 = vsel %vm1423, %v5103, %v5371
        %v5374 = vunpack.c.l.s4 1983009808
        %v5375 = vunpack.c.0.s8 %v5374
        %v5376 = vperm.slane %v5370, %v5375
        %v5378 = vunpack.c.l.s4 1983009808
        %v5379 = vunpack.c.0.s8 %v5378
        %v5380 = vperm.slane %v5372, %v5379
        %v5381 = vrot.slane %v5352, 4
        %v5382 = vsel %vm1423, %v5381, %v5340
        %v5383 = vrot.slane %v5340, 4
        %v5384 = vsel %vm1423, %v5352, %v5383
        %v5386 = vunpack.c.l.s4 1934713408
        %v5387 = vunpack.c.0.s8 %v5386
        %v5388 = vperm.slane %v5382, %v5387
        %v5390 = vunpack.c.l.s4 1934713408
        %v5391 = vunpack.c.0.s8 %v5390
        %v5392 = vperm.slane %v5384, %v5391
        %v5393 = vrot.slane %v5356, 4
        %v5394 = vsel %vm1423, %v5393, %v5344
        %v5395 = vrot.slane %v5344, 4
        %v5396 = vsel %vm1423, %v5356, %v5395
        %v5398 = vunpack.c.l.s4 1934713408
        %v5399 = vunpack.c.0.s8 %v5398
        %v5400 = vperm.slane %v5394, %v5399
        %v5402 = vunpack.c.l.s4 1934713408
        %v5403 = vunpack.c.0.s8 %v5402
        %v5404 = vperm.slane %v5396, %v5403
        %v5405 = vrot.slane %v5376, 4
        %v5406 = vsel %vm1423, %v5405, %v5364
        %v5407 = vrot.slane %v5364, 4
        %v5408 = vsel %vm1423, %v5376, %v5407
        %v5410 = vunpack.c.l.s4 1934713408
        %v5411 = vunpack.c.0.s8 %v5410
        %v5412 = vperm.slane %v5406, %v5411
        %v5414 = vunpack.c.l.s4 1934713408
        %v5415 = vunpack.c.0.s8 %v5414
        %v5416 = vperm.slane %v5408, %v5415
        %v5417 = vrot.slane %v5380, 4
        %v5418 = vsel %vm1423, %v5417, %v5368
        %v5419 = vrot.slane %v5368, 4
        %v5420 = vsel %vm1423, %v5380, %v5419
        %v5422 = vunpack.c.l.s4 1934713408
        %v5423 = vunpack.c.0.s8 %v5422
        %v5424 = vperm.slane %v5418, %v5423
        %v5426 = vunpack.c.l.s4 1934713408
        %v5427 = vunpack.c.0.s8 %v5426
        %v5428 = vperm.slane %v5420, %v5427
        %v5429 = vrot.slane %v5412, 4
        %v5430 = vsel %vm1423, %v5429, %v5388
        %v5431 = vrot.slane %v5388, 4
        %v5432 = vsel %vm1423, %v5412, %v5431
        %v5433 = vrot.slane %v5416, 4
        %v5434 = vsel %vm1423, %v5433, %v5392
        %v5435 = vrot.slane %v5392, 4
        %v5436 = vsel %vm1423, %v5416, %v5435
        %v5437 = vrot.slane %v5424, 4
        %v5438 = vsel %vm1423, %v5437, %v5400
        %v5439 = vrot.slane %v5400, 4
        %v5440 = vsel %vm1423, %v5424, %v5439
        %v5441 = vrot.slane %v5428, 4
        %v5442 = vsel %vm1423, %v5441, %v5404
        %v5443 = vrot.slane %v5404, 4
        %v5444 = vsel %vm1423, %v5428, %v5443
        %v5445 = vrot.slane %v5064, 4
        %v5446 = vsel %vm1423, %v5445, %v5048
        %v5447 = vrot.slane %v5048, 4
        %v5448 = vsel %vm1423, %v5064, %v5447
        %v5450 = vunpack.c.l.s4 1983009808
        %v5451 = vunpack.c.0.s8 %v5450
        %v5452 = vperm.slane %v5446, %v5451
        %v5454 = vunpack.c.l.s4 1983009808
        %v5455 = vunpack.c.0.s8 %v5454
        %v5456 = vperm.slane %v5448, %v5455
        %v5457 = vrot.slane %v5072, 4
        %v5458 = vsel %vm1423, %v5457, %v5056
        %v5459 = vrot.slane %v5056, 4
        %v5460 = vsel %vm1423, %v5072, %v5459
        %v5462 = vunpack.c.l.s4 1983009808
        %v5463 = vunpack.c.0.s8 %v5462
        %v5464 = vperm.slane %v5458, %v5463
        %v5466 = vunpack.c.l.s4 1983009808
        %v5467 = vunpack.c.0.s8 %v5466
        %v5468 = vperm.slane %v5460, %v5467
        %v5469 = vrot.slane %v5096, 4
        %v5470 = vsel %vm1423, %v5469, %v5080
        %v5471 = vrot.slane %v5080, 4
        %v5472 = vsel %vm1423, %v5096, %v5471
        %v5474 = vunpack.c.l.s4 1983009808
        %v5475 = vunpack.c.0.s8 %v5474
        %v5476 = vperm.slane %v5470, %v5475
        %v5478 = vunpack.c.l.s4 1983009808
        %v5479 = vunpack.c.0.s8 %v5478
        %v5480 = vperm.slane %v5472, %v5479
        %v5481 = vrot.slane %v5104, 4
        %v5482 = vsel %vm1423, %v5481, %v5088
        %v5483 = vrot.slane %v5088, 4
        %v5484 = vsel %vm1423, %v5104, %v5483
        %v5486 = vunpack.c.l.s4 1983009808
        %v5487 = vunpack.c.0.s8 %v5486
        %v5488 = vperm.slane %v5482, %v5487
        %v5490 = vunpack.c.l.s4 1983009808
        %v5491 = vunpack.c.0.s8 %v5490
        %v5492 = vperm.slane %v5484, %v5491
        %v5493 = vrot.slane %v5464, 4
        %v5494 = vsel %vm1423, %v5493, %v5452
        %v5495 = vrot.slane %v5452, 4
        %v5496 = vsel %vm1423, %v5464, %v5495
        %v5498 = vunpack.c.l.s4 1934713408
        %v5499 = vunpack.c.0.s8 %v5498
        %v5500 = vperm.slane %v5494, %v5499
        %v5502 = vunpack.c.l.s4 1934713408
        %v5503 = vunpack.c.0.s8 %v5502
        %v5504 = vperm.slane %v5496, %v5503
        %v5505 = vrot.slane %v5468, 4
        %v5506 = vsel %vm1423, %v5505, %v5456
        %v5507 = vrot.slane %v5456, 4
        %v5508 = vsel %vm1423, %v5468, %v5507
        %v5510 = vunpack.c.l.s4 1934713408
        %v5511 = vunpack.c.0.s8 %v5510
        %v5512 = vperm.slane %v5506, %v5511
        %v5514 = vunpack.c.l.s4 1934713408
        %v5515 = vunpack.c.0.s8 %v5514
        %v5516 = vperm.slane %v5508, %v5515
        %v5517 = vrot.slane %v5488, 4
        %v5518 = vsel %vm1423, %v5517, %v5476
        %v5519 = vrot.slane %v5476, 4
        %v5520 = vsel %vm1423, %v5488, %v5519
        %v5522 = vunpack.c.l.s4 1934713408
        %v5523 = vunpack.c.0.s8 %v5522
        %v5524 = vperm.slane %v5518, %v5523
        %v5526 = vunpack.c.l.s4 1934713408
        %v5527 = vunpack.c.0.s8 %v5526
        %v5528 = vperm.slane %v5520, %v5527
        %v5529 = vrot.slane %v5492, 4
        %v5530 = vsel %vm1423, %v5529, %v5480
        %v5531 = vrot.slane %v5480, 4
        %v5532 = vsel %vm1423, %v5492, %v5531
        %v5534 = vunpack.c.l.s4 1934713408
        %v5535 = vunpack.c.0.s8 %v5534
        %v5536 = vperm.slane %v5530, %v5535
        %v5538 = vunpack.c.l.s4 1934713408
        %v5539 = vunpack.c.0.s8 %v5538
        %v5540 = vperm.slane %v5532, %v5539
        %v5541 = vrot.slane %v5524, 4
        %v5542 = vsel %vm1423, %v5541, %v5500
        %v5543 = vrot.slane %v5500, 4
        %v5544 = vsel %vm1423, %v5524, %v5543
        %v5545 = vrot.slane %v5528, 4
        %v5546 = vsel %vm1423, %v5545, %v5504
        %v5547 = vrot.slane %v5504, 4
        %v5548 = vsel %vm1423, %v5528, %v5547
        %v5549 = vrot.slane %v5536, 4
        %v5550 = vsel %vm1423, %v5549, %v5512
        %v5551 = vrot.slane %v5512, 4
        %v5552 = vsel %vm1423, %v5536, %v5551
        %v5553 = vrot.slane %v5540, 4
        %v5554 = vsel %vm1423, %v5553, %v5516
        %v5555 = vrot.slane %v5516, 4
        %v5556 = vsel %vm1423, %v5540, %v5555
        %v5557 = vrot.slane %v5065, 4
        %v5558 = vsel %vm1423, %v5557, %v5049
        %v5559 = vrot.slane %v5049, 4
        %v5560 = vsel %vm1423, %v5065, %v5559
        %v5562 = vunpack.c.l.s4 1983009808
        %v5563 = vunpack.c.0.s8 %v5562
        %v5564 = vperm.slane %v5558, %v5563
        %v5566 = vunpack.c.l.s4 1983009808
        %v5567 = vunpack.c.0.s8 %v5566
        %v5568 = vperm.slane %v5560, %v5567
        %v5569 = vrot.slane %v5073, 4
        %v5570 = vsel %vm1423, %v5569, %v5057
        %v5571 = vrot.slane %v5057, 4
        %v5572 = vsel %vm1423, %v5073, %v5571
        %v5574 = vunpack.c.l.s4 1983009808
        %v5575 = vunpack.c.0.s8 %v5574
        %v5576 = vperm.slane %v5570, %v5575
        %v5578 = vunpack.c.l.s4 1983009808
        %v5579 = vunpack.c.0.s8 %v5578
        %v5580 = vperm.slane %v5572, %v5579
        %v5581 = vrot.slane %v5097, 4
        %v5582 = vsel %vm1423, %v5581, %v5081
        %v5583 = vrot.slane %v5081, 4
        %v5584 = vsel %vm1423, %v5097, %v5583
        %v5586 = vunpack.c.l.s4 1983009808
        %v5587 = vunpack.c.0.s8 %v5586
        %v5588 = vperm.slane %v5582, %v5587
        %v5590 = vunpack.c.l.s4 1983009808
        %v5591 = vunpack.c.0.s8 %v5590
        %v5592 = vperm.slane %v5584, %v5591
        %v5593 = vrot.slane %v5105, 4
        %v5594 = vsel %vm1423, %v5593, %v5089
        %v5595 = vrot.slane %v5089, 4
        %v5596 = vsel %vm1423, %v5105, %v5595
        %v5598 = vunpack.c.l.s4 1983009808
        %v5599 = vunpack.c.0.s8 %v5598
        %v5600 = vperm.slane %v5594, %v5599
        %v5602 = vunpack.c.l.s4 1983009808
        %v5603 = vunpack.c.0.s8 %v5602
        %v5604 = vperm.slane %v5596, %v5603
        %v5605 = vrot.slane %v5576, 4
        %v5606 = vsel %vm1423, %v5605, %v5564
        %v5607 = vrot.slane %v5564, 4
        %v5608 = vsel %vm1423, %v5576, %v5607
        %v5610 = vunpack.c.l.s4 1934713408
        %v5611 = vunpack.c.0.s8 %v5610
        %v5612 = vperm.slane %v5606, %v5611
        %v5614 = vunpack.c.l.s4 1934713408
        %v5615 = vunpack.c.0.s8 %v5614
        %v5616 = vperm.slane %v5608, %v5615
        %v5617 = vrot.slane %v5580, 4
        %v5618 = vsel %vm1423, %v5617, %v5568
        %v5619 = vrot.slane %v5568, 4
        %v5620 = vsel %vm1423, %v5580, %v5619
        %v5622 = vunpack.c.l.s4 1934713408
        %v5623 = vunpack.c.0.s8 %v5622
        %v5624 = vperm.slane %v5618, %v5623
        %v5626 = vunpack.c.l.s4 1934713408
        %v5627 = vunpack.c.0.s8 %v5626
        %v5628 = vperm.slane %v5620, %v5627
        %v5629 = vrot.slane %v5600, 4
        %v5630 = vsel %vm1423, %v5629, %v5588
        %v5631 = vrot.slane %v5588, 4
        %v5632 = vsel %vm1423, %v5600, %v5631
        %v5634 = vunpack.c.l.s4 1934713408
        %v5635 = vunpack.c.0.s8 %v5634
        %v5636 = vperm.slane %v5630, %v5635
        %v5638 = vunpack.c.l.s4 1934713408
        %v5639 = vunpack.c.0.s8 %v5638
        %v5640 = vperm.slane %v5632, %v5639
        %v5641 = vrot.slane %v5604, 4
        %v5642 = vsel %vm1423, %v5641, %v5592
        %v5643 = vrot.slane %v5592, 4
        %v5644 = vsel %vm1423, %v5604, %v5643
        %v5646 = vunpack.c.l.s4 1934713408
        %v5647 = vunpack.c.0.s8 %v5646
        %v5648 = vperm.slane %v5642, %v5647
        %v5650 = vunpack.c.l.s4 1934713408
        %v5651 = vunpack.c.0.s8 %v5650
        %v5652 = vperm.slane %v5644, %v5651
        %v5653 = vrot.slane %v5636, 4
        %v5654 = vsel %vm1423, %v5653, %v5612
        %v5655 = vrot.slane %v5612, 4
        %v5656 = vsel %vm1423, %v5636, %v5655
        %v5657 = vrot.slane %v5640, 4
        %v5658 = vsel %vm1423, %v5657, %v5616
        %v5659 = vrot.slane %v5616, 4
        %v5660 = vsel %vm1423, %v5640, %v5659
        %v5661 = vrot.slane %v5648, 4
        %v5662 = vsel %vm1423, %v5661, %v5624
        %v5663 = vrot.slane %v5624, 4
        %v5664 = vsel %vm1423, %v5648, %v5663
        %v5665 = vrot.slane %v5652, 4
        %v5666 = vsel %vm1423, %v5665, %v5628
        %v5667 = vrot.slane %v5628, 4
        %v5668 = vsel %vm1423, %v5652, %v5667
        %v5669 = vrot.slane %v5066, 4
        %v5670 = vsel %vm1423, %v5669, %v5050
        %v5671 = vrot.slane %v5050, 4
        %v5672 = vsel %vm1423, %v5066, %v5671
        %v5674 = vunpack.c.l.s4 1983009808
        %v5675 = vunpack.c.0.s8 %v5674
        %v5676 = vperm.slane %v5670, %v5675
        %v5678 = vunpack.c.l.s4 1983009808
        %v5679 = vunpack.c.0.s8 %v5678
        %v5680 = vperm.slane %v5672, %v5679
        %v5681 = vrot.slane %v5074, 4
        %v5682 = vsel %vm1423, %v5681, %v5058
        %v5683 = vrot.slane %v5058, 4
        %v5684 = vsel %vm1423, %v5074, %v5683
        %v5686 = vunpack.c.l.s4 1983009808
        %v5687 = vunpack.c.0.s8 %v5686
        %v5688 = vperm.slane %v5682, %v5687
        %v5690 = vunpack.c.l.s4 1983009808
        %v5691 = vunpack.c.0.s8 %v5690
        %v5692 = vperm.slane %v5684, %v5691
        %v5693 = vrot.slane %v5098, 4
        %v5694 = vsel %vm1423, %v5693, %v5082
        %v5695 = vrot.slane %v5082, 4
        %v5696 = vsel %vm1423, %v5098, %v5695
        %v5698 = vunpack.c.l.s4 1983009808
        %v5699 = vunpack.c.0.s8 %v5698
        %v5700 = vperm.slane %v5694, %v5699
        %v5702 = vunpack.c.l.s4 1983009808
        %v5703 = vunpack.c.0.s8 %v5702
        %v5704 = vperm.slane %v5696, %v5703
        %v5705 = vrot.slane %v5106, 4
        %v5706 = vsel %vm1423, %v5705, %v5090
        %v5707 = vrot.slane %v5090, 4
        %v5708 = vsel %vm1423, %v5106, %v5707
        %v5710 = vunpack.c.l.s4 1983009808
        %v5711 = vunpack.c.0.s8 %v5710
        %v5712 = vperm.slane %v5706, %v5711
        %v5714 = vunpack.c.l.s4 1983009808
        %v5715 = vunpack.c.0.s8 %v5714
        %v5716 = vperm.slane %v5708, %v5715
        %v5717 = vrot.slane %v5688, 4
        %v5718 = vsel %vm1423, %v5717, %v5676
        %v5719 = vrot.slane %v5676, 4
        %v5720 = vsel %vm1423, %v5688, %v5719
        %v5722 = vunpack.c.l.s4 1934713408
        %v5723 = vunpack.c.0.s8 %v5722
        %v5724 = vperm.slane %v5718, %v5723
        %v5726 = vunpack.c.l.s4 1934713408
        %v5727 = vunpack.c.0.s8 %v5726
        %v5728 = vperm.slane %v5720, %v5727
        %v5729 = vrot.slane %v5692, 4
        %v5730 = vsel %vm1423, %v5729, %v5680
        %v5731 = vrot.slane %v5680, 4
        %v5732 = vsel %vm1423, %v5692, %v5731
        %v5734 = vunpack.c.l.s4 1934713408
        %v5735 = vunpack.c.0.s8 %v5734
        %v5736 = vperm.slane %v5730, %v5735
        %v5738 = vunpack.c.l.s4 1934713408
        %v5739 = vunpack.c.0.s8 %v5738
        %v5740 = vperm.slane %v5732, %v5739
        %v5741 = vrot.slane %v5712, 4
        %v5742 = vsel %vm1423, %v5741, %v5700
        %v5743 = vrot.slane %v5700, 4
        %v5744 = vsel %vm1423, %v5712, %v5743
        %v5746 = vunpack.c.l.s4 1934713408
        %v5747 = vunpack.c.0.s8 %v5746
        %v5748 = vperm.slane %v5742, %v5747
        %v5750 = vunpack.c.l.s4 1934713408
        %v5751 = vunpack.c.0.s8 %v5750
        %v5752 = vperm.slane %v5744, %v5751
        %v5753 = vrot.slane %v5716, 4
        %v5754 = vsel %vm1423, %v5753, %v5704
        %v5755 = vrot.slane %v5704, 4
        %v5756 = vsel %vm1423, %v5716, %v5755
        %v5758 = vunpack.c.l.s4 1934713408
        %v5759 = vunpack.c.0.s8 %v5758
        %v5760 = vperm.slane %v5754, %v5759
        %v5762 = vunpack.c.l.s4 1934713408
        %v5763 = vunpack.c.0.s8 %v5762
        %v5764 = vperm.slane %v5756, %v5763
        %v5765 = vrot.slane %v5748, 4
        %v5766 = vsel %vm1423, %v5765, %v5724
        %v5767 = vrot.slane %v5724, 4
        %v5768 = vsel %vm1423, %v5748, %v5767
        %v5769 = vrot.slane %v5752, 4
        %v5770 = vsel %vm1423, %v5769, %v5728
        %v5771 = vrot.slane %v5728, 4
        %v5772 = vsel %vm1423, %v5752, %v5771
        %v5773 = vrot.slane %v5760, 4
        %v5774 = vsel %vm1423, %v5773, %v5736
        %v5775 = vrot.slane %v5736, 4
        %v5776 = vsel %vm1423, %v5760, %v5775
        %v5777 = vrot.slane %v5764, 4
        %v5778 = vsel %vm1423, %v5777, %v5740
        %v5779 = vrot.slane %v5740, 4
        %v5780 = vsel %vm1423, %v5764, %v5779
        %v5781 = vrot.slane %v5067, 4
        %v5782 = vsel %vm1423, %v5781, %v5051
        %v5783 = vrot.slane %v5051, 4
        %v5784 = vsel %vm1423, %v5067, %v5783
        %v5786 = vunpack.c.l.s4 1983009808
        %v5787 = vunpack.c.0.s8 %v5786
        %v5788 = vperm.slane %v5782, %v5787
        %v5790 = vunpack.c.l.s4 1983009808
        %v5791 = vunpack.c.0.s8 %v5790
        %v5792 = vperm.slane %v5784, %v5791
        %v5793 = vrot.slane %v5075, 4
        %v5794 = vsel %vm1423, %v5793, %v5059
        %v5795 = vrot.slane %v5059, 4
        %v5796 = vsel %vm1423, %v5075, %v5795
        %v5798 = vunpack.c.l.s4 1983009808
        %v5799 = vunpack.c.0.s8 %v5798
        %v5800 = vperm.slane %v5794, %v5799
        %v5802 = vunpack.c.l.s4 1983009808
        %v5803 = vunpack.c.0.s8 %v5802
        %v5804 = vperm.slane %v5796, %v5803
        %v5805 = vrot.slane %v5099, 4
        %v5806 = vsel %vm1423, %v5805, %v5083
        %v5807 = vrot.slane %v5083, 4
        %v5808 = vsel %vm1423, %v5099, %v5807
        %v5810 = vunpack.c.l.s4 1983009808
        %v5811 = vunpack.c.0.s8 %v5810
        %v5812 = vperm.slane %v5806, %v5811
        %v5814 = vunpack.c.l.s4 1983009808
        %v5815 = vunpack.c.0.s8 %v5814
        %v5816 = vperm.slane %v5808, %v5815
        %v5817 = vrot.slane %v5107, 4
        %v5818 = vsel %vm1423, %v5817, %v5091
        %v5819 = vrot.slane %v5091, 4
        %v5820 = vsel %vm1423, %v5107, %v5819
        %v5822 = vunpack.c.l.s4 1983009808
        %v5823 = vunpack.c.0.s8 %v5822
        %v5824 = vperm.slane %v5818, %v5823
        %v5826 = vunpack.c.l.s4 1983009808
        %v5827 = vunpack.c.0.s8 %v5826
        %v5828 = vperm.slane %v5820, %v5827
        %v5829 = vrot.slane %v5800, 4
        %v5830 = vsel %vm1423, %v5829, %v5788
        %v5831 = vrot.slane %v5788, 4
        %v5832 = vsel %vm1423, %v5800, %v5831
        %v5834 = vunpack.c.l.s4 1934713408
        %v5835 = vunpack.c.0.s8 %v5834
        %v5836 = vperm.slane %v5830, %v5835
        %v5838 = vunpack.c.l.s4 1934713408
        %v5839 = vunpack.c.0.s8 %v5838
        %v5840 = vperm.slane %v5832, %v5839
        %v5841 = vrot.slane %v5804, 4
        %v5842 = vsel %vm1423, %v5841, %v5792
        %v5843 = vrot.slane %v5792, 4
        %v5844 = vsel %vm1423, %v5804, %v5843
        %v5846 = vunpack.c.l.s4 1934713408
        %v5847 = vunpack.c.0.s8 %v5846
        %v5848 = vperm.slane %v5842, %v5847
        %v5850 = vunpack.c.l.s4 1934713408
        %v5851 = vunpack.c.0.s8 %v5850
        %v5852 = vperm.slane %v5844, %v5851
        %v5853 = vrot.slane %v5824, 4
        %v5854 = vsel %vm1423, %v5853, %v5812
        %v5855 = vrot.slane %v5812, 4
        %v5856 = vsel %vm1423, %v5824, %v5855
        %v5858 = vunpack.c.l.s4 1934713408
        %v5859 = vunpack.c.0.s8 %v5858
        %v5860 = vperm.slane %v5854, %v5859
        %v5862 = vunpack.c.l.s4 1934713408
        %v5863 = vunpack.c.0.s8 %v5862
        %v5864 = vperm.slane %v5856, %v5863
        %v5865 = vrot.slane %v5828, 4
        %v5866 = vsel %vm1423, %v5865, %v5816
        %v5867 = vrot.slane %v5816, 4
        %v5868 = vsel %vm1423, %v5828, %v5867
        %v5870 = vunpack.c.l.s4 1934713408
        %v5871 = vunpack.c.0.s8 %v5870
        %v5872 = vperm.slane %v5866, %v5871
        %v5874 = vunpack.c.l.s4 1934713408
        %v5875 = vunpack.c.0.s8 %v5874
        %v5876 = vperm.slane %v5868, %v5875
        %v5877 = vrot.slane %v5860, 4
        %v5878 = vsel %vm1423, %v5877, %v5836
        %v5879 = vrot.slane %v5836, 4
        %v5880 = vsel %vm1423, %v5860, %v5879
        %v5881 = vrot.slane %v5864, 4
        %v5882 = vsel %vm1423, %v5881, %v5840
        %v5883 = vrot.slane %v5840, 4
        %v5884 = vsel %vm1423, %v5864, %v5883
        %v5885 = vrot.slane %v5872, 4
        %v5886 = vsel %vm1423, %v5885, %v5848
        %v5887 = vrot.slane %v5848, 4
        %v5888 = vsel %vm1423, %v5872, %v5887
        %v5889 = vrot.slane %v5876, 4
        %v5890 = vsel %vm1423, %v5889, %v5852
        %v5891 = vrot.slane %v5852, 4
        %v5892 = vsel %vm1423, %v5876, %v5891
        %v5893 = vrot.slane %v5068, 4
        %v5894 = vsel %vm1423, %v5893, %v5052
        %v5895 = vrot.slane %v5052, 4
        %v5896 = vsel %vm1423, %v5068, %v5895
        %v5898 = vunpack.c.l.s4 1983009808
        %v5899 = vunpack.c.0.s8 %v5898
        %v5900 = vperm.slane %v5894, %v5899
        %v5902 = vunpack.c.l.s4 1983009808
        %v5903 = vunpack.c.0.s8 %v5902
        %v5904 = vperm.slane %v5896, %v5903
        %v5905 = vrot.slane %v5076, 4
        %v5906 = vsel %vm1423, %v5905, %v5060
        %v5907 = vrot.slane %v5060, 4
        %v5908 = vsel %vm1423, %v5076, %v5907
        %v5910 = vunpack.c.l.s4 1983009808
        %v5911 = vunpack.c.0.s8 %v5910
        %v5912 = vperm.slane %v5906, %v5911
        %v5914 = vunpack.c.l.s4 1983009808
        %v5915 = vunpack.c.0.s8 %v5914
        %v5916 = vperm.slane %v5908, %v5915
        %v5917 = vrot.slane %v5100, 4
        %v5918 = vsel %vm1423, %v5917, %v5084
        %v5919 = vrot.slane %v5084, 4
        %v5920 = vsel %vm1423, %v5100, %v5919
        %v5922 = vunpack.c.l.s4 1983009808
        %v5923 = vunpack.c.0.s8 %v5922
        %v5924 = vperm.slane %v5918, %v5923
        %v5926 = vunpack.c.l.s4 1983009808
        %v5927 = vunpack.c.0.s8 %v5926
        %v5928 = vperm.slane %v5920, %v5927
        %v5929 = vrot.slane %v5108, 4
        %v5930 = vsel %vm1423, %v5929, %v5092
        %v5931 = vrot.slane %v5092, 4
        %v5932 = vsel %vm1423, %v5108, %v5931
        %v5934 = vunpack.c.l.s4 1983009808
        %v5935 = vunpack.c.0.s8 %v5934
        %v5936 = vperm.slane %v5930, %v5935
        %v5938 = vunpack.c.l.s4 1983009808
        %v5939 = vunpack.c.0.s8 %v5938
        %v5940 = vperm.slane %v5932, %v5939
        %v5941 = vrot.slane %v5912, 4
        %v5942 = vsel %vm1423, %v5941, %v5900
        %v5943 = vrot.slane %v5900, 4
        %v5944 = vsel %vm1423, %v5912, %v5943
        %v5946 = vunpack.c.l.s4 1934713408
        %v5947 = vunpack.c.0.s8 %v5946
        %v5948 = vperm.slane %v5942, %v5947
        %v5950 = vunpack.c.l.s4 1934713408
        %v5951 = vunpack.c.0.s8 %v5950
        %v5952 = vperm.slane %v5944, %v5951
        %v5953 = vrot.slane %v5916, 4
        %v5954 = vsel %vm1423, %v5953, %v5904
        %v5955 = vrot.slane %v5904, 4
        %v5956 = vsel %vm1423, %v5916, %v5955
        %v5958 = vunpack.c.l.s4 1934713408
        %v5959 = vunpack.c.0.s8 %v5958
        %v5960 = vperm.slane %v5954, %v5959
        %v5962 = vunpack.c.l.s4 1934713408
        %v5963 = vunpack.c.0.s8 %v5962
        %v5964 = vperm.slane %v5956, %v5963
        %v5965 = vrot.slane %v5936, 4
        %v5966 = vsel %vm1423, %v5965, %v5924
        %v5967 = vrot.slane %v5924, 4
        %v5968 = vsel %vm1423, %v5936, %v5967
        %v5970 = vunpack.c.l.s4 1934713408
        %v5971 = vunpack.c.0.s8 %v5970
        %v5972 = vperm.slane %v5966, %v5971
        %v5974 = vunpack.c.l.s4 1934713408
        %v5975 = vunpack.c.0.s8 %v5974
        %v5976 = vperm.slane %v5968, %v5975
        %v5977 = vrot.slane %v5940, 4
        %v5978 = vsel %vm1423, %v5977, %v5928
        %v5979 = vrot.slane %v5928, 4
        %v5980 = vsel %vm1423, %v5940, %v5979
        %v5982 = vunpack.c.l.s4 1934713408
        %v5983 = vunpack.c.0.s8 %v5982
        %v5984 = vperm.slane %v5978, %v5983
        %v5986 = vunpack.c.l.s4 1934713408
        %v5987 = vunpack.c.0.s8 %v5986
        %v5988 = vperm.slane %v5980, %v5987
        %v5989 = vrot.slane %v5972, 4
        %v5990 = vsel %vm1423, %v5989, %v5948
        %v5991 = vrot.slane %v5948, 4
        %v5992 = vsel %vm1423, %v5972, %v5991
        %v5993 = vrot.slane %v5976, 4
        %v5994 = vsel %vm1423, %v5993, %v5952
        %v5995 = vrot.slane %v5952, 4
        %v5996 = vsel %vm1423, %v5976, %v5995
        %v5997 = vrot.slane %v5984, 4
        %v5998 = vsel %vm1423, %v5997, %v5960
        %v5999 = vrot.slane %v5960, 4
        %v6000 = vsel %vm1423, %v5984, %v5999
        %v6001 = vrot.slane %v5988, 4
        %v6002 = vsel %vm1423, %v6001, %v5964
        %v6003 = vrot.slane %v5964, 4
        %v6004 = vsel %vm1423, %v5988, %v6003
        %6006 = vrot.lane.b32.xlu0 %v5208, 64
        %v6007 = vpop.permute.xlu0 %6006
        %6010 = vrot.lane.b32.xlu0 %v5212, 64
        %v6011 = vpop.permute.xlu0 %6010
        %6014 = vrot.lane.b32.xlu0 %v5216, 64
        %v6015 = vpop.permute.xlu0 %6014
        %6018 = vrot.lane.b32.xlu0 %v5220, 64
        %v6019 = vpop.permute.xlu0 %6018
        %6022 = vrot.lane.b32.xlu0 %v5320, 64
        %v6023 = vpop.permute.xlu0 %6022
        %6026 = vrot.lane.b32.xlu0 %v5324, 64
        %v6027 = vpop.permute.xlu0 %6026
        %6030 = vrot.lane.b32.xlu0 %v5328, 64
        %v6031 = vpop.permute.xlu0 %6030
        %6034 = vrot.lane.b32.xlu0 %v5332, 64
        %v6035 = vpop.permute.xlu0 %6034
        %6038 = vrot.lane.b32.xlu0 %v5432, 64
        %v6039 = vpop.permute.xlu0 %6038
        %6042 = vrot.lane.b32.xlu0 %v5436, 64
        %v6043 = vpop.permute.xlu0 %6042
        %6046 = vrot.lane.b32.xlu0 %v5440, 64
        %v6047 = vpop.permute.xlu0 %6046
        %6050 = vrot.lane.b32.xlu0 %v5444, 64
        %v6051 = vpop.permute.xlu0 %6050
        %6054 = vrot.lane.b32.xlu0 %v5544, 64
        %v6055 = vpop.permute.xlu0 %6054
        %6058 = vrot.lane.b32.xlu0 %v5548, 64
        %v6059 = vpop.permute.xlu0 %6058
        %6062 = vrot.lane.b32.xlu0 %v5552, 64
        %v6063 = vpop.permute.xlu0 %6062
        %6066 = vrot.lane.b32.xlu0 %v5556, 64
        %v6067 = vpop.permute.xlu0 %6066
        %6070 = vrot.lane.b32.xlu0 %v5656, 64
        %v6071 = vpop.permute.xlu0 %6070
        %6074 = vrot.lane.b32.xlu0 %v5660, 64
        %v6075 = vpop.permute.xlu0 %6074
        %6078 = vrot.lane.b32.xlu0 %v5664, 64
        %v6079 = vpop.permute.xlu0 %6078
        %6082 = vrot.lane.b32.xlu0 %v5668, 64
        %v6083 = vpop.permute.xlu0 %6082
        %6086 = vrot.lane.b32.xlu0 %v5768, 64
        %v6087 = vpop.permute.xlu0 %6086
        %6090 = vrot.lane.b32.xlu0 %v5772, 64
        %v6091 = vpop.permute.xlu0 %6090
        %6094 = vrot.lane.b32.xlu0 %v5776, 64
        %v6095 = vpop.permute.xlu0 %6094
        %6098 = vrot.lane.b32.xlu0 %v5780, 64
        %v6099 = vpop.permute.xlu0 %6098
        %6102 = vrot.lane.b32.xlu0 %v5880, 64
        %v6103 = vpop.permute.xlu0 %6102
        %6106 = vrot.lane.b32.xlu0 %v5884, 64
        %v6107 = vpop.permute.xlu0 %6106
        %6110 = vrot.lane.b32.xlu0 %v5888, 64
        %v6111 = vpop.permute.xlu0 %6110
        %6114 = vrot.lane.b32.xlu0 %v5892, 64
        %v6115 = vpop.permute.xlu0 %6114
        %6118 = vrot.lane.b32.xlu0 %v5992, 64
        %v6119 = vpop.permute.xlu0 %6118
        %6122 = vrot.lane.b32.xlu0 %v5996, 64
        %v6123 = vpop.permute.xlu0 %6122
        %6126 = vrot.lane.b32.xlu0 %v6000, 64
        %v6127 = vpop.permute.xlu0 %6126
        %6130 = vrot.lane.b32.xlu0 %v6004, 64
        %v6131 = vpop.permute.xlu0 %6130
        %v6133 = vsel %vm2447, %v5206, %v6007
        %v6134 = vsel %vm2447, %v5210, %v6011
        %v6135 = vsel %vm2447, %v5214, %v6015
        %v6136 = vsel %vm2447, %v5218, %v6019
        %v6137 = vsel %vm2447, %v5318, %v6023
        %v6138 = vsel %vm2447, %v5322, %v6027
        %v6139 = vsel %vm2447, %v5326, %v6031
        %v6140 = vsel %vm2447, %v5330, %v6035
        %v6141 = vsel %vm2447, %v5430, %v6039
        %v6142 = vsel %vm2447, %v5434, %v6043
        %v6143 = vsel %vm2447, %v5438, %v6047
        %v6144 = vsel %vm2447, %v5442, %v6051
        %v6145 = vsel %vm2447, %v5542, %v6055
        %v6146 = vsel %vm2447, %v5546, %v6059
        %v6147 = vsel %vm2447, %v5550, %v6063
        %v6148 = vsel %vm2447, %v5554, %v6067
        %v6149 = vsel %vm2447, %v5654, %v6071
        %v6150 = vsel %vm2447, %v5658, %v6075
        %v6151 = vsel %vm2447, %v5662, %v6079
        %v6152 = vsel %vm2447, %v5666, %v6083
        %v6153 = vsel %vm2447, %v5766, %v6087
        %v6154 = vsel %vm2447, %v5770, %v6091
        %v6155 = vsel %vm2447, %v5774, %v6095
        %v6156 = vsel %vm2447, %v5778, %v6099
        %v6157 = vsel %vm2447, %v5878, %v6103
        %v6158 = vsel %vm2447, %v5882, %v6107
        %v6159 = vsel %vm2447, %v5886, %v6111
        %v6160 = vsel %vm2447, %v5890, %v6115
        %v6161 = vsel %vm2447, %v5990, %v6119
        %v6162 = vsel %vm2447, %v5994, %v6123
        %v6163 = vsel %vm2447, %v5998, %v6127
        %v6164 = vsel %vm2447, %v6002, %v6131
        %v6165 = vpack.c.bf16 %v6133, %v6133
        %v6166 = vpack.c.bf16 %v6134, %v6134
        %v6167 = vpack.c.bf16 %v6135, %v6135
        %v6168 = vpack.c.bf16 %v6136, %v6136
        %v6169 = vpack.c.bf16 %v6137, %v6137
        %v6170 = vpack.c.bf16 %v6138, %v6138
        %v6171 = vpack.c.bf16 %v6139, %v6139
        %v6172 = vpack.c.bf16 %v6140, %v6140
        %v6173 = vpack.c.bf16 %v6141, %v6141
        %v6174 = vpack.c.bf16 %v6142, %v6142
        %v6175 = vpack.c.bf16 %v6143, %v6143
        %v6176 = vpack.c.bf16 %v6144, %v6144
        %v6177 = vpack.c.bf16 %v6145, %v6145
        %v6178 = vpack.c.bf16 %v6146, %v6146
        %v6179 = vpack.c.bf16 %v6147, %v6147
        %v6180 = vpack.c.bf16 %v6148, %v6148
        %v6181 = vpack.c.bf16 %v6149, %v6149
        %v6182 = vpack.c.bf16 %v6150, %v6150
        %v6183 = vpack.c.bf16 %v6151, %v6151
        %v6184 = vpack.c.bf16 %v6152, %v6152
        %v6185 = vpack.c.bf16 %v6153, %v6153
        %v6186 = vpack.c.bf16 %v6154, %v6154
        %v6187 = vpack.c.bf16 %v6155, %v6155
        %v6188 = vpack.c.bf16 %v6156, %v6156
        %v6189 = vpack.c.bf16 %v6157, %v6157
        %v6190 = vpack.c.bf16 %v6158, %v6158
        %v6191 = vpack.c.bf16 %v6159, %v6159
        %v6192 = vpack.c.bf16 %v6160, %v6160
        %v6193 = vpack.c.bf16 %v6161, %v6161
        %v6194 = vpack.c.bf16 %v6162, %v6162
        %v6195 = vpack.c.bf16 %v6163, %v6163
        %v6196 = vpack.c.bf16 %v6164, %v6164
        %v6197 = vsel %vm2447, %v4628, 0
        %6199 = vmatpush.msra.mxu0 0.0
        %6200 = vmatpush.msra.mxu0 0.0
        %6201 = vmatpush.msra.mxu0 0.0
        %6202 = vmatpush.msra.mxu0 0.0
        %6203 = vmatpush.msra.mxu0 0.0
        %6204 = vmatpush.msra.mxu0 0.0
        %6205 = vmatpush.msra.mxu0 0.0
        %6206 = vmatpush.msra.mxu0 0.0
        %6207 = vmatpush.msra.mxu0 %v833
        %6208 = vmatpush.msra.mxu0 %v832
        %6209 = vmatpush.msra.mxu0 %v831
        %6210 = vmatpush.msra.mxu0 %v830
        %6211 = vmatpush.msra.mxu0 %v829
        %6212 = vmatpush.msra.mxu0 %v828
        %6213 = vmatpush.msra.mxu0 %v827
        %6214 = vmatpush.msra.mxu0 %v826
        %6215 = vmatmul.f32.gmra.mxu0 %v6197
        %v6216 = vpop.f32.mrf.mxu0
        %v6217 = vadd.f32 0.0, %v6216
        %6218 = vdwg.mxu0
        %6219 = vmatpush.bf16.msra.mxu0 %v3565
        %6220 = vmatpush.bf16.msra.mxu0 %v3564
        %6221 = vmatpush.bf16.msra.mxu0 %v3563
        %6222 = vmatpush.bf16.msra.mxu0 %v3562
        %6223 = vmatpush.bf16.msra.mxu0 %v3561
        %6224 = vmatpush.bf16.msra.mxu0 %v3560
        %6225 = vmatpush.bf16.msra.mxu0 %v3559
        %6226 = vmatpush.bf16.msra.mxu0 %v3558
        %6227 = vmatmul.bf16.gmra.mxu0 %v6165
        %v6228 = vpop.f32.mrf.mxu0
        %v6229 = vadd.f32 %v6217, %v6228
        %v6230 = vpop.f32.mrf.mxu0
        %6231 = vdwg.mxu0
        %6232 = vmatpush.bf16.msra.mxu0 %v3573
        %6233 = vmatpush.bf16.msra.mxu0 %v3572
        %6234 = vmatpush.bf16.msra.mxu0 %v3571
        %6235 = vmatpush.bf16.msra.mxu0 %v3570
        %6236 = vmatpush.bf16.msra.mxu0 %v3569
        %6237 = vmatpush.bf16.msra.mxu0 %v3568
        %6238 = vmatpush.bf16.msra.mxu0 %v3567
        %6239 = vmatpush.bf16.msra.mxu0 %v3566
        %6240 = vmatmul.bf16.gmra.mxu0 %v6166
        %v6241 = vpop.f32.mrf.mxu0
        %v6242 = vadd.f32 %v6229, %v6241
        %v6243 = vpop.f32.mrf.mxu0
        %6244 = vdwg.mxu0
        %6245 = vmatpush.bf16.msra.mxu0 %v3581
        %6246 = vmatpush.bf16.msra.mxu0 %v3580
        %6247 = vmatpush.bf16.msra.mxu0 %v3579
        %6248 = vmatpush.bf16.msra.mxu0 %v3578
        %6249 = vmatpush.bf16.msra.mxu0 %v3577
        %6250 = vmatpush.bf16.msra.mxu0 %v3576
        %6251 = vmatpush.bf16.msra.mxu0 %v3575
        %6252 = vmatpush.bf16.msra.mxu0 %v3574
        %6253 = vmatmul.bf16.gmra.mxu0 %v6167
        %v6254 = vpop.f32.mrf.mxu0
        %v6255 = vadd.f32 %v6242, %v6254
        %v6256 = vpop.f32.mrf.mxu0
        %6257 = vdwg.mxu0
        %6258 = vmatpush.bf16.msra.mxu0 %v3589
        %6259 = vmatpush.bf16.msra.mxu0 %v3588
        %6260 = vmatpush.bf16.msra.mxu0 %v3587
        %6261 = vmatpush.bf16.msra.mxu0 %v3586
        %6262 = vmatpush.bf16.msra.mxu0 %v3585
        %6263 = vmatpush.bf16.msra.mxu0 %v3584
        %6264 = vmatpush.bf16.msra.mxu0 %v3583
        %6265 = vmatpush.bf16.msra.mxu0 %v3582
        %6266 = vmatmul.bf16.gmra.mxu0 %v6168
        %v6267 = vpop.f32.mrf.mxu0
        %v6268 = vadd.f32 %v6255, %v6267
        %v6269 = vpop.f32.mrf.mxu0
        %6270 = vdwg.mxu0
        %6271 = vmatpush.bf16.msra.mxu0 %v3597
        %6272 = vmatpush.bf16.msra.mxu0 %v3596
        %6273 = vmatpush.bf16.msra.mxu0 %v3595
        %6274 = vmatpush.bf16.msra.mxu0 %v3594
        %6275 = vmatpush.bf16.msra.mxu0 %v3593
        %6276 = vmatpush.bf16.msra.mxu0 %v3592
        %6277 = vmatpush.bf16.msra.mxu0 %v3591
        %6278 = vmatpush.bf16.msra.mxu0 %v3590
        %6279 = vmatmul.bf16.gmra.mxu0 %v6169
        %v6280 = vpop.f32.mrf.mxu0
        %v6281 = vadd.f32 %v6268, %v6280
        %v6282 = vpop.f32.mrf.mxu0
        %6283 = vdwg.mxu0
        %6284 = vmatpush.bf16.msra.mxu0 %v3605
        %6285 = vmatpush.bf16.msra.mxu0 %v3604
        %6286 = vmatpush.bf16.msra.mxu0 %v3603
        %6287 = vmatpush.bf16.msra.mxu0 %v3602
        %6288 = vmatpush.bf16.msra.mxu0 %v3601
        %6289 = vmatpush.bf16.msra.mxu0 %v3600
        %6290 = vmatpush.bf16.msra.mxu0 %v3599
        %6291 = vmatpush.bf16.msra.mxu0 %v3598
        %6292 = vmatmul.bf16.gmra.mxu0 %v6170
        %v6293 = vpop.f32.mrf.mxu0
        %v6294 = vadd.f32 %v6281, %v6293
        %v6295 = vpop.f32.mrf.mxu0
        %6296 = vdwg.mxu0
        %6297 = vmatpush.bf16.msra.mxu0 %v3613
        %6298 = vmatpush.bf16.msra.mxu0 %v3612
        %6299 = vmatpush.bf16.msra.mxu0 %v3611
        %6300 = vmatpush.bf16.msra.mxu0 %v3610
        %6301 = vmatpush.bf16.msra.mxu0 %v3609
        %6302 = vmatpush.bf16.msra.mxu0 %v3608
        %6303 = vmatpush.bf16.msra.mxu0 %v3607
        %6304 = vmatpush.bf16.msra.mxu0 %v3606
        %6305 = vmatmul.bf16.gmra.mxu0 %v6171
        %v6306 = vpop.f32.mrf.mxu0
        %v6307 = vadd.f32 %v6294, %v6306
        %v6308 = vpop.f32.mrf.mxu0
        %6309 = vdwg.mxu0
        %6310 = vmatpush.bf16.msra.mxu0 %v3621
        %6311 = vmatpush.bf16.msra.mxu0 %v3620
        %6312 = vmatpush.bf16.msra.mxu0 %v3619
        %6313 = vmatpush.bf16.msra.mxu0 %v3618
        %6314 = vmatpush.bf16.msra.mxu0 %v3617
        %6315 = vmatpush.bf16.msra.mxu0 %v3616
        %6316 = vmatpush.bf16.msra.mxu0 %v3615
        %6317 = vmatpush.bf16.msra.mxu0 %v3614
        %6318 = vmatmul.bf16.gmra.mxu0 %v6172
        %v6319 = vpop.f32.mrf.mxu0
        %v6320 = vadd.f32 %v6307, %v6319
        %v6321 = vpop.f32.mrf.mxu0
        %6322 = vdwg.mxu0
        %6323 = vmatpush.bf16.msra.mxu0 %v3629
        %6324 = vmatpush.bf16.msra.mxu0 %v3628
        %6325 = vmatpush.bf16.msra.mxu0 %v3627
        %6326 = vmatpush.bf16.msra.mxu0 %v3626
        %6327 = vmatpush.bf16.msra.mxu0 %v3625
        %6328 = vmatpush.bf16.msra.mxu0 %v3624
        %6329 = vmatpush.bf16.msra.mxu0 %v3623
        %6330 = vmatpush.bf16.msra.mxu0 %v3622
        %6331 = vmatmul.bf16.gmra.mxu0 %v6173
        %v6332 = vpop.f32.mrf.mxu0
        %v6333 = vadd.f32 %v6320, %v6332
        %v6334 = vpop.f32.mrf.mxu0
        %6335 = vdwg.mxu0
        %6336 = vmatpush.bf16.msra.mxu0 %v3637
        %6337 = vmatpush.bf16.msra.mxu0 %v3636
        %6338 = vmatpush.bf16.msra.mxu0 %v3635
        %6339 = vmatpush.bf16.msra.mxu0 %v3634
        %6340 = vmatpush.bf16.msra.mxu0 %v3633
        %6341 = vmatpush.bf16.msra.mxu0 %v3632
        %6342 = vmatpush.bf16.msra.mxu0 %v3631
        %6343 = vmatpush.bf16.msra.mxu0 %v3630
        %6344 = vmatmul.bf16.gmra.mxu0 %v6174
        %v6345 = vpop.f32.mrf.mxu0
        %v6346 = vadd.f32 %v6333, %v6345
        %v6347 = vpop.f32.mrf.mxu0
        %6348 = vdwg.mxu0
        %6349 = vmatpush.bf16.msra.mxu0 %v3645
        %6350 = vmatpush.bf16.msra.mxu0 %v3644
        %6351 = vmatpush.bf16.msra.mxu0 %v3643
        %6352 = vmatpush.bf16.msra.mxu0 %v3642
        %6353 = vmatpush.bf16.msra.mxu0 %v3641
        %6354 = vmatpush.bf16.msra.mxu0 %v3640
        %6355 = vmatpush.bf16.msra.mxu0 %v3639
        %6356 = vmatpush.bf16.msra.mxu0 %v3638
        %6357 = vmatmul.bf16.gmra.mxu0 %v6175
        %v6358 = vpop.f32.mrf.mxu0
        %v6359 = vadd.f32 %v6346, %v6358
        %v6360 = vpop.f32.mrf.mxu0
        %6361 = vdwg.mxu0
        %6362 = vmatpush.bf16.msra.mxu0 %v3653
        %6363 = vmatpush.bf16.msra.mxu0 %v3652
        %6364 = vmatpush.bf16.msra.mxu0 %v3651
        %6365 = vmatpush.bf16.msra.mxu0 %v3650
        %6366 = vmatpush.bf16.msra.mxu0 %v3649
        %6367 = vmatpush.bf16.msra.mxu0 %v3648
        %6368 = vmatpush.bf16.msra.mxu0 %v3647
        %6369 = vmatpush.bf16.msra.mxu0 %v3646
        %6370 = vmatmul.bf16.gmra.mxu0 %v6176
        %v6371 = vpop.f32.mrf.mxu0
        %v6372 = vadd.f32 %v6359, %v6371
        %v6373 = vpop.f32.mrf.mxu0
        %6374 = vdwg.mxu0
        %6375 = vmatpush.bf16.msra.mxu0 %v3661
        %6376 = vmatpush.bf16.msra.mxu0 %v3660
        %6377 = vmatpush.bf16.msra.mxu0 %v3659
        %6378 = vmatpush.bf16.msra.mxu0 %v3658
        %6379 = vmatpush.bf16.msra.mxu0 %v3657
        %6380 = vmatpush.bf16.msra.mxu0 %v3656
        %6381 = vmatpush.bf16.msra.mxu0 %v3655
        %6382 = vmatpush.bf16.msra.mxu0 %v3654
        %6383 = vmatmul.bf16.gmra.mxu0 %v6177
        %v6384 = vpop.f32.mrf.mxu0
        %v6385 = vadd.f32 %v6372, %v6384
        %v6386 = vpop.f32.mrf.mxu0
        %6387 = vdwg.mxu0
        %6388 = vmatpush.bf16.msra.mxu0 %v3669
        %6389 = vmatpush.bf16.msra.mxu0 %v3668
        %6390 = vmatpush.bf16.msra.mxu0 %v3667
        %6391 = vmatpush.bf16.msra.mxu0 %v3666
        %6392 = vmatpush.bf16.msra.mxu0 %v3665
        %6393 = vmatpush.bf16.msra.mxu0 %v3664
        %6394 = vmatpush.bf16.msra.mxu0 %v3663
        %6395 = vmatpush.bf16.msra.mxu0 %v3662
        %6396 = vmatmul.bf16.gmra.mxu0 %v6178
        %v6397 = vpop.f32.mrf.mxu0
        %v6398 = vadd.f32 %v6385, %v6397
        %v6399 = vpop.f32.mrf.mxu0
        %6400 = vdwg.mxu0
        %6401 = vmatpush.bf16.msra.mxu0 %v3677
        %6402 = vmatpush.bf16.msra.mxu0 %v3676
        %6403 = vmatpush.bf16.msra.mxu0 %v3675
        %6404 = vmatpush.bf16.msra.mxu0 %v3674
        %6405 = vmatpush.bf16.msra.mxu0 %v3673
        %6406 = vmatpush.bf16.msra.mxu0 %v3672
        %6407 = vmatpush.bf16.msra.mxu0 %v3671
        %6408 = vmatpush.bf16.msra.mxu0 %v3670
        %6409 = vmatmul.bf16.gmra.mxu0 %v6179
        %v6410 = vpop.f32.mrf.mxu0
        %v6411 = vadd.f32 %v6398, %v6410
        %v6412 = vpop.f32.mrf.mxu0
        %6413 = vdwg.mxu0
        %6414 = vmatpush.bf16.msra.mxu0 %v3685
        %6415 = vmatpush.bf16.msra.mxu0 %v3684
        %6416 = vmatpush.bf16.msra.mxu0 %v3683
        %6417 = vmatpush.bf16.msra.mxu0 %v3682
        %6418 = vmatpush.bf16.msra.mxu0 %v3681
        %6419 = vmatpush.bf16.msra.mxu0 %v3680
        %6420 = vmatpush.bf16.msra.mxu0 %v3679
        %6421 = vmatpush.bf16.msra.mxu0 %v3678
        %6422 = vmatmul.bf16.gmra.mxu0 %v6180
        %v6423 = vpop.f32.mrf.mxu0
        %v6424 = vadd.f32 %v6411, %v6423
        %v6425 = vpop.f32.mrf.mxu0
        %6426 = vdwg.mxu0
        %6427 = vmatpush.bf16.msra.mxu0 %v3693
        %6428 = vmatpush.bf16.msra.mxu0 %v3692
        %6429 = vmatpush.bf16.msra.mxu0 %v3691
        %6430 = vmatpush.bf16.msra.mxu0 %v3690
        %6431 = vmatpush.bf16.msra.mxu0 %v3689
        %6432 = vmatpush.bf16.msra.mxu0 %v3688
        %6433 = vmatpush.bf16.msra.mxu0 %v3687
        %6434 = vmatpush.bf16.msra.mxu0 %v3686
        %6435 = vmatmul.bf16.gmra.mxu0 %v6181
        %v6436 = vpop.f32.mrf.mxu0
        %v6437 = vadd.f32 %v6424, %v6436
        %v6438 = vpop.f32.mrf.mxu0
        %6439 = vdwg.mxu0
        %6440 = vmatpush.bf16.msra.mxu0 %v3701
        %6441 = vmatpush.bf16.msra.mxu0 %v3700
        %6442 = vmatpush.bf16.msra.mxu0 %v3699
        %6443 = vmatpush.bf16.msra.mxu0 %v3698
        %6444 = vmatpush.bf16.msra.mxu0 %v3697
        %6445 = vmatpush.bf16.msra.mxu0 %v3696
        %6446 = vmatpush.bf16.msra.mxu0 %v3695
        %6447 = vmatpush.bf16.msra.mxu0 %v3694
        %6448 = vmatmul.bf16.gmra.mxu0 %v6182
        %v6449 = vpop.f32.mrf.mxu0
        %v6450 = vadd.f32 %v6437, %v6449
        %v6451 = vpop.f32.mrf.mxu0
        %6452 = vdwg.mxu0
        %6453 = vmatpush.bf16.msra.mxu0 %v3709
        %6454 = vmatpush.bf16.msra.mxu0 %v3708
        %6455 = vmatpush.bf16.msra.mxu0 %v3707
        %6456 = vmatpush.bf16.msra.mxu0 %v3706
        %6457 = vmatpush.bf16.msra.mxu0 %v3705
        %6458 = vmatpush.bf16.msra.mxu0 %v3704
        %6459 = vmatpush.bf16.msra.mxu0 %v3703
        %6460 = vmatpush.bf16.msra.mxu0 %v3702
        %6461 = vmatmul.bf16.gmra.mxu0 %v6183
        %v6462 = vpop.f32.mrf.mxu0
        %v6463 = vadd.f32 %v6450, %v6462
        %v6464 = vpop.f32.mrf.mxu0
        %6465 = vdwg.mxu0
        %6466 = vmatpush.bf16.msra.mxu0 %v3717
        %6467 = vmatpush.bf16.msra.mxu0 %v3716
        %6468 = vmatpush.bf16.msra.mxu0 %v3715
        %6469 = vmatpush.bf16.msra.mxu0 %v3714
        %6470 = vmatpush.bf16.msra.mxu0 %v3713
        %6471 = vmatpush.bf16.msra.mxu0 %v3712
        %6472 = vmatpush.bf16.msra.mxu0 %v3711
        %6473 = vmatpush.bf16.msra.mxu0 %v3710
        %6474 = vmatmul.bf16.gmra.mxu0 %v6184
        %v6475 = vpop.f32.mrf.mxu0
        %v6476 = vadd.f32 %v6463, %v6475
        %v6477 = vpop.f32.mrf.mxu0
        %6478 = vdwg.mxu0
        %6479 = vmatpush.bf16.msra.mxu0 %v3725
        %6480 = vmatpush.bf16.msra.mxu0 %v3724
        %6481 = vmatpush.bf16.msra.mxu0 %v3723
        %6482 = vmatpush.bf16.msra.mxu0 %v3722
        %6483 = vmatpush.bf16.msra.mxu0 %v3721
        %6484 = vmatpush.bf16.msra.mxu0 %v3720
        %6485 = vmatpush.bf16.msra.mxu0 %v3719
        %6486 = vmatpush.bf16.msra.mxu0 %v3718
        %6487 = vmatmul.bf16.gmra.mxu0 %v6185
        %v6488 = vpop.f32.mrf.mxu0
        %v6489 = vadd.f32 %v6476, %v6488
        %v6490 = vpop.f32.mrf.mxu0
        %6491 = vdwg.mxu0
        %6492 = vmatpush.bf16.msra.mxu0 %v3733
        %6493 = vmatpush.bf16.msra.mxu0 %v3732
        %6494 = vmatpush.bf16.msra.mxu0 %v3731
        %6495 = vmatpush.bf16.msra.mxu0 %v3730
        %6496 = vmatpush.bf16.msra.mxu0 %v3729
        %6497 = vmatpush.bf16.msra.mxu0 %v3728
        %6498 = vmatpush.bf16.msra.mxu0 %v3727
        %6499 = vmatpush.bf16.msra.mxu0 %v3726
        %6500 = vmatmul.bf16.gmra.mxu0 %v6186
        %v6501 = vpop.f32.mrf.mxu0
        %v6502 = vadd.f32 %v6489, %v6501
        %v6503 = vpop.f32.mrf.mxu0
        %6504 = vdwg.mxu0
        %6505 = vmatpush.bf16.msra.mxu0 %v3741
        %6506 = vmatpush.bf16.msra.mxu0 %v3740
        %6507 = vmatpush.bf16.msra.mxu0 %v3739
        %6508 = vmatpush.bf16.msra.mxu0 %v3738
        %6509 = vmatpush.bf16.msra.mxu0 %v3737
        %6510 = vmatpush.bf16.msra.mxu0 %v3736
        %6511 = vmatpush.bf16.msra.mxu0 %v3735
        %6512 = vmatpush.bf16.msra.mxu0 %v3734
        %6513 = vmatmul.bf16.gmra.mxu0 %v6187
        %v6514 = vpop.f32.mrf.mxu0
        %v6515 = vadd.f32 %v6502, %v6514
        %v6516 = vpop.f32.mrf.mxu0
        %6517 = vdwg.mxu0
        %6518 = vmatpush.bf16.msra.mxu0 %v3749
        %6519 = vmatpush.bf16.msra.mxu0 %v3748
        %6520 = vmatpush.bf16.msra.mxu0 %v3747
        %6521 = vmatpush.bf16.msra.mxu0 %v3746
        %6522 = vmatpush.bf16.msra.mxu0 %v3745
        %6523 = vmatpush.bf16.msra.mxu0 %v3744
        %6524 = vmatpush.bf16.msra.mxu0 %v3743
        %6525 = vmatpush.bf16.msra.mxu0 %v3742
        %6526 = vmatmul.bf16.gmra.mxu0 %v6188
        %v6527 = vpop.f32.mrf.mxu0
        %v6528 = vadd.f32 %v6515, %v6527
        %v6529 = vpop.f32.mrf.mxu0
        %6530 = vdwg.mxu0
        %6531 = vmatpush.bf16.msra.mxu0 %v3757
        %6532 = vmatpush.bf16.msra.mxu0 %v3756
        %6533 = vmatpush.bf16.msra.mxu0 %v3755
        %6534 = vmatpush.bf16.msra.mxu0 %v3754
        %6535 = vmatpush.bf16.msra.mxu0 %v3753
        %6536 = vmatpush.bf16.msra.mxu0 %v3752
        %6537 = vmatpush.bf16.msra.mxu0 %v3751
        %6538 = vmatpush.bf16.msra.mxu0 %v3750
        %6539 = vmatmul.bf16.gmra.mxu0 %v6189
        %v6540 = vpop.f32.mrf.mxu0
        %v6541 = vadd.f32 %v6528, %v6540
        %v6542 = vpop.f32.mrf.mxu0
        %6543 = vdwg.mxu0
        %6544 = vmatpush.bf16.msra.mxu0 %v3765
        %6545 = vmatpush.bf16.msra.mxu0 %v3764
        %6546 = vmatpush.bf16.msra.mxu0 %v3763
        %6547 = vmatpush.bf16.msra.mxu0 %v3762
        %6548 = vmatpush.bf16.msra.mxu0 %v3761
        %6549 = vmatpush.bf16.msra.mxu0 %v3760
        %6550 = vmatpush.bf16.msra.mxu0 %v3759
        %6551 = vmatpush.bf16.msra.mxu0 %v3758
        %6552 = vmatmul.bf16.gmra.mxu0 %v6190
        %v6553 = vpop.f32.mrf.mxu0
        %v6554 = vadd.f32 %v6541, %v6553
        %v6555 = vpop.f32.mrf.mxu0
        %6556 = vdwg.mxu0
        %6557 = vmatpush.bf16.msra.mxu0 %v3773
        %6558 = vmatpush.bf16.msra.mxu0 %v3772
        %6559 = vmatpush.bf16.msra.mxu0 %v3771
        %6560 = vmatpush.bf16.msra.mxu0 %v3770
        %6561 = vmatpush.bf16.msra.mxu0 %v3769
        %6562 = vmatpush.bf16.msra.mxu0 %v3768
        %6563 = vmatpush.bf16.msra.mxu0 %v3767
        %6564 = vmatpush.bf16.msra.mxu0 %v3766
        %6565 = vmatmul.bf16.gmra.mxu0 %v6191
        %v6566 = vpop.f32.mrf.mxu0
        %v6567 = vadd.f32 %v6554, %v6566
        %v6568 = vpop.f32.mrf.mxu0
        %6569 = vdwg.mxu0
        %6570 = vmatpush.bf16.msra.mxu0 %v3781
        %6571 = vmatpush.bf16.msra.mxu0 %v3780
        %6572 = vmatpush.bf16.msra.mxu0 %v3779
        %6573 = vmatpush.bf16.msra.mxu0 %v3778
        %6574 = vmatpush.bf16.msra.mxu0 %v3777
        %6575 = vmatpush.bf16.msra.mxu0 %v3776
        %6576 = vmatpush.bf16.msra.mxu0 %v3775
        %6577 = vmatpush.bf16.msra.mxu0 %v3774
        %6578 = vmatmul.bf16.gmra.mxu0 %v6192
        %v6579 = vpop.f32.mrf.mxu0
        %v6580 = vadd.f32 %v6567, %v6579
        %v6581 = vpop.f32.mrf.mxu0
        %6582 = vdwg.mxu0
        %6583 = vmatpush.bf16.msra.mxu0 %v3789
        %6584 = vmatpush.bf16.msra.mxu0 %v3788
        %6585 = vmatpush.bf16.msra.mxu0 %v3787
        %6586 = vmatpush.bf16.msra.mxu0 %v3786
        %6587 = vmatpush.bf16.msra.mxu0 %v3785
        %6588 = vmatpush.bf16.msra.mxu0 %v3784
        %6589 = vmatpush.bf16.msra.mxu0 %v3783
        %6590 = vmatpush.bf16.msra.mxu0 %v3782
        %6591 = vmatmul.bf16.gmra.mxu0 %v6193
        %v6592 = vpop.f32.mrf.mxu0
        %v6593 = vadd.f32 %v6580, %v6592
        %v6594 = vpop.f32.mrf.mxu0
        %6595 = vdwg.mxu0
        %6596 = vmatpush.bf16.msra.mxu0 %v3797
        %6597 = vmatpush.bf16.msra.mxu0 %v3796
        %6598 = vmatpush.bf16.msra.mxu0 %v3795
        %6599 = vmatpush.bf16.msra.mxu0 %v3794
        %6600 = vmatpush.bf16.msra.mxu0 %v3793
        %6601 = vmatpush.bf16.msra.mxu0 %v3792
        %6602 = vmatpush.bf16.msra.mxu0 %v3791
        %6603 = vmatpush.bf16.msra.mxu0 %v3790
        %6604 = vmatmul.bf16.gmra.mxu0 %v6194
        %v6605 = vpop.f32.mrf.mxu0
        %v6606 = vadd.f32 %v6593, %v6605
        %v6607 = vpop.f32.mrf.mxu0
        %6608 = vdwg.mxu0
        %6609 = vmatpush.bf16.msra.mxu0 %v3805
        %6610 = vmatpush.bf16.msra.mxu0 %v3804
        %6611 = vmatpush.bf16.msra.mxu0 %v3803
        %6612 = vmatpush.bf16.msra.mxu0 %v3802
        %6613 = vmatpush.bf16.msra.mxu0 %v3801
        %6614 = vmatpush.bf16.msra.mxu0 %v3800
        %6615 = vmatpush.bf16.msra.mxu0 %v3799
        %6616 = vmatpush.bf16.msra.mxu0 %v3798
        %6617 = vmatmul.bf16.gmra.mxu0 %v6195
        %v6618 = vpop.f32.mrf.mxu0
        %v6619 = vadd.f32 %v6606, %v6618
        %v6620 = vpop.f32.mrf.mxu0
        %6621 = vdwg.mxu0
        %6622 = vmatpush.bf16.msra.mxu0 %v3813
        %6623 = vmatpush.bf16.msra.mxu0 %v3812
        %6624 = vmatpush.bf16.msra.mxu0 %v3811
        %6625 = vmatpush.bf16.msra.mxu0 %v3810
        %6626 = vmatpush.bf16.msra.mxu0 %v3809
        %6627 = vmatpush.bf16.msra.mxu0 %v3808
        %6628 = vmatpush.bf16.msra.mxu0 %v3807
        %6629 = vmatpush.bf16.msra.mxu0 %v3806
        %6630 = vmatmul.bf16.gmra.mxu0 %v6196
        %v6631 = vpop.f32.mrf.mxu0
        %v6632 = vadd.f32 %v6619, %v6631
        %v6633 = vpop.f32.mrf.mxu0
        %6634 = vdwg.mxu0
        %v6635 = vadd.f32 %v6632, %v4487
        %v6636 = vtanh.pop %v6635
        %6637 = vst.msk [vmem:[#allocation3] sm:$0xff] %vm311, %v6636
        %s6638 = sld [smem:[#allocation5 + %s4524]]
        %v6639 = vld [vmem:[#allocation3] sm:$0x1]
        %s6640 = scalar_lea.vmem %s303, %s6638 [#allocation10]
        %6641 = vst.msk [vmem:[%s6640] sm:$0x1] %vm840, %v6639
        %s6642 = sld [smem:[#allocation5 + %s4537]]
        %v6643 = vld [vmem:[#allocation3 + $0x1] sm:$0x1]
        %s6644 = scalar_lea.vmem %s303, %s6642 [#allocation10]
        %6645 = vst.msk [vmem:[%s6644] sm:$0x1] %vm840, %v6643
        %s6646 = sld [smem:[#allocation5 + %s4550]]
        %v6647 = vld [vmem:[#allocation3 + $0x2] sm:$0x1]
        %s6648 = scalar_lea.vmem %s303, %s6646 [#allocation10]
        %6649 = vst.msk [vmem:[%s6648] sm:$0x1] %vm840, %v6647
        %s6650 = sld [smem:[#allocation5 + %s4563]]
        %v6651 = vld [vmem:[#allocation3 + $0x3] sm:$0x1]
        %s6652 = scalar_lea.vmem %s303, %s6650 [#allocation10]
        %6653 = vst.msk [vmem:[%s6652] sm:$0x1] %vm840, %v6651
        %s6654 = sld [smem:[#allocation5 + %s4576]]
        %v6655 = vld [vmem:[#allocation3 + $0x4] sm:$0x1]
        %s6656 = scalar_lea.vmem %s303, %s6654 [#allocation10]
        %6657 = vst.msk [vmem:[%s6656] sm:$0x1] %vm840, %v6655
        %s6658 = sld [smem:[#allocation5 + %s4589]]
        %v6659 = vld [vmem:[#allocation3 + $0x5] sm:$0x1]
        %s6660 = scalar_lea.vmem %s303, %s6658 [#allocation10]
        %6661 = vst.msk [vmem:[%s6660] sm:$0x1] %vm840, %v6659
        %s6662 = sld [smem:[#allocation5 + %s4602]]
        %v6663 = vld [vmem:[#allocation3 + $0x6] sm:$0x1]
        %s6664 = scalar_lea.vmem %s303, %s6662 [#allocation10]
        %6665 = vst.msk [vmem:[%s6664] sm:$0x1] %vm840, %v6663
        %s6666 = sld [smem:[#allocation5 + %s4615]]
        %v6667 = vld [vmem:[#allocation3 + $0x7] sm:$0x1]
        %s6668 = scalar_lea.vmem %s303, %s6666 [#allocation10]
        %6669 = vst.msk [vmem:[%s6668] sm:$0x1] %vm840, %v6667
        %s6670 = sadd.s32 %s835, 16
        %s6671 = sld [smem:[#allocation6 + %s6670]]
        %s6672 = sld [smem:[#allocation7 + %s6670]]
        %s6673 = scalar_lea.vmem %s303, %s6671 [#allocation10]
        %v6674 = vld [vmem:[%s6673] sm:$0x1]
        %6675 = vst.msk [vmem:[#allocation2] sm:$0x1] %vm840, %v6674
        %s6676 = scalar_lea.vmem %s303, %s6672 [#allocation10]
        %v6677 = vld [vmem:[%s6676] sm:$0x1]
        %6679 = vrot.lane.b32.xlu0 %v6677, 32
        %v6680 = vpop.permute.xlu0 %6679
        %6682 = vst.msk [vmem:[#allocation2] sm:$0x1] %vm848, %v6680
        %s6683 = sadd.s32 %s835, 17
        %s6684 = sld [smem:[#allocation6 + %s6683]]
        %s6685 = sld [smem:[#allocation7 + %s6683]]
        %s6686 = scalar_lea.vmem %s303, %s6684 [#allocation10]
        %v6687 = vld [vmem:[%s6686] sm:$0x1]
        %6688 = vst.msk [vmem:[#allocation2 + $0x1] sm:$0x1] %vm840, %v6687
        %s6689 = scalar_lea.vmem %s303, %s6685 [#allocation10]
        %v6690 = vld [vmem:[%s6689] sm:$0x1]
        %6692 = vrot.lane.b32.xlu0 %v6690, 32
        %v6693 = vpop.permute.xlu0 %6692
        %6695 = vst.msk [vmem:[#allocation2 + $0x1] sm:$0x1] %vm848, %v6693
        %s6696 = sadd.s32 %s835, 18
        %s6697 = sld [smem:[#allocation6 + %s6696]]
        %s6698 = sld [smem:[#allocation7 + %s6696]]
        %s6699 = scalar_lea.vmem %s303, %s6697 [#allocation10]
        %v6700 = vld [vmem:[%s6699] sm:$0x1]
        %6701 = vst.msk [vmem:[#allocation2 + $0x2] sm:$0x1] %vm840, %v6700
        %s6702 = scalar_lea.vmem %s303, %s6698 [#allocation10]
        %v6703 = vld [vmem:[%s6702] sm:$0x1]
        %6705 = vrot.lane.b32.xlu0 %v6703, 32
        %v6706 = vpop.permute.xlu0 %6705
        %6708 = vst.msk [vmem:[#allocation2 + $0x2] sm:$0x1] %vm848, %v6706
        %s6709 = sadd.s32 %s835, 19
        %s6710 = sld [smem:[#allocation6 + %s6709]]
        %s6711 = sld [smem:[#allocation7 + %s6709]]
        %s6712 = scalar_lea.vmem %s303, %s6710 [#allocation10]
        %v6713 = vld [vmem:[%s6712] sm:$0x1]
        %6714 = vst.msk [vmem:[#allocation2 + $0x3] sm:$0x1] %vm840, %v6713
        %s6715 = scalar_lea.vmem %s303, %s6711 [#allocation10]
        %v6716 = vld [vmem:[%s6715] sm:$0x1]
        %6718 = vrot.lane.b32.xlu0 %v6716, 32
        %v6719 = vpop.permute.xlu0 %6718
        %6721 = vst.msk [vmem:[#allocation2 + $0x3] sm:$0x1] %vm848, %v6719
        %s6722 = sadd.s32 %s835, 20
        %s6723 = sld [smem:[#allocation6 + %s6722]]
        %s6724 = sld [smem:[#allocation7 + %s6722]]
        %s6725 = scalar_lea.vmem %s303, %s6723 [#allocation10]
        %v6726 = vld [vmem:[%s6725] sm:$0x1]
        %6727 = vst.msk [vmem:[#allocation2 + $0x4] sm:$0x1] %vm840, %v6726
        %s6728 = scalar_lea.vmem %s303, %s6724 [#allocation10]
        %v6729 = vld [vmem:[%s6728] sm:$0x1]
        %6731 = vrot.lane.b32.xlu0 %v6729, 32
        %v6732 = vpop.permute.xlu0 %6731
        %6734 = vst.msk [vmem:[#allocation2 + $0x4] sm:$0x1] %vm848, %v6732
        %s6735 = sadd.s32 %s835, 21
        %s6736 = sld [smem:[#allocation6 + %s6735]]
        %s6737 = sld [smem:[#allocation7 + %s6735]]
        %s6738 = scalar_lea.vmem %s303, %s6736 [#allocation10]
        %v6739 = vld [vmem:[%s6738] sm:$0x1]
        %6740 = vst.msk [vmem:[#allocation2 + $0x5] sm:$0x1] %vm840, %v6739
        %s6741 = scalar_lea.vmem %s303, %s6737 [#allocation10]
        %v6742 = vld [vmem:[%s6741] sm:$0x1]
        %6744 = vrot.lane.b32.xlu0 %v6742, 32
        %v6745 = vpop.permute.xlu0 %6744
        %6747 = vst.msk [vmem:[#allocation2 + $0x5] sm:$0x1] %vm848, %v6745
        %s6748 = sadd.s32 %s835, 22
        %s6749 = sld [smem:[#allocation6 + %s6748]]
        %s6750 = sld [smem:[#allocation7 + %s6748]]
        %s6751 = scalar_lea.vmem %s303, %s6749 [#allocation10]
        %v6752 = vld [vmem:[%s6751] sm:$0x1]
        %6753 = vst.msk [vmem:[#allocation2 + $0x6] sm:$0x1] %vm840, %v6752
        %s6754 = scalar_lea.vmem %s303, %s6750 [#allocation10]
        %v6755 = vld [vmem:[%s6754] sm:$0x1]
        %6757 = vrot.lane.b32.xlu0 %v6755, 32
        %v6758 = vpop.permute.xlu0 %6757
        %6760 = vst.msk [vmem:[#allocation2 + $0x6] sm:$0x1] %vm848, %v6758
        %s6761 = sadd.s32 %s835, 23
        %s6762 = sld [smem:[#allocation6 + %s6761]]
        %s6763 = sld [smem:[#allocation7 + %s6761]]
        %s6764 = scalar_lea.vmem %s303, %s6762 [#allocation10]
        %v6765 = vld [vmem:[%s6764] sm:$0x1]
        %6766 = vst.msk [vmem:[#allocation2 + $0x7] sm:$0x1] %vm840, %v6765
        %s6767 = scalar_lea.vmem %s303, %s6763 [#allocation10]
        %v6768 = vld [vmem:[%s6767] sm:$0x1]
        %6770 = vrot.lane.b32.xlu0 %v6768, 32
        %v6771 = vpop.permute.xlu0 %6770
        %6773 = vst.msk [vmem:[#allocation2 + $0x7] sm:$0x1] %vm848, %v6771
        %v6774 = vld [vmem:[#allocation2] sm:$0xff]
        %v6775 = vperm.slane %v6774, 0
        %v6776 = vlaneseq
        %v6777 = vshrl.u32 %v6776, 7
        %6779 = vset.pattern.permute.xlu0 %v6777
        %6780 = vperm.xlu0 %6779, %v6775
        %v6781 = vpop.permute.xlu0 %6780
        %v6782 = vlaneseq
        %v6783 = vshrl.u32 %v6782, 7
        %v6784 = vadd.s32 %v6783, 8
        %6785 = vset.pattern.permute.xlu0 %v6784
        %6786 = vperm.xlu0 %6785, %v6775
        %v6787 = vpop.permute.xlu0 %6786
        %v6788 = vlaneseq
        %v6789 = vshrl.u32 %v6788, 7
        %v6790 = vadd.s32 %v6789, 16
        %6791 = vset.pattern.permute.xlu0 %v6790
        %6792 = vperm.xlu0 %6791, %v6775
        %v6793 = vpop.permute.xlu0 %6792
        %v6794 = vlaneseq
        %v6795 = vshrl.u32 %v6794, 7
        %v6796 = vadd.s32 %v6795, 24
        %6797 = vset.pattern.permute.xlu0 %v6796
        %6798 = vperm.xlu0 %6797, %v6775
        %v6799 = vpop.permute.xlu0 %6798
        %v6800 = vlaneseq
        %v6801 = vshrl.u32 %v6800, 7
        %v6802 = vadd.s32 %v6801, 32
        %6803 = vset.pattern.permute.xlu0 %v6802
        %6804 = vperm.xlu0 %6803, %v6775
        %v6805 = vpop.permute.xlu0 %6804
        %v6806 = vlaneseq
        %v6807 = vshrl.u32 %v6806, 7
        %v6808 = vadd.s32 %v6807, 40
        %6809 = vset.pattern.permute.xlu0 %v6808
        %6810 = vperm.xlu0 %6809, %v6775
        %v6811 = vpop.permute.xlu0 %6810
        %v6812 = vlaneseq
        %v6813 = vshrl.u32 %v6812, 7
        %v6814 = vadd.s32 %v6813, 48
        %6815 = vset.pattern.permute.xlu0 %v6814
        %6816 = vperm.xlu0 %6815, %v6775
        %v6817 = vpop.permute.xlu0 %6816
        %v6818 = vlaneseq
        %v6819 = vshrl.u32 %v6818, 7
        %v6820 = vadd.s32 %v6819, 56
        %6821 = vset.pattern.permute.xlu0 %v6820
        %6822 = vperm.xlu0 %6821, %v6775
        %v6823 = vpop.permute.xlu0 %6822
        %v6824 = vperm.slane %v6774, 1
        %v6825 = vlaneseq
        %v6826 = vshrl.u32 %v6825, 7
        %6828 = vset.pattern.permute.xlu0 %v6826
        %6829 = vperm.xlu0 %6828, %v6824
        %v6830 = vpop.permute.xlu0 %6829
        %v6831 = vlaneseq
        %v6832 = vshrl.u32 %v6831, 7
        %v6833 = vadd.s32 %v6832, 8
        %6834 = vset.pattern.permute.xlu0 %v6833
        %6835 = vperm.xlu0 %6834, %v6824
        %v6836 = vpop.permute.xlu0 %6835
        %v6837 = vlaneseq
        %v6838 = vshrl.u32 %v6837, 7
        %v6839 = vadd.s32 %v6838, 16
        %6840 = vset.pattern.permute.xlu0 %v6839
        %6841 = vperm.xlu0 %6840, %v6824
        %v6842 = vpop.permute.xlu0 %6841
        %v6843 = vlaneseq
        %v6844 = vshrl.u32 %v6843, 7
        %v6845 = vadd.s32 %v6844, 24
        %6846 = vset.pattern.permute.xlu0 %v6845
        %6847 = vperm.xlu0 %6846, %v6824
        %v6848 = vpop.permute.xlu0 %6847
        %v6849 = vlaneseq
        %v6850 = vshrl.u32 %v6849, 7
        %v6851 = vadd.s32 %v6850, 32
        %6852 = vset.pattern.permute.xlu0 %v6851
        %6853 = vperm.xlu0 %6852, %v6824
        %v6854 = vpop.permute.xlu0 %6853
        %v6855 = vlaneseq
        %v6856 = vshrl.u32 %v6855, 7
        %v6857 = vadd.s32 %v6856, 40
        %6858 = vset.pattern.permute.xlu0 %v6857
        %6859 = vperm.xlu0 %6858, %v6824
        %v6860 = vpop.permute.xlu0 %6859
        %v6861 = vlaneseq
        %v6862 = vshrl.u32 %v6861, 7
        %v6863 = vadd.s32 %v6862, 48
        %6864 = vset.pattern.permute.xlu0 %v6863
        %6865 = vperm.xlu0 %6864, %v6824
        %v6866 = vpop.permute.xlu0 %6865
        %v6867 = vlaneseq
        %v6868 = vshrl.u32 %v6867, 7
        %v6869 = vadd.s32 %v6868, 56
        %6870 = vset.pattern.permute.xlu0 %v6869
        %6871 = vperm.xlu0 %6870, %v6824
        %v6872 = vpop.permute.xlu0 %6871
        %v6873 = vperm.slane %v6774, 2
        %v6874 = vlaneseq
        %v6875 = vshrl.u32 %v6874, 7
        %6877 = vset.pattern.permute.xlu0 %v6875
        %6878 = vperm.xlu0 %6877, %v6873
        %v6879 = vpop.permute.xlu0 %6878
        %v6880 = vlaneseq
        %v6881 = vshrl.u32 %v6880, 7
        %v6882 = vadd.s32 %v6881, 8
        %6883 = vset.pattern.permute.xlu0 %v6882
        %6884 = vperm.xlu0 %6883, %v6873
        %v6885 = vpop.permute.xlu0 %6884
        %v6886 = vlaneseq
        %v6887 = vshrl.u32 %v6886, 7
        %v6888 = vadd.s32 %v6887, 16
        %6889 = vset.pattern.permute.xlu0 %v6888
        %6890 = vperm.xlu0 %6889, %v6873
        %v6891 = vpop.permute.xlu0 %6890
        %v6892 = vlaneseq
        %v6893 = vshrl.u32 %v6892, 7
        %v6894 = vadd.s32 %v6893, 24
        %6895 = vset.pattern.permute.xlu0 %v6894
        %6896 = vperm.xlu0 %6895, %v6873
        %v6897 = vpop.permute.xlu0 %6896
        %v6898 = vlaneseq
        %v6899 = vshrl.u32 %v6898, 7
        %v6900 = vadd.s32 %v6899, 32
        %6901 = vset.pattern.permute.xlu0 %v6900
        %6902 = vperm.xlu0 %6901, %v6873
        %v6903 = vpop.permute.xlu0 %6902
        %v6904 = vlaneseq
        %v6905 = vshrl.u32 %v6904, 7
        %v6906 = vadd.s32 %v6905, 40
        %6907 = vset.pattern.permute.xlu0 %v6906
        %6908 = vperm.xlu0 %6907, %v6873
        %v6909 = vpop.permute.xlu0 %6908
        %v6910 = vlaneseq
        %v6911 = vshrl.u32 %v6910, 7
        %v6912 = vadd.s32 %v6911, 48
        %6913 = vset.pattern.permute.xlu0 %v6912
        %6914 = vperm.xlu0 %6913, %v6873
        %v6915 = vpop.permute.xlu0 %6914
        %v6916 = vlaneseq
        %v6917 = vshrl.u32 %v6916, 7
        %v6918 = vadd.s32 %v6917, 56
        %6919 = vset.pattern.permute.xlu0 %v6918
        %6920 = vperm.xlu0 %6919, %v6873
        %v6921 = vpop.permute.xlu0 %6920
        %v6922 = vperm.slane %v6774, 3
        %v6923 = vlaneseq
        %v6924 = vshrl.u32 %v6923, 7
        %6926 = vset.pattern.permute.xlu0 %v6924
        %6927 = vperm.xlu0 %6926, %v6922
        %v6928 = vpop.permute.xlu0 %6927
        %v6929 = vlaneseq
        %v6930 = vshrl.u32 %v6929, 7
        %v6931 = vadd.s32 %v6930, 8
        %6932 = vset.pattern.permute.xlu0 %v6931
        %6933 = vperm.xlu0 %6932, %v6922
        %v6934 = vpop.permute.xlu0 %6933
        %v6935 = vlaneseq
        %v6936 = vshrl.u32 %v6935, 7
        %v6937 = vadd.s32 %v6936, 16
        %6938 = vset.pattern.permute.xlu0 %v6937
        %6939 = vperm.xlu0 %6938, %v6922
        %v6940 = vpop.permute.xlu0 %6939
        %v6941 = vlaneseq
        %v6942 = vshrl.u32 %v6941, 7
        %v6943 = vadd.s32 %v6942, 24
        %6944 = vset.pattern.permute.xlu0 %v6943
        %6945 = vperm.xlu0 %6944, %v6922
        %v6946 = vpop.permute.xlu0 %6945
        %v6947 = vlaneseq
        %v6948 = vshrl.u32 %v6947, 7
        %v6949 = vadd.s32 %v6948, 32
        %6950 = vset.pattern.permute.xlu0 %v6949
        %6951 = vperm.xlu0 %6950, %v6922
        %v6952 = vpop.permute.xlu0 %6951
        %v6953 = vlaneseq
        %v6954 = vshrl.u32 %v6953, 7
        %v6955 = vadd.s32 %v6954, 40
        %6956 = vset.pattern.permute.xlu0 %v6955
        %6957 = vperm.xlu0 %6956, %v6922
        %v6958 = vpop.permute.xlu0 %6957
        %v6959 = vlaneseq
        %v6960 = vshrl.u32 %v6959, 7
        %v6961 = vadd.s32 %v6960, 48
        %6962 = vset.pattern.permute.xlu0 %v6961
        %6963 = vperm.xlu0 %6962, %v6922
        %v6964 = vpop.permute.xlu0 %6963
        %v6965 = vlaneseq
        %v6966 = vshrl.u32 %v6965, 7
        %v6967 = vadd.s32 %v6966, 56
        %6968 = vset.pattern.permute.xlu0 %v6967
        %6969 = vperm.xlu0 %6968, %v6922
        %v6970 = vpop.permute.xlu0 %6969
        %v6971 = vperm.slane %v6774, 4
        %v6972 = vlaneseq
        %v6973 = vshrl.u32 %v6972, 7
        %6975 = vset.pattern.permute.xlu0 %v6973
        %6976 = vperm.xlu0 %6975, %v6971
        %v6977 = vpop.permute.xlu0 %6976
        %v6978 = vlaneseq
        %v6979 = vshrl.u32 %v6978, 7
        %v6980 = vadd.s32 %v6979, 8
        %6981 = vset.pattern.permute.xlu0 %v6980
        %6982 = vperm.xlu0 %6981, %v6971
        %v6983 = vpop.permute.xlu0 %6982
        %v6984 = vlaneseq
        %v6985 = vshrl.u32 %v6984, 7
        %v6986 = vadd.s32 %v6985, 16
        %6987 = vset.pattern.permute.xlu0 %v6986
        %6988 = vperm.xlu0 %6987, %v6971
        %v6989 = vpop.permute.xlu0 %6988
        %v6990 = vlaneseq
        %v6991 = vshrl.u32 %v6990, 7
        %v6992 = vadd.s32 %v6991, 24
        %6993 = vset.pattern.permute.xlu0 %v6992
        %6994 = vperm.xlu0 %6993, %v6971
        %v6995 = vpop.permute.xlu0 %6994
        %v6996 = vlaneseq
        %v6997 = vshrl.u32 %v6996, 7
        %v6998 = vadd.s32 %v6997, 32
        %6999 = vset.pattern.permute.xlu0 %v6998
        %7000 = vperm.xlu0 %6999, %v6971
        %v7001 = vpop.permute.xlu0 %7000
        %v7002 = vlaneseq
        %v7003 = vshrl.u32 %v7002, 7
        %v7004 = vadd.s32 %v7003, 40
        %7005 = vset.pattern.permute.xlu0 %v7004
        %7006 = vperm.xlu0 %7005, %v6971
        %v7007 = vpop.permute.xlu0 %7006
        %v7008 = vlaneseq
        %v7009 = vshrl.u32 %v7008, 7
        %v7010 = vadd.s32 %v7009, 48
        %7011 = vset.pattern.permute.xlu0 %v7010
        %7012 = vperm.xlu0 %7011, %v6971
        %v7013 = vpop.permute.xlu0 %7012
        %v7014 = vlaneseq
        %v7015 = vshrl.u32 %v7014, 7
        %v7016 = vadd.s32 %v7015, 56
        %7017 = vset.pattern.permute.xlu0 %v7016
        %7018 = vperm.xlu0 %7017, %v6971
        %v7019 = vpop.permute.xlu0 %7018
        %v7020 = vperm.slane %v6774, 5
        %v7021 = vlaneseq
        %v7022 = vshrl.u32 %v7021, 7
        %7024 = vset.pattern.permute.xlu0 %v7022
        %7025 = vperm.xlu0 %7024, %v7020
        %v7026 = vpop.permute.xlu0 %7025
        %v7027 = vlaneseq
        %v7028 = vshrl.u32 %v7027, 7
        %v7029 = vadd.s32 %v7028, 8
        %7030 = vset.pattern.permute.xlu0 %v7029
        %7031 = vperm.xlu0 %7030, %v7020
        %v7032 = vpop.permute.xlu0 %7031
        %v7033 = vlaneseq
        %v7034 = vshrl.u32 %v7033, 7
        %v7035 = vadd.s32 %v7034, 16
        %7036 = vset.pattern.permute.xlu0 %v7035
        %7037 = vperm.xlu0 %7036, %v7020
        %v7038 = vpop.permute.xlu0 %7037
        %v7039 = vlaneseq
        %v7040 = vshrl.u32 %v7039, 7
        %v7041 = vadd.s32 %v7040, 24
        %7042 = vset.pattern.permute.xlu0 %v7041
        %7043 = vperm.xlu0 %7042, %v7020
        %v7044 = vpop.permute.xlu0 %7043
        %v7045 = vlaneseq
        %v7046 = vshrl.u32 %v7045, 7
        %v7047 = vadd.s32 %v7046, 32
        %7048 = vset.pattern.permute.xlu0 %v7047
        %7049 = vperm.xlu0 %7048, %v7020
        %v7050 = vpop.permute.xlu0 %7049
        %v7051 = vlaneseq
        %v7052 = vshrl.u32 %v7051, 7
        %v7053 = vadd.s32 %v7052, 40
        %7054 = vset.pattern.permute.xlu0 %v7053
        %7055 = vperm.xlu0 %7054, %v7020
        %v7056 = vpop.permute.xlu0 %7055
        %v7057 = vlaneseq
        %v7058 = vshrl.u32 %v7057, 7
        %v7059 = vadd.s32 %v7058, 48
        %7060 = vset.pattern.permute.xlu0 %v7059
        %7061 = vperm.xlu0 %7060, %v7020
        %v7062 = vpop.permute.xlu0 %7061
        %v7063 = vlaneseq
        %v7064 = vshrl.u32 %v7063, 7
        %v7065 = vadd.s32 %v7064, 56
        %7066 = vset.pattern.permute.xlu0 %v7065
        %7067 = vperm.xlu0 %7066, %v7020
        %v7068 = vpop.permute.xlu0 %7067
        %v7069 = vperm.slane %v6774, 6
        %v7070 = vlaneseq
        %v7071 = vshrl.u32 %v7070, 7
        %7073 = vset.pattern.permute.xlu0 %v7071
        %7074 = vperm.xlu0 %7073, %v7069
        %v7075 = vpop.permute.xlu0 %7074
        %v7076 = vlaneseq
        %v7077 = vshrl.u32 %v7076, 7
        %v7078 = vadd.s32 %v7077, 8
        %7079 = vset.pattern.permute.xlu0 %v7078
        %7080 = vperm.xlu0 %7079, %v7069
        %v7081 = vpop.permute.xlu0 %7080
        %v7082 = vlaneseq
        %v7083 = vshrl.u32 %v7082, 7
        %v7084 = vadd.s32 %v7083, 16
        %7085 = vset.pattern.permute.xlu0 %v7084
        %7086 = vperm.xlu0 %7085, %v7069
        %v7087 = vpop.permute.xlu0 %7086
        %v7088 = vlaneseq
        %v7089 = vshrl.u32 %v7088, 7
        %v7090 = vadd.s32 %v7089, 24
        %7091 = vset.pattern.permute.xlu0 %v7090
        %7092 = vperm.xlu0 %7091, %v7069
        %v7093 = vpop.permute.xlu0 %7092
        %v7094 = vlaneseq
        %v7095 = vshrl.u32 %v7094, 7
        %v7096 = vadd.s32 %v7095, 32
        %7097 = vset.pattern.permute.xlu0 %v7096
        %7098 = vperm.xlu0 %7097, %v7069
        %v7099 = vpop.permute.xlu0 %7098
        %v7100 = vlaneseq
        %v7101 = vshrl.u32 %v7100, 7
        %v7102 = vadd.s32 %v7101, 40
        %7103 = vset.pattern.permute.xlu0 %v7102
        %7104 = vperm.xlu0 %7103, %v7069
        %v7105 = vpop.permute.xlu0 %7104
        %v7106 = vlaneseq
        %v7107 = vshrl.u32 %v7106, 7
        %v7108 = vadd.s32 %v7107, 48
        %7109 = vset.pattern.permute.xlu0 %v7108
        %7110 = vperm.xlu0 %7109, %v7069
        %v7111 = vpop.permute.xlu0 %7110
        %v7112 = vlaneseq
        %v7113 = vshrl.u32 %v7112, 7
        %v7114 = vadd.s32 %v7113, 56
        %7115 = vset.pattern.permute.xlu0 %v7114
        %7116 = vperm.xlu0 %7115, %v7069
        %v7117 = vpop.permute.xlu0 %7116
        %v7118 = vperm.slane %v6774, 7
        %v7119 = vlaneseq
        %v7120 = vshrl.u32 %v7119, 7
        %7122 = vset.pattern.permute.xlu0 %v7120
        %7123 = vperm.xlu0 %7122, %v7118
        %v7124 = vpop.permute.xlu0 %7123
        %v7125 = vlaneseq
        %v7126 = vshrl.u32 %v7125, 7
        %v7127 = vadd.s32 %v7126, 8
        %7128 = vset.pattern.permute.xlu0 %v7127
        %7129 = vperm.xlu0 %7128, %v7118
        %v7130 = vpop.permute.xlu0 %7129
        %v7131 = vlaneseq
        %v7132 = vshrl.u32 %v7131, 7
        %v7133 = vadd.s32 %v7132, 16
        %7134 = vset.pattern.permute.xlu0 %v7133
        %7135 = vperm.xlu0 %7134, %v7118
        %v7136 = vpop.permute.xlu0 %7135
        %v7137 = vlaneseq
        %v7138 = vshrl.u32 %v7137, 7
        %v7139 = vadd.s32 %v7138, 24
        %7140 = vset.pattern.permute.xlu0 %v7139
        %7141 = vperm.xlu0 %7140, %v7118
        %v7142 = vpop.permute.xlu0 %7141
        %v7143 = vlaneseq
        %v7144 = vshrl.u32 %v7143, 7
        %v7145 = vadd.s32 %v7144, 32
        %7146 = vset.pattern.permute.xlu0 %v7145
        %7147 = vperm.xlu0 %7146, %v7118
        %v7148 = vpop.permute.xlu0 %7147
        %v7149 = vlaneseq
        %v7150 = vshrl.u32 %v7149, 7
        %v7151 = vadd.s32 %v7150, 40
        %7152 = vset.pattern.permute.xlu0 %v7151
        %7153 = vperm.xlu0 %7152, %v7118
        %v7154 = vpop.permute.xlu0 %7153
        %v7155 = vlaneseq
        %v7156 = vshrl.u32 %v7155, 7
        %v7157 = vadd.s32 %v7156, 48
        %7158 = vset.pattern.permute.xlu0 %v7157
        %7159 = vperm.xlu0 %7158, %v7118
        %v7160 = vpop.permute.xlu0 %7159
        %v7161 = vlaneseq
        %v7162 = vshrl.u32 %v7161, 7
        %v7163 = vadd.s32 %v7162, 56
        %7164 = vset.pattern.permute.xlu0 %v7163
        %7165 = vperm.xlu0 %7164, %v7118
        %v7166 = vpop.permute.xlu0 %7165
        %v7168 = vrot.slane %v6774, 1
        %v7169 = vrot.slane %v6774, 2
        %v7170 = vrot.slane %v6774, 3
        %v7171 = vrot.slane %v6774, 4
        %v7172 = vrot.slane %v6774, 5
        %v7173 = vrot.slane %v6774, 6
        %v7174 = vrot.slane %v6774, 7
        %v7175 = vperm.slane %v6774, 0
        %v7176 = vperm.slane %v7168, 0
        %v7177 = vperm.slane %v7169, 0
        %v7178 = vperm.slane %v7170, 0
        %v7179 = vperm.slane %v7171, 0
        %v7180 = vperm.slane %v7172, 0
        %v7181 = vperm.slane %v7173, 0
        %v7182 = vperm.slane %v7174, 0
        %v7191 = vmul.f32 %v6781, %v7175
        %v7192 = vmul.f32 %v6787, %v7175
        %v7193 = vmul.f32 %v6793, %v7175
        %v7194 = vmul.f32 %v6799, %v7175
        %v7195 = vmul.f32 %v6805, %v7175
        %v7196 = vmul.f32 %v6811, %v7175
        %v7197 = vmul.f32 %v6817, %v7175
        %v7198 = vmul.f32 %v6823, %v7175
        %v7199 = vmul.f32 %v6830, %v7176
        %v7200 = vmul.f32 %v6836, %v7176
        %v7201 = vmul.f32 %v6842, %v7176
        %v7202 = vmul.f32 %v6848, %v7176
        %v7203 = vmul.f32 %v6854, %v7176
        %v7204 = vmul.f32 %v6860, %v7176
        %v7205 = vmul.f32 %v6866, %v7176
        %v7206 = vmul.f32 %v6872, %v7176
        %v7207 = vmul.f32 %v6879, %v7177
        %v7208 = vmul.f32 %v6885, %v7177
        %v7209 = vmul.f32 %v6891, %v7177
        %v7210 = vmul.f32 %v6897, %v7177
        %v7211 = vmul.f32 %v6903, %v7177
        %v7212 = vmul.f32 %v6909, %v7177
        %v7213 = vmul.f32 %v6915, %v7177
        %v7214 = vmul.f32 %v6921, %v7177
        %v7215 = vmul.f32 %v6928, %v7178
        %v7216 = vmul.f32 %v6934, %v7178
        %v7217 = vmul.f32 %v6940, %v7178
        %v7218 = vmul.f32 %v6946, %v7178
        %v7219 = vmul.f32 %v6952, %v7178
        %v7220 = vmul.f32 %v6958, %v7178
        %v7221 = vmul.f32 %v6964, %v7178
        %v7222 = vmul.f32 %v6970, %v7178
        %v7223 = vmul.f32 %v6977, %v7179
        %v7224 = vmul.f32 %v6983, %v7179
        %v7225 = vmul.f32 %v6989, %v7179
        %v7226 = vmul.f32 %v6995, %v7179
        %v7227 = vmul.f32 %v7001, %v7179
        %v7228 = vmul.f32 %v7007, %v7179
        %v7229 = vmul.f32 %v7013, %v7179
        %v7230 = vmul.f32 %v7019, %v7179
        %v7231 = vmul.f32 %v7026, %v7180
        %v7232 = vmul.f32 %v7032, %v7180
        %v7233 = vmul.f32 %v7038, %v7180
        %v7234 = vmul.f32 %v7044, %v7180
        %v7235 = vmul.f32 %v7050, %v7180
        %v7236 = vmul.f32 %v7056, %v7180
        %v7237 = vmul.f32 %v7062, %v7180
        %v7238 = vmul.f32 %v7068, %v7180
        %v7239 = vmul.f32 %v7075, %v7181
        %v7240 = vmul.f32 %v7081, %v7181
        %v7241 = vmul.f32 %v7087, %v7181
        %v7242 = vmul.f32 %v7093, %v7181
        %v7243 = vmul.f32 %v7099, %v7181
        %v7244 = vmul.f32 %v7105, %v7181
        %v7245 = vmul.f32 %v7111, %v7181
        %v7246 = vmul.f32 %v7117, %v7181
        %v7247 = vmul.f32 %v7124, %v7182
        %v7248 = vmul.f32 %v7130, %v7182
        %v7249 = vmul.f32 %v7136, %v7182
        %v7250 = vmul.f32 %v7142, %v7182
        %v7251 = vmul.f32 %v7148, %v7182
        %v7252 = vmul.f32 %v7154, %v7182
        %v7253 = vmul.f32 %v7160, %v7182
        %v7254 = vmul.f32 %v7166, %v7182
        %v7255 = vrot.slane %v7207, 4
        %v7256 = vsel %vm1423, %v7255, %v7191
        %v7257 = vrot.slane %v7191, 4
        %v7258 = vsel %vm1423, %v7207, %v7257
        %v7260 = vunpack.c.l.s4 1983009808
        %v7261 = vunpack.c.0.s8 %v7260
        %v7262 = vperm.slane %v7256, %v7261
        %v7264 = vunpack.c.l.s4 1983009808
        %v7265 = vunpack.c.0.s8 %v7264
        %v7266 = vperm.slane %v7258, %v7265
        %v7267 = vrot.slane %v7215, 4
        %v7268 = vsel %vm1423, %v7267, %v7199
        %v7269 = vrot.slane %v7199, 4
        %v7270 = vsel %vm1423, %v7215, %v7269
        %v7272 = vunpack.c.l.s4 1983009808
        %v7273 = vunpack.c.0.s8 %v7272
        %v7274 = vperm.slane %v7268, %v7273
        %v7276 = vunpack.c.l.s4 1983009808
        %v7277 = vunpack.c.0.s8 %v7276
        %v7278 = vperm.slane %v7270, %v7277
        %v7279 = vrot.slane %v7239, 4
        %v7280 = vsel %vm1423, %v7279, %v7223
        %v7281 = vrot.slane %v7223, 4
        %v7282 = vsel %vm1423, %v7239, %v7281
        %v7284 = vunpack.c.l.s4 1983009808
        %v7285 = vunpack.c.0.s8 %v7284
        %v7286 = vperm.slane %v7280, %v7285
        %v7288 = vunpack.c.l.s4 1983009808
        %v7289 = vunpack.c.0.s8 %v7288
        %v7290 = vperm.slane %v7282, %v7289
        %v7291 = vrot.slane %v7247, 4
        %v7292 = vsel %vm1423, %v7291, %v7231
        %v7293 = vrot.slane %v7231, 4
        %v7294 = vsel %vm1423, %v7247, %v7293
        %v7296 = vunpack.c.l.s4 1983009808
        %v7297 = vunpack.c.0.s8 %v7296
        %v7298 = vperm.slane %v7292, %v7297
        %v7300 = vunpack.c.l.s4 1983009808
        %v7301 = vunpack.c.0.s8 %v7300
        %v7302 = vperm.slane %v7294, %v7301
        %v7303 = vrot.slane %v7274, 4
        %v7304 = vsel %vm1423, %v7303, %v7262
        %v7305 = vrot.slane %v7262, 4
        %v7306 = vsel %vm1423, %v7274, %v7305
        %v7308 = vunpack.c.l.s4 1934713408
        %v7309 = vunpack.c.0.s8 %v7308
        %v7310 = vperm.slane %v7304, %v7309
        %v7312 = vunpack.c.l.s4 1934713408
        %v7313 = vunpack.c.0.s8 %v7312
        %v7314 = vperm.slane %v7306, %v7313
        %v7315 = vrot.slane %v7278, 4
        %v7316 = vsel %vm1423, %v7315, %v7266
        %v7317 = vrot.slane %v7266, 4
        %v7318 = vsel %vm1423, %v7278, %v7317
        %v7320 = vunpack.c.l.s4 1934713408
        %v7321 = vunpack.c.0.s8 %v7320
        %v7322 = vperm.slane %v7316, %v7321
        %v7324 = vunpack.c.l.s4 1934713408
        %v7325 = vunpack.c.0.s8 %v7324
        %v7326 = vperm.slane %v7318, %v7325
        %v7327 = vrot.slane %v7298, 4
        %v7328 = vsel %vm1423, %v7327, %v7286
        %v7329 = vrot.slane %v7286, 4
        %v7330 = vsel %vm1423, %v7298, %v7329
        %v7332 = vunpack.c.l.s4 1934713408
        %v7333 = vunpack.c.0.s8 %v7332
        %v7334 = vperm.slane %v7328, %v7333
        %v7336 = vunpack.c.l.s4 1934713408
        %v7337 = vunpack.c.0.s8 %v7336
        %v7338 = vperm.slane %v7330, %v7337
        %v7339 = vrot.slane %v7302, 4
        %v7340 = vsel %vm1423, %v7339, %v7290
        %v7341 = vrot.slane %v7290, 4
        %v7342 = vsel %vm1423, %v7302, %v7341
        %v7344 = vunpack.c.l.s4 1934713408
        %v7345 = vunpack.c.0.s8 %v7344
        %v7346 = vperm.slane %v7340, %v7345
        %v7348 = vunpack.c.l.s4 1934713408
        %v7349 = vunpack.c.0.s8 %v7348
        %v7350 = vperm.slane %v7342, %v7349
        %v7351 = vrot.slane %v7334, 4
        %v7352 = vsel %vm1423, %v7351, %v7310
        %v7353 = vrot.slane %v7310, 4
        %v7354 = vsel %vm1423, %v7334, %v7353
        %v7355 = vrot.slane %v7338, 4
        %v7356 = vsel %vm1423, %v7355, %v7314
        %v7357 = vrot.slane %v7314, 4
        %v7358 = vsel %vm1423, %v7338, %v7357
        %v7359 = vrot.slane %v7346, 4
        %v7360 = vsel %vm1423, %v7359, %v7322
        %v7361 = vrot.slane %v7322, 4
        %v7362 = vsel %vm1423, %v7346, %v7361
        %v7363 = vrot.slane %v7350, 4
        %v7364 = vsel %vm1423, %v7363, %v7326
        %v7365 = vrot.slane %v7326, 4
        %v7366 = vsel %vm1423, %v7350, %v7365
        %v7367 = vrot.slane %v7208, 4
        %v7368 = vsel %vm1423, %v7367, %v7192
        %v7369 = vrot.slane %v7192, 4
        %v7370 = vsel %vm1423, %v7208, %v7369
        %v7372 = vunpack.c.l.s4 1983009808
        %v7373 = vunpack.c.0.s8 %v7372
        %v7374 = vperm.slane %v7368, %v7373
        %v7376 = vunpack.c.l.s4 1983009808
        %v7377 = vunpack.c.0.s8 %v7376
        %v7378 = vperm.slane %v7370, %v7377
        %v7379 = vrot.slane %v7216, 4
        %v7380 = vsel %vm1423, %v7379, %v7200
        %v7381 = vrot.slane %v7200, 4
        %v7382 = vsel %vm1423, %v7216, %v7381
        %v7384 = vunpack.c.l.s4 1983009808
        %v7385 = vunpack.c.0.s8 %v7384
        %v7386 = vperm.slane %v7380, %v7385
        %v7388 = vunpack.c.l.s4 1983009808
        %v7389 = vunpack.c.0.s8 %v7388
        %v7390 = vperm.slane %v7382, %v7389
        %v7391 = vrot.slane %v7240, 4
        %v7392 = vsel %vm1423, %v7391, %v7224
        %v7393 = vrot.slane %v7224, 4
        %v7394 = vsel %vm1423, %v7240, %v7393
        %v7396 = vunpack.c.l.s4 1983009808
        %v7397 = vunpack.c.0.s8 %v7396
        %v7398 = vperm.slane %v7392, %v7397
        %v7400 = vunpack.c.l.s4 1983009808
        %v7401 = vunpack.c.0.s8 %v7400
        %v7402 = vperm.slane %v7394, %v7401
        %v7403 = vrot.slane %v7248, 4
        %v7404 = vsel %vm1423, %v7403, %v7232
        %v7405 = vrot.slane %v7232, 4
        %v7406 = vsel %vm1423, %v7248, %v7405
        %v7408 = vunpack.c.l.s4 1983009808
        %v7409 = vunpack.c.0.s8 %v7408
        %v7410 = vperm.slane %v7404, %v7409
        %v7412 = vunpack.c.l.s4 1983009808
        %v7413 = vunpack.c.0.s8 %v7412
        %v7414 = vperm.slane %v7406, %v7413
        %v7415 = vrot.slane %v7386, 4
        %v7416 = vsel %vm1423, %v7415, %v7374
        %v7417 = vrot.slane %v7374, 4
        %v7418 = vsel %vm1423, %v7386, %v7417
        %v7420 = vunpack.c.l.s4 1934713408
        %v7421 = vunpack.c.0.s8 %v7420
        %v7422 = vperm.slane %v7416, %v7421
        %v7424 = vunpack.c.l.s4 1934713408
        %v7425 = vunpack.c.0.s8 %v7424
        %v7426 = vperm.slane %v7418, %v7425
        %v7427 = vrot.slane %v7390, 4
        %v7428 = vsel %vm1423, %v7427, %v7378
        %v7429 = vrot.slane %v7378, 4
        %v7430 = vsel %vm1423, %v7390, %v7429
        %v7432 = vunpack.c.l.s4 1934713408
        %v7433 = vunpack.c.0.s8 %v7432
        %v7434 = vperm.slane %v7428, %v7433
        %v7436 = vunpack.c.l.s4 1934713408
        %v7437 = vunpack.c.0.s8 %v7436
        %v7438 = vperm.slane %v7430, %v7437
        %v7439 = vrot.slane %v7410, 4
        %v7440 = vsel %vm1423, %v7439, %v7398
        %v7441 = vrot.slane %v7398, 4
        %v7442 = vsel %vm1423, %v7410, %v7441
        %v7444 = vunpack.c.l.s4 1934713408
        %v7445 = vunpack.c.0.s8 %v7444
        %v7446 = vperm.slane %v7440, %v7445
        %v7448 = vunpack.c.l.s4 1934713408
        %v7449 = vunpack.c.0.s8 %v7448
        %v7450 = vperm.slane %v7442, %v7449
        %v7451 = vrot.slane %v7414, 4
        %v7452 = vsel %vm1423, %v7451, %v7402
        %v7453 = vrot.slane %v7402, 4
        %v7454 = vsel %vm1423, %v7414, %v7453
        %v7456 = vunpack.c.l.s4 1934713408
        %v7457 = vunpack.c.0.s8 %v7456
        %v7458 = vperm.slane %v7452, %v7457
        %v7460 = vunpack.c.l.s4 1934713408
        %v7461 = vunpack.c.0.s8 %v7460
        %v7462 = vperm.slane %v7454, %v7461
        %v7463 = vrot.slane %v7446, 4
        %v7464 = vsel %vm1423, %v7463, %v7422
        %v7465 = vrot.slane %v7422, 4
        %v7466 = vsel %vm1423, %v7446, %v7465
        %v7467 = vrot.slane %v7450, 4
        %v7468 = vsel %vm1423, %v7467, %v7426
        %v7469 = vrot.slane %v7426, 4
        %v7470 = vsel %vm1423, %v7450, %v7469
        %v7471 = vrot.slane %v7458, 4
        %v7472 = vsel %vm1423, %v7471, %v7434
        %v7473 = vrot.slane %v7434, 4
        %v7474 = vsel %vm1423, %v7458, %v7473
        %v7475 = vrot.slane %v7462, 4
        %v7476 = vsel %vm1423, %v7475, %v7438
        %v7477 = vrot.slane %v7438, 4
        %v7478 = vsel %vm1423, %v7462, %v7477
        %v7479 = vrot.slane %v7209, 4
        %v7480 = vsel %vm1423, %v7479, %v7193
        %v7481 = vrot.slane %v7193, 4
        %v7482 = vsel %vm1423, %v7209, %v7481
        %v7484 = vunpack.c.l.s4 1983009808
        %v7485 = vunpack.c.0.s8 %v7484
        %v7486 = vperm.slane %v7480, %v7485
        %v7488 = vunpack.c.l.s4 1983009808
        %v7489 = vunpack.c.0.s8 %v7488
        %v7490 = vperm.slane %v7482, %v7489
        %v7491 = vrot.slane %v7217, 4
        %v7492 = vsel %vm1423, %v7491, %v7201
        %v7493 = vrot.slane %v7201, 4
        %v7494 = vsel %vm1423, %v7217, %v7493
        %v7496 = vunpack.c.l.s4 1983009808
        %v7497 = vunpack.c.0.s8 %v7496
        %v7498 = vperm.slane %v7492, %v7497
        %v7500 = vunpack.c.l.s4 1983009808
        %v7501 = vunpack.c.0.s8 %v7500
        %v7502 = vperm.slane %v7494, %v7501
        %v7503 = vrot.slane %v7241, 4
        %v7504 = vsel %vm1423, %v7503, %v7225
        %v7505 = vrot.slane %v7225, 4
        %v7506 = vsel %vm1423, %v7241, %v7505
        %v7508 = vunpack.c.l.s4 1983009808
        %v7509 = vunpack.c.0.s8 %v7508
        %v7510 = vperm.slane %v7504, %v7509
        %v7512 = vunpack.c.l.s4 1983009808
        %v7513 = vunpack.c.0.s8 %v7512
        %v7514 = vperm.slane %v7506, %v7513
        %v7515 = vrot.slane %v7249, 4
        %v7516 = vsel %vm1423, %v7515, %v7233
        %v7517 = vrot.slane %v7233, 4
        %v7518 = vsel %vm1423, %v7249, %v7517
        %v7520 = vunpack.c.l.s4 1983009808
        %v7521 = vunpack.c.0.s8 %v7520
        %v7522 = vperm.slane %v7516, %v7521
        %v7524 = vunpack.c.l.s4 1983009808
        %v7525 = vunpack.c.0.s8 %v7524
        %v7526 = vperm.slane %v7518, %v7525
        %v7527 = vrot.slane %v7498, 4
        %v7528 = vsel %vm1423, %v7527, %v7486
        %v7529 = vrot.slane %v7486, 4
        %v7530 = vsel %vm1423, %v7498, %v7529
        %v7532 = vunpack.c.l.s4 1934713408
        %v7533 = vunpack.c.0.s8 %v7532
        %v7534 = vperm.slane %v7528, %v7533
        %v7536 = vunpack.c.l.s4 1934713408
        %v7537 = vunpack.c.0.s8 %v7536
        %v7538 = vperm.slane %v7530, %v7537
        %v7539 = vrot.slane %v7502, 4
        %v7540 = vsel %vm1423, %v7539, %v7490
        %v7541 = vrot.slane %v7490, 4
        %v7542 = vsel %vm1423, %v7502, %v7541
        %v7544 = vunpack.c.l.s4 1934713408
        %v7545 = vunpack.c.0.s8 %v7544
        %v7546 = vperm.slane %v7540, %v7545
        %v7548 = vunpack.c.l.s4 1934713408
        %v7549 = vunpack.c.0.s8 %v7548
        %v7550 = vperm.slane %v7542, %v7549
        %v7551 = vrot.slane %v7522, 4
        %v7552 = vsel %vm1423, %v7551, %v7510
        %v7553 = vrot.slane %v7510, 4
        %v7554 = vsel %vm1423, %v7522, %v7553
        %v7556 = vunpack.c.l.s4 1934713408
        %v7557 = vunpack.c.0.s8 %v7556
        %v7558 = vperm.slane %v7552, %v7557
        %v7560 = vunpack.c.l.s4 1934713408
        %v7561 = vunpack.c.0.s8 %v7560
        %v7562 = vperm.slane %v7554, %v7561
        %v7563 = vrot.slane %v7526, 4
        %v7564 = vsel %vm1423, %v7563, %v7514
        %v7565 = vrot.slane %v7514, 4
        %v7566 = vsel %vm1423, %v7526, %v7565
        %v7568 = vunpack.c.l.s4 1934713408
        %v7569 = vunpack.c.0.s8 %v7568
        %v7570 = vperm.slane %v7564, %v7569
        %v7572 = vunpack.c.l.s4 1934713408
        %v7573 = vunpack.c.0.s8 %v7572
        %v7574 = vperm.slane %v7566, %v7573
        %v7575 = vrot.slane %v7558, 4
        %v7576 = vsel %vm1423, %v7575, %v7534
        %v7577 = vrot.slane %v7534, 4
        %v7578 = vsel %vm1423, %v7558, %v7577
        %v7579 = vrot.slane %v7562, 4
        %v7580 = vsel %vm1423, %v7579, %v7538
        %v7581 = vrot.slane %v7538, 4
        %v7582 = vsel %vm1423, %v7562, %v7581
        %v7583 = vrot.slane %v7570, 4
        %v7584 = vsel %vm1423, %v7583, %v7546
        %v7585 = vrot.slane %v7546, 4
        %v7586 = vsel %vm1423, %v7570, %v7585
        %v7587 = vrot.slane %v7574, 4
        %v7588 = vsel %vm1423, %v7587, %v7550
        %v7589 = vrot.slane %v7550, 4
        %v7590 = vsel %vm1423, %v7574, %v7589
        %v7591 = vrot.slane %v7210, 4
        %v7592 = vsel %vm1423, %v7591, %v7194
        %v7593 = vrot.slane %v7194, 4
        %v7594 = vsel %vm1423, %v7210, %v7593
        %v7596 = vunpack.c.l.s4 1983009808
        %v7597 = vunpack.c.0.s8 %v7596
        %v7598 = vperm.slane %v7592, %v7597
        %v7600 = vunpack.c.l.s4 1983009808
        %v7601 = vunpack.c.0.s8 %v7600
        %v7602 = vperm.slane %v7594, %v7601
        %v7603 = vrot.slane %v7218, 4
        %v7604 = vsel %vm1423, %v7603, %v7202
        %v7605 = vrot.slane %v7202, 4
        %v7606 = vsel %vm1423, %v7218, %v7605
        %v7608 = vunpack.c.l.s4 1983009808
        %v7609 = vunpack.c.0.s8 %v7608
        %v7610 = vperm.slane %v7604, %v7609
        %v7612 = vunpack.c.l.s4 1983009808
        %v7613 = vunpack.c.0.s8 %v7612
        %v7614 = vperm.slane %v7606, %v7613
        %v7615 = vrot.slane %v7242, 4
        %v7616 = vsel %vm1423, %v7615, %v7226
        %v7617 = vrot.slane %v7226, 4
        %v7618 = vsel %vm1423, %v7242, %v7617
        %v7620 = vunpack.c.l.s4 1983009808
        %v7621 = vunpack.c.0.s8 %v7620
        %v7622 = vperm.slane %v7616, %v7621
        %v7624 = vunpack.c.l.s4 1983009808
        %v7625 = vunpack.c.0.s8 %v7624
        %v7626 = vperm.slane %v7618, %v7625
        %v7627 = vrot.slane %v7250, 4
        %v7628 = vsel %vm1423, %v7627, %v7234
        %v7629 = vrot.slane %v7234, 4
        %v7630 = vsel %vm1423, %v7250, %v7629
        %v7632 = vunpack.c.l.s4 1983009808
        %v7633 = vunpack.c.0.s8 %v7632
        %v7634 = vperm.slane %v7628, %v7633
        %v7636 = vunpack.c.l.s4 1983009808
        %v7637 = vunpack.c.0.s8 %v7636
        %v7638 = vperm.slane %v7630, %v7637
        %v7639 = vrot.slane %v7610, 4
        %v7640 = vsel %vm1423, %v7639, %v7598
        %v7641 = vrot.slane %v7598, 4
        %v7642 = vsel %vm1423, %v7610, %v7641
        %v7644 = vunpack.c.l.s4 1934713408
        %v7645 = vunpack.c.0.s8 %v7644
        %v7646 = vperm.slane %v7640, %v7645
        %v7648 = vunpack.c.l.s4 1934713408
        %v7649 = vunpack.c.0.s8 %v7648
        %v7650 = vperm.slane %v7642, %v7649
        %v7651 = vrot.slane %v7614, 4
        %v7652 = vsel %vm1423, %v7651, %v7602
        %v7653 = vrot.slane %v7602, 4
        %v7654 = vsel %vm1423, %v7614, %v7653
        %v7656 = vunpack.c.l.s4 1934713408
        %v7657 = vunpack.c.0.s8 %v7656
        %v7658 = vperm.slane %v7652, %v7657
        %v7660 = vunpack.c.l.s4 1934713408
        %v7661 = vunpack.c.0.s8 %v7660
        %v7662 = vperm.slane %v7654, %v7661
        %v7663 = vrot.slane %v7634, 4
        %v7664 = vsel %vm1423, %v7663, %v7622
        %v7665 = vrot.slane %v7622, 4
        %v7666 = vsel %vm1423, %v7634, %v7665
        %v7668 = vunpack.c.l.s4 1934713408
        %v7669 = vunpack.c.0.s8 %v7668
        %v7670 = vperm.slane %v7664, %v7669
        %v7672 = vunpack.c.l.s4 1934713408
        %v7673 = vunpack.c.0.s8 %v7672
        %v7674 = vperm.slane %v7666, %v7673
        %v7675 = vrot.slane %v7638, 4
        %v7676 = vsel %vm1423, %v7675, %v7626
        %v7677 = vrot.slane %v7626, 4
        %v7678 = vsel %vm1423, %v7638, %v7677
        %v7680 = vunpack.c.l.s4 1934713408
        %v7681 = vunpack.c.0.s8 %v7680
        %v7682 = vperm.slane %v7676, %v7681
        %v7684 = vunpack.c.l.s4 1934713408
        %v7685 = vunpack.c.0.s8 %v7684
        %v7686 = vperm.slane %v7678, %v7685
        %v7687 = vrot.slane %v7670, 4
        %v7688 = vsel %vm1423, %v7687, %v7646
        %v7689 = vrot.slane %v7646, 4
        %v7690 = vsel %vm1423, %v7670, %v7689
        %v7691 = vrot.slane %v7674, 4
        %v7692 = vsel %vm1423, %v7691, %v7650
        %v7693 = vrot.slane %v7650, 4
        %v7694 = vsel %vm1423, %v7674, %v7693
        %v7695 = vrot.slane %v7682, 4
        %v7696 = vsel %vm1423, %v7695, %v7658
        %v7697 = vrot.slane %v7658, 4
        %v7698 = vsel %vm1423, %v7682, %v7697
        %v7699 = vrot.slane %v7686, 4
        %v7700 = vsel %vm1423, %v7699, %v7662
        %v7701 = vrot.slane %v7662, 4
        %v7702 = vsel %vm1423, %v7686, %v7701
        %v7703 = vrot.slane %v7211, 4
        %v7704 = vsel %vm1423, %v7703, %v7195
        %v7705 = vrot.slane %v7195, 4
        %v7706 = vsel %vm1423, %v7211, %v7705
        %v7708 = vunpack.c.l.s4 1983009808
        %v7709 = vunpack.c.0.s8 %v7708
        %v7710 = vperm.slane %v7704, %v7709
        %v7712 = vunpack.c.l.s4 1983009808
        %v7713 = vunpack.c.0.s8 %v7712
        %v7714 = vperm.slane %v7706, %v7713
        %v7715 = vrot.slane %v7219, 4
        %v7716 = vsel %vm1423, %v7715, %v7203
        %v7717 = vrot.slane %v7203, 4
        %v7718 = vsel %vm1423, %v7219, %v7717
        %v7720 = vunpack.c.l.s4 1983009808
        %v7721 = vunpack.c.0.s8 %v7720
        %v7722 = vperm.slane %v7716, %v7721
        %v7724 = vunpack.c.l.s4 1983009808
        %v7725 = vunpack.c.0.s8 %v7724
        %v7726 = vperm.slane %v7718, %v7725
        %v7727 = vrot.slane %v7243, 4
        %v7728 = vsel %vm1423, %v7727, %v7227
        %v7729 = vrot.slane %v7227, 4
        %v7730 = vsel %vm1423, %v7243, %v7729
        %v7732 = vunpack.c.l.s4 1983009808
        %v7733 = vunpack.c.0.s8 %v7732
        %v7734 = vperm.slane %v7728, %v7733
        %v7736 = vunpack.c.l.s4 1983009808
        %v7737 = vunpack.c.0.s8 %v7736
        %v7738 = vperm.slane %v7730, %v7737
        %v7739 = vrot.slane %v7251, 4
        %v7740 = vsel %vm1423, %v7739, %v7235
        %v7741 = vrot.slane %v7235, 4
        %v7742 = vsel %vm1423, %v7251, %v7741
        %v7744 = vunpack.c.l.s4 1983009808
        %v7745 = vunpack.c.0.s8 %v7744
        %v7746 = vperm.slane %v7740, %v7745
        %v7748 = vunpack.c.l.s4 1983009808
        %v7749 = vunpack.c.0.s8 %v7748
        %v7750 = vperm.slane %v7742, %v7749
        %v7751 = vrot.slane %v7722, 4
        %v7752 = vsel %vm1423, %v7751, %v7710
        %v7753 = vrot.slane %v7710, 4
        %v7754 = vsel %vm1423, %v7722, %v7753
        %v7756 = vunpack.c.l.s4 1934713408
        %v7757 = vunpack.c.0.s8 %v7756
        %v7758 = vperm.slane %v7752, %v7757
        %v7760 = vunpack.c.l.s4 1934713408
        %v7761 = vunpack.c.0.s8 %v7760
        %v7762 = vperm.slane %v7754, %v7761
        %v7763 = vrot.slane %v7726, 4
        %v7764 = vsel %vm1423, %v7763, %v7714
        %v7765 = vrot.slane %v7714, 4
        %v7766 = vsel %vm1423, %v7726, %v7765
        %v7768 = vunpack.c.l.s4 1934713408
        %v7769 = vunpack.c.0.s8 %v7768
        %v7770 = vperm.slane %v7764, %v7769
        %v7772 = vunpack.c.l.s4 1934713408
        %v7773 = vunpack.c.0.s8 %v7772
        %v7774 = vperm.slane %v7766, %v7773
        %v7775 = vrot.slane %v7746, 4
        %v7776 = vsel %vm1423, %v7775, %v7734
        %v7777 = vrot.slane %v7734, 4
        %v7778 = vsel %vm1423, %v7746, %v7777
        %v7780 = vunpack.c.l.s4 1934713408
        %v7781 = vunpack.c.0.s8 %v7780
        %v7782 = vperm.slane %v7776, %v7781
        %v7784 = vunpack.c.l.s4 1934713408
        %v7785 = vunpack.c.0.s8 %v7784
        %v7786 = vperm.slane %v7778, %v7785
        %v7787 = vrot.slane %v7750, 4
        %v7788 = vsel %vm1423, %v7787, %v7738
        %v7789 = vrot.slane %v7738, 4
        %v7790 = vsel %vm1423, %v7750, %v7789
        %v7792 = vunpack.c.l.s4 1934713408
        %v7793 = vunpack.c.0.s8 %v7792
        %v7794 = vperm.slane %v7788, %v7793
        %v7796 = vunpack.c.l.s4 1934713408
        %v7797 = vunpack.c.0.s8 %v7796
        %v7798 = vperm.slane %v7790, %v7797
        %v7799 = vrot.slane %v7782, 4
        %v7800 = vsel %vm1423, %v7799, %v7758
        %v7801 = vrot.slane %v7758, 4
        %v7802 = vsel %vm1423, %v7782, %v7801
        %v7803 = vrot.slane %v7786, 4
        %v7804 = vsel %vm1423, %v7803, %v7762
        %v7805 = vrot.slane %v7762, 4
        %v7806 = vsel %vm1423, %v7786, %v7805
        %v7807 = vrot.slane %v7794, 4
        %v7808 = vsel %vm1423, %v7807, %v7770
        %v7809 = vrot.slane %v7770, 4
        %v7810 = vsel %vm1423, %v7794, %v7809
        %v7811 = vrot.slane %v7798, 4
        %v7812 = vsel %vm1423, %v7811, %v7774
        %v7813 = vrot.slane %v7774, 4
        %v7814 = vsel %vm1423, %v7798, %v7813
        %v7815 = vrot.slane %v7212, 4
        %v7816 = vsel %vm1423, %v7815, %v7196
        %v7817 = vrot.slane %v7196, 4
        %v7818 = vsel %vm1423, %v7212, %v7817
        %v7820 = vunpack.c.l.s4 1983009808
        %v7821 = vunpack.c.0.s8 %v7820
        %v7822 = vperm.slane %v7816, %v7821
        %v7824 = vunpack.c.l.s4 1983009808
        %v7825 = vunpack.c.0.s8 %v7824
        %v7826 = vperm.slane %v7818, %v7825
        %v7827 = vrot.slane %v7220, 4
        %v7828 = vsel %vm1423, %v7827, %v7204
        %v7829 = vrot.slane %v7204, 4
        %v7830 = vsel %vm1423, %v7220, %v7829
        %v7832 = vunpack.c.l.s4 1983009808
        %v7833 = vunpack.c.0.s8 %v7832
        %v7834 = vperm.slane %v7828, %v7833
        %v7836 = vunpack.c.l.s4 1983009808
        %v7837 = vunpack.c.0.s8 %v7836
        %v7838 = vperm.slane %v7830, %v7837
        %v7839 = vrot.slane %v7244, 4
        %v7840 = vsel %vm1423, %v7839, %v7228
        %v7841 = vrot.slane %v7228, 4
        %v7842 = vsel %vm1423, %v7244, %v7841
        %v7844 = vunpack.c.l.s4 1983009808
        %v7845 = vunpack.c.0.s8 %v7844
        %v7846 = vperm.slane %v7840, %v7845
        %v7848 = vunpack.c.l.s4 1983009808
        %v7849 = vunpack.c.0.s8 %v7848
        %v7850 = vperm.slane %v7842, %v7849
        %v7851 = vrot.slane %v7252, 4
        %v7852 = vsel %vm1423, %v7851, %v7236
        %v7853 = vrot.slane %v7236, 4
        %v7854 = vsel %vm1423, %v7252, %v7853
        %v7856 = vunpack.c.l.s4 1983009808
        %v7857 = vunpack.c.0.s8 %v7856
        %v7858 = vperm.slane %v7852, %v7857
        %v7860 = vunpack.c.l.s4 1983009808
        %v7861 = vunpack.c.0.s8 %v7860
        %v7862 = vperm.slane %v7854, %v7861
        %v7863 = vrot.slane %v7834, 4
        %v7864 = vsel %vm1423, %v7863, %v7822
        %v7865 = vrot.slane %v7822, 4
        %v7866 = vsel %vm1423, %v7834, %v7865
        %v7868 = vunpack.c.l.s4 1934713408
        %v7869 = vunpack.c.0.s8 %v7868
        %v7870 = vperm.slane %v7864, %v7869
        %v7872 = vunpack.c.l.s4 1934713408
        %v7873 = vunpack.c.0.s8 %v7872
        %v7874 = vperm.slane %v7866, %v7873
        %v7875 = vrot.slane %v7838, 4
        %v7876 = vsel %vm1423, %v7875, %v7826
        %v7877 = vrot.slane %v7826, 4
        %v7878 = vsel %vm1423, %v7838, %v7877
        %v7880 = vunpack.c.l.s4 1934713408
        %v7881 = vunpack.c.0.s8 %v7880
        %v7882 = vperm.slane %v7876, %v7881
        %v7884 = vunpack.c.l.s4 1934713408
        %v7885 = vunpack.c.0.s8 %v7884
        %v7886 = vperm.slane %v7878, %v7885
        %v7887 = vrot.slane %v7858, 4
        %v7888 = vsel %vm1423, %v7887, %v7846
        %v7889 = vrot.slane %v7846, 4
        %v7890 = vsel %vm1423, %v7858, %v7889
        %v7892 = vunpack.c.l.s4 1934713408
        %v7893 = vunpack.c.0.s8 %v7892
        %v7894 = vperm.slane %v7888, %v7893
        %v7896 = vunpack.c.l.s4 1934713408
        %v7897 = vunpack.c.0.s8 %v7896
        %v7898 = vperm.slane %v7890, %v7897
        %v7899 = vrot.slane %v7862, 4
        %v7900 = vsel %vm1423, %v7899, %v7850
        %v7901 = vrot.slane %v7850, 4
        %v7902 = vsel %vm1423, %v7862, %v7901
        %v7904 = vunpack.c.l.s4 1934713408
        %v7905 = vunpack.c.0.s8 %v7904
        %v7906 = vperm.slane %v7900, %v7905
        %v7908 = vunpack.c.l.s4 1934713408
        %v7909 = vunpack.c.0.s8 %v7908
        %v7910 = vperm.slane %v7902, %v7909
        %v7911 = vrot.slane %v7894, 4
        %v7912 = vsel %vm1423, %v7911, %v7870
        %v7913 = vrot.slane %v7870, 4
        %v7914 = vsel %vm1423, %v7894, %v7913
        %v7915 = vrot.slane %v7898, 4
        %v7916 = vsel %vm1423, %v7915, %v7874
        %v7917 = vrot.slane %v7874, 4
        %v7918 = vsel %vm1423, %v7898, %v7917
        %v7919 = vrot.slane %v7906, 4
        %v7920 = vsel %vm1423, %v7919, %v7882
        %v7921 = vrot.slane %v7882, 4
        %v7922 = vsel %vm1423, %v7906, %v7921
        %v7923 = vrot.slane %v7910, 4
        %v7924 = vsel %vm1423, %v7923, %v7886
        %v7925 = vrot.slane %v7886, 4
        %v7926 = vsel %vm1423, %v7910, %v7925
        %v7927 = vrot.slane %v7213, 4
        %v7928 = vsel %vm1423, %v7927, %v7197
        %v7929 = vrot.slane %v7197, 4
        %v7930 = vsel %vm1423, %v7213, %v7929
        %v7932 = vunpack.c.l.s4 1983009808
        %v7933 = vunpack.c.0.s8 %v7932
        %v7934 = vperm.slane %v7928, %v7933
        %v7936 = vunpack.c.l.s4 1983009808
        %v7937 = vunpack.c.0.s8 %v7936
        %v7938 = vperm.slane %v7930, %v7937
        %v7939 = vrot.slane %v7221, 4
        %v7940 = vsel %vm1423, %v7939, %v7205
        %v7941 = vrot.slane %v7205, 4
        %v7942 = vsel %vm1423, %v7221, %v7941
        %v7944 = vunpack.c.l.s4 1983009808
        %v7945 = vunpack.c.0.s8 %v7944
        %v7946 = vperm.slane %v7940, %v7945
        %v7948 = vunpack.c.l.s4 1983009808
        %v7949 = vunpack.c.0.s8 %v7948
        %v7950 = vperm.slane %v7942, %v7949
        %v7951 = vrot.slane %v7245, 4
        %v7952 = vsel %vm1423, %v7951, %v7229
        %v7953 = vrot.slane %v7229, 4
        %v7954 = vsel %vm1423, %v7245, %v7953
        %v7956 = vunpack.c.l.s4 1983009808
        %v7957 = vunpack.c.0.s8 %v7956
        %v7958 = vperm.slane %v7952, %v7957
        %v7960 = vunpack.c.l.s4 1983009808
        %v7961 = vunpack.c.0.s8 %v7960
        %v7962 = vperm.slane %v7954, %v7961
        %v7963 = vrot.slane %v7253, 4
        %v7964 = vsel %vm1423, %v7963, %v7237
        %v7965 = vrot.slane %v7237, 4
        %v7966 = vsel %vm1423, %v7253, %v7965
        %v7968 = vunpack.c.l.s4 1983009808
        %v7969 = vunpack.c.0.s8 %v7968
        %v7970 = vperm.slane %v7964, %v7969
        %v7972 = vunpack.c.l.s4 1983009808
        %v7973 = vunpack.c.0.s8 %v7972
        %v7974 = vperm.slane %v7966, %v7973
        %v7975 = vrot.slane %v7946, 4
        %v7976 = vsel %vm1423, %v7975, %v7934
        %v7977 = vrot.slane %v7934, 4
        %v7978 = vsel %vm1423, %v7946, %v7977
        %v7980 = vunpack.c.l.s4 1934713408
        %v7981 = vunpack.c.0.s8 %v7980
        %v7982 = vperm.slane %v7976, %v7981
        %v7984 = vunpack.c.l.s4 1934713408
        %v7985 = vunpack.c.0.s8 %v7984
        %v7986 = vperm.slane %v7978, %v7985
        %v7987 = vrot.slane %v7950, 4
        %v7988 = vsel %vm1423, %v7987, %v7938
        %v7989 = vrot.slane %v7938, 4
        %v7990 = vsel %vm1423, %v7950, %v7989
        %v7992 = vunpack.c.l.s4 1934713408
        %v7993 = vunpack.c.0.s8 %v7992
        %v7994 = vperm.slane %v7988, %v7993
        %v7996 = vunpack.c.l.s4 1934713408
        %v7997 = vunpack.c.0.s8 %v7996
        %v7998 = vperm.slane %v7990, %v7997
        %v7999 = vrot.slane %v7970, 4
        %v8000 = vsel %vm1423, %v7999, %v7958
        %v8001 = vrot.slane %v7958, 4
        %v8002 = vsel %vm1423, %v7970, %v8001
        %v8004 = vunpack.c.l.s4 1934713408
        %v8005 = vunpack.c.0.s8 %v8004
        %v8006 = vperm.slane %v8000, %v8005
        %v8008 = vunpack.c.l.s4 1934713408
        %v8009 = vunpack.c.0.s8 %v8008
        %v8010 = vperm.slane %v8002, %v8009
        %v8011 = vrot.slane %v7974, 4
        %v8012 = vsel %vm1423, %v8011, %v7962
        %v8013 = vrot.slane %v7962, 4
        %v8014 = vsel %vm1423, %v7974, %v8013
        %v8016 = vunpack.c.l.s4 1934713408
        %v8017 = vunpack.c.0.s8 %v8016
        %v8018 = vperm.slane %v8012, %v8017
        %v8020 = vunpack.c.l.s4 1934713408
        %v8021 = vunpack.c.0.s8 %v8020
        %v8022 = vperm.slane %v8014, %v8021
        %v8023 = vrot.slane %v8006, 4
        %v8024 = vsel %vm1423, %v8023, %v7982
        %v8025 = vrot.slane %v7982, 4
        %v8026 = vsel %vm1423, %v8006, %v8025
        %v8027 = vrot.slane %v8010, 4
        %v8028 = vsel %vm1423, %v8027, %v7986
        %v8029 = vrot.slane %v7986, 4
        %v8030 = vsel %vm1423, %v8010, %v8029
        %v8031 = vrot.slane %v8018, 4
        %v8032 = vsel %vm1423, %v8031, %v7994
        %v8033 = vrot.slane %v7994, 4
        %v8034 = vsel %vm1423, %v8018, %v8033
        %v8035 = vrot.slane %v8022, 4
        %v8036 = vsel %vm1423, %v8035, %v7998
        %v8037 = vrot.slane %v7998, 4
        %v8038 = vsel %vm1423, %v8022, %v8037
        %v8039 = vrot.slane %v7214, 4
        %v8040 = vsel %vm1423, %v8039, %v7198
        %v8041 = vrot.slane %v7198, 4
        %v8042 = vsel %vm1423, %v7214, %v8041
        %v8044 = vunpack.c.l.s4 1983009808
        %v8045 = vunpack.c.0.s8 %v8044
        %v8046 = vperm.slane %v8040, %v8045
        %v8048 = vunpack.c.l.s4 1983009808
        %v8049 = vunpack.c.0.s8 %v8048
        %v8050 = vperm.slane %v8042, %v8049
        %v8051 = vrot.slane %v7222, 4
        %v8052 = vsel %vm1423, %v8051, %v7206
        %v8053 = vrot.slane %v7206, 4
        %v8054 = vsel %vm1423, %v7222, %v8053
        %v8056 = vunpack.c.l.s4 1983009808
        %v8057 = vunpack.c.0.s8 %v8056
        %v8058 = vperm.slane %v8052, %v8057
        %v8060 = vunpack.c.l.s4 1983009808
        %v8061 = vunpack.c.0.s8 %v8060
        %v8062 = vperm.slane %v8054, %v8061
        %v8063 = vrot.slane %v7246, 4
        %v8064 = vsel %vm1423, %v8063, %v7230
        %v8065 = vrot.slane %v7230, 4
        %v8066 = vsel %vm1423, %v7246, %v8065
        %v8068 = vunpack.c.l.s4 1983009808
        %v8069 = vunpack.c.0.s8 %v8068
        %v8070 = vperm.slane %v8064, %v8069
        %v8072 = vunpack.c.l.s4 1983009808
        %v8073 = vunpack.c.0.s8 %v8072
        %v8074 = vperm.slane %v8066, %v8073
        %v8075 = vrot.slane %v7254, 4
        %v8076 = vsel %vm1423, %v8075, %v7238
        %v8077 = vrot.slane %v7238, 4
        %v8078 = vsel %vm1423, %v7254, %v8077
        %v8080 = vunpack.c.l.s4 1983009808
        %v8081 = vunpack.c.0.s8 %v8080
        %v8082 = vperm.slane %v8076, %v8081
        %v8084 = vunpack.c.l.s4 1983009808
        %v8085 = vunpack.c.0.s8 %v8084
        %v8086 = vperm.slane %v8078, %v8085
        %v8087 = vrot.slane %v8058, 4
        %v8088 = vsel %vm1423, %v8087, %v8046
        %v8089 = vrot.slane %v8046, 4
        %v8090 = vsel %vm1423, %v8058, %v8089
        %v8092 = vunpack.c.l.s4 1934713408
        %v8093 = vunpack.c.0.s8 %v8092
        %v8094 = vperm.slane %v8088, %v8093
        %v8096 = vunpack.c.l.s4 1934713408
        %v8097 = vunpack.c.0.s8 %v8096
        %v8098 = vperm.slane %v8090, %v8097
        %v8099 = vrot.slane %v8062, 4
        %v8100 = vsel %vm1423, %v8099, %v8050
        %v8101 = vrot.slane %v8050, 4
        %v8102 = vsel %vm1423, %v8062, %v8101
        %v8104 = vunpack.c.l.s4 1934713408
        %v8105 = vunpack.c.0.s8 %v8104
        %v8106 = vperm.slane %v8100, %v8105
        %v8108 = vunpack.c.l.s4 1934713408
        %v8109 = vunpack.c.0.s8 %v8108
        %v8110 = vperm.slane %v8102, %v8109
        %v8111 = vrot.slane %v8082, 4
        %v8112 = vsel %vm1423, %v8111, %v8070
        %v8113 = vrot.slane %v8070, 4
        %v8114 = vsel %vm1423, %v8082, %v8113
        %v8116 = vunpack.c.l.s4 1934713408
        %v8117 = vunpack.c.0.s8 %v8116
        %v8118 = vperm.slane %v8112, %v8117
        %v8120 = vunpack.c.l.s4 1934713408
        %v8121 = vunpack.c.0.s8 %v8120
        %v8122 = vperm.slane %v8114, %v8121
        %v8123 = vrot.slane %v8086, 4
        %v8124 = vsel %vm1423, %v8123, %v8074
        %v8125 = vrot.slane %v8074, 4
        %v8126 = vsel %vm1423, %v8086, %v8125
        %v8128 = vunpack.c.l.s4 1934713408
        %v8129 = vunpack.c.0.s8 %v8128
        %v8130 = vperm.slane %v8124, %v8129
        %v8132 = vunpack.c.l.s4 1934713408
        %v8133 = vunpack.c.0.s8 %v8132
        %v8134 = vperm.slane %v8126, %v8133
        %v8135 = vrot.slane %v8118, 4
        %v8136 = vsel %vm1423, %v8135, %v8094
        %v8137 = vrot.slane %v8094, 4
        %v8138 = vsel %vm1423, %v8118, %v8137
        %v8139 = vrot.slane %v8122, 4
        %v8140 = vsel %vm1423, %v8139, %v8098
        %v8141 = vrot.slane %v8098, 4
        %v8142 = vsel %vm1423, %v8122, %v8141
        %v8143 = vrot.slane %v8130, 4
        %v8144 = vsel %vm1423, %v8143, %v8106
        %v8145 = vrot.slane %v8106, 4
        %v8146 = vsel %vm1423, %v8130, %v8145
        %v8147 = vrot.slane %v8134, 4
        %v8148 = vsel %vm1423, %v8147, %v8110
        %v8149 = vrot.slane %v8110, 4
        %v8150 = vsel %vm1423, %v8134, %v8149
        %8152 = vrot.lane.b32.xlu0 %v7354, 64
        %v8153 = vpop.permute.xlu0 %8152
        %8156 = vrot.lane.b32.xlu0 %v7358, 64
        %v8157 = vpop.permute.xlu0 %8156
        %8160 = vrot.lane.b32.xlu0 %v7362, 64
        %v8161 = vpop.permute.xlu0 %8160
        %8164 = vrot.lane.b32.xlu0 %v7366, 64
        %v8165 = vpop.permute.xlu0 %8164
        %8168 = vrot.lane.b32.xlu0 %v7466, 64
        %v8169 = vpop.permute.xlu0 %8168
        %8172 = vrot.lane.b32.xlu0 %v7470, 64
        %v8173 = vpop.permute.xlu0 %8172
        %8176 = vrot.lane.b32.xlu0 %v7474, 64
        %v8177 = vpop.permute.xlu0 %8176
        %8180 = vrot.lane.b32.xlu0 %v7478, 64
        %v8181 = vpop.permute.xlu0 %8180
        %8184 = vrot.lane.b32.xlu0 %v7578, 64
        %v8185 = vpop.permute.xlu0 %8184
        %8188 = vrot.lane.b32.xlu0 %v7582, 64
        %v8189 = vpop.permute.xlu0 %8188
        %8192 = vrot.lane.b32.xlu0 %v7586, 64
        %v8193 = vpop.permute.xlu0 %8192
        %8196 = vrot.lane.b32.xlu0 %v7590, 64
        %v8197 = vpop.permute.xlu0 %8196
        %8200 = vrot.lane.b32.xlu0 %v7690, 64
        %v8201 = vpop.permute.xlu0 %8200
        %8204 = vrot.lane.b32.xlu0 %v7694, 64
        %v8205 = vpop.permute.xlu0 %8204
        %8208 = vrot.lane.b32.xlu0 %v7698, 64
        %v8209 = vpop.permute.xlu0 %8208
        %8212 = vrot.lane.b32.xlu0 %v7702, 64
        %v8213 = vpop.permute.xlu0 %8212
        %8216 = vrot.lane.b32.xlu0 %v7802, 64
        %v8217 = vpop.permute.xlu0 %8216
        %8220 = vrot.lane.b32.xlu0 %v7806, 64
        %v8221 = vpop.permute.xlu0 %8220
        %8224 = vrot.lane.b32.xlu0 %v7810, 64
        %v8225 = vpop.permute.xlu0 %8224
        %8228 = vrot.lane.b32.xlu0 %v7814, 64
        %v8229 = vpop.permute.xlu0 %8228
        %8232 = vrot.lane.b32.xlu0 %v7914, 64
        %v8233 = vpop.permute.xlu0 %8232
        %8236 = vrot.lane.b32.xlu0 %v7918, 64
        %v8237 = vpop.permute.xlu0 %8236
        %8240 = vrot.lane.b32.xlu0 %v7922, 64
        %v8241 = vpop.permute.xlu0 %8240
        %8244 = vrot.lane.b32.xlu0 %v7926, 64
        %v8245 = vpop.permute.xlu0 %8244
        %8248 = vrot.lane.b32.xlu0 %v8026, 64
        %v8249 = vpop.permute.xlu0 %8248
        %8252 = vrot.lane.b32.xlu0 %v8030, 64
        %v8253 = vpop.permute.xlu0 %8252
        %8256 = vrot.lane.b32.xlu0 %v8034, 64
        %v8257 = vpop.permute.xlu0 %8256
        %8260 = vrot.lane.b32.xlu0 %v8038, 64
        %v8261 = vpop.permute.xlu0 %8260
        %8264 = vrot.lane.b32.xlu0 %v8138, 64
        %v8265 = vpop.permute.xlu0 %8264
        %8268 = vrot.lane.b32.xlu0 %v8142, 64
        %v8269 = vpop.permute.xlu0 %8268
        %8272 = vrot.lane.b32.xlu0 %v8146, 64
        %v8273 = vpop.permute.xlu0 %8272
        %8276 = vrot.lane.b32.xlu0 %v8150, 64
        %v8277 = vpop.permute.xlu0 %8276
        %v8279 = vsel %vm2447, %v7352, %v8153
        %v8280 = vsel %vm2447, %v7356, %v8157
        %v8281 = vsel %vm2447, %v7360, %v8161
        %v8282 = vsel %vm2447, %v7364, %v8165
        %v8283 = vsel %vm2447, %v7464, %v8169
        %v8284 = vsel %vm2447, %v7468, %v8173
        %v8285 = vsel %vm2447, %v7472, %v8177
        %v8286 = vsel %vm2447, %v7476, %v8181
        %v8287 = vsel %vm2447, %v7576, %v8185
        %v8288 = vsel %vm2447, %v7580, %v8189
        %v8289 = vsel %vm2447, %v7584, %v8193
        %v8290 = vsel %vm2447, %v7588, %v8197
        %v8291 = vsel %vm2447, %v7688, %v8201
        %v8292 = vsel %vm2447, %v7692, %v8205
        %v8293 = vsel %vm2447, %v7696, %v8209
        %v8294 = vsel %vm2447, %v7700, %v8213
        %v8295 = vsel %vm2447, %v7800, %v8217
        %v8296 = vsel %vm2447, %v7804, %v8221
        %v8297 = vsel %vm2447, %v7808, %v8225
        %v8298 = vsel %vm2447, %v7812, %v8229
        %v8299 = vsel %vm2447, %v7912, %v8233
        %v8300 = vsel %vm2447, %v7916, %v8237
        %v8301 = vsel %vm2447, %v7920, %v8241
        %v8302 = vsel %vm2447, %v7924, %v8245
        %v8303 = vsel %vm2447, %v8024, %v8249
        %v8304 = vsel %vm2447, %v8028, %v8253
        %v8305 = vsel %vm2447, %v8032, %v8257
        %v8306 = vsel %vm2447, %v8036, %v8261
        %v8307 = vsel %vm2447, %v8136, %v8265
        %v8308 = vsel %vm2447, %v8140, %v8269
        %v8309 = vsel %vm2447, %v8144, %v8273
        %v8310 = vsel %vm2447, %v8148, %v8277
        %v8311 = vpack.c.bf16 %v8279, %v8279
        %v8312 = vpack.c.bf16 %v8280, %v8280
        %v8313 = vpack.c.bf16 %v8281, %v8281
        %v8314 = vpack.c.bf16 %v8282, %v8282
        %v8315 = vpack.c.bf16 %v8283, %v8283
        %v8316 = vpack.c.bf16 %v8284, %v8284
        %v8317 = vpack.c.bf16 %v8285, %v8285
        %v8318 = vpack.c.bf16 %v8286, %v8286
        %v8319 = vpack.c.bf16 %v8287, %v8287
        %v8320 = vpack.c.bf16 %v8288, %v8288
        %v8321 = vpack.c.bf16 %v8289, %v8289
        %v8322 = vpack.c.bf16 %v8290, %v8290
        %v8323 = vpack.c.bf16 %v8291, %v8291
        %v8324 = vpack.c.bf16 %v8292, %v8292
        %v8325 = vpack.c.bf16 %v8293, %v8293
        %v8326 = vpack.c.bf16 %v8294, %v8294
        %v8327 = vpack.c.bf16 %v8295, %v8295
        %v8328 = vpack.c.bf16 %v8296, %v8296
        %v8329 = vpack.c.bf16 %v8297, %v8297
        %v8330 = vpack.c.bf16 %v8298, %v8298
        %v8331 = vpack.c.bf16 %v8299, %v8299
        %v8332 = vpack.c.bf16 %v8300, %v8300
        %v8333 = vpack.c.bf16 %v8301, %v8301
        %v8334 = vpack.c.bf16 %v8302, %v8302
        %v8335 = vpack.c.bf16 %v8303, %v8303
        %v8336 = vpack.c.bf16 %v8304, %v8304
        %v8337 = vpack.c.bf16 %v8305, %v8305
        %v8338 = vpack.c.bf16 %v8306, %v8306
        %v8339 = vpack.c.bf16 %v8307, %v8307
        %v8340 = vpack.c.bf16 %v8308, %v8308
        %v8341 = vpack.c.bf16 %v8309, %v8309
        %v8342 = vpack.c.bf16 %v8310, %v8310
        %v8343 = vsel %vm2447, %v6774, 0
        %8345 = vmatpush.msra.mxu0 0.0
        %8346 = vmatpush.msra.mxu0 0.0
        %8347 = vmatpush.msra.mxu0 0.0
        %8348 = vmatpush.msra.mxu0 0.0
        %8349 = vmatpush.msra.mxu0 0.0
        %8350 = vmatpush.msra.mxu0 0.0
        %8351 = vmatpush.msra.mxu0 0.0
        %8352 = vmatpush.msra.mxu0 0.0
        %8353 = vmatpush.msra.mxu0 %v833
        %8354 = vmatpush.msra.mxu0 %v832
        %8355 = vmatpush.msra.mxu0 %v831
        %8356 = vmatpush.msra.mxu0 %v830
        %8357 = vmatpush.msra.mxu0 %v829
        %8358 = vmatpush.msra.mxu0 %v828
        %8359 = vmatpush.msra.mxu0 %v827
        %8360 = vmatpush.msra.mxu0 %v826
        %8361 = vmatmul.f32.gmra.mxu0 %v8343
        %v8362 = vpop.f32.mrf.mxu0
        %v8363 = vadd.f32 0.0, %v8362
        %8364 = vdwg.mxu0
        %8365 = vmatpush.bf16.msra.mxu0 %v3565
        %8366 = vmatpush.bf16.msra.mxu0 %v3564
        %8367 = vmatpush.bf16.msra.mxu0 %v3563
        %8368 = vmatpush.bf16.msra.mxu0 %v3562
        %8369 = vmatpush.bf16.msra.mxu0 %v3561
        %8370 = vmatpush.bf16.msra.mxu0 %v3560
        %8371 = vmatpush.bf16.msra.mxu0 %v3559
        %8372 = vmatpush.bf16.msra.mxu0 %v3558
        %8373 = vmatmul.bf16.gmra.mxu0 %v8311
        %v8374 = vpop.f32.mrf.mxu0
        %v8375 = vadd.f32 %v8363, %v8374
        %v8376 = vpop.f32.mrf.mxu0
        %8377 = vdwg.mxu0
        %8378 = vmatpush.bf16.msra.mxu0 %v3573
        %8379 = vmatpush.bf16.msra.mxu0 %v3572
        %8380 = vmatpush.bf16.msra.mxu0 %v3571
        %8381 = vmatpush.bf16.msra.mxu0 %v3570
        %8382 = vmatpush.bf16.msra.mxu0 %v3569
        %8383 = vmatpush.bf16.msra.mxu0 %v3568
        %8384 = vmatpush.bf16.msra.mxu0 %v3567
        %8385 = vmatpush.bf16.msra.mxu0 %v3566
        %8386 = vmatmul.bf16.gmra.mxu0 %v8312
        %v8387 = vpop.f32.mrf.mxu0
        %v8388 = vadd.f32 %v8375, %v8387
        %v8389 = vpop.f32.mrf.mxu0
        %8390 = vdwg.mxu0
        %8391 = vmatpush.bf16.msra.mxu0 %v3581
        %8392 = vmatpush.bf16.msra.mxu0 %v3580
        %8393 = vmatpush.bf16.msra.mxu0 %v3579
        %8394 = vmatpush.bf16.msra.mxu0 %v3578
        %8395 = vmatpush.bf16.msra.mxu0 %v3577
        %8396 = vmatpush.bf16.msra.mxu0 %v3576
        %8397 = vmatpush.bf16.msra.mxu0 %v3575
        %8398 = vmatpush.bf16.msra.mxu0 %v3574
        %8399 = vmatmul.bf16.gmra.mxu0 %v8313
        %v8400 = vpop.f32.mrf.mxu0
        %v8401 = vadd.f32 %v8388, %v8400
        %v8402 = vpop.f32.mrf.mxu0
        %8403 = vdwg.mxu0
        %8404 = vmatpush.bf16.msra.mxu0 %v3589
        %8405 = vmatpush.bf16.msra.mxu0 %v3588
        %8406 = vmatpush.bf16.msra.mxu0 %v3587
        %8407 = vmatpush.bf16.msra.mxu0 %v3586
        %8408 = vmatpush.bf16.msra.mxu0 %v3585
        %8409 = vmatpush.bf16.msra.mxu0 %v3584
        %8410 = vmatpush.bf16.msra.mxu0 %v3583
        %8411 = vmatpush.bf16.msra.mxu0 %v3582
        %8412 = vmatmul.bf16.gmra.mxu0 %v8314
        %v8413 = vpop.f32.mrf.mxu0
        %v8414 = vadd.f32 %v8401, %v8413
        %v8415 = vpop.f32.mrf.mxu0
        %8416 = vdwg.mxu0
        %8417 = vmatpush.bf16.msra.mxu0 %v3597
        %8418 = vmatpush.bf16.msra.mxu0 %v3596
        %8419 = vmatpush.bf16.msra.mxu0 %v3595
        %8420 = vmatpush.bf16.msra.mxu0 %v3594
        %8421 = vmatpush.bf16.msra.mxu0 %v3593
        %8422 = vmatpush.bf16.msra.mxu0 %v3592
        %8423 = vmatpush.bf16.msra.mxu0 %v3591
        %8424 = vmatpush.bf16.msra.mxu0 %v3590
        %8425 = vmatmul.bf16.gmra.mxu0 %v8315
        %v8426 = vpop.f32.mrf.mxu0
        %v8427 = vadd.f32 %v8414, %v8426
        %v8428 = vpop.f32.mrf.mxu0
        %8429 = vdwg.mxu0
        %8430 = vmatpush.bf16.msra.mxu0 %v3605
        %8431 = vmatpush.bf16.msra.mxu0 %v3604
        %8432 = vmatpush.bf16.msra.mxu0 %v3603
        %8433 = vmatpush.bf16.msra.mxu0 %v3602
        %8434 = vmatpush.bf16.msra.mxu0 %v3601
        %8435 = vmatpush.bf16.msra.mxu0 %v3600
        %8436 = vmatpush.bf16.msra.mxu0 %v3599
        %8437 = vmatpush.bf16.msra.mxu0 %v3598
        %8438 = vmatmul.bf16.gmra.mxu0 %v8316
        %v8439 = vpop.f32.mrf.mxu0
        %v8440 = vadd.f32 %v8427, %v8439
        %v8441 = vpop.f32.mrf.mxu0
        %8442 = vdwg.mxu0
        %8443 = vmatpush.bf16.msra.mxu0 %v3613
        %8444 = vmatpush.bf16.msra.mxu0 %v3612
        %8445 = vmatpush.bf16.msra.mxu0 %v3611
        %8446 = vmatpush.bf16.msra.mxu0 %v3610
        %8447 = vmatpush.bf16.msra.mxu0 %v3609
        %8448 = vmatpush.bf16.msra.mxu0 %v3608
        %8449 = vmatpush.bf16.msra.mxu0 %v3607
        %8450 = vmatpush.bf16.msra.mxu0 %v3606
        %8451 = vmatmul.bf16.gmra.mxu0 %v8317
        %v8452 = vpop.f32.mrf.mxu0
        %v8453 = vadd.f32 %v8440, %v8452
        %v8454 = vpop.f32.mrf.mxu0
        %8455 = vdwg.mxu0
        %8456 = vmatpush.bf16.msra.mxu0 %v3621
        %8457 = vmatpush.bf16.msra.mxu0 %v3620
        %8458 = vmatpush.bf16.msra.mxu0 %v3619
        %8459 = vmatpush.bf16.msra.mxu0 %v3618
        %8460 = vmatpush.bf16.msra.mxu0 %v3617
        %8461 = vmatpush.bf16.msra.mxu0 %v3616
        %8462 = vmatpush.bf16.msra.mxu0 %v3615
        %8463 = vmatpush.bf16.msra.mxu0 %v3614
        %8464 = vmatmul.bf16.gmra.mxu0 %v8318
        %v8465 = vpop.f32.mrf.mxu0
        %v8466 = vadd.f32 %v8453, %v8465
        %v8467 = vpop.f32.mrf.mxu0
        %8468 = vdwg.mxu0
        %8469 = vmatpush.bf16.msra.mxu0 %v3629
        %8470 = vmatpush.bf16.msra.mxu0 %v3628
        %8471 = vmatpush.bf16.msra.mxu0 %v3627
        %8472 = vmatpush.bf16.msra.mxu0 %v3626
        %8473 = vmatpush.bf16.msra.mxu0 %v3625
        %8474 = vmatpush.bf16.msra.mxu0 %v3624
        %8475 = vmatpush.bf16.msra.mxu0 %v3623
        %8476 = vmatpush.bf16.msra.mxu0 %v3622
        %8477 = vmatmul.bf16.gmra.mxu0 %v8319
        %v8478 = vpop.f32.mrf.mxu0
        %v8479 = vadd.f32 %v8466, %v8478
        %v8480 = vpop.f32.mrf.mxu0
        %8481 = vdwg.mxu0
        %8482 = vmatpush.bf16.msra.mxu0 %v3637
        %8483 = vmatpush.bf16.msra.mxu0 %v3636
        %8484 = vmatpush.bf16.msra.mxu0 %v3635
        %8485 = vmatpush.bf16.msra.mxu0 %v3634
        %8486 = vmatpush.bf16.msra.mxu0 %v3633
        %8487 = vmatpush.bf16.msra.mxu0 %v3632
        %8488 = vmatpush.bf16.msra.mxu0 %v3631
        %8489 = vmatpush.bf16.msra.mxu0 %v3630
        %8490 = vmatmul.bf16.gmra.mxu0 %v8320
        %v8491 = vpop.f32.mrf.mxu0
        %v8492 = vadd.f32 %v8479, %v8491
        %v8493 = vpop.f32.mrf.mxu0
        %8494 = vdwg.mxu0
        %8495 = vmatpush.bf16.msra.mxu0 %v3645
        %8496 = vmatpush.bf16.msra.mxu0 %v3644
        %8497 = vmatpush.bf16.msra.mxu0 %v3643
        %8498 = vmatpush.bf16.msra.mxu0 %v3642
        %8499 = vmatpush.bf16.msra.mxu0 %v3641
        %8500 = vmatpush.bf16.msra.mxu0 %v3640
        %8501 = vmatpush.bf16.msra.mxu0 %v3639
        %8502 = vmatpush.bf16.msra.mxu0 %v3638
        %8503 = vmatmul.bf16.gmra.mxu0 %v8321
        %v8504 = vpop.f32.mrf.mxu0
        %v8505 = vadd.f32 %v8492, %v8504
        %v8506 = vpop.f32.mrf.mxu0
        %8507 = vdwg.mxu0
        %8508 = vmatpush.bf16.msra.mxu0 %v3653
        %8509 = vmatpush.bf16.msra.mxu0 %v3652
        %8510 = vmatpush.bf16.msra.mxu0 %v3651
        %8511 = vmatpush.bf16.msra.mxu0 %v3650
        %8512 = vmatpush.bf16.msra.mxu0 %v3649
        %8513 = vmatpush.bf16.msra.mxu0 %v3648
        %8514 = vmatpush.bf16.msra.mxu0 %v3647
        %8515 = vmatpush.bf16.msra.mxu0 %v3646
        %8516 = vmatmul.bf16.gmra.mxu0 %v8322
        %v8517 = vpop.f32.mrf.mxu0
        %v8518 = vadd.f32 %v8505, %v8517
        %v8519 = vpop.f32.mrf.mxu0
        %8520 = vdwg.mxu0
        %8521 = vmatpush.bf16.msra.mxu0 %v3661
        %8522 = vmatpush.bf16.msra.mxu0 %v3660
        %8523 = vmatpush.bf16.msra.mxu0 %v3659
        %8524 = vmatpush.bf16.msra.mxu0 %v3658
        %8525 = vmatpush.bf16.msra.mxu0 %v3657
        %8526 = vmatpush.bf16.msra.mxu0 %v3656
        %8527 = vmatpush.bf16.msra.mxu0 %v3655
        %8528 = vmatpush.bf16.msra.mxu0 %v3654
        %8529 = vmatmul.bf16.gmra.mxu0 %v8323
        %v8530 = vpop.f32.mrf.mxu0
        %v8531 = vadd.f32 %v8518, %v8530
        %v8532 = vpop.f32.mrf.mxu0
        %8533 = vdwg.mxu0
        %8534 = vmatpush.bf16.msra.mxu0 %v3669
        %8535 = vmatpush.bf16.msra.mxu0 %v3668
        %8536 = vmatpush.bf16.msra.mxu0 %v3667
        %8537 = vmatpush.bf16.msra.mxu0 %v3666
        %8538 = vmatpush.bf16.msra.mxu0 %v3665
        %8539 = vmatpush.bf16.msra.mxu0 %v3664
        %8540 = vmatpush.bf16.msra.mxu0 %v3663
        %8541 = vmatpush.bf16.msra.mxu0 %v3662
        %8542 = vmatmul.bf16.gmra.mxu0 %v8324
        %v8543 = vpop.f32.mrf.mxu0
        %v8544 = vadd.f32 %v8531, %v8543
        %v8545 = vpop.f32.mrf.mxu0
        %8546 = vdwg.mxu0
        %8547 = vmatpush.bf16.msra.mxu0 %v3677
        %8548 = vmatpush.bf16.msra.mxu0 %v3676
        %8549 = vmatpush.bf16.msra.mxu0 %v3675
        %8550 = vmatpush.bf16.msra.mxu0 %v3674
        %8551 = vmatpush.bf16.msra.mxu0 %v3673
        %8552 = vmatpush.bf16.msra.mxu0 %v3672
        %8553 = vmatpush.bf16.msra.mxu0 %v3671
        %8554 = vmatpush.bf16.msra.mxu0 %v3670
        %8555 = vmatmul.bf16.gmra.mxu0 %v8325
        %v8556 = vpop.f32.mrf.mxu0
        %v8557 = vadd.f32 %v8544, %v8556
        %v8558 = vpop.f32.mrf.mxu0
        %8559 = vdwg.mxu0
        %8560 = vmatpush.bf16.msra.mxu0 %v3685
        %8561 = vmatpush.bf16.msra.mxu0 %v3684
        %8562 = vmatpush.bf16.msra.mxu0 %v3683
        %8563 = vmatpush.bf16.msra.mxu0 %v3682
        %8564 = vmatpush.bf16.msra.mxu0 %v3681
        %8565 = vmatpush.bf16.msra.mxu0 %v3680
        %8566 = vmatpush.bf16.msra.mxu0 %v3679
        %8567 = vmatpush.bf16.msra.mxu0 %v3678
        %8568 = vmatmul.bf16.gmra.mxu0 %v8326
        %v8569 = vpop.f32.mrf.mxu0
        %v8570 = vadd.f32 %v8557, %v8569
        %v8571 = vpop.f32.mrf.mxu0
        %8572 = vdwg.mxu0
        %8573 = vmatpush.bf16.msra.mxu0 %v3693
        %8574 = vmatpush.bf16.msra.mxu0 %v3692
        %8575 = vmatpush.bf16.msra.mxu0 %v3691
        %8576 = vmatpush.bf16.msra.mxu0 %v3690
        %8577 = vmatpush.bf16.msra.mxu0 %v3689
        %8578 = vmatpush.bf16.msra.mxu0 %v3688
        %8579 = vmatpush.bf16.msra.mxu0 %v3687
        %8580 = vmatpush.bf16.msra.mxu0 %v3686
        %8581 = vmatmul.bf16.gmra.mxu0 %v8327
        %v8582 = vpop.f32.mrf.mxu0
        %v8583 = vadd.f32 %v8570, %v8582
        %v8584 = vpop.f32.mrf.mxu0
        %8585 = vdwg.mxu0
        %8586 = vmatpush.bf16.msra.mxu0 %v3701
        %8587 = vmatpush.bf16.msra.mxu0 %v3700
        %8588 = vmatpush.bf16.msra.mxu0 %v3699
        %8589 = vmatpush.bf16.msra.mxu0 %v3698
        %8590 = vmatpush.bf16.msra.mxu0 %v3697
        %8591 = vmatpush.bf16.msra.mxu0 %v3696
        %8592 = vmatpush.bf16.msra.mxu0 %v3695
        %8593 = vmatpush.bf16.msra.mxu0 %v3694
        %8594 = vmatmul.bf16.gmra.mxu0 %v8328
        %v8595 = vpop.f32.mrf.mxu0
        %v8596 = vadd.f32 %v8583, %v8595
        %v8597 = vpop.f32.mrf.mxu0
        %8598 = vdwg.mxu0
        %8599 = vmatpush.bf16.msra.mxu0 %v3709
        %8600 = vmatpush.bf16.msra.mxu0 %v3708
        %8601 = vmatpush.bf16.msra.mxu0 %v3707
        %8602 = vmatpush.bf16.msra.mxu0 %v3706
        %8603 = vmatpush.bf16.msra.mxu0 %v3705
        %8604 = vmatpush.bf16.msra.mxu0 %v3704
        %8605 = vmatpush.bf16.msra.mxu0 %v3703
        %8606 = vmatpush.bf16.msra.mxu0 %v3702
        %8607 = vmatmul.bf16.gmra.mxu0 %v8329
        %v8608 = vpop.f32.mrf.mxu0
        %v8609 = vadd.f32 %v8596, %v8608
        %v8610 = vpop.f32.mrf.mxu0
        %8611 = vdwg.mxu0
        %8612 = vmatpush.bf16.msra.mxu0 %v3717
        %8613 = vmatpush.bf16.msra.mxu0 %v3716
        %8614 = vmatpush.bf16.msra.mxu0 %v3715
        %8615 = vmatpush.bf16.msra.mxu0 %v3714
        %8616 = vmatpush.bf16.msra.mxu0 %v3713
        %8617 = vmatpush.bf16.msra.mxu0 %v3712
        %8618 = vmatpush.bf16.msra.mxu0 %v3711
        %8619 = vmatpush.bf16.msra.mxu0 %v3710
        %8620 = vmatmul.bf16.gmra.mxu0 %v8330
        %v8621 = vpop.f32.mrf.mxu0
        %v8622 = vadd.f32 %v8609, %v8621
        %v8623 = vpop.f32.mrf.mxu0
        %8624 = vdwg.mxu0
        %8625 = vmatpush.bf16.msra.mxu0 %v3725
        %8626 = vmatpush.bf16.msra.mxu0 %v3724
        %8627 = vmatpush.bf16.msra.mxu0 %v3723
        %8628 = vmatpush.bf16.msra.mxu0 %v3722
        %8629 = vmatpush.bf16.msra.mxu0 %v3721
        %8630 = vmatpush.bf16.msra.mxu0 %v3720
        %8631 = vmatpush.bf16.msra.mxu0 %v3719
        %8632 = vmatpush.bf16.msra.mxu0 %v3718
        %8633 = vmatmul.bf16.gmra.mxu0 %v8331
        %v8634 = vpop.f32.mrf.mxu0
        %v8635 = vadd.f32 %v8622, %v8634
        %v8636 = vpop.f32.mrf.mxu0
        %8637 = vdwg.mxu0
        %8638 = vmatpush.bf16.msra.mxu0 %v3733
        %8639 = vmatpush.bf16.msra.mxu0 %v3732
        %8640 = vmatpush.bf16.msra.mxu0 %v3731
        %8641 = vmatpush.bf16.msra.mxu0 %v3730
        %8642 = vmatpush.bf16.msra.mxu0 %v3729
        %8643 = vmatpush.bf16.msra.mxu0 %v3728
        %8644 = vmatpush.bf16.msra.mxu0 %v3727
        %8645 = vmatpush.bf16.msra.mxu0 %v3726
        %8646 = vmatmul.bf16.gmra.mxu0 %v8332
        %v8647 = vpop.f32.mrf.mxu0
        %v8648 = vadd.f32 %v8635, %v8647
        %v8649 = vpop.f32.mrf.mxu0
        %8650 = vdwg.mxu0
        %8651 = vmatpush.bf16.msra.mxu0 %v3741
        %8652 = vmatpush.bf16.msra.mxu0 %v3740
        %8653 = vmatpush.bf16.msra.mxu0 %v3739
        %8654 = vmatpush.bf16.msra.mxu0 %v3738
        %8655 = vmatpush.bf16.msra.mxu0 %v3737
        %8656 = vmatpush.bf16.msra.mxu0 %v3736
        %8657 = vmatpush.bf16.msra.mxu0 %v3735
        %8658 = vmatpush.bf16.msra.mxu0 %v3734
        %8659 = vmatmul.bf16.gmra.mxu0 %v8333
        %v8660 = vpop.f32.mrf.mxu0
        %v8661 = vadd.f32 %v8648, %v8660
        %v8662 = vpop.f32.mrf.mxu0
        %8663 = vdwg.mxu0
        %8664 = vmatpush.bf16.msra.mxu0 %v3749
        %8665 = vmatpush.bf16.msra.mxu0 %v3748
        %8666 = vmatpush.bf16.msra.mxu0 %v3747
        %8667 = vmatpush.bf16.msra.mxu0 %v3746
        %8668 = vmatpush.bf16.msra.mxu0 %v3745
        %8669 = vmatpush.bf16.msra.mxu0 %v3744
        %8670 = vmatpush.bf16.msra.mxu0 %v3743
        %8671 = vmatpush.bf16.msra.mxu0 %v3742
        %8672 = vmatmul.bf16.gmra.mxu0 %v8334
        %v8673 = vpop.f32.mrf.mxu0
        %v8674 = vadd.f32 %v8661, %v8673
        %v8675 = vpop.f32.mrf.mxu0
        %8676 = vdwg.mxu0
        %8677 = vmatpush.bf16.msra.mxu0 %v3757
        %8678 = vmatpush.bf16.msra.mxu0 %v3756
        %8679 = vmatpush.bf16.msra.mxu0 %v3755
        %8680 = vmatpush.bf16.msra.mxu0 %v3754
        %8681 = vmatpush.bf16.msra.mxu0 %v3753
        %8682 = vmatpush.bf16.msra.mxu0 %v3752
        %8683 = vmatpush.bf16.msra.mxu0 %v3751
        %8684 = vmatpush.bf16.msra.mxu0 %v3750
        %8685 = vmatmul.bf16.gmra.mxu0 %v8335
        %v8686 = vpop.f32.mrf.mxu0
        %v8687 = vadd.f32 %v8674, %v8686
        %v8688 = vpop.f32.mrf.mxu0
        %8689 = vdwg.mxu0
        %8690 = vmatpush.bf16.msra.mxu0 %v3765
        %8691 = vmatpush.bf16.msra.mxu0 %v3764
        %8692 = vmatpush.bf16.msra.mxu0 %v3763
        %8693 = vmatpush.bf16.msra.mxu0 %v3762
        %8694 = vmatpush.bf16.msra.mxu0 %v3761
        %8695 = vmatpush.bf16.msra.mxu0 %v3760
        %8696 = vmatpush.bf16.msra.mxu0 %v3759
        %8697 = vmatpush.bf16.msra.mxu0 %v3758
        %8698 = vmatmul.bf16.gmra.mxu0 %v8336
        %v8699 = vpop.f32.mrf.mxu0
        %v8700 = vadd.f32 %v8687, %v8699
        %v8701 = vpop.f32.mrf.mxu0
        %8702 = vdwg.mxu0
        %8703 = vmatpush.bf16.msra.mxu0 %v3773
        %8704 = vmatpush.bf16.msra.mxu0 %v3772
        %8705 = vmatpush.bf16.msra.mxu0 %v3771
        %8706 = vmatpush.bf16.msra.mxu0 %v3770
        %8707 = vmatpush.bf16.msra.mxu0 %v3769
        %8708 = vmatpush.bf16.msra.mxu0 %v3768
        %8709 = vmatpush.bf16.msra.mxu0 %v3767
        %8710 = vmatpush.bf16.msra.mxu0 %v3766
        %8711 = vmatmul.bf16.gmra.mxu0 %v8337
        %v8712 = vpop.f32.mrf.mxu0
        %v8713 = vadd.f32 %v8700, %v8712
        %v8714 = vpop.f32.mrf.mxu0
        %8715 = vdwg.mxu0
        %8716 = vmatpush.bf16.msra.mxu0 %v3781
        %8717 = vmatpush.bf16.msra.mxu0 %v3780
        %8718 = vmatpush.bf16.msra.mxu0 %v3779
        %8719 = vmatpush.bf16.msra.mxu0 %v3778
        %8720 = vmatpush.bf16.msra.mxu0 %v3777
        %8721 = vmatpush.bf16.msra.mxu0 %v3776
        %8722 = vmatpush.bf16.msra.mxu0 %v3775
        %8723 = vmatpush.bf16.msra.mxu0 %v3774
        %8724 = vmatmul.bf16.gmra.mxu0 %v8338
        %v8725 = vpop.f32.mrf.mxu0
        %v8726 = vadd.f32 %v8713, %v8725
        %v8727 = vpop.f32.mrf.mxu0
        %8728 = vdwg.mxu0
        %8729 = vmatpush.bf16.msra.mxu0 %v3789
        %8730 = vmatpush.bf16.msra.mxu0 %v3788
        %8731 = vmatpush.bf16.msra.mxu0 %v3787
        %8732 = vmatpush.bf16.msra.mxu0 %v3786
        %8733 = vmatpush.bf16.msra.mxu0 %v3785
        %8734 = vmatpush.bf16.msra.mxu0 %v3784
        %8735 = vmatpush.bf16.msra.mxu0 %v3783
        %8736 = vmatpush.bf16.msra.mxu0 %v3782
        %8737 = vmatmul.bf16.gmra.mxu0 %v8339
        %v8738 = vpop.f32.mrf.mxu0
        %v8739 = vadd.f32 %v8726, %v8738
        %v8740 = vpop.f32.mrf.mxu0
        %8741 = vdwg.mxu0
        %8742 = vmatpush.bf16.msra.mxu0 %v3797
        %8743 = vmatpush.bf16.msra.mxu0 %v3796
        %8744 = vmatpush.bf16.msra.mxu0 %v3795
        %8745 = vmatpush.bf16.msra.mxu0 %v3794
        %8746 = vmatpush.bf16.msra.mxu0 %v3793
        %8747 = vmatpush.bf16.msra.mxu0 %v3792
        %8748 = vmatpush.bf16.msra.mxu0 %v3791
        %8749 = vmatpush.bf16.msra.mxu0 %v3790
        %8750 = vmatmul.bf16.gmra.mxu0 %v8340
        %v8751 = vpop.f32.mrf.mxu0
        %v8752 = vadd.f32 %v8739, %v8751
        %v8753 = vpop.f32.mrf.mxu0
        %8754 = vdwg.mxu0
        %8755 = vmatpush.bf16.msra.mxu0 %v3805
        %8756 = vmatpush.bf16.msra.mxu0 %v3804
        %8757 = vmatpush.bf16.msra.mxu0 %v3803
        %8758 = vmatpush.bf16.msra.mxu0 %v3802
        %8759 = vmatpush.bf16.msra.mxu0 %v3801
        %8760 = vmatpush.bf16.msra.mxu0 %v3800
        %8761 = vmatpush.bf16.msra.mxu0 %v3799
        %8762 = vmatpush.bf16.msra.mxu0 %v3798
        %8763 = vmatmul.bf16.gmra.mxu0 %v8341
        %v8764 = vpop.f32.mrf.mxu0
        %v8765 = vadd.f32 %v8752, %v8764
        %v8766 = vpop.f32.mrf.mxu0
        %8767 = vdwg.mxu0
        %8768 = vmatpush.bf16.msra.mxu0 %v3813
        %8769 = vmatpush.bf16.msra.mxu0 %v3812
        %8770 = vmatpush.bf16.msra.mxu0 %v3811
        %8771 = vmatpush.bf16.msra.mxu0 %v3810
        %8772 = vmatpush.bf16.msra.mxu0 %v3809
        %8773 = vmatpush.bf16.msra.mxu0 %v3808
        %8774 = vmatpush.bf16.msra.mxu0 %v3807
        %8775 = vmatpush.bf16.msra.mxu0 %v3806
        %8776 = vmatmul.bf16.gmra.mxu0 %v8342
        %v8777 = vpop.f32.mrf.mxu0
        %v8778 = vadd.f32 %v8765, %v8777
        %v8779 = vpop.f32.mrf.mxu0
        %8780 = vdwg.mxu0
        %v8781 = vadd.f32 %v8778, %v4487
        %v8782 = vtanh.pop %v8781
        %8783 = vst.msk [vmem:[#allocation3] sm:$0xff] %vm311, %v8782
        %s8784 = sld [smem:[#allocation5 + %s6670]]
        %v8785 = vld [vmem:[#allocation3] sm:$0x1]
        %s8786 = scalar_lea.vmem %s303, %s8784 [#allocation10]
        %8787 = vst.msk [vmem:[%s8786] sm:$0x1] %vm840, %v8785
        %s8788 = sld [smem:[#allocation5 + %s6683]]
        %v8789 = vld [vmem:[#allocation3 + $0x1] sm:$0x1]
        %s8790 = scalar_lea.vmem %s303, %s8788 [#allocation10]
        %8791 = vst.msk [vmem:[%s8790] sm:$0x1] %vm840, %v8789
        %s8792 = sld [smem:[#allocation5 + %s6696]]
        %v8793 = vld [vmem:[#allocation3 + $0x2] sm:$0x1]
        %s8794 = scalar_lea.vmem %s303, %s8792 [#allocation10]
        %8795 = vst.msk [vmem:[%s8794] sm:$0x1] %vm840, %v8793
        %s8796 = sld [smem:[#allocation5 + %s6709]]
        %v8797 = vld [vmem:[#allocation3 + $0x3] sm:$0x1]
        %s8798 = scalar_lea.vmem %s303, %s8796 [#allocation10]
        %8799 = vst.msk [vmem:[%s8798] sm:$0x1] %vm840, %v8797
        %s8800 = sld [smem:[#allocation5 + %s6722]]
        %v8801 = vld [vmem:[#allocation3 + $0x4] sm:$0x1]
        %s8802 = scalar_lea.vmem %s303, %s8800 [#allocation10]
        %8803 = vst.msk [vmem:[%s8802] sm:$0x1] %vm840, %v8801
        %s8804 = sld [smem:[#allocation5 + %s6735]]
        %v8805 = vld [vmem:[#allocation3 + $0x5] sm:$0x1]
        %s8806 = scalar_lea.vmem %s303, %s8804 [#allocation10]
        %8807 = vst.msk [vmem:[%s8806] sm:$0x1] %vm840, %v8805
        %s8808 = sld [smem:[#allocation5 + %s6748]]
        %v8809 = vld [vmem:[#allocation3 + $0x6] sm:$0x1]
        %s8810 = scalar_lea.vmem %s303, %s8808 [#allocation10]
        %8811 = vst.msk [vmem:[%s8810] sm:$0x1] %vm840, %v8809
        %s8812 = sld [smem:[#allocation5 + %s6761]]
        %v8813 = vld [vmem:[#allocation3 + $0x7] sm:$0x1]
        %s8814 = scalar_lea.vmem %s303, %s8812 [#allocation10]
        %8815 = vst.msk [vmem:[%s8814] sm:$0x1] %vm840, %v8813
        %v8816 = vld [vmem:[%s303] sm:$0xff]
        %v8817 = vld [vmem:[%s303 + $0x8] sm:$0xff]
        %v8818 = vld [vmem:[%s7] sm:$0xff]
        %v8819 = vld [vmem:[%s7 + $0x8] sm:$0xff]
        %v8820 = vld [vmem:[%s7 + $0x10] sm:$0xff]
        %v8821 = vld [vmem:[%s7 + $0x18] sm:$0xff]
        %v8822 = vld [vmem:[%s8] sm:$0x1]
        %v8824 = vperm.slane %v8822, 0
        %v8827 = vsel %vm311, %v8816, 0
        %v8830 = vsel %vm311, %v8817, 0
        %8832 = vmatpush.msra.mxu0 0.0
        %8833 = vmatpush.msra.mxu0 0.0
        %8834 = vmatpush.msra.mxu0 0.0
        %8835 = vmatpush.msra.mxu0 0.0
        %8836 = vmatpush.msra.mxu0 0.0
        %8837 = vmatpush.msra.mxu0 0.0
        %8838 = vmatpush.msra.mxu0 0.0
        %8839 = vmatpush.msra.mxu0 0.0
        %8840 = vmatpush.msra.mxu0 0.0
        %8841 = vmatpush.msra.mxu0 0.0
        %8842 = vmatpush.msra.mxu0 0.0
        %8843 = vmatpush.msra.mxu0 0.0
        %8844 = vmatpush.msra.mxu0 %v8821
        %8845 = vmatpush.msra.mxu0 %v8820
        %8846 = vmatpush.msra.mxu0 %v8819
        %8847 = vmatpush.msra.mxu0 %v8818
        %8848 = vmatmul.f32.gmra.mxu0 %v8827
        %v8849 = vpop.f32.mrf.mxu0
        %v8850 = vadd.f32 %v8824, %v8849
        %8851 = vmatmul.f32.gmra.mxu0 %v8830
        %v8852 = vpop.f32.mrf.mxu0
        %v8853 = vadd.f32 %v8824, %v8852
        %8854 = vdwg.mxu0
        %8855 = vmax.xlane.f32.xlu0 %v8850
        %v8856 = vpop.xlane.xlu0 %8855
        %8857 = vmax.xlane.f32.xlu0 %v8853
        %v8858 = vpop.xlane.xlu0 %8857
        %v8859 = vsub.f32 %v8850, %v8856
        %v8860 = vsub.f32 %v8853, %v8858
        %v8861 = vmul.f32 %v8859, 1.442695
        %v8862 = vpow.pop %v8861
        %v8863 = vmul.f32 %v8860, 1.442695
        %v8864 = vpow.pop %v8863
        %8865 = vadd.xlane.f32.xlu0 %v8862
        %v8866 = vpop.xlane.xlu0 %8865
        %8867 = vadd.xlane.f32.xlu0 %v8864
        %v8868 = vpop.xlane.xlu0 %8867
        %v8869 = vlog2.pop %v8866
        %v8870 = vmul.f32 %v8869, 0.6931472
        %v8871 = vlog2.pop %v8868
        %v8872 = vmul.f32 %v8871, 0.6931472
        %v8873 = vsub.f32 %v8859, %v8870
        %v8874 = vsub.f32 %v8860, %v8872
        %8875 = vst [vmem:[%s296] sm:$0xff] %v8873
        %8876 = vst [vmem:[%s296 + $0x8] sm:$0xff] %v8874
        %s8877 = sand.u32 %s185, 1
        %s8878 = scalar_lea.sflag [#allocation9], %s8877
        %s8879 = sand.u32 %s185, 1
        %s8880 = smul.addr %s8879, 16
        %s8881 = scalar_lea.vmem [#allocation8], %s8880
        %s8882 = sand.u32 %s211, 1
        %s8883 = scalar_lea.sflag [#allocation11], %s8882
        %s8884 = sand.u32 %s211, 1
        %s8885 = smul.addr %s8884, 16
        %s8886 = scalar_lea.vmem [#allocation10], %s8885
        // Predicated region
        $region45: #{tpu_custom_call.1} parent=43 // pred_check
          %p8887 = pneg %p195
        $region46: #{tpu_custom_call.1} parent=43 // pred_check_branch
          %8889 = sbr.rel (%p8887) target = $region48
        $region47: #{tpu_custom_call.1} parent=43 // pred_region
          %8891 = vsyncadd %s8878, 0
          %s8892 = smul.addr %s46, 2
          %s8893 = smul.addr %s8892, 8
          %s8894 = scalar_lea.hbm %s9, %s8893
          %s8895 = sshll.u32 %s8881, 4
          %s8896 = int_to_ptr.vmem [resolvable:$true] %s8895
          %s8897 = sshll.u32 %s8894, 4
          %s8898 = int_to_ptr.hbm [resolvable:$true] %s8897
          %8903 = dma.vmem_to_hbm [thread:$0]  %s8896, 256, %s8898, %s8878, 128, 128, 8
        $region48: #{tpu_custom_call.1} parent=43 // pred_fallthru
          _
        // Predicated region
        $region49: #{tpu_custom_call.1} parent=43 // pred_check
          %p8904 = pneg %p221
        $region50: #{tpu_custom_call.1} parent=43 // pred_check_branch
          %8906 = sbr.rel (%p8904) target = $region52
        $region51: #{tpu_custom_call.1} parent=43 // pred_region
          %8908 = vsyncadd %s8883, 0
          %s8909 = smul.addr %s46, 2
          %s8910 = smul.addr %s8909, 8
          %s8911 = scalar_lea.hbm %s10, %s8910
          %s8912 = sshll.u32 %s8886, 4
          %s8913 = int_to_ptr.vmem [resolvable:$true] %s8912
          %s8914 = sshll.u32 %s8911, 4
          %s8915 = int_to_ptr.hbm [resolvable:$true] %s8914
          %8920 = dma.vmem_to_hbm [thread:$0]  %s8913, 256, %s8915, %s8883, 128, 128, 8
        $region52: #{tpu_custom_call.1} parent=43 // pred_fallthru
          _
      $region44: #{tpu_custom_call.1} parent=5 // pred_fallthru
        _
      %p8921 = scmp.le.s32.totalorder 2, %s41
      // Predicated region
      $region53: #{tpu_custom_call.1} parent=5 // pred_check
        %p8922 = pneg %p8921
      $region54: #{tpu_custom_call.1} parent=5 // pred_check_branch
        %8924 = sbr.rel (%p8922) target = $region56
      $region55: #{tpu_custom_call.1} parent=5 // pred_region
        %s8925 = ssub.s32 %s41, 2
        // Predicated region
        $region57: #{tpu_custom_call.1} parent=55 // pred_check
          %p8926 = pneg %p201
        $region58: #{tpu_custom_call.1} parent=55 // pred_check_branch
          %8928 = sbr.rel (%p8926) target = $region60
        $region59: #{tpu_custom_call.1} parent=55 // pred_region
          %s8929 = sand.u32 %s186, 1
          %s8930 = scalar_lea.sflag [#allocation9], %s8929
          %s8931 = sand.u32 %s186, 1
          %s8932 = smul.addr %s8931, 16
          %s8933 = scalar_lea.vmem [#allocation8], %s8932
          %8935 = dma.done %s8930, 256
        $region60: #{tpu_custom_call.1} parent=55 // pred_fallthru
          _
        // Predicated region
        $region61: #{tpu_custom_call.1} parent=55 // pred_check
          %p8936 = pneg %p227
        $region62: #{tpu_custom_call.1} parent=55 // pred_check_branch
          %8938 = sbr.rel (%p8936) target = $region64
        $region63: #{tpu_custom_call.1} parent=55 // pred_region
          %s8939 = sand.u32 %s212, 1
          %s8940 = scalar_lea.sflag [#allocation11], %s8939
          %s8941 = sand.u32 %s212, 1
          %s8942 = smul.addr %s8941, 16
          %s8943 = scalar_lea.vmem [#allocation10], %s8942
          %8945 = dma.done %s8940, 256
        $region64: #{tpu_custom_call.1} parent=55 // pred_fallthru
          _
      $region56: #{tpu_custom_call.1} parent=5 // pred_fallthru
        _
    $region6: #{tpu_custom_call.1} parent=1 // loop_footer
      %s45 = sadd.s32 1, %s41
    $region7: #{tpu_custom_call.1} parent=1 // loop_footer_branch
      %40 = sbr.rel target = $region3
    $region8: #{tpu_custom_call.1} parent=1 // loop_exit
      _
    %8946 = vsyncpa [#allocation9], 1
    %s8947 = scalar_lea.sflag [#allocation9], 1
    %8948 = vsyncpa %s8947, 1
    %8949 = vsyncpa [#allocation11], 1
    %s8950 = scalar_lea.sflag [#allocation11], 1
    %8951 = vsyncpa %s8950, 1

</llo_original>
